<compile_context>
chip_gen: v5e
topology: v5e:2x2
jax: 0.10.0
libtpu: 0.0.40
codegen_flags: <defaults>
</compile_context>

<pallas_src>
import jax
import jax.numpy as jnp
from jax.experimental import pallas as pl
from jax.experimental.pallas import tpu as pltpu


# ----------------------------- fused kernel ---------------------------------
def vgg_fused_kernel(x_ref, w1_ref, b1_ref, w2_ref, b2_ref,
                     wf1_ref, bf1_ref, wf2_ref, bf2_ref, wf3_ref, bf3_ref,
                     pred_ref, feat_ref):
    # x:   [bt, H, W, 1]           (NHWC, Cin = 1)
    # w1:  [3, 3, 1, C1]  b1: [1, C1]
    # w2:  [9*C1, C2]     b2: [1, C2]          (im2col layout, rows = (kh,kw,cin))
    # wf1: [Hp*Wp*C2, 120] (rows in HWC order)  wf2: [120, 84]  wf3: [84, 10]
    bt, H, W, _ = x_ref.shape
    C1 = w1_ref.shape[-1]
    C2 = w2_ref.shape[-1]
    H1, W1 = H - 2, W - 2          # after conv1 (valid, stride 1)
    H2, W2 = H1 - 2, W1 - 2        # after conv2
    Hp, Wp = H2 // 2, W2 // 2      # after 2x2 max-pool

    # ---- conv1 + ReLU (Cin == 1: cheap VPU tap loop, f32) ----
    x = x_ref[...]
    w1 = w1_ref[...]
    b1 = b1_ref[...]                               # hoisted out of the tap loop
    acc = jnp.zeros((bt, H1, W1, C1), jnp.float32)
    for kh in range(3):
        for kw in range(3):
            # (bt,H1,W1,1) * (1,C1) -> (bt,H1,W1,C1)
            acc = acc + x[:, kh:kh + H1, kw:kw + W1, :] * w1[kh, kw]
    h1 = jnp.maximum(acc + b1, 0.0)                # [bt, H1, W1, C1]

    # ---- conv2 + ReLU as ONE im2col matmul: [bt*H2*W2, 9*C1] @ [9*C1, C2] ----
    taps = [h1[:, kh:kh + H2, kw:kw + W2, :].reshape(bt * H2 * W2, C1)
            for kh in range(3) for kw in range(3)]
    p2 = jnp.concatenate(taps, axis=-1)            # [bt*H2*W2, 9*C1]
    h2 = jnp.dot(p2, w2_ref[...], preferred_element_type=jnp.float32)
    h2 = jnp.maximum(h2 + b2_ref[...], 0.0)
    h2 = h2.reshape(bt, H2, W2, C2)                # last dim unchanged -> cheap

    # ---- 2x2 max-pool + HWC flatten, fully in-kernel ----
    # pool along H via a leading-dim split (layout-preserving reshape)
    h2r = h2.reshape(bt, Hp, 2, W2, C2)
    hmax = jnp.maximum(h2r[:, :, 0], h2r[:, :, 1])  # [bt, Hp, W2, C2]
    # pool along W and flatten (h, w, c order) in one pass: 36 columns of
    # shape (bt, C2) lane-concatenated -> [bt, Hp*Wp*C2]
    cols = []
    for hh in range(Hp):
        for ww in range(Wp):
            cols.append(jnp.maximum(hmax[:, hh, 2 * ww, :],
                                    hmax[:, hh, 2 * ww + 1, :]))
    flat = jnp.concatenate(cols, axis=-1)           # [bt, Hp*Wp*C2]

    # ---- MLP head ----
    h = jnp.dot(flat, wf1_ref[...], preferred_element_type=jnp.float32)
    h = jnp.maximum(h + bf1_ref[...], 0.0)
    # TODO(synk): nn.Dropout(0.5) is identity in eval mode; training-mode RNG
    # dropout mask is not implemented.
    f = jnp.dot(h, wf2_ref[...], preferred_element_type=jnp.float32)
    f = jnp.maximum(f + bf2_ref[...], 0.0)
    feat_ref[...] = f
    pred_ref[...] = (jnp.dot(f, wf3_ref[...], preferred_element_type=jnp.float32)
                     + bf3_ref[...])


# ------------------------------ wrapper --------------------------------------
def _pick_batch_tile(B):
    # Whole batch for toy sizes; for larger B pick a multiple of 8 that divides
    # B.  Keep tiles modest so they also fit v7x's smaller (64 MiB) VMEM.
    if B <= 512:
        return B
    for bt in (512, 256, 128, 64, 32, 16, 8):
        if B % bt == 0:
            return bt
    return B


def cnn_forward(x_nchw, p):
    B, C, H, W = x_nchw.shape
    assert C == 1
    # NCHW -> NHWC is a pure (free) reshape when Cin == 1: no transpose op.
    x = x_nchw.reshape(B, H, W, 1)

    bt = _pick_batch_tile(B)
    assert B % bt == 0  # TODO(synk): pad ragged batches if needed
    grid = (B // bt,)

    weights = [p["w_c1"], p["b_c1"], p["w_c2"], p["b_c2"],
               p["w_f1"], p["b_f1"], p["w_f2"], p["b_f2"],
               p["w_f3"], p["b_f3"]]

    def const_map(ndim):
        return lambda i: (0,) * ndim

    in_specs = [pl.BlockSpec((bt, H, W, 1), lambda i: (i, 0, 0, 0))]
    # weights: full-shape blocks with constant index_maps -> stay resident
    in_specs += [pl.BlockSpec(w.shape, const_map(w.ndim)) for w in weights]

    out_specs = (pl.BlockSpec((bt, 10), lambda i: (i, 0)),
                 pl.BlockSpec((bt, 84), lambda i: (i, 0)))

    pred, feature = pl.pallas_call(
        vgg_fused_kernel,
        out_shape=(jax.ShapeDtypeStruct((B, 10), jnp.float32),
                   jax.ShapeDtypeStruct((B, 84), jnp.float32)),
        grid=grid,
        in_specs=in_specs,
        out_specs=out_specs,
        compiler_params=pltpu.CompilerParams(
            dimension_semantics=("parallel",),        # v7x: 2 TCs split batch
            vmem_limit_bytes=32 * 1024 * 1024),
    )(x, *weights)
    return pred, feature


# ------------------------------ parameters -----------------------------------
def init_params(key):
    ks = jax.random.split(key, 10)

    def u(k, shape, fan_in):
        bound = 1.0 / jnp.sqrt(jnp.float32(fan_in))
        return jax.random.uniform(k, shape, jnp.float32, -bound, bound)

    # conv1: torch layout [Cout,Cin,KH,KW] -> [KH,KW,Cin,Cout]
    w_c1 = u(ks[0], (32, 1, 3, 3), 1 * 9).transpose(2, 3, 1, 0)
    b_c1 = u(ks[1], (1, 32), 1 * 9)
    # conv2: torch layout -> im2col matrix [(kh,kw,cin), cout] = [288, 32]
    w_c2 = u(ks[2], (32, 32, 3, 3), 32 * 9).transpose(2, 3, 1, 0).reshape(9 * 32, 32)
    b_c2 = u(ks[3], (1, 32), 32 * 9)
    # fc1: torch layout [out, in] with CHW input columns; permute rows to HWC
    # order (init-time, zero runtime cost) so the in-kernel NHWC flatten matches
    # torch's x.view(B, -1) on NCHW exactly.
    w_f1_t = u(ks[4], (120, 1152), 1152)                  # [out, c*36 + h*6 + w]
    w_f1 = (w_f1_t.reshape(120, 32, 6, 6)                 # [out, c, h, w]
                  .transpose(0, 2, 3, 1)                  # [out, h, w, c]
                  .reshape(120, 1152).T)                  # [h*192 + w*32 + c, out]
    b_f1 = u(ks[5], (1, 120), 1152)
    w_f2 = u(ks[6], (84, 120), 120).T
    b_f2 = u(ks[7], (1, 84), 120)
    w_f3 = u(ks[8], (10, 84), 84).T
    b_f3 = u(ks[9], (1, 10), 84)
    return dict(w_c1=w_c1, b_c1=b_c1, w_c2=w_c2, b_c2=b_c2,
                w_f1=w_f1, b_f1=b_f1, w_f2=w_f2, b_f2=b_f2,
                w_f3=w_f3, b_f3=b_f3)


if __name__ == "__main__":
    key = jax.random.PRNGKey(0)
    k_x, k_p = jax.random.split(key)
    # Linear(1152, 120) implies a 1x16x16 input (14 -> 12 -> pool -> 6x6x32).
    x = jax.random.normal(k_x, (2, 1, 16, 16), dtype=jnp.float32)
    params = init_params(k_p)

    pred, feature = jax.jit(cnn_forward)(x, params)
    jax.block_until_ready((pred, feature))

    assert pred.shape == (2, 10) and feature.shape == (2, 84)
    assert bool(jnp.all(jnp.isfinite(pred))) and bool(jnp.all(jnp.isfinite(feature)))
    print("KERNEL_OK")
</pallas_src>

<mosaic_0001>
module attributes {stable_mosaic.version = 11 : i64} {
  func.func @vgg_fused_kernel(%arg0: i32, %arg1: memref<2x16x16x1xf32, #tpu.memory_space<vmem>>, %arg2: memref<3x3x1x32xf32, #tpu.memory_space<vmem>>, %arg3: memref<1x32xf32, #tpu.memory_space<vmem>>, %arg4: memref<288x32xf32, #tpu.memory_space<vmem>>, %arg5: memref<1x32xf32, #tpu.memory_space<vmem>>, %arg6: memref<1152x120xf32, #tpu.memory_space<vmem>>, %arg7: memref<1x120xf32, #tpu.memory_space<vmem>>, %arg8: memref<120x84xf32, #tpu.memory_space<vmem>>, %arg9: memref<1x84xf32, #tpu.memory_space<vmem>>, %arg10: memref<84x10xf32, #tpu.memory_space<vmem>>, %arg11: memref<1x10xf32, #tpu.memory_space<vmem>>, %arg12: memref<2x10xf32, #tpu.memory_space<vmem>>, %arg13: memref<2x84xf32, #tpu.memory_space<vmem>>) attributes {dimension_semantics = [#tpu.dimension_semantics<parallel>], iteration_bounds = array<i64: 1>, scalar_prefetch = 0 : i64, scratch_operands = 0 : i64, tpu.core_type = #tpu.core_type<tc>, window_params = [{transform_indices = @transform_0, window_bounds = array<i64: 2, 16, 16, 1>}, {pipeline_mode = #tpu.pipeline_mode<synchronous>, transform_indices = @transform_1, window_bounds = array<i64: 3, 3, 1, 32>}, {pipeline_mode = #tpu.pipeline_mode<synchronous>, transform_indices = @transform_2, window_bounds = array<i64: 1, 32>}, {pipeline_mode = #tpu.pipeline_mode<synchronous>, transform_indices = @transform_3, window_bounds = array<i64: 288, 32>}, {pipeline_mode = #tpu.pipeline_mode<synchronous>, transform_indices = @transform_4, window_bounds = array<i64: 1, 32>}, {pipeline_mode = #tpu.pipeline_mode<synchronous>, transform_indices = @transform_5, window_bounds = array<i64: 1152, 120>}, {pipeline_mode = #tpu.pipeline_mode<synchronous>, transform_indices = @transform_6, window_bounds = array<i64: 1, 120>}, {pipeline_mode = #tpu.pipeline_mode<synchronous>, transform_indices = @transform_7, window_bounds = array<i64: 120, 84>}, {pipeline_mode = #tpu.pipeline_mode<synchronous>, transform_indices = @transform_8, window_bounds = array<i64: 1, 84>}, {pipeline_mode = #tpu.pipeline_mode<synchronous>, transform_indices = @transform_9, window_bounds = array<i64: 84, 10>}, {pipeline_mode = #tpu.pipeline_mode<synchronous>, transform_indices = @transform_10, window_bounds = array<i64: 1, 10>}, {transform_indices = @transform_11, window_bounds = array<i64: 2, 10>}, {transform_indices = @transform_12, window_bounds = array<i64: 2, 84>}]} {
    %c0 = arith.constant 0 : index
    %c0_0 = arith.constant 0 : index
    %c0_1 = arith.constant 0 : index
    %c0_2 = arith.constant 0 : index
    %0 = vector.load %arg1[%c0, %c0_0, %c0_1, %c0_2] : memref<2x16x16x1xf32, #tpu.memory_space<vmem>>, vector<2x16x16x1xf32>
    %c0_3 = arith.constant 0 : index
    %c0_4 = arith.constant 0 : index
    %c0_5 = arith.constant 0 : index
    %c0_6 = arith.constant 0 : index
    %1 = vector.load %arg2[%c0_3, %c0_4, %c0_5, %c0_6] : memref<3x3x1x32xf32, #tpu.memory_space<vmem>>, vector<3x3x1x32xf32>
    %c0_7 = arith.constant 0 : index
    %c0_8 = arith.constant 0 : index
    %2 = vector.load %arg3[%c0_7, %c0_8] : memref<1x32xf32, #tpu.memory_space<vmem>>, vector<1x32xf32>
    %cst = arith.constant 0.000000e+00 : f32
    %3 = vector.broadcast %cst : f32 to vector<2x14x14x32xf32>
    %4 = vector.extract_strided_slice %0 {offsets = [0, 0, 0, 0], sizes = [2, 14, 14, 1], strides = [1, 1, 1, 1]} : vector<2x16x16x1xf32> to vector<2x14x14x1xf32>
    %5 = vector.extract_strided_slice %1 {offsets = [0, 0, 0, 0], sizes = [1, 1, 1, 32], strides = [1, 1, 1, 1]} : vector<3x3x1x32xf32> to vector<1x1x1x32xf32>
    %6 = vector.shape_cast %5 : vector<1x1x1x32xf32> to vector<1x32xf32>
    %7 = vector.shape_cast %6 : vector<1x32xf32> to vector<1x1x1x32xf32>
    %8 = vector.broadcast %4 : vector<2x14x14x1xf32> to vector<2x14x14x32xf32>
    %9 = vector.broadcast %7 : vector<1x1x1x32xf32> to vector<2x14x14x32xf32>
    %10 = arith.mulf %8, %9 : vector<2x14x14x32xf32>
    %11 = arith.addf %3, %10 : vector<2x14x14x32xf32>
    %12 = vector.extract_strided_slice %0 {offsets = [0, 0, 1, 0], sizes = [2, 14, 14, 1], strides = [1, 1, 1, 1]} : vector<2x16x16x1xf32> to vector<2x14x14x1xf32>
    %13 = vector.extract_strided_slice %1 {offsets = [0, 1, 0, 0], sizes = [1, 1, 1, 32], strides = [1, 1, 1, 1]} : vector<3x3x1x32xf32> to vector<1x1x1x32xf32>
    %14 = vector.shape_cast %13 : vector<1x1x1x32xf32> to vector<1x32xf32>
    %15 = vector.shape_cast %14 : vector<1x32xf32> to vector<1x1x1x32xf32>
    %16 = vector.broadcast %12 : vector<2x14x14x1xf32> to vector<2x14x14x32xf32>
    %17 = vector.broadcast %15 : vector<1x1x1x32xf32> to vector<2x14x14x32xf32>
    %18 = arith.mulf %16, %17 : vector<2x14x14x32xf32>
    %19 = arith.addf %11, %18 : vector<2x14x14x32xf32>
    %20 = vector.extract_strided_slice %0 {offsets = [0, 0, 2, 0], sizes = [2, 14, 14, 1], strides = [1, 1, 1, 1]} : vector<2x16x16x1xf32> to vector<2x14x14x1xf32>
    %21 = vector.extract_strided_slice %1 {offsets = [0, 2, 0, 0], sizes = [1, 1, 1, 32], strides = [1, 1, 1, 1]} : vector<3x3x1x32xf32> to vector<1x1x1x32xf32>
    %22 = vector.shape_cast %21 : vector<1x1x1x32xf32> to vector<1x32xf32>
    %23 = vector.shape_cast %22 : vector<1x32xf32> to vector<1x1x1x32xf32>
    %24 = vector.broadcast %20 : vector<2x14x14x1xf32> to vector<2x14x14x32xf32>
    %25 = vector.broadcast %23 : vector<1x1x1x32xf32> to vector<2x14x14x32xf32>
    %26 = arith.mulf %24, %25 : vector<2x14x14x32xf32>
    %27 = arith.addf %19, %26 : vector<2x14x14x32xf32>
    %28 = vector.extract_strided_slice %0 {offsets = [0, 1, 0, 0], sizes = [2, 14, 14, 1], strides = [1, 1, 1, 1]} : vector<2x16x16x1xf32> to vector<2x14x14x1xf32>
    %29 = vector.extract_strided_slice %1 {offsets = [1, 0, 0, 0], sizes = [1, 1, 1, 32], strides = [1, 1, 1, 1]} : vector<3x3x1x32xf32> to vector<1x1x1x32xf32>
    %30 = vector.shape_cast %29 : vector<1x1x1x32xf32> to vector<1x32xf32>
    %31 = vector.shape_cast %30 : vector<1x32xf32> to vector<1x1x1x32xf32>
    %32 = vector.broadcast %28 : vector<2x14x14x1xf32> to vector<2x14x14x32xf32>
    %33 = vector.broadcast %31 : vector<1x1x1x32xf32> to vector<2x14x14x32xf32>
    %34 = arith.mulf %32, %33 : vector<2x14x14x32xf32>
    %35 = arith.addf %27, %34 : vector<2x14x14x32xf32>
    %36 = vector.extract_strided_slice %0 {offsets = [0, 1, 1, 0], sizes = [2, 14, 14, 1], strides = [1, 1, 1, 1]} : vector<2x16x16x1xf32> to vector<2x14x14x1xf32>
    %37 = vector.extract_strided_slice %1 {offsets = [1, 1, 0, 0], sizes = [1, 1, 1, 32], strides = [1, 1, 1, 1]} : vector<3x3x1x32xf32> to vector<1x1x1x32xf32>
    %38 = vector.shape_cast %37 : vector<1x1x1x32xf32> to vector<1x32xf32>
    %39 = vector.shape_cast %38 : vector<1x32xf32> to vector<1x1x1x32xf32>
    %40 = vector.broadcast %36 : vector<2x14x14x1xf32> to vector<2x14x14x32xf32>
    %41 = vector.broadcast %39 : vector<1x1x1x32xf32> to vector<2x14x14x32xf32>
    %42 = arith.mulf %40, %41 : vector<2x14x14x32xf32>
    %43 = arith.addf %35, %42 : vector<2x14x14x32xf32>
    %44 = vector.extract_strided_slice %0 {offsets = [0, 1, 2, 0], sizes = [2, 14, 14, 1], strides = [1, 1, 1, 1]} : vector<2x16x16x1xf32> to vector<2x14x14x1xf32>
    %45 = vector.extract_strided_slice %1 {offsets = [1, 2, 0, 0], sizes = [1, 1, 1, 32], strides = [1, 1, 1, 1]} : vector<3x3x1x32xf32> to vector<1x1x1x32xf32>
    %46 = vector.shape_cast %45 : vector<1x1x1x32xf32> to vector<1x32xf32>
    %47 = vector.shape_cast %46 : vector<1x32xf32> to vector<1x1x1x32xf32>
    %48 = vector.broadcast %44 : vector<2x14x14x1xf32> to vector<2x14x14x32xf32>
    %49 = vector.broadcast %47 : vector<1x1x1x32xf32> to vector<2x14x14x32xf32>
    %50 = arith.mulf %48, %49 : vector<2x14x14x32xf32>
    %51 = arith.addf %43, %50 : vector<2x14x14x32xf32>
    %52 = vector.extract_strided_slice %0 {offsets = [0, 2, 0, 0], sizes = [2, 14, 14, 1], strides = [1, 1, 1, 1]} : vector<2x16x16x1xf32> to vector<2x14x14x1xf32>
    %53 = vector.extract_strided_slice %1 {offsets = [2, 0, 0, 0], sizes = [1, 1, 1, 32], strides = [1, 1, 1, 1]} : vector<3x3x1x32xf32> to vector<1x1x1x32xf32>
    %54 = vector.shape_cast %53 : vector<1x1x1x32xf32> to vector<1x32xf32>
    %55 = vector.shape_cast %54 : vector<1x32xf32> to vector<1x1x1x32xf32>
    %56 = vector.broadcast %52 : vector<2x14x14x1xf32> to vector<2x14x14x32xf32>
    %57 = vector.broadcast %55 : vector<1x1x1x32xf32> to vector<2x14x14x32xf32>
    %58 = arith.mulf %56, %57 : vector<2x14x14x32xf32>
    %59 = arith.addf %51, %58 : vector<2x14x14x32xf32>
    %60 = vector.extract_strided_slice %0 {offsets = [0, 2, 1, 0], sizes = [2, 14, 14, 1], strides = [1, 1, 1, 1]} : vector<2x16x16x1xf32> to vector<2x14x14x1xf32>
    %61 = vector.extract_strided_slice %1 {offsets = [2, 1, 0, 0], sizes = [1, 1, 1, 32], strides = [1, 1, 1, 1]} : vector<3x3x1x32xf32> to vector<1x1x1x32xf32>
    %62 = vector.shape_cast %61 : vector<1x1x1x32xf32> to vector<1x32xf32>
    %63 = vector.shape_cast %62 : vector<1x32xf32> to vector<1x1x1x32xf32>
    %64 = vector.broadcast %60 : vector<2x14x14x1xf32> to vector<2x14x14x32xf32>
    %65 = vector.broadcast %63 : vector<1x1x1x32xf32> to vector<2x14x14x32xf32>
    %66 = arith.mulf %64, %65 : vector<2x14x14x32xf32>
    %67 = arith.addf %59, %66 : vector<2x14x14x32xf32>
    %68 = vector.extract_strided_slice %0 {offsets = [0, 2, 2, 0], sizes = [2, 14, 14, 1], strides = [1, 1, 1, 1]} : vector<2x16x16x1xf32> to vector<2x14x14x1xf32>
    %69 = vector.extract_strided_slice %1 {offsets = [2, 2, 0, 0], sizes = [1, 1, 1, 32], strides = [1, 1, 1, 1]} : vector<3x3x1x32xf32> to vector<1x1x1x32xf32>
    %70 = vector.shape_cast %69 : vector<1x1x1x32xf32> to vector<1x32xf32>
    %71 = vector.shape_cast %70 : vector<1x32xf32> to vector<1x1x1x32xf32>
    %72 = vector.broadcast %68 : vector<2x14x14x1xf32> to vector<2x14x14x32xf32>
    %73 = vector.broadcast %71 : vector<1x1x1x32xf32> to vector<2x14x14x32xf32>
    %74 = arith.mulf %72, %73 : vector<2x14x14x32xf32>
    %75 = arith.addf %67, %74 : vector<2x14x14x32xf32>
    %76 = vector.shape_cast %2 : vector<1x32xf32> to vector<1x1x1x32xf32>
    %77 = vector.broadcast %76 : vector<1x1x1x32xf32> to vector<2x14x14x32xf32>
    %78 = arith.addf %75, %77 : vector<2x14x14x32xf32>
    %cst_9 = arith.constant 0.000000e+00 : f32
    %79 = vector.broadcast %cst_9 : f32 to vector<2x14x14x32xf32>
    %80 = arith.maximumf %78, %79 : vector<2x14x14x32xf32>
    %81 = vector.extract_strided_slice %80 {offsets = [0, 0, 0, 0], sizes = [2, 12, 12, 32], strides = [1, 1, 1, 1]} : vector<2x14x14x32xf32> to vector<2x12x12x32xf32>
    %82 = vector.shape_cast %81 : vector<2x12x12x32xf32> to vector<288x32xf32>
    %83 = vector.extract_strided_slice %80 {offsets = [0, 0, 1, 0], sizes = [2, 12, 12, 32], strides = [1, 1, 1, 1]} : vector<2x14x14x32xf32> to vector<2x12x12x32xf32>
    %84 = vector.shape_cast %83 : vector<2x12x12x32xf32> to vector<288x32xf32>
    %85 = vector.extract_strided_slice %80 {offsets = [0, 0, 2, 0], sizes = [2, 12, 12, 32], strides = [1, 1, 1, 1]} : vector<2x14x14x32xf32> to vector<2x12x12x32xf32>
    %86 = vector.shape_cast %85 : vector<2x12x12x32xf32> to vector<288x32xf32>
    %87 = vector.extract_strided_slice %80 {offsets = [0, 1, 0, 0], sizes = [2, 12, 12, 32], strides = [1, 1, 1, 1]} : vector<2x14x14x32xf32> to vector<2x12x12x32xf32>
    %88 = vector.shape_cast %87 : vector<2x12x12x32xf32> to vector<288x32xf32>
    %89 = vector.extract_strided_slice %80 {offsets = [0, 1, 1, 0], sizes = [2, 12, 12, 32], strides = [1, 1, 1, 1]} : vector<2x14x14x32xf32> to vector<2x12x12x32xf32>
    %90 = vector.shape_cast %89 : vector<2x12x12x32xf32> to vector<288x32xf32>
    %91 = vector.extract_strided_slice %80 {offsets = [0, 1, 2, 0], sizes = [2, 12, 12, 32], strides = [1, 1, 1, 1]} : vector<2x14x14x32xf32> to vector<2x12x12x32xf32>
    %92 = vector.shape_cast %91 : vector<2x12x12x32xf32> to vector<288x32xf32>
    %93 = vector.extract_strided_slice %80 {offsets = [0, 2, 0, 0], sizes = [2, 12, 12, 32], strides = [1, 1, 1, 1]} : vector<2x14x14x32xf32> to vector<2x12x12x32xf32>
    %94 = vector.shape_cast %93 : vector<2x12x12x32xf32> to vector<288x32xf32>
    %95 = vector.extract_strided_slice %80 {offsets = [0, 2, 1, 0], sizes = [2, 12, 12, 32], strides = [1, 1, 1, 1]} : vector<2x14x14x32xf32> to vector<2x12x12x32xf32>
    %96 = vector.shape_cast %95 : vector<2x12x12x32xf32> to vector<288x32xf32>
    %97 = vector.extract_strided_slice %80 {offsets = [0, 2, 2, 0], sizes = [2, 12, 12, 32], strides = [1, 1, 1, 1]} : vector<2x14x14x32xf32> to vector<2x12x12x32xf32>
    %98 = vector.shape_cast %97 : vector<2x12x12x32xf32> to vector<288x32xf32>
    %99 = tpu.concatenate %82, %84, %86, %88, %90, %92, %94, %96, %98 in 1 : vector<288x32xf32>, vector<288x32xf32>, vector<288x32xf32>, vector<288x32xf32>, vector<288x32xf32>, vector<288x32xf32>, vector<288x32xf32>, vector<288x32xf32>, vector<288x32xf32> -> vector<288x288xf32>
    %c0_10 = arith.constant 0 : index
    %c0_11 = arith.constant 0 : index
    %100 = vector.load %arg4[%c0_10, %c0_11] : memref<288x32xf32, #tpu.memory_space<vmem>>, vector<288x32xf32>
    %cst_12 = arith.constant dense<0.000000e+00> : vector<288x32xf32>
    %101 = tpu.matmul %99, %100, %cst_12 {dimension_numbers = #tpu.dot_dimension_numbers<[1], [0], [0], [1], [0, 0, 1, 1], [], []>} : vector<288x288xf32>, vector<288x32xf32>, vector<288x32xf32> -> vector<288x32xf32>
    %c0_13 = arith.constant 0 : index
    %c0_14 = arith.constant 0 : index
    %102 = vector.load %arg5[%c0_13, %c0_14] : memref<1x32xf32, #tpu.memory_space<vmem>>, vector<1x32xf32>
    %103 = vector.broadcast %102 : vector<1x32xf32> to vector<288x32xf32>
    %104 = arith.addf %101, %103 : vector<288x32xf32>
    %cst_15 = arith.constant 0.000000e+00 : f32
    %105 = vector.broadcast %cst_15 : f32 to vector<288x32xf32>
    %106 = arith.maximumf %104, %105 : vector<288x32xf32>
    %107 = vector.shape_cast %106 : vector<288x32xf32> to vector<2x12x12x32xf32>
    %108 = vector.shape_cast %107 : vector<2x12x12x32xf32> to vector<2x6x2x12x32xf32>
    %109 = vector.extract_strided_slice %108 {offsets = [0, 0, 0, 0, 0], sizes = [2, 6, 1, 12, 32], strides = [1, 1, 1, 1, 1]} : vector<2x6x2x12x32xf32> to vector<2x6x1x12x32xf32>
    %110 = vector.shape_cast %109 : vector<2x6x1x12x32xf32> to vector<2x6x12x32xf32>
    %111 = vector.extract_strided_slice %108 {offsets = [0, 0, 1, 0, 0], sizes = [2, 6, 1, 12, 32], strides = [1, 1, 1, 1, 1]} : vector<2x6x2x12x32xf32> to vector<2x6x1x12x32xf32>
    %112 = vector.shape_cast %111 : vector<2x6x1x12x32xf32> to vector<2x6x12x32xf32>
    %113 = arith.maximumf %110, %112 : vector<2x6x12x32xf32>
    %114 = vector.extract_strided_slice %113 {offsets = [0, 0, 0, 0], sizes = [2, 1, 1, 32], strides = [1, 1, 1, 1]} : vector<2x6x12x32xf32> to vector<2x1x1x32xf32>
    %115 = vector.shape_cast %114 : vector<2x1x1x32xf32> to vector<2x32xf32>
    %116 = vector.extract_strided_slice %113 {offsets = [0, 0, 1, 0], sizes = [2, 1, 1, 32], strides = [1, 1, 1, 1]} : vector<2x6x12x32xf32> to vector<2x1x1x32xf32>
    %117 = vector.shape_cast %116 : vector<2x1x1x32xf32> to vector<2x32xf32>
    %118 = arith.maximumf %115, %117 : vector<2x32xf32>
    %119 = vector.extract_strided_slice %113 {offsets = [0, 0, 2, 0], sizes = [2, 1, 1, 32], strides = [1, 1, 1, 1]} : vector<2x6x12x32xf32> to vector<2x1x1x32xf32>
    %120 = vector.shape_cast %119 : vector<2x1x1x32xf32> to vector<2x32xf32>
    %121 = vector.extract_strided_slice %113 {offsets = [0, 0, 3, 0], sizes = [2, 1, 1, 32], strides = [1, 1, 1, 1]} : vector<2x6x12x32xf32> to vector<2x1x1x32xf32>
    %122 = vector.shape_cast %121 : vector<2x1x1x32xf32> to vector<2x32xf32>
    %123 = arith.maximumf %120, %122 : vector<2x32xf32>
    %124 = vector.extract_strided_slice %113 {offsets = [0, 0, 4, 0], sizes = [2, 1, 1, 32], strides = [1, 1, 1, 1]} : vector<2x6x12x32xf32> to vector<2x1x1x32xf32>
    %125 = vector.shape_cast %124 : vector<2x1x1x32xf32> to vector<2x32xf32>
    %126 = vector.extract_strided_slice %113 {offsets = [0, 0, 5, 0], sizes = [2, 1, 1, 32], strides = [1, 1, 1, 1]} : vector<2x6x12x32xf32> to vector<2x1x1x32xf32>
    %127 = vector.shape_cast %126 : vector<2x1x1x32xf32> to vector<2x32xf32>
    %128 = arith.maximumf %125, %127 : vector<2x32xf32>
    %129 = vector.extract_strided_slice %113 {offsets = [0, 0, 6, 0], sizes = [2, 1, 1, 32], strides = [1, 1, 1, 1]} : vector<2x6x12x32xf32> to vector<2x1x1x32xf32>
    %130 = vector.shape_cast %129 : vector<2x1x1x32xf32> to vector<2x32xf32>
    %131 = vector.extract_strided_slice %113 {offsets = [0, 0, 7, 0], sizes = [2, 1, 1, 32], strides = [1, 1, 1, 1]} : vector<2x6x12x32xf32> to vector<2x1x1x32xf32>
    %132 = vector.shape_cast %131 : vector<2x1x1x32xf32> to vector<2x32xf32>
    %133 = arith.maximumf %130, %132 : vector<2x32xf32>
    %134 = vector.extract_strided_slice %113 {offsets = [0, 0, 8, 0], sizes = [2, 1, 1, 32], strides = [1, 1, 1, 1]} : vector<2x6x12x32xf32> to vector<2x1x1x32xf32>
    %135 = vector.shape_cast %134 : vector<2x1x1x32xf32> to vector<2x32xf32>
    %136 = vector.extract_strided_slice %113 {offsets = [0, 0, 9, 0], sizes = [2, 1, 1, 32], strides = [1, 1, 1, 1]} : vector<2x6x12x32xf32> to vector<2x1x1x32xf32>
    %137 = vector.shape_cast %136 : vector<2x1x1x32xf32> to vector<2x32xf32>
    %138 = arith.maximumf %135, %137 : vector<2x32xf32>
    %139 = vector.extract_strided_slice %113 {offsets = [0, 0, 10, 0], sizes = [2, 1, 1, 32], strides = [1, 1, 1, 1]} : vector<2x6x12x32xf32> to vector<2x1x1x32xf32>
    %140 = vector.shape_cast %139 : vector<2x1x1x32xf32> to vector<2x32xf32>
    %141 = vector.extract_strided_slice %113 {offsets = [0, 0, 11, 0], sizes = [2, 1, 1, 32], strides = [1, 1, 1, 1]} : vector<2x6x12x32xf32> to vector<2x1x1x32xf32>
    %142 = vector.shape_cast %141 : vector<2x1x1x32xf32> to vector<2x32xf32>
    %143 = arith.maximumf %140, %142 : vector<2x32xf32>
    %144 = vector.extract_strided_slice %113 {offsets = [0, 1, 0, 0], sizes = [2, 1, 1, 32], strides = [1, 1, 1, 1]} : vector<2x6x12x32xf32> to vector<2x1x1x32xf32>
    %145 = vector.shape_cast %144 : vector<2x1x1x32xf32> to vector<2x32xf32>
    %146 = vector.extract_strided_slice %113 {offsets = [0, 1, 1, 0], sizes = [2, 1, 1, 32], strides = [1, 1, 1, 1]} : vector<2x6x12x32xf32> to vector<2x1x1x32xf32>
    %147 = vector.shape_cast %146 : vector<2x1x1x32xf32> to vector<2x32xf32>
    %148 = arith.maximumf %145, %147 : vector<2x32xf32>
    %149 = vector.extract_strided_slice %113 {offsets = [0, 1, 2, 0], sizes = [2, 1, 1, 32], strides = [1, 1, 1, 1]} : vector<2x6x12x32xf32> to vector<2x1x1x32xf32>
    %150 = vector.shape_cast %149 : vector<2x1x1x32xf32> to vector<2x32xf32>
    %151 = vector.extract_strided_slice %113 {offsets = [0, 1, 3, 0], sizes = [2, 1, 1, 32], strides = [1, 1, 1, 1]} : vector<2x6x12x32xf32> to vector<2x1x1x32xf32>
    %152 = vector.shape_cast %151 : vector<2x1x1x32xf32> to vector<2x32xf32>
    %153 = arith.maximumf %150, %152 : vector<2x32xf32>
    %154 = vector.extract_strided_slice %113 {offsets = [0, 1, 4, 0], sizes = [2, 1, 1, 32], strides = [1, 1, 1, 1]} : vector<2x6x12x32xf32> to vector<2x1x1x32xf32>
    %155 = vector.shape_cast %154 : vector<2x1x1x32xf32> to vector<2x32xf32>
    %156 = vector.extract_strided_slice %113 {offsets = [0, 1, 5, 0], sizes = [2, 1, 1, 32], strides = [1, 1, 1, 1]} : vector<2x6x12x32xf32> to vector<2x1x1x32xf32>
    %157 = vector.shape_cast %156 : vector<2x1x1x32xf32> to vector<2x32xf32>
    %158 = arith.maximumf %155, %157 : vector<2x32xf32>
    %159 = vector.extract_strided_slice %113 {offsets = [0, 1, 6, 0], sizes = [2, 1, 1, 32], strides = [1, 1, 1, 1]} : vector<2x6x12x32xf32> to vector<2x1x1x32xf32>
    %160 = vector.shape_cast %159 : vector<2x1x1x32xf32> to vector<2x32xf32>
    %161 = vector.extract_strided_slice %113 {offsets = [0, 1, 7, 0], sizes = [2, 1, 1, 32], strides = [1, 1, 1, 1]} : vector<2x6x12x32xf32> to vector<2x1x1x32xf32>
    %162 = vector.shape_cast %161 : vector<2x1x1x32xf32> to vector<2x32xf32>
    %163 = arith.maximumf %160, %162 : vector<2x32xf32>
    %164 = vector.extract_strided_slice %113 {offsets = [0, 1, 8, 0], sizes = [2, 1, 1, 32], strides = [1, 1, 1, 1]} : vector<2x6x12x32xf32> to vector<2x1x1x32xf32>
    %165 = vector.shape_cast %164 : vector<2x1x1x32xf32> to vector<2x32xf32>
    %166 = vector.extract_strided_slice %113 {offsets = [0, 1, 9, 0], sizes = [2, 1, 1, 32], strides = [1, 1, 1, 1]} : vector<2x6x12x32xf32> to vector<2x1x1x32xf32>
    %167 = vector.shape_cast %166 : vector<2x1x1x32xf32> to vector<2x32xf32>
    %168 = arith.maximumf %165, %167 : vector<2x32xf32>
    %169 = vector.extract_strided_slice %113 {offsets = [0, 1, 10, 0], sizes = [2, 1, 1, 32], strides = [1, 1, 1, 1]} : vector<2x6x12x32xf32> to vector<2x1x1x32xf32>
    %170 = vector.shape_cast %169 : vector<2x1x1x32xf32> to vector<2x32xf32>
    %171 = vector.extract_strided_slice %113 {offsets = [0, 1, 11, 0], sizes = [2, 1, 1, 32], strides = [1, 1, 1, 1]} : vector<2x6x12x32xf32> to vector<2x1x1x32xf32>
    %172 = vector.shape_cast %171 : vector<2x1x1x32xf32> to vector<2x32xf32>
    %173 = arith.maximumf %170, %172 : vector<2x32xf32>
    %174 = vector.extract_strided_slice %113 {offsets = [0, 2, 0, 0], sizes = [2, 1, 1, 32], strides = [1, 1, 1, 1]} : vector<2x6x12x32xf32> to vector<2x1x1x32xf32>
    %175 = vector.shape_cast %174 : vector<2x1x1x32xf32> to vector<2x32xf32>
    %176 = vector.extract_strided_slice %113 {offsets = [0, 2, 1, 0], sizes = [2, 1, 1, 32], strides = [1, 1, 1, 1]} : vector<2x6x12x32xf32> to vector<2x1x1x32xf32>
    %177 = vector.shape_cast %176 : vector<2x1x1x32xf32> to vector<2x32xf32>
    %178 = arith.maximumf %175, %177 : vector<2x32xf32>
    %179 = vector.extract_strided_slice %113 {offsets = [0, 2, 2, 0], sizes = [2, 1, 1, 32], strides = [1, 1, 1, 1]} : vector<2x6x12x32xf32> to vector<2x1x1x32xf32>
    %180 = vector.shape_cast %179 : vector<2x1x1x32xf32> to vector<2x32xf32>
    %181 = vector.extract_strided_slice %113 {offsets = [0, 2, 3, 0], sizes = [2, 1, 1, 32], strides = [1, 1, 1, 1]} : vector<2x6x12x32xf32> to vector<2x1x1x32xf32>
    %182 = vector.shape_cast %181 : vector<2x1x1x32xf32> to vector<2x32xf32>
    %183 = arith.maximumf %180, %182 : vector<2x32xf32>
    %184 = vector.extract_strided_slice %113 {offsets = [0, 2, 4, 0], sizes = [2, 1, 1, 32], strides = [1, 1, 1, 1]} : vector<2x6x12x32xf32> to vector<2x1x1x32xf32>
    %185 = vector.shape_cast %184 : vector<2x1x1x32xf32> to vector<2x32xf32>
    %186 = vector.extract_strided_slice %113 {offsets = [0, 2, 5, 0], sizes = [2, 1, 1, 32], strides = [1, 1, 1, 1]} : vector<2x6x12x32xf32> to vector<2x1x1x32xf32>
    %187 = vector.shape_cast %186 : vector<2x1x1x32xf32> to vector<2x32xf32>
    %188 = arith.maximumf %185, %187 : vector<2x32xf32>
    %189 = vector.extract_strided_slice %113 {offsets = [0, 2, 6, 0], sizes = [2, 1, 1, 32], strides = [1, 1, 1, 1]} : vector<2x6x12x32xf32> to vector<2x1x1x32xf32>
    %190 = vector.shape_cast %189 : vector<2x1x1x32xf32> to vector<2x32xf32>
    %191 = vector.extract_strided_slice %113 {offsets = [0, 2, 7, 0], sizes = [2, 1, 1, 32], strides = [1, 1, 1, 1]} : vector<2x6x12x32xf32> to vector<2x1x1x32xf32>
    %192 = vector.shape_cast %191 : vector<2x1x1x32xf32> to vector<2x32xf32>
    %193 = arith.maximumf %190, %192 : vector<2x32xf32>
    %194 = vector.extract_strided_slice %113 {offsets = [0, 2, 8, 0], sizes = [2, 1, 1, 32], strides = [1, 1, 1, 1]} : vector<2x6x12x32xf32> to vector<2x1x1x32xf32>
    %195 = vector.shape_cast %194 : vector<2x1x1x32xf32> to vector<2x32xf32>
    %196 = vector.extract_strided_slice %113 {offsets = [0, 2, 9, 0], sizes = [2, 1, 1, 32], strides = [1, 1, 1, 1]} : vector<2x6x12x32xf32> to vector<2x1x1x32xf32>
    %197 = vector.shape_cast %196 : vector<2x1x1x32xf32> to vector<2x32xf32>
    %198 = arith.maximumf %195, %197 : vector<2x32xf32>
    %199 = vector.extract_strided_slice %113 {offsets = [0, 2, 10, 0], sizes = [2, 1, 1, 32], strides = [1, 1, 1, 1]} : vector<2x6x12x32xf32> to vector<2x1x1x32xf32>
    %200 = vector.shape_cast %199 : vector<2x1x1x32xf32> to vector<2x32xf32>
    %201 = vector.extract_strided_slice %113 {offsets = [0, 2, 11, 0], sizes = [2, 1, 1, 32], strides = [1, 1, 1, 1]} : vector<2x6x12x32xf32> to vector<2x1x1x32xf32>
    %202 = vector.shape_cast %201 : vector<2x1x1x32xf32> to vector<2x32xf32>
    %203 = arith.maximumf %200, %202 : vector<2x32xf32>
    %204 = vector.extract_strided_slice %113 {offsets = [0, 3, 0, 0], sizes = [2, 1, 1, 32], strides = [1, 1, 1, 1]} : vector<2x6x12x32xf32> to vector<2x1x1x32xf32>
    %205 = vector.shape_cast %204 : vector<2x1x1x32xf32> to vector<2x32xf32>
    %206 = vector.extract_strided_slice %113 {offsets = [0, 3, 1, 0], sizes = [2, 1, 1, 32], strides = [1, 1, 1, 1]} : vector<2x6x12x32xf32> to vector<2x1x1x32xf32>
    %207 = vector.shape_cast %206 : vector<2x1x1x32xf32> to vector<2x32xf32>
    %208 = arith.maximumf %205, %207 : vector<2x32xf32>
    %209 = vector.extract_strided_slice %113 {offsets = [0, 3, 2, 0], sizes = [2, 1, 1, 32], strides = [1, 1, 1, 1]} : vector<2x6x12x32xf32> to vector<2x1x1x32xf32>
    %210 = vector.shape_cast %209 : vector<2x1x1x32xf32> to vector<2x32xf32>
    %211 = vector.extract_strided_slice %113 {offsets = [0, 3, 3, 0], sizes = [2, 1, 1, 32], strides = [1, 1, 1, 1]} : vector<2x6x12x32xf32> to vector<2x1x1x32xf32>
    %212 = vector.shape_cast %211 : vector<2x1x1x32xf32> to vector<2x32xf32>
    %213 = arith.maximumf %210, %212 : vector<2x32xf32>
    %214 = vector.extract_strided_slice %113 {offsets = [0, 3, 4, 0], sizes = [2, 1, 1, 32], strides = [1, 1, 1, 1]} : vector<2x6x12x32xf32> to vector<2x1x1x32xf32>
    %215 = vector.shape_cast %214 : vector<2x1x1x32xf32> to vector<2x32xf32>
    %216 = vector.extract_strided_slice %113 {offsets = [0, 3, 5, 0], sizes = [2, 1, 1, 32], strides = [1, 1, 1, 1]} : vector<2x6x12x32xf32> to vector<2x1x1x32xf32>
    %217 = vector.shape_cast %216 : vector<2x1x1x32xf32> to vector<2x32xf32>
    %218 = arith.maximumf %215, %217 : vector<2x32xf32>
    %219 = vector.extract_strided_slice %113 {offsets = [0, 3, 6, 0], sizes = [2, 1, 1, 32], strides = [1, 1, 1, 1]} : vector<2x6x12x32xf32> to vector<2x1x1x32xf32>
    %220 = vector.shape_cast %219 : vector<2x1x1x32xf32> to vector<2x32xf32>
    %221 = vector.extract_strided_slice %113 {offsets = [0, 3, 7, 0], sizes = [2, 1, 1, 32], strides = [1, 1, 1, 1]} : vector<2x6x12x32xf32> to vector<2x1x1x32xf32>
    %222 = vector.shape_cast %221 : vector<2x1x1x32xf32> to vector<2x32xf32>
    %223 = arith.maximumf %220, %222 : vector<2x32xf32>
    %224 = vector.extract_strided_slice %113 {offsets = [0, 3, 8, 0], sizes = [2, 1, 1, 32], strides = [1, 1, 1, 1]} : vector<2x6x12x32xf32> to vector<2x1x1x32xf32>
    %225 = vector.shape_cast %224 : vector<2x1x1x32xf32> to vector<2x32xf32>
    %226 = vector.extract_strided_slice %113 {offsets = [0, 3, 9, 0], sizes = [2, 1, 1, 32], strides = [1, 1, 1, 1]} : vector<2x6x12x32xf32> to vector<2x1x1x32xf32>
    %227 = vector.shape_cast %226 : vector<2x1x1x32xf32> to vector<2x32xf32>
    %228 = arith.maximumf %225, %227 : vector<2x32xf32>
    %229 = vector.extract_strided_slice %113 {offsets = [0, 3, 10, 0], sizes = [2, 1, 1, 32], strides = [1, 1, 1, 1]} : vector<2x6x12x32xf32> to vector<2x1x1x32xf32>
    %230 = vector.shape_cast %229 : vector<2x1x1x32xf32> to vector<2x32xf32>
    %231 = vector.extract_strided_slice %113 {offsets = [0, 3, 11, 0], sizes = [2, 1, 1, 32], strides = [1, 1, 1, 1]} : vector<2x6x12x32xf32> to vector<2x1x1x32xf32>
    %232 = vector.shape_cast %231 : vector<2x1x1x32xf32> to vector<2x32xf32>
    %233 = arith.maximumf %230, %232 : vector<2x32xf32>
    %234 = vector.extract_strided_slice %113 {offsets = [0, 4, 0, 0], sizes = [2, 1, 1, 32], strides = [1, 1, 1, 1]} : vector<2x6x12x32xf32> to vector<2x1x1x32xf32>
    %235 = vector.shape_cast %234 : vector<2x1x1x32xf32> to vector<2x32xf32>
    %236 = vector.extract_strided_slice %113 {offsets = [0, 4, 1, 0], sizes = [2, 1, 1, 32], strides = [1, 1, 1, 1]} : vector<2x6x12x32xf32> to vector<2x1x1x32xf32>
    %237 = vector.shape_cast %236 : vector<2x1x1x32xf32> to vector<2x32xf32>
    %238 = arith.maximumf %235, %237 : vector<2x32xf32>
    %239 = vector.extract_strided_slice %113 {offsets = [0, 4, 2, 0], sizes = [2, 1, 1, 32], strides = [1, 1, 1, 1]} : vector<2x6x12x32xf32> to vector<2x1x1x32xf32>
    %240 = vector.shape_cast %239 : vector<2x1x1x32xf32> to vector<2x32xf32>
    %241 = vector.extract_strided_slice %113 {offsets = [0, 4, 3, 0], sizes = [2, 1, 1, 32], strides = [1, 1, 1, 1]} : vector<2x6x12x32xf32> to vector<2x1x1x32xf32>
    %242 = vector.shape_cast %241 : vector<2x1x1x32xf32> to vector<2x32xf32>
    %243 = arith.maximumf %240, %242 : vector<2x32xf32>
    %244 = vector.extract_strided_slice %113 {offsets = [0, 4, 4, 0], sizes = [2, 1, 1, 32], strides = [1, 1, 1, 1]} : vector<2x6x12x32xf32> to vector<2x1x1x32xf32>
    %245 = vector.shape_cast %244 : vector<2x1x1x32xf32> to vector<2x32xf32>
    %246 = vector.extract_strided_slice %113 {offsets = [0, 4, 5, 0], sizes = [2, 1, 1, 32], strides = [1, 1, 1, 1]} : vector<2x6x12x32xf32> to vector<2x1x1x32xf32>
    %247 = vector.shape_cast %246 : vector<2x1x1x32xf32> to vector<2x32xf32>
    %248 = arith.maximumf %245, %247 : vector<2x32xf32>
    %249 = vector.extract_strided_slice %113 {offsets = [0, 4, 6, 0], sizes = [2, 1, 1, 32], strides = [1, 1, 1, 1]} : vector<2x6x12x32xf32> to vector<2x1x1x32xf32>
    %250 = vector.shape_cast %249 : vector<2x1x1x32xf32> to vector<2x32xf32>
    %251 = vector.extract_strided_slice %113 {offsets = [0, 4, 7, 0], sizes = [2, 1, 1, 32], strides = [1, 1, 1, 1]} : vector<2x6x12x32xf32> to vector<2x1x1x32xf32>
    %252 = vector.shape_cast %251 : vector<2x1x1x32xf32> to vector<2x32xf32>
    %253 = arith.maximumf %250, %252 : vector<2x32xf32>
    %254 = vector.extract_strided_slice %113 {offsets = [0, 4, 8, 0], sizes = [2, 1, 1, 32], strides = [1, 1, 1, 1]} : vector<2x6x12x32xf32> to vector<2x1x1x32xf32>
    %255 = vector.shape_cast %254 : vector<2x1x1x32xf32> to vector<2x32xf32>
    %256 = vector.extract_strided_slice %113 {offsets = [0, 4, 9, 0], sizes = [2, 1, 1, 32], strides = [1, 1, 1, 1]} : vector<2x6x12x32xf32> to vector<2x1x1x32xf32>
    %257 = vector.shape_cast %256 : vector<2x1x1x32xf32> to vector<2x32xf32>
    %258 = arith.maximumf %255, %257 : vector<2x32xf32>
    %259 = vector.extract_strided_slice %113 {offsets = [0, 4, 10, 0], sizes = [2, 1, 1, 32], strides = [1, 1, 1, 1]} : vector<2x6x12x32xf32> to vector<2x1x1x32xf32>
    %260 = vector.shape_cast %259 : vector<2x1x1x32xf32> to vector<2x32xf32>
    %261 = vector.extract_strided_slice %113 {offsets = [0, 4, 11, 0], sizes = [2, 1, 1, 32], strides = [1, 1, 1, 1]} : vector<2x6x12x32xf32> to vector<2x1x1x32xf32>
    %262 = vector.shape_cast %261 : vector<2x1x1x32xf32> to vector<2x32xf32>
    %263 = arith.maximumf %260, %262 : vector<2x32xf32>
    %264 = vector.extract_strided_slice %113 {offsets = [0, 5, 0, 0], sizes = [2, 1, 1, 32], strides = [1, 1, 1, 1]} : vector<2x6x12x32xf32> to vector<2x1x1x32xf32>
    %265 = vector.shape_cast %264 : vector<2x1x1x32xf32> to vector<2x32xf32>
    %266 = vector.extract_strided_slice %113 {offsets = [0, 5, 1, 0], sizes = [2, 1, 1, 32], strides = [1, 1, 1, 1]} : vector<2x6x12x32xf32> to vector<2x1x1x32xf32>
    %267 = vector.shape_cast %266 : vector<2x1x1x32xf32> to vector<2x32xf32>
    %268 = arith.maximumf %265, %267 : vector<2x32xf32>
    %269 = vector.extract_strided_slice %113 {offsets = [0, 5, 2, 0], sizes = [2, 1, 1, 32], strides = [1, 1, 1, 1]} : vector<2x6x12x32xf32> to vector<2x1x1x32xf32>
    %270 = vector.shape_cast %269 : vector<2x1x1x32xf32> to vector<2x32xf32>
    %271 = vector.extract_strided_slice %113 {offsets = [0, 5, 3, 0], sizes = [2, 1, 1, 32], strides = [1, 1, 1, 1]} : vector<2x6x12x32xf32> to vector<2x1x1x32xf32>
    %272 = vector.shape_cast %271 : vector<2x1x1x32xf32> to vector<2x32xf32>
    %273 = arith.maximumf %270, %272 : vector<2x32xf32>
    %274 = vector.extract_strided_slice %113 {offsets = [0, 5, 4, 0], sizes = [2, 1, 1, 32], strides = [1, 1, 1, 1]} : vector<2x6x12x32xf32> to vector<2x1x1x32xf32>
    %275 = vector.shape_cast %274 : vector<2x1x1x32xf32> to vector<2x32xf32>
    %276 = vector.extract_strided_slice %113 {offsets = [0, 5, 5, 0], sizes = [2, 1, 1, 32], strides = [1, 1, 1, 1]} : vector<2x6x12x32xf32> to vector<2x1x1x32xf32>
    %277 = vector.shape_cast %276 : vector<2x1x1x32xf32> to vector<2x32xf32>
    %278 = arith.maximumf %275, %277 : vector<2x32xf32>
    %279 = vector.extract_strided_slice %113 {offsets = [0, 5, 6, 0], sizes = [2, 1, 1, 32], strides = [1, 1, 1, 1]} : vector<2x6x12x32xf32> to vector<2x1x1x32xf32>
    %280 = vector.shape_cast %279 : vector<2x1x1x32xf32> to vector<2x32xf32>
    %281 = vector.extract_strided_slice %113 {offsets = [0, 5, 7, 0], sizes = [2, 1, 1, 32], strides = [1, 1, 1, 1]} : vector<2x6x12x32xf32> to vector<2x1x1x32xf32>
    %282 = vector.shape_cast %281 : vector<2x1x1x32xf32> to vector<2x32xf32>
    %283 = arith.maximumf %280, %282 : vector<2x32xf32>
    %284 = vector.extract_strided_slice %113 {offsets = [0, 5, 8, 0], sizes = [2, 1, 1, 32], strides = [1, 1, 1, 1]} : vector<2x6x12x32xf32> to vector<2x1x1x32xf32>
    %285 = vector.shape_cast %284 : vector<2x1x1x32xf32> to vector<2x32xf32>
    %286 = vector.extract_strided_slice %113 {offsets = [0, 5, 9, 0], sizes = [2, 1, 1, 32], strides = [1, 1, 1, 1]} : vector<2x6x12x32xf32> to vector<2x1x1x32xf32>
    %287 = vector.shape_cast %286 : vector<2x1x1x32xf32> to vector<2x32xf32>
    %288 = arith.maximumf %285, %287 : vector<2x32xf32>
    %289 = vector.extract_strided_slice %113 {offsets = [0, 5, 10, 0], sizes = [2, 1, 1, 32], strides = [1, 1, 1, 1]} : vector<2x6x12x32xf32> to vector<2x1x1x32xf32>
    %290 = vector.shape_cast %289 : vector<2x1x1x32xf32> to vector<2x32xf32>
    %291 = vector.extract_strided_slice %113 {offsets = [0, 5, 11, 0], sizes = [2, 1, 1, 32], strides = [1, 1, 1, 1]} : vector<2x6x12x32xf32> to vector<2x1x1x32xf32>
    %292 = vector.shape_cast %291 : vector<2x1x1x32xf32> to vector<2x32xf32>
    %293 = arith.maximumf %290, %292 : vector<2x32xf32>
    %294 = tpu.concatenate %118, %123, %128, %133, %138, %143, %148, %153, %158, %163, %168, %173, %178, %183, %188, %193 in 1 : vector<2x32xf32>, vector<2x32xf32>, vector<2x32xf32>, vector<2x32xf32>, vector<2x32xf32>, vector<2x32xf32>, vector<2x32xf32>, vector<2x32xf32>, vector<2x32xf32>, vector<2x32xf32>, vector<2x32xf32>, vector<2x32xf32>, vector<2x32xf32>, vector<2x32xf32>, vector<2x32xf32>, vector<2x32xf32> -> vector<2x512xf32>
    %295 = tpu.concatenate %198, %203, %208, %213, %218, %223, %228, %233, %238, %243, %248, %253, %258, %263, %268, %273 in 1 : vector<2x32xf32>, vector<2x32xf32>, vector<2x32xf32>, vector<2x32xf32>, vector<2x32xf32>, vector<2x32xf32>, vector<2x32xf32>, vector<2x32xf32>, vector<2x32xf32>, vector<2x32xf32>, vector<2x32xf32>, vector<2x32xf32>, vector<2x32xf32>, vector<2x32xf32>, vector<2x32xf32>, vector<2x32xf32> -> vector<2x512xf32>
    %296 = tpu.concatenate %278, %283, %288, %293 in 1 : vector<2x32xf32>, vector<2x32xf32>, vector<2x32xf32>, vector<2x32xf32> -> vector<2x128xf32>
    %297 = tpu.concatenate %294, %295, %296 in 1 : vector<2x512xf32>, vector<2x512xf32>, vector<2x128xf32> -> vector<2x1152xf32>
    %c0_16 = arith.constant 0 : index
    %c0_17 = arith.constant 0 : index
    %298 = vector.load %arg6[%c0_16, %c0_17] : memref<1152x120xf32, #tpu.memory_space<vmem>>, vector<1152x120xf32>
    %cst_18 = arith.constant dense<0.000000e+00> : vector<2x120xf32>
    %299 = tpu.matmul %297, %298, %cst_18 {dimension_numbers = #tpu.dot_dimension_numbers<[1], [0], [0], [1], [0, 0, 1, 1], [], []>} : vector<2x1152xf32>, vector<1152x120xf32>, vector<2x120xf32> -> vector<2x120xf32>
    %c0_19 = arith.constant 0 : index
    %c0_20 = arith.constant 0 : index
    %300 = vector.load %arg7[%c0_19, %c0_20] : memref<1x120xf32, #tpu.memory_space<vmem>>, vector<1x120xf32>
    %301 = vector.broadcast %300 : vector<1x120xf32> to vector<2x120xf32>
    %302 = arith.addf %299, %301 : vector<2x120xf32>
    %cst_21 = arith.constant 0.000000e+00 : f32
    %303 = vector.broadcast %cst_21 : f32 to vector<2x120xf32>
    %304 = arith.maximumf %302, %303 : vector<2x120xf32>
    %c0_22 = arith.constant 0 : index
    %c0_23 = arith.constant 0 : index
    %305 = vector.load %arg8[%c0_22, %c0_23] : memref<120x84xf32, #tpu.memory_space<vmem>>, vector<120x84xf32>
    %cst_24 = arith.constant dense<0.000000e+00> : vector<2x84xf32>
    %306 = tpu.matmul %304, %305, %cst_24 {dimension_numbers = #tpu.dot_dimension_numbers<[1], [0], [0], [1], [0, 0, 1, 1], [], []>} : vector<2x120xf32>, vector<120x84xf32>, vector<2x84xf32> -> vector<2x84xf32>
    %c0_25 = arith.constant 0 : index
    %c0_26 = arith.constant 0 : index
    %307 = vector.load %arg9[%c0_25, %c0_26] : memref<1x84xf32, #tpu.memory_space<vmem>>, vector<1x84xf32>
    %308 = vector.broadcast %307 : vector<1x84xf32> to vector<2x84xf32>
    %309 = arith.addf %306, %308 : vector<2x84xf32>
    %cst_27 = arith.constant 0.000000e+00 : f32
    %310 = vector.broadcast %cst_27 : f32 to vector<2x84xf32>
    %311 = arith.maximumf %309, %310 : vector<2x84xf32>
    %c0_28 = arith.constant 0 : index
    %c0_29 = arith.constant 0 : index
    %312 = vector.load %arg13[%c0_28, %c0_29] : memref<2x84xf32, #tpu.memory_space<vmem>>, vector<2x84xf32>
    tpu.vector_store %arg13[%c0_28, %c0_29], %311 {strides = array<i32>} : memref<2x84xf32, #tpu.memory_space<vmem>>, vector<2x84xf32>,
    %c0_30 = arith.constant 0 : index
    %c0_31 = arith.constant 0 : index
    %313 = vector.load %arg10[%c0_30, %c0_31] : memref<84x10xf32, #tpu.memory_space<vmem>>, vector<84x10xf32>
    %cst_32 = arith.constant dense<0.000000e+00> : vector<2x10xf32>
    %314 = tpu.matmul %311, %313, %cst_32 {dimension_numbers = #tpu.dot_dimension_numbers<[1], [0], [0], [1], [0, 0, 1, 1], [], []>} : vector<2x84xf32>, vector<84x10xf32>, vector<2x10xf32> -> vector<2x10xf32>
    %c0_33 = arith.constant 0 : index
    %c0_34 = arith.constant 0 : index
    %315 = vector.load %arg11[%c0_33, %c0_34] : memref<1x10xf32, #tpu.memory_space<vmem>>, vector<1x10xf32>
    %316 = vector.broadcast %315 : vector<1x10xf32> to vector<2x10xf32>
    %317 = arith.addf %314, %316 : vector<2x10xf32>
    %c0_35 = arith.constant 0 : index
    %c0_36 = arith.constant 0 : index
    %318 = vector.load %arg12[%c0_35, %c0_36] : memref<2x10xf32, #tpu.memory_space<vmem>>, vector<2x10xf32>
    tpu.vector_store %arg12[%c0_35, %c0_36], %317 {strides = array<i32>} : memref<2x10xf32, #tpu.memory_space<vmem>>, vector<2x10xf32>,
    return
  }
  func.func @transform_0(%arg0: i32) -> (i32, i32, i32, i32) {
    %c0_i32 = arith.constant 0 : i32
    %c0_i32_0 = arith.constant 0 : i32
    %c0_i32_1 = arith.constant 0 : i32
    %c0_i32_2 = arith.constant 0 : i32
    return %arg0, %c0_i32, %c0_i32_0, %c0_i32_1 : i32, i32, i32, i32
  }
  func.func @transform_1(%arg0: i32) -> (i32, i32, i32, i32) {
    %c0_i32 = arith.constant 0 : i32
    %c0_i32_0 = arith.constant 0 : i32
    %c0_i32_1 = arith.constant 0 : i32
    %c0_i32_2 = arith.constant 0 : i32
    %c0_i32_3 = arith.constant 0 : i32
    return %c0_i32, %c0_i32_0, %c0_i32_1, %c0_i32_2 : i32, i32, i32, i32
  }
  func.func @transform_2(%arg0: i32) -> (i32, i32) {
    %c0_i32 = arith.constant 0 : i32
    %c0_i32_0 = arith.constant 0 : i32
    %c0_i32_1 = arith.constant 0 : i32
    return %c0_i32, %c0_i32_0 : i32, i32
  }
  func.func @transform_3(%arg0: i32) -> (i32, i32) {
    %c0_i32 = arith.constant 0 : i32
    %c0_i32_0 = arith.constant 0 : i32
    %c0_i32_1 = arith.constant 0 : i32
    return %c0_i32, %c0_i32_0 : i32, i32
  }
  func.func @transform_4(%arg0: i32) -> (i32, i32) {
    %c0_i32 = arith.constant 0 : i32
    %c0_i32_0 = arith.constant 0 : i32
    %c0_i32_1 = arith.constant 0 : i32
    return %c0_i32, %c0_i32_0 : i32, i32
  }
  func.func @transform_5(%arg0: i32) -> (i32, i32) {
    %c0_i32 = arith.constant 0 : i32
    %c0_i32_0 = arith.constant 0 : i32
    %c0_i32_1 = arith.constant 0 : i32
    return %c0_i32, %c0_i32_0 : i32, i32
  }
  func.func @transform_6(%arg0: i32) -> (i32, i32) {
    %c0_i32 = arith.constant 0 : i32
    %c0_i32_0 = arith.constant 0 : i32
    %c0_i32_1 = arith.constant 0 : i32
    return %c0_i32, %c0_i32_0 : i32, i32
  }
  func.func @transform_7(%arg0: i32) -> (i32, i32) {
    %c0_i32 = arith.constant 0 : i32
    %c0_i32_0 = arith.constant 0 : i32
    %c0_i32_1 = arith.constant 0 : i32
    return %c0_i32, %c0_i32_0 : i32, i32
  }
  func.func @transform_8(%arg0: i32) -> (i32, i32) {
    %c0_i32 = arith.constant 0 : i32
    %c0_i32_0 = arith.constant 0 : i32
    %c0_i32_1 = arith.constant 0 : i32
    return %c0_i32, %c0_i32_0 : i32, i32
  }
  func.func @transform_9(%arg0: i32) -> (i32, i32) {
    %c0_i32 = arith.constant 0 : i32
    %c0_i32_0 = arith.constant 0 : i32
    %c0_i32_1 = arith.constant 0 : i32
    return %c0_i32, %c0_i32_0 : i32, i32
  }
  func.func @transform_10(%arg0: i32) -> (i32, i32) {
    %c0_i32 = arith.constant 0 : i32
    %c0_i32_0 = arith.constant 0 : i32
    %c0_i32_1 = arith.constant 0 : i32
    return %c0_i32, %c0_i32_0 : i32, i32
  }
  func.func @transform_11(%arg0: i32) -> (i32, i32) {
    %c0_i32 = arith.constant 0 : i32
    %c0_i32_0 = arith.constant 0 : i32
    return %arg0, %c0_i32 : i32, i32
  }
  func.func @transform_12(%arg0: i32) -> (i32, i32) {
    %c0_i32 = arith.constant 0 : i32
    %c0_i32_0 = arith.constant 0 : i32
    return %arg0, %c0_i32 : i32, i32
  }
}

</mosaic_0001>

<llo_original>
// kernel: cnn_forward.1
$region0: #{cnn_forward.1}
  #allocation0 [shape = 'u32[]', space=smem, size = 0x4, offset = 0x4, fixed_abs, tag = 'smem constant byte address 0x4 - core index']
  #allocation1 [shape = 'u32[72,128]{1,0:T(1,128)}', space=vmem, size = 0x9000, scoped, tag = 'internal scratch']
  %s0 = inlined_call_operand.vmem [shape: f32[2,16,16,1], index: 0, kind: input, shape index: {}]
  %s1 = inlined_call_operand.vmem [shape: f32[3,3,1,32], index: 1, kind: input, shape index: {}]
  %s2 = inlined_call_operand.vmem [shape: f32[1,32], index: 2, kind: input, shape index: {}]
  %s3 = inlined_call_operand.vmem [shape: f32[288,32], index: 3, kind: input, shape index: {}]
  %s4 = inlined_call_operand.vmem [shape: f32[1,32], index: 4, kind: input, shape index: {}]
  %s5 = inlined_call_operand.vmem [shape: f32[1152,120], index: 5, kind: input, shape index: {}]
  %s6 = inlined_call_operand.vmem [shape: f32[1,120], index: 6, kind: input, shape index: {}]
  %s7 = inlined_call_operand.vmem [shape: f32[120,84], index: 7, kind: input, shape index: {}]
  %s8 = inlined_call_operand.vmem [shape: f32[1,84], index: 8, kind: input, shape index: {}]
  %s9 = inlined_call_operand.vmem [shape: f32[84,10], index: 9, kind: input, shape index: {}]
  %s10 = inlined_call_operand.vmem [shape: f32[1,10], index: 10, kind: input, shape index: {}]
  %s11 = inlined_call_operand.hbm [shape: f32[2,10], index: 11, kind: output, shape index: {0}]
  %s12 = inlined_call_operand.hbm [shape: f32[2,84], index: 12, kind: output, shape index: {1}]
  %13 = xla_tuple %s11, %s12
  %s14 = sld [smem:[#allocation0]]
  $region62: #{cnn_forward.1} parent=0
    _
  %s16 = ssub.s32 1, %s14
  %s17 = scalar_select 0, %s16, %s14
  $region1: #{cnn_forward.1} parent=0
    #allocation2 [shape = 'u8[1024]{0}', space=vmem, size = 0x400, scoped, tag = 'output window, operand 0, single buffered']
    #allocation3 [shape = 's32[1]{0}', space=sflag, size = 0x4, scoped, tag = 'scoped memory for cnn_forward.1']
    #allocation4 [shape = 'u8[1024]{0}', space=vmem, size = 0x400, scoped, tag = 'output window, operand 1, single buffered']
    #allocation5 [shape = 's32[1]{0}', space=sflag, size = 0x4, scoped, tag = 'scoped memory for cnn_forward.1']
    %18 = vsyncpa [#allocation3], 0
    %19 = vsyncpa [#allocation5], 0
    // Predicated region
    $region2: #{cnn_forward.1} parent=1 // pred_check
      _
    $region3: #{cnn_forward.1} parent=1 // pred_check_branch
      %21 = sbr.rel (0) target = $region5
    $region4: #{cnn_forward.1} parent=1 // pred_region
      _
    $region5: #{cnn_forward.1} parent=1 // pred_fallthru
      _
    // Predicated region
    $region6: #{cnn_forward.1} parent=1 // pred_check
      _
    $region7: #{cnn_forward.1} parent=1 // pred_check_branch
      %23 = sbr.rel (0) target = $region9
    $region8: #{cnn_forward.1} parent=1 // pred_region
      _
    $region9: #{cnn_forward.1} parent=1 // pred_fallthru
      _
    // Predicated region
    $region10: #{cnn_forward.1} parent=1 // pred_check
      _
    $region11: #{cnn_forward.1} parent=1 // pred_check_branch
      %25 = sbr.rel (0) target = $region13
    $region12: #{cnn_forward.1} parent=1 // pred_region
      _
    $region13: #{cnn_forward.1} parent=1 // pred_fallthru
      _
    // Predicated region
    $region14: #{cnn_forward.1} parent=1 // pred_check
      _
    $region15: #{cnn_forward.1} parent=1 // pred_check_branch
      %27 = sbr.rel (0) target = $region17
    $region16: #{cnn_forward.1} parent=1 // pred_region
      _
    $region17: #{cnn_forward.1} parent=1 // pred_fallthru
      _
    // Predicated region
    $region18: #{cnn_forward.1} parent=1 // pred_check
      _
    $region19: #{cnn_forward.1} parent=1 // pred_check_branch
      %29 = sbr.rel (0) target = $region21
    $region20: #{cnn_forward.1} parent=1 // pred_region
      _
    $region21: #{cnn_forward.1} parent=1 // pred_fallthru
      _
    // Predicated region
    $region22: #{cnn_forward.1} parent=1 // pred_check
      _
    $region23: #{cnn_forward.1} parent=1 // pred_check_branch
      %31 = sbr.rel (0) target = $region25
    $region24: #{cnn_forward.1} parent=1 // pred_region
      _
    $region25: #{cnn_forward.1} parent=1 // pred_fallthru
      _
    // Predicated region
    $region26: #{cnn_forward.1} parent=1 // pred_check
      _
    $region27: #{cnn_forward.1} parent=1 // pred_check_branch
      %33 = sbr.rel (0) target = $region29
    $region28: #{cnn_forward.1} parent=1 // pred_region
      _
    $region29: #{cnn_forward.1} parent=1 // pred_fallthru
      _
    // Predicated region
    $region30: #{cnn_forward.1} parent=1 // pred_check
      _
    $region31: #{cnn_forward.1} parent=1 // pred_check_branch
      %35 = sbr.rel (0) target = $region33
    $region32: #{cnn_forward.1} parent=1 // pred_region
      _
    $region33: #{cnn_forward.1} parent=1 // pred_fallthru
      _
    // Predicated region
    $region34: #{cnn_forward.1} parent=1 // pred_check
      _
    $region35: #{cnn_forward.1} parent=1 // pred_check_branch
      %37 = sbr.rel (0) target = $region37
    $region36: #{cnn_forward.1} parent=1 // pred_region
      _
    $region37: #{cnn_forward.1} parent=1 // pred_fallthru
      _
    // Predicated region
    $region38: #{cnn_forward.1} parent=1 // pred_check
      _
    $region39: #{cnn_forward.1} parent=1 // pred_check_branch
      %39 = sbr.rel (0) target = $region41
    $region40: #{cnn_forward.1} parent=1 // pred_region
      _
    $region41: #{cnn_forward.1} parent=1 // pred_fallthru
      _
    // Predicated region
    $region42: #{cnn_forward.1} parent=1 // pred_check
      _
    $region43: #{cnn_forward.1} parent=1 // pred_check_branch
      %41 = sbr.rel (0) target = $region45
    $region44: #{cnn_forward.1} parent=1 // pred_region
      _
    $region45: #{cnn_forward.1} parent=1 // pred_fallthru
      _
    %v42 = vld [vmem:[%s0] sm:$0xff]
    %v43 = vld [vmem:[%s0 + $0x8] sm:$0xff]
    %v44 = vld [vmem:[%s0 + $0x10] sm:$0xff]
    %v45 = vld [vmem:[%s0 + $0x18] sm:$0xff]
    %v46 = vld [vmem:[%s0 + $0x20] sm:$0xff]
    %v47 = vld [vmem:[%s0 + $0x28] sm:$0xff]
    %v48 = vld [vmem:[%s0 + $0x30] sm:$0xff]
    %v49 = vld [vmem:[%s0 + $0x38] sm:$0xff]
    %v50 = vld [vmem:[%s0 + $0x40] sm:$0xff]
    %v51 = vld [vmem:[%s0 + $0x48] sm:$0xff]
    %v52 = vld [vmem:[%s0 + $0x50] sm:$0xff]
    %v53 = vld [vmem:[%s0 + $0x58] sm:$0xff]
    %v54 = vld [vmem:[%s0 + $0x60] sm:$0xff]
    %v55 = vld [vmem:[%s0 + $0x68] sm:$0xff]
    %v56 = vld [vmem:[%s0 + $0x70] sm:$0xff]
    %v57 = vld [vmem:[%s0 + $0x78] sm:$0xff]
    %v58 = vld [vmem:[%s0 + $0x80] sm:$0xff]
    %v59 = vld [vmem:[%s0 + $0x88] sm:$0xff]
    %v60 = vld [vmem:[%s0 + $0x90] sm:$0xff]
    %v61 = vld [vmem:[%s0 + $0x98] sm:$0xff]
    %v62 = vld [vmem:[%s0 + $0xa0] sm:$0xff]
    %v63 = vld [vmem:[%s0 + $0xa8] sm:$0xff]
    %v64 = vld [vmem:[%s0 + $0xb0] sm:$0xff]
    %v65 = vld [vmem:[%s0 + $0xb8] sm:$0xff]
    %v66 = vld [vmem:[%s0 + $0xc0] sm:$0xff]
    %v67 = vld [vmem:[%s0 + $0xc8] sm:$0xff]
    %v68 = vld [vmem:[%s0 + $0xd0] sm:$0xff]
    %v69 = vld [vmem:[%s0 + $0xd8] sm:$0xff]
    %v70 = vld [vmem:[%s0 + $0xe0] sm:$0xff]
    %v71 = vld [vmem:[%s0 + $0xe8] sm:$0xff]
    %v72 = vld [vmem:[%s0 + $0xf0] sm:$0xff]
    %v73 = vld [vmem:[%s0 + $0xf8] sm:$0xff]
    %v74 = vld [vmem:[%s0 + $0x100] sm:$0xff]
    %v75 = vld [vmem:[%s0 + $0x108] sm:$0xff]
    %v76 = vld [vmem:[%s0 + $0x110] sm:$0xff]
    %v77 = vld [vmem:[%s0 + $0x118] sm:$0xff]
    %v78 = vld [vmem:[%s0 + $0x120] sm:$0xff]
    %v79 = vld [vmem:[%s0 + $0x128] sm:$0xff]
    %v80 = vld [vmem:[%s0 + $0x130] sm:$0xff]
    %v81 = vld [vmem:[%s0 + $0x138] sm:$0xff]
    %v82 = vld [vmem:[%s0 + $0x140] sm:$0xff]
    %v83 = vld [vmem:[%s0 + $0x148] sm:$0xff]
    %v84 = vld [vmem:[%s0 + $0x150] sm:$0xff]
    %v85 = vld [vmem:[%s0 + $0x158] sm:$0xff]
    %v86 = vld [vmem:[%s0 + $0x160] sm:$0xff]
    %v87 = vld [vmem:[%s0 + $0x168] sm:$0xff]
    %v88 = vld [vmem:[%s0 + $0x170] sm:$0xff]
    %v89 = vld [vmem:[%s0 + $0x178] sm:$0xff]
    %v90 = vld [vmem:[%s0 + $0x180] sm:$0xff]
    %v91 = vld [vmem:[%s0 + $0x188] sm:$0xff]
    %v92 = vld [vmem:[%s0 + $0x190] sm:$0xff]
    %v93 = vld [vmem:[%s0 + $0x198] sm:$0xff]
    %v94 = vld [vmem:[%s0 + $0x1a0] sm:$0xff]
    %v95 = vld [vmem:[%s0 + $0x1a8] sm:$0xff]
    %v96 = vld [vmem:[%s0 + $0x1b0] sm:$0xff]
    %v97 = vld [vmem:[%s0 + $0x1b8] sm:$0xff]
    %v98 = vld [vmem:[%s0 + $0x1c0] sm:$0xff]
    %v99 = vld [vmem:[%s0 + $0x1c8] sm:$0xff]
    %v100 = vld [vmem:[%s0 + $0x1d0] sm:$0xff]
    %v101 = vld [vmem:[%s0 + $0x1d8] sm:$0xff]
    %v102 = vld [vmem:[%s0 + $0x1e0] sm:$0xff]
    %v103 = vld [vmem:[%s0 + $0x1e8] sm:$0xff]
    %v104 = vld [vmem:[%s0 + $0x1f0] sm:$0xff]
    %v105 = vld [vmem:[%s0 + $0x1f8] sm:$0xff]
    %v106 = vld [vmem:[%s1] sm:$0x1]
    %v107 = vld [vmem:[%s1 + $0x1] sm:$0x1]
    %v108 = vld [vmem:[%s1 + $0x2] sm:$0x1]
    %v109 = vld [vmem:[%s1 + $0x3] sm:$0x1]
    %v110 = vld [vmem:[%s1 + $0x4] sm:$0x1]
    %v111 = vld [vmem:[%s1 + $0x5] sm:$0x1]
    %v112 = vld [vmem:[%s1 + $0x6] sm:$0x1]
    %v113 = vld [vmem:[%s1 + $0x7] sm:$0x1]
    %v114 = vld [vmem:[%s1 + $0x8] sm:$0x1]
    %v115 = vld [vmem:[%s2] sm:$0x1]
    %117 = vset.pattern.permute.xlu0 0
    %118 = vperm.xlu0 %117, %v42
    %v119 = vpop.permute.xlu0 %118
    %122 = vset.pattern.permute.xlu0 0
    %123 = vperm.xlu0 %122, %v43
    %v124 = vpop.permute.xlu0 %123
    %127 = vset.pattern.permute.xlu0 0
    %128 = vperm.xlu0 %127, %v44
    %v129 = vpop.permute.xlu0 %128
    %132 = vset.pattern.permute.xlu0 0
    %133 = vperm.xlu0 %132, %v45
    %v134 = vpop.permute.xlu0 %133
    %137 = vset.pattern.permute.xlu0 0
    %138 = vperm.xlu0 %137, %v46
    %v139 = vpop.permute.xlu0 %138
    %142 = vset.pattern.permute.xlu0 0
    %143 = vperm.xlu0 %142, %v47
    %v144 = vpop.permute.xlu0 %143
    %147 = vset.pattern.permute.xlu0 0
    %148 = vperm.xlu0 %147, %v48
    %v149 = vpop.permute.xlu0 %148
    %152 = vset.pattern.permute.xlu0 0
    %153 = vperm.xlu0 %152, %v49
    %v154 = vpop.permute.xlu0 %153
    %157 = vset.pattern.permute.xlu0 0
    %158 = vperm.xlu0 %157, %v50
    %v159 = vpop.permute.xlu0 %158
    %162 = vset.pattern.permute.xlu0 0
    %163 = vperm.xlu0 %162, %v51
    %v164 = vpop.permute.xlu0 %163
    %167 = vset.pattern.permute.xlu0 0
    %168 = vperm.xlu0 %167, %v52
    %v169 = vpop.permute.xlu0 %168
    %172 = vset.pattern.permute.xlu0 0
    %173 = vperm.xlu0 %172, %v53
    %v174 = vpop.permute.xlu0 %173
    %177 = vset.pattern.permute.xlu0 0
    %178 = vperm.xlu0 %177, %v54
    %v179 = vpop.permute.xlu0 %178
    %182 = vset.pattern.permute.xlu0 0
    %183 = vperm.xlu0 %182, %v55
    %v184 = vpop.permute.xlu0 %183
    %187 = vset.pattern.permute.xlu0 0
    %188 = vperm.xlu0 %187, %v56
    %v189 = vpop.permute.xlu0 %188
    %192 = vset.pattern.permute.xlu0 0
    %193 = vperm.xlu0 %192, %v57
    %v194 = vpop.permute.xlu0 %193
    %197 = vset.pattern.permute.xlu0 0
    %198 = vperm.xlu0 %197, %v58
    %v199 = vpop.permute.xlu0 %198
    %202 = vset.pattern.permute.xlu0 0
    %203 = vperm.xlu0 %202, %v59
    %v204 = vpop.permute.xlu0 %203
    %207 = vset.pattern.permute.xlu0 0
    %208 = vperm.xlu0 %207, %v60
    %v209 = vpop.permute.xlu0 %208
    %212 = vset.pattern.permute.xlu0 0
    %213 = vperm.xlu0 %212, %v61
    %v214 = vpop.permute.xlu0 %213
    %217 = vset.pattern.permute.xlu0 0
    %218 = vperm.xlu0 %217, %v62
    %v219 = vpop.permute.xlu0 %218
    %222 = vset.pattern.permute.xlu0 0
    %223 = vperm.xlu0 %222, %v63
    %v224 = vpop.permute.xlu0 %223
    %227 = vset.pattern.permute.xlu0 0
    %228 = vperm.xlu0 %227, %v64
    %v229 = vpop.permute.xlu0 %228
    %232 = vset.pattern.permute.xlu0 0
    %233 = vperm.xlu0 %232, %v65
    %v234 = vpop.permute.xlu0 %233
    %237 = vset.pattern.permute.xlu0 0
    %238 = vperm.xlu0 %237, %v66
    %v239 = vpop.permute.xlu0 %238
    %242 = vset.pattern.permute.xlu0 0
    %243 = vperm.xlu0 %242, %v67
    %v244 = vpop.permute.xlu0 %243
    %247 = vset.pattern.permute.xlu0 0
    %248 = vperm.xlu0 %247, %v68
    %v249 = vpop.permute.xlu0 %248
    %252 = vset.pattern.permute.xlu0 0
    %253 = vperm.xlu0 %252, %v69
    %v254 = vpop.permute.xlu0 %253
    %257 = vset.pattern.permute.xlu0 0
    %258 = vperm.xlu0 %257, %v74
    %v259 = vpop.permute.xlu0 %258
    %262 = vset.pattern.permute.xlu0 0
    %263 = vperm.xlu0 %262, %v75
    %v264 = vpop.permute.xlu0 %263
    %267 = vset.pattern.permute.xlu0 0
    %268 = vperm.xlu0 %267, %v76
    %v269 = vpop.permute.xlu0 %268
    %272 = vset.pattern.permute.xlu0 0
    %273 = vperm.xlu0 %272, %v77
    %v274 = vpop.permute.xlu0 %273
    %277 = vset.pattern.permute.xlu0 0
    %278 = vperm.xlu0 %277, %v78
    %v279 = vpop.permute.xlu0 %278
    %282 = vset.pattern.permute.xlu0 0
    %283 = vperm.xlu0 %282, %v79
    %v284 = vpop.permute.xlu0 %283
    %287 = vset.pattern.permute.xlu0 0
    %288 = vperm.xlu0 %287, %v80
    %v289 = vpop.permute.xlu0 %288
    %292 = vset.pattern.permute.xlu0 0
    %293 = vperm.xlu0 %292, %v81
    %v294 = vpop.permute.xlu0 %293
    %297 = vset.pattern.permute.xlu0 0
    %298 = vperm.xlu0 %297, %v82
    %v299 = vpop.permute.xlu0 %298
    %302 = vset.pattern.permute.xlu0 0
    %303 = vperm.xlu0 %302, %v83
    %v304 = vpop.permute.xlu0 %303
    %307 = vset.pattern.permute.xlu0 0
    %308 = vperm.xlu0 %307, %v84
    %v309 = vpop.permute.xlu0 %308
    %312 = vset.pattern.permute.xlu0 0
    %313 = vperm.xlu0 %312, %v85
    %v314 = vpop.permute.xlu0 %313
    %317 = vset.pattern.permute.xlu0 0
    %318 = vperm.xlu0 %317, %v86
    %v319 = vpop.permute.xlu0 %318
    %322 = vset.pattern.permute.xlu0 0
    %323 = vperm.xlu0 %322, %v87
    %v324 = vpop.permute.xlu0 %323
    %327 = vset.pattern.permute.xlu0 0
    %328 = vperm.xlu0 %327, %v88
    %v329 = vpop.permute.xlu0 %328
    %332 = vset.pattern.permute.xlu0 0
    %333 = vperm.xlu0 %332, %v89
    %v334 = vpop.permute.xlu0 %333
    %337 = vset.pattern.permute.xlu0 0
    %338 = vperm.xlu0 %337, %v90
    %v339 = vpop.permute.xlu0 %338
    %342 = vset.pattern.permute.xlu0 0
    %343 = vperm.xlu0 %342, %v91
    %v344 = vpop.permute.xlu0 %343
    %347 = vset.pattern.permute.xlu0 0
    %348 = vperm.xlu0 %347, %v92
    %v349 = vpop.permute.xlu0 %348
    %352 = vset.pattern.permute.xlu0 0
    %353 = vperm.xlu0 %352, %v93
    %v354 = vpop.permute.xlu0 %353
    %357 = vset.pattern.permute.xlu0 0
    %358 = vperm.xlu0 %357, %v94
    %v359 = vpop.permute.xlu0 %358
    %362 = vset.pattern.permute.xlu0 0
    %363 = vperm.xlu0 %362, %v95
    %v364 = vpop.permute.xlu0 %363
    %367 = vset.pattern.permute.xlu0 0
    %368 = vperm.xlu0 %367, %v96
    %v369 = vpop.permute.xlu0 %368
    %372 = vset.pattern.permute.xlu0 0
    %373 = vperm.xlu0 %372, %v97
    %v374 = vpop.permute.xlu0 %373
    %377 = vset.pattern.permute.xlu0 0
    %378 = vperm.xlu0 %377, %v98
    %v379 = vpop.permute.xlu0 %378
    %382 = vset.pattern.permute.xlu0 0
    %383 = vperm.xlu0 %382, %v99
    %v384 = vpop.permute.xlu0 %383
    %387 = vset.pattern.permute.xlu0 0
    %388 = vperm.xlu0 %387, %v100
    %v389 = vpop.permute.xlu0 %388
    %392 = vset.pattern.permute.xlu0 0
    %393 = vperm.xlu0 %392, %v101
    %v394 = vpop.permute.xlu0 %393
    %v397 = vperm.slane %v106, 0
    %v399 = vmul.f32 %v119, %v397
    %v400 = vmul.f32 %v124, %v397
    %v401 = vmul.f32 %v129, %v397
    %v402 = vmul.f32 %v134, %v397
    %v403 = vmul.f32 %v139, %v397
    %v404 = vmul.f32 %v144, %v397
    %v405 = vmul.f32 %v149, %v397
    %v406 = vmul.f32 %v154, %v397
    %v407 = vmul.f32 %v159, %v397
    %v408 = vmul.f32 %v164, %v397
    %v409 = vmul.f32 %v169, %v397
    %v410 = vmul.f32 %v174, %v397
    %v411 = vmul.f32 %v179, %v397
    %v412 = vmul.f32 %v184, %v397
    %v413 = vmul.f32 %v189, %v397
    %v414 = vmul.f32 %v194, %v397
    %v415 = vmul.f32 %v199, %v397
    %v416 = vmul.f32 %v204, %v397
    %v417 = vmul.f32 %v209, %v397
    %v418 = vmul.f32 %v214, %v397
    %v419 = vmul.f32 %v219, %v397
    %v420 = vmul.f32 %v224, %v397
    %v421 = vmul.f32 %v229, %v397
    %v422 = vmul.f32 %v234, %v397
    %v423 = vmul.f32 %v239, %v397
    %v424 = vmul.f32 %v244, %v397
    %v425 = vmul.f32 %v249, %v397
    %v426 = vmul.f32 %v254, %v397
    %v427 = vmul.f32 %v259, %v397
    %v428 = vmul.f32 %v264, %v397
    %v429 = vmul.f32 %v269, %v397
    %v430 = vmul.f32 %v274, %v397
    %v431 = vmul.f32 %v279, %v397
    %v432 = vmul.f32 %v284, %v397
    %v433 = vmul.f32 %v289, %v397
    %v434 = vmul.f32 %v294, %v397
    %v435 = vmul.f32 %v299, %v397
    %v436 = vmul.f32 %v304, %v397
    %v437 = vmul.f32 %v309, %v397
    %v438 = vmul.f32 %v314, %v397
    %v439 = vmul.f32 %v319, %v397
    %v440 = vmul.f32 %v324, %v397
    %v441 = vmul.f32 %v329, %v397
    %v442 = vmul.f32 %v334, %v397
    %v443 = vmul.f32 %v339, %v397
    %v444 = vmul.f32 %v344, %v397
    %v445 = vmul.f32 %v349, %v397
    %v446 = vmul.f32 %v354, %v397
    %v447 = vmul.f32 %v359, %v397
    %v448 = vmul.f32 %v364, %v397
    %v449 = vmul.f32 %v369, %v397
    %v450 = vmul.f32 %v374, %v397
    %v451 = vmul.f32 %v379, %v397
    %v452 = vmul.f32 %v384, %v397
    %v453 = vmul.f32 %v389, %v397
    %v454 = vmul.f32 %v394, %v397
    %v455 = vadd.f32 %v399, 0.0
    %v456 = vadd.f32 %v400, 0.0
    %v457 = vadd.f32 %v401, 0.0
    %v458 = vadd.f32 %v402, 0.0
    %v459 = vadd.f32 %v403, 0.0
    %v460 = vadd.f32 %v404, 0.0
    %v461 = vadd.f32 %v405, 0.0
    %v462 = vadd.f32 %v406, 0.0
    %v463 = vadd.f32 %v407, 0.0
    %v464 = vadd.f32 %v408, 0.0
    %v465 = vadd.f32 %v409, 0.0
    %v466 = vadd.f32 %v410, 0.0
    %v467 = vadd.f32 %v411, 0.0
    %v468 = vadd.f32 %v412, 0.0
    %v469 = vadd.f32 %v413, 0.0
    %v470 = vadd.f32 %v414, 0.0
    %v471 = vadd.f32 %v415, 0.0
    %v472 = vadd.f32 %v416, 0.0
    %v473 = vadd.f32 %v417, 0.0
    %v474 = vadd.f32 %v418, 0.0
    %v475 = vadd.f32 %v419, 0.0
    %v476 = vadd.f32 %v420, 0.0
    %v477 = vadd.f32 %v421, 0.0
    %v478 = vadd.f32 %v422, 0.0
    %v479 = vadd.f32 %v423, 0.0
    %v480 = vadd.f32 %v424, 0.0
    %v481 = vadd.f32 %v425, 0.0
    %v482 = vadd.f32 %v426, 0.0
    %v483 = vadd.f32 %v427, 0.0
    %v484 = vadd.f32 %v428, 0.0
    %v485 = vadd.f32 %v429, 0.0
    %v486 = vadd.f32 %v430, 0.0
    %v487 = vadd.f32 %v431, 0.0
    %v488 = vadd.f32 %v432, 0.0
    %v489 = vadd.f32 %v433, 0.0
    %v490 = vadd.f32 %v434, 0.0
    %v491 = vadd.f32 %v435, 0.0
    %v492 = vadd.f32 %v436, 0.0
    %v493 = vadd.f32 %v437, 0.0
    %v494 = vadd.f32 %v438, 0.0
    %v495 = vadd.f32 %v439, 0.0
    %v496 = vadd.f32 %v440, 0.0
    %v497 = vadd.f32 %v441, 0.0
    %v498 = vadd.f32 %v442, 0.0
    %v499 = vadd.f32 %v443, 0.0
    %v500 = vadd.f32 %v444, 0.0
    %v501 = vadd.f32 %v445, 0.0
    %v502 = vadd.f32 %v446, 0.0
    %v503 = vadd.f32 %v447, 0.0
    %v504 = vadd.f32 %v448, 0.0
    %v505 = vadd.f32 %v449, 0.0
    %v506 = vadd.f32 %v450, 0.0
    %v507 = vadd.f32 %v451, 0.0
    %v508 = vadd.f32 %v452, 0.0
    %v509 = vadd.f32 %v453, 0.0
    %v510 = vadd.f32 %v454, 0.0
    %v512 = vperm.slane %v107, 0
    %v514 = vmul.f32 %v119, %v512
    %v515 = vmul.f32 %v124, %v512
    %v516 = vmul.f32 %v129, %v512
    %v517 = vmul.f32 %v134, %v512
    %v518 = vmul.f32 %v139, %v512
    %v519 = vmul.f32 %v144, %v512
    %v520 = vmul.f32 %v149, %v512
    %v521 = vmul.f32 %v154, %v512
    %v522 = vmul.f32 %v159, %v512
    %v523 = vmul.f32 %v164, %v512
    %v524 = vmul.f32 %v169, %v512
    %v525 = vmul.f32 %v174, %v512
    %v526 = vmul.f32 %v179, %v512
    %v527 = vmul.f32 %v184, %v512
    %v528 = vmul.f32 %v189, %v512
    %v529 = vmul.f32 %v194, %v512
    %v530 = vmul.f32 %v199, %v512
    %v531 = vmul.f32 %v204, %v512
    %v532 = vmul.f32 %v209, %v512
    %v533 = vmul.f32 %v214, %v512
    %v534 = vmul.f32 %v219, %v512
    %v535 = vmul.f32 %v224, %v512
    %v536 = vmul.f32 %v229, %v512
    %v537 = vmul.f32 %v234, %v512
    %v538 = vmul.f32 %v239, %v512
    %v539 = vmul.f32 %v244, %v512
    %v540 = vmul.f32 %v249, %v512
    %v541 = vmul.f32 %v254, %v512
    %v542 = vmul.f32 %v259, %v512
    %v543 = vmul.f32 %v264, %v512
    %v544 = vmul.f32 %v269, %v512
    %v545 = vmul.f32 %v274, %v512
    %v546 = vmul.f32 %v279, %v512
    %v547 = vmul.f32 %v284, %v512
    %v548 = vmul.f32 %v289, %v512
    %v549 = vmul.f32 %v294, %v512
    %v550 = vmul.f32 %v299, %v512
    %v551 = vmul.f32 %v304, %v512
    %v552 = vmul.f32 %v309, %v512
    %v553 = vmul.f32 %v314, %v512
    %v554 = vmul.f32 %v319, %v512
    %v555 = vmul.f32 %v324, %v512
    %v556 = vmul.f32 %v329, %v512
    %v557 = vmul.f32 %v334, %v512
    %v558 = vmul.f32 %v339, %v512
    %v559 = vmul.f32 %v344, %v512
    %v560 = vmul.f32 %v349, %v512
    %v561 = vmul.f32 %v354, %v512
    %v562 = vmul.f32 %v359, %v512
    %v563 = vmul.f32 %v364, %v512
    %v564 = vmul.f32 %v369, %v512
    %v565 = vmul.f32 %v374, %v512
    %v566 = vmul.f32 %v379, %v512
    %v567 = vmul.f32 %v384, %v512
    %v568 = vmul.f32 %v389, %v512
    %v569 = vmul.f32 %v394, %v512
    %vm626 = vcmask 1046528
    %v627 = vrot.slane %v514, 1
    %v628 = vrot.slane %v515, 1
    %v629 = vsel %vm626, %v627, %v628
    %v630 = vrot.slane %v516, 1
    %v631 = vrot.slane %v517, 1
    %v632 = vsel %vm626, %v630, %v631
    %v633 = vrot.slane %v518, 1
    %v634 = vrot.slane %v519, 1
    %v635 = vsel %vm626, %v633, %v634
    %v636 = vrot.slane %v520, 1
    %v637 = vrot.slane %v521, 1
    %v638 = vsel %vm626, %v636, %v637
    %v639 = vrot.slane %v522, 1
    %v640 = vrot.slane %v523, 1
    %v641 = vsel %vm626, %v639, %v640
    %v642 = vrot.slane %v524, 1
    %v643 = vrot.slane %v525, 1
    %v644 = vsel %vm626, %v642, %v643
    %v645 = vrot.slane %v526, 1
    %v646 = vrot.slane %v527, 1
    %v647 = vsel %vm626, %v645, %v646
    %v648 = vrot.slane %v528, 1
    %v649 = vrot.slane %v529, 1
    %v650 = vsel %vm626, %v648, %v649
    %v651 = vrot.slane %v530, 1
    %v652 = vrot.slane %v531, 1
    %v653 = vsel %vm626, %v651, %v652
    %v654 = vrot.slane %v532, 1
    %v655 = vrot.slane %v533, 1
    %v656 = vsel %vm626, %v654, %v655
    %v657 = vrot.slane %v534, 1
    %v658 = vrot.slane %v535, 1
    %v659 = vsel %vm626, %v657, %v658
    %v660 = vrot.slane %v536, 1
    %v661 = vrot.slane %v537, 1
    %v662 = vsel %vm626, %v660, %v661
    %v663 = vrot.slane %v538, 1
    %v664 = vrot.slane %v539, 1
    %v665 = vsel %vm626, %v663, %v664
    %v666 = vrot.slane %v540, 1
    %v667 = vrot.slane %v541, 1
    %v668 = vsel %vm626, %v666, %v667
    %v669 = vrot.slane %v542, 1
    %v670 = vrot.slane %v543, 1
    %v671 = vsel %vm626, %v669, %v670
    %v672 = vrot.slane %v544, 1
    %v673 = vrot.slane %v545, 1
    %v674 = vsel %vm626, %v672, %v673
    %v675 = vrot.slane %v546, 1
    %v676 = vrot.slane %v547, 1
    %v677 = vsel %vm626, %v675, %v676
    %v678 = vrot.slane %v548, 1
    %v679 = vrot.slane %v549, 1
    %v680 = vsel %vm626, %v678, %v679
    %v681 = vrot.slane %v550, 1
    %v682 = vrot.slane %v551, 1
    %v683 = vsel %vm626, %v681, %v682
    %v684 = vrot.slane %v552, 1
    %v685 = vrot.slane %v553, 1
    %v686 = vsel %vm626, %v684, %v685
    %v687 = vrot.slane %v554, 1
    %v688 = vrot.slane %v555, 1
    %v689 = vsel %vm626, %v687, %v688
    %v690 = vrot.slane %v556, 1
    %v691 = vrot.slane %v557, 1
    %v692 = vsel %vm626, %v690, %v691
    %v693 = vrot.slane %v558, 1
    %v694 = vrot.slane %v559, 1
    %v695 = vsel %vm626, %v693, %v694
    %v696 = vrot.slane %v560, 1
    %v697 = vrot.slane %v561, 1
    %v698 = vsel %vm626, %v696, %v697
    %v699 = vrot.slane %v562, 1
    %v700 = vrot.slane %v563, 1
    %v701 = vsel %vm626, %v699, %v700
    %v702 = vrot.slane %v564, 1
    %v703 = vrot.slane %v565, 1
    %v704 = vsel %vm626, %v702, %v703
    %v705 = vrot.slane %v566, 1
    %v706 = vrot.slane %v567, 1
    %v707 = vsel %vm626, %v705, %v706
    %v708 = vrot.slane %v568, 1
    %v709 = vrot.slane %v569, 1
    %v710 = vsel %vm626, %v708, %v709
    %v767 = vadd.f32 %v455, %v629
    %v768 = vadd.f32 %v456, %v628
    %v769 = vadd.f32 %v457, %v632
    %v770 = vadd.f32 %v458, %v631
    %v771 = vadd.f32 %v459, %v635
    %v772 = vadd.f32 %v460, %v634
    %v773 = vadd.f32 %v461, %v638
    %v774 = vadd.f32 %v462, %v637
    %v775 = vadd.f32 %v463, %v641
    %v776 = vadd.f32 %v464, %v640
    %v777 = vadd.f32 %v465, %v644
    %v778 = vadd.f32 %v466, %v643
    %v779 = vadd.f32 %v467, %v647
    %v780 = vadd.f32 %v468, %v646
    %v781 = vadd.f32 %v469, %v650
    %v782 = vadd.f32 %v470, %v649
    %v783 = vadd.f32 %v471, %v653
    %v784 = vadd.f32 %v472, %v652
    %v785 = vadd.f32 %v473, %v656
    %v786 = vadd.f32 %v474, %v655
    %v787 = vadd.f32 %v475, %v659
    %v788 = vadd.f32 %v476, %v658
    %v789 = vadd.f32 %v477, %v662
    %v790 = vadd.f32 %v478, %v661
    %v791 = vadd.f32 %v479, %v665
    %v792 = vadd.f32 %v480, %v664
    %v793 = vadd.f32 %v481, %v668
    %v794 = vadd.f32 %v482, %v667
    %v795 = vadd.f32 %v483, %v671
    %v796 = vadd.f32 %v484, %v670
    %v797 = vadd.f32 %v485, %v674
    %v798 = vadd.f32 %v486, %v673
    %v799 = vadd.f32 %v487, %v677
    %v800 = vadd.f32 %v488, %v676
    %v801 = vadd.f32 %v489, %v680
    %v802 = vadd.f32 %v490, %v679
    %v803 = vadd.f32 %v491, %v683
    %v804 = vadd.f32 %v492, %v682
    %v805 = vadd.f32 %v493, %v686
    %v806 = vadd.f32 %v494, %v685
    %v807 = vadd.f32 %v495, %v689
    %v808 = vadd.f32 %v496, %v688
    %v809 = vadd.f32 %v497, %v692
    %v810 = vadd.f32 %v498, %v691
    %v811 = vadd.f32 %v499, %v695
    %v812 = vadd.f32 %v500, %v694
    %v813 = vadd.f32 %v501, %v698
    %v814 = vadd.f32 %v502, %v697
    %v815 = vadd.f32 %v503, %v701
    %v816 = vadd.f32 %v504, %v700
    %v817 = vadd.f32 %v505, %v704
    %v818 = vadd.f32 %v506, %v703
    %v819 = vadd.f32 %v507, %v707
    %v820 = vadd.f32 %v508, %v706
    %v821 = vadd.f32 %v509, %v710
    %v822 = vadd.f32 %v510, %v709
    %v824 = vperm.slane %v108, 0
    %v826 = vmul.f32 %v119, %v824
    %v827 = vmul.f32 %v124, %v824
    %v828 = vmul.f32 %v129, %v824
    %v829 = vmul.f32 %v134, %v824
    %v830 = vmul.f32 %v139, %v824
    %v831 = vmul.f32 %v144, %v824
    %v832 = vmul.f32 %v149, %v824
    %v833 = vmul.f32 %v154, %v824
    %v834 = vmul.f32 %v159, %v824
    %v835 = vmul.f32 %v164, %v824
    %v836 = vmul.f32 %v169, %v824
    %v837 = vmul.f32 %v174, %v824
    %v838 = vmul.f32 %v179, %v824
    %v839 = vmul.f32 %v184, %v824
    %v840 = vmul.f32 %v189, %v824
    %v841 = vmul.f32 %v194, %v824
    %v842 = vmul.f32 %v199, %v824
    %v843 = vmul.f32 %v204, %v824
    %v844 = vmul.f32 %v209, %v824
    %v845 = vmul.f32 %v214, %v824
    %v846 = vmul.f32 %v219, %v824
    %v847 = vmul.f32 %v224, %v824
    %v848 = vmul.f32 %v229, %v824
    %v849 = vmul.f32 %v234, %v824
    %v850 = vmul.f32 %v239, %v824
    %v851 = vmul.f32 %v244, %v824
    %v852 = vmul.f32 %v249, %v824
    %v853 = vmul.f32 %v254, %v824
    %v854 = vmul.f32 %v259, %v824
    %v855 = vmul.f32 %v264, %v824
    %v856 = vmul.f32 %v269, %v824
    %v857 = vmul.f32 %v274, %v824
    %v858 = vmul.f32 %v279, %v824
    %v859 = vmul.f32 %v284, %v824
    %v860 = vmul.f32 %v289, %v824
    %v861 = vmul.f32 %v294, %v824
    %v862 = vmul.f32 %v299, %v824
    %v863 = vmul.f32 %v304, %v824
    %v864 = vmul.f32 %v309, %v824
    %v865 = vmul.f32 %v314, %v824
    %v866 = vmul.f32 %v319, %v824
    %v867 = vmul.f32 %v324, %v824
    %v868 = vmul.f32 %v329, %v824
    %v869 = vmul.f32 %v334, %v824
    %v870 = vmul.f32 %v339, %v824
    %v871 = vmul.f32 %v344, %v824
    %v872 = vmul.f32 %v349, %v824
    %v873 = vmul.f32 %v354, %v824
    %v874 = vmul.f32 %v359, %v824
    %v875 = vmul.f32 %v364, %v824
    %v876 = vmul.f32 %v369, %v824
    %v877 = vmul.f32 %v374, %v824
    %v878 = vmul.f32 %v379, %v824
    %v879 = vmul.f32 %v384, %v824
    %v880 = vmul.f32 %v389, %v824
    %v881 = vmul.f32 %v394, %v824
    %vm938 = vcmask 1045504
    %v939 = vrot.slane %v826, 2
    %v940 = vrot.slane %v827, 2
    %v941 = vsel %vm938, %v939, %v940
    %v942 = vrot.slane %v828, 2
    %v943 = vrot.slane %v829, 2
    %v944 = vsel %vm938, %v942, %v943
    %v945 = vrot.slane %v830, 2
    %v946 = vrot.slane %v831, 2
    %v947 = vsel %vm938, %v945, %v946
    %v948 = vrot.slane %v832, 2
    %v949 = vrot.slane %v833, 2
    %v950 = vsel %vm938, %v948, %v949
    %v951 = vrot.slane %v834, 2
    %v952 = vrot.slane %v835, 2
    %v953 = vsel %vm938, %v951, %v952
    %v954 = vrot.slane %v836, 2
    %v955 = vrot.slane %v837, 2
    %v956 = vsel %vm938, %v954, %v955
    %v957 = vrot.slane %v838, 2
    %v958 = vrot.slane %v839, 2
    %v959 = vsel %vm938, %v957, %v958
    %v960 = vrot.slane %v840, 2
    %v961 = vrot.slane %v841, 2
    %v962 = vsel %vm938, %v960, %v961
    %v963 = vrot.slane %v842, 2
    %v964 = vrot.slane %v843, 2
    %v965 = vsel %vm938, %v963, %v964
    %v966 = vrot.slane %v844, 2
    %v967 = vrot.slane %v845, 2
    %v968 = vsel %vm938, %v966, %v967
    %v969 = vrot.slane %v846, 2
    %v970 = vrot.slane %v847, 2
    %v971 = vsel %vm938, %v969, %v970
    %v972 = vrot.slane %v848, 2
    %v973 = vrot.slane %v849, 2
    %v974 = vsel %vm938, %v972, %v973
    %v975 = vrot.slane %v850, 2
    %v976 = vrot.slane %v851, 2
    %v977 = vsel %vm938, %v975, %v976
    %v978 = vrot.slane %v852, 2
    %v979 = vrot.slane %v853, 2
    %v980 = vsel %vm938, %v978, %v979
    %v981 = vrot.slane %v854, 2
    %v982 = vrot.slane %v855, 2
    %v983 = vsel %vm938, %v981, %v982
    %v984 = vrot.slane %v856, 2
    %v985 = vrot.slane %v857, 2
    %v986 = vsel %vm938, %v984, %v985
    %v987 = vrot.slane %v858, 2
    %v988 = vrot.slane %v859, 2
    %v989 = vsel %vm938, %v987, %v988
    %v990 = vrot.slane %v860, 2
    %v991 = vrot.slane %v861, 2
    %v992 = vsel %vm938, %v990, %v991
    %v993 = vrot.slane %v862, 2
    %v994 = vrot.slane %v863, 2
    %v995 = vsel %vm938, %v993, %v994
    %v996 = vrot.slane %v864, 2
    %v997 = vrot.slane %v865, 2
    %v998 = vsel %vm938, %v996, %v997
    %v999 = vrot.slane %v866, 2
    %v1000 = vrot.slane %v867, 2
    %v1001 = vsel %vm938, %v999, %v1000
    %v1002 = vrot.slane %v868, 2
    %v1003 = vrot.slane %v869, 2
    %v1004 = vsel %vm938, %v1002, %v1003
    %v1005 = vrot.slane %v870, 2
    %v1006 = vrot.slane %v871, 2
    %v1007 = vsel %vm938, %v1005, %v1006
    %v1008 = vrot.slane %v872, 2
    %v1009 = vrot.slane %v873, 2
    %v1010 = vsel %vm938, %v1008, %v1009
    %v1011 = vrot.slane %v874, 2
    %v1012 = vrot.slane %v875, 2
    %v1013 = vsel %vm938, %v1011, %v1012
    %v1014 = vrot.slane %v876, 2
    %v1015 = vrot.slane %v877, 2
    %v1016 = vsel %vm938, %v1014, %v1015
    %v1017 = vrot.slane %v878, 2
    %v1018 = vrot.slane %v879, 2
    %v1019 = vsel %vm938, %v1017, %v1018
    %v1020 = vrot.slane %v880, 2
    %v1021 = vrot.slane %v881, 2
    %v1022 = vsel %vm938, %v1020, %v1021
    %v1079 = vadd.f32 %v767, %v941
    %v1080 = vadd.f32 %v768, %v940
    %v1081 = vadd.f32 %v769, %v944
    %v1082 = vadd.f32 %v770, %v943
    %v1083 = vadd.f32 %v771, %v947
    %v1084 = vadd.f32 %v772, %v946
    %v1085 = vadd.f32 %v773, %v950
    %v1086 = vadd.f32 %v774, %v949
    %v1087 = vadd.f32 %v775, %v953
    %v1088 = vadd.f32 %v776, %v952
    %v1089 = vadd.f32 %v777, %v956
    %v1090 = vadd.f32 %v778, %v955
    %v1091 = vadd.f32 %v779, %v959
    %v1092 = vadd.f32 %v780, %v958
    %v1093 = vadd.f32 %v781, %v962
    %v1094 = vadd.f32 %v782, %v961
    %v1095 = vadd.f32 %v783, %v965
    %v1096 = vadd.f32 %v784, %v964
    %v1097 = vadd.f32 %v785, %v968
    %v1098 = vadd.f32 %v786, %v967
    %v1099 = vadd.f32 %v787, %v971
    %v1100 = vadd.f32 %v788, %v970
    %v1101 = vadd.f32 %v789, %v974
    %v1102 = vadd.f32 %v790, %v973
    %v1103 = vadd.f32 %v791, %v977
    %v1104 = vadd.f32 %v792, %v976
    %v1105 = vadd.f32 %v793, %v980
    %v1106 = vadd.f32 %v794, %v979
    %v1107 = vadd.f32 %v795, %v983
    %v1108 = vadd.f32 %v796, %v982
    %v1109 = vadd.f32 %v797, %v986
    %v1110 = vadd.f32 %v798, %v985
    %v1111 = vadd.f32 %v799, %v989
    %v1112 = vadd.f32 %v800, %v988
    %v1113 = vadd.f32 %v801, %v992
    %v1114 = vadd.f32 %v802, %v991
    %v1115 = vadd.f32 %v803, %v995
    %v1116 = vadd.f32 %v804, %v994
    %v1117 = vadd.f32 %v805, %v998
    %v1118 = vadd.f32 %v806, %v997
    %v1119 = vadd.f32 %v807, %v1001
    %v1120 = vadd.f32 %v808, %v1000
    %v1121 = vadd.f32 %v809, %v1004
    %v1122 = vadd.f32 %v810, %v1003
    %v1123 = vadd.f32 %v811, %v1007
    %v1124 = vadd.f32 %v812, %v1006
    %v1125 = vadd.f32 %v813, %v1010
    %v1126 = vadd.f32 %v814, %v1009
    %v1127 = vadd.f32 %v815, %v1013
    %v1128 = vadd.f32 %v816, %v1012
    %v1129 = vadd.f32 %v817, %v1016
    %v1130 = vadd.f32 %v818, %v1015
    %v1131 = vadd.f32 %v819, %v1019
    %v1132 = vadd.f32 %v820, %v1018
    %v1133 = vadd.f32 %v821, %v1022
    %v1134 = vadd.f32 %v822, %v1021
    %1136 = vset.pattern.permute.xlu0 0
    %1137 = vperm.xlu0 %1136, %v70
    %v1138 = vpop.permute.xlu0 %1137
    %1141 = vset.pattern.permute.xlu0 0
    %1142 = vperm.xlu0 %1141, %v71
    %v1143 = vpop.permute.xlu0 %1142
    %1146 = vset.pattern.permute.xlu0 0
    %1147 = vperm.xlu0 %1146, %v102
    %v1148 = vpop.permute.xlu0 %1147
    %1151 = vset.pattern.permute.xlu0 0
    %1152 = vperm.xlu0 %1151, %v103
    %v1153 = vpop.permute.xlu0 %1152
    %v1156 = vperm.slane %v109, 0
    %v1158 = vmul.f32 %v129, %v1156
    %v1159 = vmul.f32 %v134, %v1156
    %v1160 = vmul.f32 %v139, %v1156
    %v1161 = vmul.f32 %v144, %v1156
    %v1162 = vmul.f32 %v149, %v1156
    %v1163 = vmul.f32 %v154, %v1156
    %v1164 = vmul.f32 %v159, %v1156
    %v1165 = vmul.f32 %v164, %v1156
    %v1166 = vmul.f32 %v169, %v1156
    %v1167 = vmul.f32 %v174, %v1156
    %v1168 = vmul.f32 %v179, %v1156
    %v1169 = vmul.f32 %v184, %v1156
    %v1170 = vmul.f32 %v189, %v1156
    %v1171 = vmul.f32 %v194, %v1156
    %v1172 = vmul.f32 %v199, %v1156
    %v1173 = vmul.f32 %v204, %v1156
    %v1174 = vmul.f32 %v209, %v1156
    %v1175 = vmul.f32 %v214, %v1156
    %v1176 = vmul.f32 %v219, %v1156
    %v1177 = vmul.f32 %v224, %v1156
    %v1178 = vmul.f32 %v229, %v1156
    %v1179 = vmul.f32 %v234, %v1156
    %v1180 = vmul.f32 %v239, %v1156
    %v1181 = vmul.f32 %v244, %v1156
    %v1182 = vmul.f32 %v249, %v1156
    %v1183 = vmul.f32 %v254, %v1156
    %v1184 = vmul.f32 %v1138, %v1156
    %v1185 = vmul.f32 %v1143, %v1156
    %v1186 = vmul.f32 %v269, %v1156
    %v1187 = vmul.f32 %v274, %v1156
    %v1188 = vmul.f32 %v279, %v1156
    %v1189 = vmul.f32 %v284, %v1156
    %v1190 = vmul.f32 %v289, %v1156
    %v1191 = vmul.f32 %v294, %v1156
    %v1192 = vmul.f32 %v299, %v1156
    %v1193 = vmul.f32 %v304, %v1156
    %v1194 = vmul.f32 %v309, %v1156
    %v1195 = vmul.f32 %v314, %v1156
    %v1196 = vmul.f32 %v319, %v1156
    %v1197 = vmul.f32 %v324, %v1156
    %v1198 = vmul.f32 %v329, %v1156
    %v1199 = vmul.f32 %v334, %v1156
    %v1200 = vmul.f32 %v339, %v1156
    %v1201 = vmul.f32 %v344, %v1156
    %v1202 = vmul.f32 %v349, %v1156
    %v1203 = vmul.f32 %v354, %v1156
    %v1204 = vmul.f32 %v359, %v1156
    %v1205 = vmul.f32 %v364, %v1156
    %v1206 = vmul.f32 %v369, %v1156
    %v1207 = vmul.f32 %v374, %v1156
    %v1208 = vmul.f32 %v379, %v1156
    %v1209 = vmul.f32 %v384, %v1156
    %v1210 = vmul.f32 %v389, %v1156
    %v1211 = vmul.f32 %v394, %v1156
    %v1212 = vmul.f32 %v1148, %v1156
    %v1213 = vmul.f32 %v1153, %v1156
    %v1214 = vadd.f32 %v1079, %v1158
    %v1215 = vadd.f32 %v1080, %v1159
    %v1216 = vadd.f32 %v1081, %v1160
    %v1217 = vadd.f32 %v1082, %v1161
    %v1218 = vadd.f32 %v1083, %v1162
    %v1219 = vadd.f32 %v1084, %v1163
    %v1220 = vadd.f32 %v1085, %v1164
    %v1221 = vadd.f32 %v1086, %v1165
    %v1222 = vadd.f32 %v1087, %v1166
    %v1223 = vadd.f32 %v1088, %v1167
    %v1224 = vadd.f32 %v1089, %v1168
    %v1225 = vadd.f32 %v1090, %v1169
    %v1226 = vadd.f32 %v1091, %v1170
    %v1227 = vadd.f32 %v1092, %v1171
    %v1228 = vadd.f32 %v1093, %v1172
    %v1229 = vadd.f32 %v1094, %v1173
    %v1230 = vadd.f32 %v1095, %v1174
    %v1231 = vadd.f32 %v1096, %v1175
    %v1232 = vadd.f32 %v1097, %v1176
    %v1233 = vadd.f32 %v1098, %v1177
    %v1234 = vadd.f32 %v1099, %v1178
    %v1235 = vadd.f32 %v1100, %v1179
    %v1236 = vadd.f32 %v1101, %v1180
    %v1237 = vadd.f32 %v1102, %v1181
    %v1238 = vadd.f32 %v1103, %v1182
    %v1239 = vadd.f32 %v1104, %v1183
    %v1240 = vadd.f32 %v1105, %v1184
    %v1241 = vadd.f32 %v1106, %v1185
    %v1242 = vadd.f32 %v1107, %v1186
    %v1243 = vadd.f32 %v1108, %v1187
    %v1244 = vadd.f32 %v1109, %v1188
    %v1245 = vadd.f32 %v1110, %v1189
    %v1246 = vadd.f32 %v1111, %v1190
    %v1247 = vadd.f32 %v1112, %v1191
    %v1248 = vadd.f32 %v1113, %v1192
    %v1249 = vadd.f32 %v1114, %v1193
    %v1250 = vadd.f32 %v1115, %v1194
    %v1251 = vadd.f32 %v1116, %v1195
    %v1252 = vadd.f32 %v1117, %v1196
    %v1253 = vadd.f32 %v1118, %v1197
    %v1254 = vadd.f32 %v1119, %v1198
    %v1255 = vadd.f32 %v1120, %v1199
    %v1256 = vadd.f32 %v1121, %v1200
    %v1257 = vadd.f32 %v1122, %v1201
    %v1258 = vadd.f32 %v1123, %v1202
    %v1259 = vadd.f32 %v1124, %v1203
    %v1260 = vadd.f32 %v1125, %v1204
    %v1261 = vadd.f32 %v1126, %v1205
    %v1262 = vadd.f32 %v1127, %v1206
    %v1263 = vadd.f32 %v1128, %v1207
    %v1264 = vadd.f32 %v1129, %v1208
    %v1265 = vadd.f32 %v1130, %v1209
    %v1266 = vadd.f32 %v1131, %v1210
    %v1267 = vadd.f32 %v1132, %v1211
    %v1268 = vadd.f32 %v1133, %v1212
    %v1269 = vadd.f32 %v1134, %v1213
    %v1271 = vperm.slane %v110, 0
    %v1273 = vmul.f32 %v129, %v1271
    %v1274 = vmul.f32 %v134, %v1271
    %v1275 = vmul.f32 %v139, %v1271
    %v1276 = vmul.f32 %v144, %v1271
    %v1277 = vmul.f32 %v149, %v1271
    %v1278 = vmul.f32 %v154, %v1271
    %v1279 = vmul.f32 %v159, %v1271
    %v1280 = vmul.f32 %v164, %v1271
    %v1281 = vmul.f32 %v169, %v1271
    %v1282 = vmul.f32 %v174, %v1271
    %v1283 = vmul.f32 %v179, %v1271
    %v1284 = vmul.f32 %v184, %v1271
    %v1285 = vmul.f32 %v189, %v1271
    %v1286 = vmul.f32 %v194, %v1271
    %v1287 = vmul.f32 %v199, %v1271
    %v1288 = vmul.f32 %v204, %v1271
    %v1289 = vmul.f32 %v209, %v1271
    %v1290 = vmul.f32 %v214, %v1271
    %v1291 = vmul.f32 %v219, %v1271
    %v1292 = vmul.f32 %v224, %v1271
    %v1293 = vmul.f32 %v229, %v1271
    %v1294 = vmul.f32 %v234, %v1271
    %v1295 = vmul.f32 %v239, %v1271
    %v1296 = vmul.f32 %v244, %v1271
    %v1297 = vmul.f32 %v249, %v1271
    %v1298 = vmul.f32 %v254, %v1271
    %v1299 = vmul.f32 %v1138, %v1271
    %v1300 = vmul.f32 %v1143, %v1271
    %v1301 = vmul.f32 %v269, %v1271
    %v1302 = vmul.f32 %v274, %v1271
    %v1303 = vmul.f32 %v279, %v1271
    %v1304 = vmul.f32 %v284, %v1271
    %v1305 = vmul.f32 %v289, %v1271
    %v1306 = vmul.f32 %v294, %v1271
    %v1307 = vmul.f32 %v299, %v1271
    %v1308 = vmul.f32 %v304, %v1271
    %v1309 = vmul.f32 %v309, %v1271
    %v1310 = vmul.f32 %v314, %v1271
    %v1311 = vmul.f32 %v319, %v1271
    %v1312 = vmul.f32 %v324, %v1271
    %v1313 = vmul.f32 %v329, %v1271
    %v1314 = vmul.f32 %v334, %v1271
    %v1315 = vmul.f32 %v339, %v1271
    %v1316 = vmul.f32 %v344, %v1271
    %v1317 = vmul.f32 %v349, %v1271
    %v1318 = vmul.f32 %v354, %v1271
    %v1319 = vmul.f32 %v359, %v1271
    %v1320 = vmul.f32 %v364, %v1271
    %v1321 = vmul.f32 %v369, %v1271
    %v1322 = vmul.f32 %v374, %v1271
    %v1323 = vmul.f32 %v379, %v1271
    %v1324 = vmul.f32 %v384, %v1271
    %v1325 = vmul.f32 %v389, %v1271
    %v1326 = vmul.f32 %v394, %v1271
    %v1327 = vmul.f32 %v1148, %v1271
    %v1328 = vmul.f32 %v1153, %v1271
    %v1385 = vrot.slane %v1273, 1
    %v1386 = vrot.slane %v1274, 1
    %v1387 = vsel %vm626, %v1385, %v1386
    %v1388 = vrot.slane %v1275, 1
    %v1389 = vrot.slane %v1276, 1
    %v1390 = vsel %vm626, %v1388, %v1389
    %v1391 = vrot.slane %v1277, 1
    %v1392 = vrot.slane %v1278, 1
    %v1393 = vsel %vm626, %v1391, %v1392
    %v1394 = vrot.slane %v1279, 1
    %v1395 = vrot.slane %v1280, 1
    %v1396 = vsel %vm626, %v1394, %v1395
    %v1397 = vrot.slane %v1281, 1
    %v1398 = vrot.slane %v1282, 1
    %v1399 = vsel %vm626, %v1397, %v1398
    %v1400 = vrot.slane %v1283, 1
    %v1401 = vrot.slane %v1284, 1
    %v1402 = vsel %vm626, %v1400, %v1401
    %v1403 = vrot.slane %v1285, 1
    %v1404 = vrot.slane %v1286, 1
    %v1405 = vsel %vm626, %v1403, %v1404
    %v1406 = vrot.slane %v1287, 1
    %v1407 = vrot.slane %v1288, 1
    %v1408 = vsel %vm626, %v1406, %v1407
    %v1409 = vrot.slane %v1289, 1
    %v1410 = vrot.slane %v1290, 1
    %v1411 = vsel %vm626, %v1409, %v1410
    %v1412 = vrot.slane %v1291, 1
    %v1413 = vrot.slane %v1292, 1
    %v1414 = vsel %vm626, %v1412, %v1413
    %v1415 = vrot.slane %v1293, 1
    %v1416 = vrot.slane %v1294, 1
    %v1417 = vsel %vm626, %v1415, %v1416
    %v1418 = vrot.slane %v1295, 1
    %v1419 = vrot.slane %v1296, 1
    %v1420 = vsel %vm626, %v1418, %v1419
    %v1421 = vrot.slane %v1297, 1
    %v1422 = vrot.slane %v1298, 1
    %v1423 = vsel %vm626, %v1421, %v1422
    %v1424 = vrot.slane %v1299, 1
    %v1425 = vrot.slane %v1300, 1
    %v1426 = vsel %vm626, %v1424, %v1425
    %v1427 = vrot.slane %v1301, 1
    %v1428 = vrot.slane %v1302, 1
    %v1429 = vsel %vm626, %v1427, %v1428
    %v1430 = vrot.slane %v1303, 1
    %v1431 = vrot.slane %v1304, 1
    %v1432 = vsel %vm626, %v1430, %v1431
    %v1433 = vrot.slane %v1305, 1
    %v1434 = vrot.slane %v1306, 1
    %v1435 = vsel %vm626, %v1433, %v1434
    %v1436 = vrot.slane %v1307, 1
    %v1437 = vrot.slane %v1308, 1
    %v1438 = vsel %vm626, %v1436, %v1437
    %v1439 = vrot.slane %v1309, 1
    %v1440 = vrot.slane %v1310, 1
    %v1441 = vsel %vm626, %v1439, %v1440
    %v1442 = vrot.slane %v1311, 1
    %v1443 = vrot.slane %v1312, 1
    %v1444 = vsel %vm626, %v1442, %v1443
    %v1445 = vrot.slane %v1313, 1
    %v1446 = vrot.slane %v1314, 1
    %v1447 = vsel %vm626, %v1445, %v1446
    %v1448 = vrot.slane %v1315, 1
    %v1449 = vrot.slane %v1316, 1
    %v1450 = vsel %vm626, %v1448, %v1449
    %v1451 = vrot.slane %v1317, 1
    %v1452 = vrot.slane %v1318, 1
    %v1453 = vsel %vm626, %v1451, %v1452
    %v1454 = vrot.slane %v1319, 1
    %v1455 = vrot.slane %v1320, 1
    %v1456 = vsel %vm626, %v1454, %v1455
    %v1457 = vrot.slane %v1321, 1
    %v1458 = vrot.slane %v1322, 1
    %v1459 = vsel %vm626, %v1457, %v1458
    %v1460 = vrot.slane %v1323, 1
    %v1461 = vrot.slane %v1324, 1
    %v1462 = vsel %vm626, %v1460, %v1461
    %v1463 = vrot.slane %v1325, 1
    %v1464 = vrot.slane %v1326, 1
    %v1465 = vsel %vm626, %v1463, %v1464
    %v1466 = vrot.slane %v1327, 1
    %v1467 = vrot.slane %v1328, 1
    %v1468 = vsel %vm626, %v1466, %v1467
    %v1525 = vadd.f32 %v1214, %v1387
    %v1526 = vadd.f32 %v1215, %v1386
    %v1527 = vadd.f32 %v1216, %v1390
    %v1528 = vadd.f32 %v1217, %v1389
    %v1529 = vadd.f32 %v1218, %v1393
    %v1530 = vadd.f32 %v1219, %v1392
    %v1531 = vadd.f32 %v1220, %v1396
    %v1532 = vadd.f32 %v1221, %v1395
    %v1533 = vadd.f32 %v1222, %v1399
    %v1534 = vadd.f32 %v1223, %v1398
    %v1535 = vadd.f32 %v1224, %v1402
    %v1536 = vadd.f32 %v1225, %v1401
    %v1537 = vadd.f32 %v1226, %v1405
    %v1538 = vadd.f32 %v1227, %v1404
    %v1539 = vadd.f32 %v1228, %v1408
    %v1540 = vadd.f32 %v1229, %v1407
    %v1541 = vadd.f32 %v1230, %v1411
    %v1542 = vadd.f32 %v1231, %v1410
    %v1543 = vadd.f32 %v1232, %v1414
    %v1544 = vadd.f32 %v1233, %v1413
    %v1545 = vadd.f32 %v1234, %v1417
    %v1546 = vadd.f32 %v1235, %v1416
    %v1547 = vadd.f32 %v1236, %v1420
    %v1548 = vadd.f32 %v1237, %v1419
    %v1549 = vadd.f32 %v1238, %v1423
    %v1550 = vadd.f32 %v1239, %v1422
    %v1551 = vadd.f32 %v1240, %v1426
    %v1552 = vadd.f32 %v1241, %v1425
    %v1553 = vadd.f32 %v1242, %v1429
    %v1554 = vadd.f32 %v1243, %v1428
    %v1555 = vadd.f32 %v1244, %v1432
    %v1556 = vadd.f32 %v1245, %v1431
    %v1557 = vadd.f32 %v1246, %v1435
    %v1558 = vadd.f32 %v1247, %v1434
    %v1559 = vadd.f32 %v1248, %v1438
    %v1560 = vadd.f32 %v1249, %v1437
    %v1561 = vadd.f32 %v1250, %v1441
    %v1562 = vadd.f32 %v1251, %v1440
    %v1563 = vadd.f32 %v1252, %v1444
    %v1564 = vadd.f32 %v1253, %v1443
    %v1565 = vadd.f32 %v1254, %v1447
    %v1566 = vadd.f32 %v1255, %v1446
    %v1567 = vadd.f32 %v1256, %v1450
    %v1568 = vadd.f32 %v1257, %v1449
    %v1569 = vadd.f32 %v1258, %v1453
    %v1570 = vadd.f32 %v1259, %v1452
    %v1571 = vadd.f32 %v1260, %v1456
    %v1572 = vadd.f32 %v1261, %v1455
    %v1573 = vadd.f32 %v1262, %v1459
    %v1574 = vadd.f32 %v1263, %v1458
    %v1575 = vadd.f32 %v1264, %v1462
    %v1576 = vadd.f32 %v1265, %v1461
    %v1577 = vadd.f32 %v1266, %v1465
    %v1578 = vadd.f32 %v1267, %v1464
    %v1579 = vadd.f32 %v1268, %v1468
    %v1580 = vadd.f32 %v1269, %v1467
    %v1582 = vperm.slane %v111, 0
    %v1584 = vmul.f32 %v129, %v1582
    %v1585 = vmul.f32 %v134, %v1582
    %v1586 = vmul.f32 %v139, %v1582
    %v1587 = vmul.f32 %v144, %v1582
    %v1588 = vmul.f32 %v149, %v1582
    %v1589 = vmul.f32 %v154, %v1582
    %v1590 = vmul.f32 %v159, %v1582
    %v1591 = vmul.f32 %v164, %v1582
    %v1592 = vmul.f32 %v169, %v1582
    %v1593 = vmul.f32 %v174, %v1582
    %v1594 = vmul.f32 %v179, %v1582
    %v1595 = vmul.f32 %v184, %v1582
    %v1596 = vmul.f32 %v189, %v1582
    %v1597 = vmul.f32 %v194, %v1582
    %v1598 = vmul.f32 %v199, %v1582
    %v1599 = vmul.f32 %v204, %v1582
    %v1600 = vmul.f32 %v209, %v1582
    %v1601 = vmul.f32 %v214, %v1582
    %v1602 = vmul.f32 %v219, %v1582
    %v1603 = vmul.f32 %v224, %v1582
    %v1604 = vmul.f32 %v229, %v1582
    %v1605 = vmul.f32 %v234, %v1582
    %v1606 = vmul.f32 %v239, %v1582
    %v1607 = vmul.f32 %v244, %v1582
    %v1608 = vmul.f32 %v249, %v1582
    %v1609 = vmul.f32 %v254, %v1582
    %v1610 = vmul.f32 %v1138, %v1582
    %v1611 = vmul.f32 %v1143, %v1582
    %v1612 = vmul.f32 %v269, %v1582
    %v1613 = vmul.f32 %v274, %v1582
    %v1614 = vmul.f32 %v279, %v1582
    %v1615 = vmul.f32 %v284, %v1582
    %v1616 = vmul.f32 %v289, %v1582
    %v1617 = vmul.f32 %v294, %v1582
    %v1618 = vmul.f32 %v299, %v1582
    %v1619 = vmul.f32 %v304, %v1582
    %v1620 = vmul.f32 %v309, %v1582
    %v1621 = vmul.f32 %v314, %v1582
    %v1622 = vmul.f32 %v319, %v1582
    %v1623 = vmul.f32 %v324, %v1582
    %v1624 = vmul.f32 %v329, %v1582
    %v1625 = vmul.f32 %v334, %v1582
    %v1626 = vmul.f32 %v339, %v1582
    %v1627 = vmul.f32 %v344, %v1582
    %v1628 = vmul.f32 %v349, %v1582
    %v1629 = vmul.f32 %v354, %v1582
    %v1630 = vmul.f32 %v359, %v1582
    %v1631 = vmul.f32 %v364, %v1582
    %v1632 = vmul.f32 %v369, %v1582
    %v1633 = vmul.f32 %v374, %v1582
    %v1634 = vmul.f32 %v379, %v1582
    %v1635 = vmul.f32 %v384, %v1582
    %v1636 = vmul.f32 %v389, %v1582
    %v1637 = vmul.f32 %v394, %v1582
    %v1638 = vmul.f32 %v1148, %v1582
    %v1639 = vmul.f32 %v1153, %v1582
    %v1696 = vrot.slane %v1584, 2
    %v1697 = vrot.slane %v1585, 2
    %v1698 = vsel %vm938, %v1696, %v1697
    %v1699 = vrot.slane %v1586, 2
    %v1700 = vrot.slane %v1587, 2
    %v1701 = vsel %vm938, %v1699, %v1700
    %v1702 = vrot.slane %v1588, 2
    %v1703 = vrot.slane %v1589, 2
    %v1704 = vsel %vm938, %v1702, %v1703
    %v1705 = vrot.slane %v1590, 2
    %v1706 = vrot.slane %v1591, 2
    %v1707 = vsel %vm938, %v1705, %v1706
    %v1708 = vrot.slane %v1592, 2
    %v1709 = vrot.slane %v1593, 2
    %v1710 = vsel %vm938, %v1708, %v1709
    %v1711 = vrot.slane %v1594, 2
    %v1712 = vrot.slane %v1595, 2
    %v1713 = vsel %vm938, %v1711, %v1712
    %v1714 = vrot.slane %v1596, 2
    %v1715 = vrot.slane %v1597, 2
    %v1716 = vsel %vm938, %v1714, %v1715
    %v1717 = vrot.slane %v1598, 2
    %v1718 = vrot.slane %v1599, 2
    %v1719 = vsel %vm938, %v1717, %v1718
    %v1720 = vrot.slane %v1600, 2
    %v1721 = vrot.slane %v1601, 2
    %v1722 = vsel %vm938, %v1720, %v1721
    %v1723 = vrot.slane %v1602, 2
    %v1724 = vrot.slane %v1603, 2
    %v1725 = vsel %vm938, %v1723, %v1724
    %v1726 = vrot.slane %v1604, 2
    %v1727 = vrot.slane %v1605, 2
    %v1728 = vsel %vm938, %v1726, %v1727
    %v1729 = vrot.slane %v1606, 2
    %v1730 = vrot.slane %v1607, 2
    %v1731 = vsel %vm938, %v1729, %v1730
    %v1732 = vrot.slane %v1608, 2
    %v1733 = vrot.slane %v1609, 2
    %v1734 = vsel %vm938, %v1732, %v1733
    %v1735 = vrot.slane %v1610, 2
    %v1736 = vrot.slane %v1611, 2
    %v1737 = vsel %vm938, %v1735, %v1736
    %v1738 = vrot.slane %v1612, 2
    %v1739 = vrot.slane %v1613, 2
    %v1740 = vsel %vm938, %v1738, %v1739
    %v1741 = vrot.slane %v1614, 2
    %v1742 = vrot.slane %v1615, 2
    %v1743 = vsel %vm938, %v1741, %v1742
    %v1744 = vrot.slane %v1616, 2
    %v1745 = vrot.slane %v1617, 2
    %v1746 = vsel %vm938, %v1744, %v1745
    %v1747 = vrot.slane %v1618, 2
    %v1748 = vrot.slane %v1619, 2
    %v1749 = vsel %vm938, %v1747, %v1748
    %v1750 = vrot.slane %v1620, 2
    %v1751 = vrot.slane %v1621, 2
    %v1752 = vsel %vm938, %v1750, %v1751
    %v1753 = vrot.slane %v1622, 2
    %v1754 = vrot.slane %v1623, 2
    %v1755 = vsel %vm938, %v1753, %v1754
    %v1756 = vrot.slane %v1624, 2
    %v1757 = vrot.slane %v1625, 2
    %v1758 = vsel %vm938, %v1756, %v1757
    %v1759 = vrot.slane %v1626, 2
    %v1760 = vrot.slane %v1627, 2
    %v1761 = vsel %vm938, %v1759, %v1760
    %v1762 = vrot.slane %v1628, 2
    %v1763 = vrot.slane %v1629, 2
    %v1764 = vsel %vm938, %v1762, %v1763
    %v1765 = vrot.slane %v1630, 2
    %v1766 = vrot.slane %v1631, 2
    %v1767 = vsel %vm938, %v1765, %v1766
    %v1768 = vrot.slane %v1632, 2
    %v1769 = vrot.slane %v1633, 2
    %v1770 = vsel %vm938, %v1768, %v1769
    %v1771 = vrot.slane %v1634, 2
    %v1772 = vrot.slane %v1635, 2
    %v1773 = vsel %vm938, %v1771, %v1772
    %v1774 = vrot.slane %v1636, 2
    %v1775 = vrot.slane %v1637, 2
    %v1776 = vsel %vm938, %v1774, %v1775
    %v1777 = vrot.slane %v1638, 2
    %v1778 = vrot.slane %v1639, 2
    %v1779 = vsel %vm938, %v1777, %v1778
    %v1836 = vadd.f32 %v1525, %v1698
    %v1837 = vadd.f32 %v1526, %v1697
    %v1838 = vadd.f32 %v1527, %v1701
    %v1839 = vadd.f32 %v1528, %v1700
    %v1840 = vadd.f32 %v1529, %v1704
    %v1841 = vadd.f32 %v1530, %v1703
    %v1842 = vadd.f32 %v1531, %v1707
    %v1843 = vadd.f32 %v1532, %v1706
    %v1844 = vadd.f32 %v1533, %v1710
    %v1845 = vadd.f32 %v1534, %v1709
    %v1846 = vadd.f32 %v1535, %v1713
    %v1847 = vadd.f32 %v1536, %v1712
    %v1848 = vadd.f32 %v1537, %v1716
    %v1849 = vadd.f32 %v1538, %v1715
    %v1850 = vadd.f32 %v1539, %v1719
    %v1851 = vadd.f32 %v1540, %v1718
    %v1852 = vadd.f32 %v1541, %v1722
    %v1853 = vadd.f32 %v1542, %v1721
    %v1854 = vadd.f32 %v1543, %v1725
    %v1855 = vadd.f32 %v1544, %v1724
    %v1856 = vadd.f32 %v1545, %v1728
    %v1857 = vadd.f32 %v1546, %v1727
    %v1858 = vadd.f32 %v1547, %v1731
    %v1859 = vadd.f32 %v1548, %v1730
    %v1860 = vadd.f32 %v1549, %v1734
    %v1861 = vadd.f32 %v1550, %v1733
    %v1862 = vadd.f32 %v1551, %v1737
    %v1863 = vadd.f32 %v1552, %v1736
    %v1864 = vadd.f32 %v1553, %v1740
    %v1865 = vadd.f32 %v1554, %v1739
    %v1866 = vadd.f32 %v1555, %v1743
    %v1867 = vadd.f32 %v1556, %v1742
    %v1868 = vadd.f32 %v1557, %v1746
    %v1869 = vadd.f32 %v1558, %v1745
    %v1870 = vadd.f32 %v1559, %v1749
    %v1871 = vadd.f32 %v1560, %v1748
    %v1872 = vadd.f32 %v1561, %v1752
    %v1873 = vadd.f32 %v1562, %v1751
    %v1874 = vadd.f32 %v1563, %v1755
    %v1875 = vadd.f32 %v1564, %v1754
    %v1876 = vadd.f32 %v1565, %v1758
    %v1877 = vadd.f32 %v1566, %v1757
    %v1878 = vadd.f32 %v1567, %v1761
    %v1879 = vadd.f32 %v1568, %v1760
    %v1880 = vadd.f32 %v1569, %v1764
    %v1881 = vadd.f32 %v1570, %v1763
    %v1882 = vadd.f32 %v1571, %v1767
    %v1883 = vadd.f32 %v1572, %v1766
    %v1884 = vadd.f32 %v1573, %v1770
    %v1885 = vadd.f32 %v1574, %v1769
    %v1886 = vadd.f32 %v1575, %v1773
    %v1887 = vadd.f32 %v1576, %v1772
    %v1888 = vadd.f32 %v1577, %v1776
    %v1889 = vadd.f32 %v1578, %v1775
    %v1890 = vadd.f32 %v1579, %v1779
    %v1891 = vadd.f32 %v1580, %v1778
    %1893 = vset.pattern.permute.xlu0 0
    %1894 = vperm.xlu0 %1893, %v72
    %v1895 = vpop.permute.xlu0 %1894
    %1898 = vset.pattern.permute.xlu0 0
    %1899 = vperm.xlu0 %1898, %v73
    %v1900 = vpop.permute.xlu0 %1899
    %1903 = vset.pattern.permute.xlu0 0
    %1904 = vperm.xlu0 %1903, %v104
    %v1905 = vpop.permute.xlu0 %1904
    %1908 = vset.pattern.permute.xlu0 0
    %1909 = vperm.xlu0 %1908, %v105
    %v1910 = vpop.permute.xlu0 %1909
    %v1913 = vperm.slane %v112, 0
    %v1915 = vmul.f32 %v139, %v1913
    %v1916 = vmul.f32 %v144, %v1913
    %v1917 = vmul.f32 %v149, %v1913
    %v1918 = vmul.f32 %v154, %v1913
    %v1919 = vmul.f32 %v159, %v1913
    %v1920 = vmul.f32 %v164, %v1913
    %v1921 = vmul.f32 %v169, %v1913
    %v1922 = vmul.f32 %v174, %v1913
    %v1923 = vmul.f32 %v179, %v1913
    %v1924 = vmul.f32 %v184, %v1913
    %v1925 = vmul.f32 %v189, %v1913
    %v1926 = vmul.f32 %v194, %v1913
    %v1927 = vmul.f32 %v199, %v1913
    %v1928 = vmul.f32 %v204, %v1913
    %v1929 = vmul.f32 %v209, %v1913
    %v1930 = vmul.f32 %v214, %v1913
    %v1931 = vmul.f32 %v219, %v1913
    %v1932 = vmul.f32 %v224, %v1913
    %v1933 = vmul.f32 %v229, %v1913
    %v1934 = vmul.f32 %v234, %v1913
    %v1935 = vmul.f32 %v239, %v1913
    %v1936 = vmul.f32 %v244, %v1913
    %v1937 = vmul.f32 %v249, %v1913
    %v1938 = vmul.f32 %v254, %v1913
    %v1939 = vmul.f32 %v1138, %v1913
    %v1940 = vmul.f32 %v1143, %v1913
    %v1941 = vmul.f32 %v1895, %v1913
    %v1942 = vmul.f32 %v1900, %v1913
    %v1943 = vmul.f32 %v279, %v1913
    %v1944 = vmul.f32 %v284, %v1913
    %v1945 = vmul.f32 %v289, %v1913
    %v1946 = vmul.f32 %v294, %v1913
    %v1947 = vmul.f32 %v299, %v1913
    %v1948 = vmul.f32 %v304, %v1913
    %v1949 = vmul.f32 %v309, %v1913
    %v1950 = vmul.f32 %v314, %v1913
    %v1951 = vmul.f32 %v319, %v1913
    %v1952 = vmul.f32 %v324, %v1913
    %v1953 = vmul.f32 %v329, %v1913
    %v1954 = vmul.f32 %v334, %v1913
    %v1955 = vmul.f32 %v339, %v1913
    %v1956 = vmul.f32 %v344, %v1913
    %v1957 = vmul.f32 %v349, %v1913
    %v1958 = vmul.f32 %v354, %v1913
    %v1959 = vmul.f32 %v359, %v1913
    %v1960 = vmul.f32 %v364, %v1913
    %v1961 = vmul.f32 %v369, %v1913
    %v1962 = vmul.f32 %v374, %v1913
    %v1963 = vmul.f32 %v379, %v1913
    %v1964 = vmul.f32 %v384, %v1913
    %v1965 = vmul.f32 %v389, %v1913
    %v1966 = vmul.f32 %v394, %v1913
    %v1967 = vmul.f32 %v1148, %v1913
    %v1968 = vmul.f32 %v1153, %v1913
    %v1969 = vmul.f32 %v1905, %v1913
    %v1970 = vmul.f32 %v1910, %v1913
    %v1971 = vadd.f32 %v1836, %v1915
    %v1972 = vadd.f32 %v1837, %v1916
    %v1973 = vadd.f32 %v1838, %v1917
    %v1974 = vadd.f32 %v1839, %v1918
    %v1975 = vadd.f32 %v1840, %v1919
    %v1976 = vadd.f32 %v1841, %v1920
    %v1977 = vadd.f32 %v1842, %v1921
    %v1978 = vadd.f32 %v1843, %v1922
    %v1979 = vadd.f32 %v1844, %v1923
    %v1980 = vadd.f32 %v1845, %v1924
    %v1981 = vadd.f32 %v1846, %v1925
    %v1982 = vadd.f32 %v1847, %v1926
    %v1983 = vadd.f32 %v1848, %v1927
    %v1984 = vadd.f32 %v1849, %v1928
    %v1985 = vadd.f32 %v1850, %v1929
    %v1986 = vadd.f32 %v1851, %v1930
    %v1987 = vadd.f32 %v1852, %v1931
    %v1988 = vadd.f32 %v1853, %v1932
    %v1989 = vadd.f32 %v1854, %v1933
    %v1990 = vadd.f32 %v1855, %v1934
    %v1991 = vadd.f32 %v1856, %v1935
    %v1992 = vadd.f32 %v1857, %v1936
    %v1993 = vadd.f32 %v1858, %v1937
    %v1994 = vadd.f32 %v1859, %v1938
    %v1995 = vadd.f32 %v1860, %v1939
    %v1996 = vadd.f32 %v1861, %v1940
    %v1997 = vadd.f32 %v1862, %v1941
    %v1998 = vadd.f32 %v1863, %v1942
    %v1999 = vadd.f32 %v1864, %v1943
    %v2000 = vadd.f32 %v1865, %v1944
    %v2001 = vadd.f32 %v1866, %v1945
    %v2002 = vadd.f32 %v1867, %v1946
    %v2003 = vadd.f32 %v1868, %v1947
    %v2004 = vadd.f32 %v1869, %v1948
    %v2005 = vadd.f32 %v1870, %v1949
    %v2006 = vadd.f32 %v1871, %v1950
    %v2007 = vadd.f32 %v1872, %v1951
    %v2008 = vadd.f32 %v1873, %v1952
    %v2009 = vadd.f32 %v1874, %v1953
    %v2010 = vadd.f32 %v1875, %v1954
    %v2011 = vadd.f32 %v1876, %v1955
    %v2012 = vadd.f32 %v1877, %v1956
    %v2013 = vadd.f32 %v1878, %v1957
    %v2014 = vadd.f32 %v1879, %v1958
    %v2015 = vadd.f32 %v1880, %v1959
    %v2016 = vadd.f32 %v1881, %v1960
    %v2017 = vadd.f32 %v1882, %v1961
    %v2018 = vadd.f32 %v1883, %v1962
    %v2019 = vadd.f32 %v1884, %v1963
    %v2020 = vadd.f32 %v1885, %v1964
    %v2021 = vadd.f32 %v1886, %v1965
    %v2022 = vadd.f32 %v1887, %v1966
    %v2023 = vadd.f32 %v1888, %v1967
    %v2024 = vadd.f32 %v1889, %v1968
    %v2025 = vadd.f32 %v1890, %v1969
    %v2026 = vadd.f32 %v1891, %v1970
    %v2028 = vperm.slane %v113, 0
    %v2030 = vmul.f32 %v139, %v2028
    %v2031 = vmul.f32 %v144, %v2028
    %v2032 = vmul.f32 %v149, %v2028
    %v2033 = vmul.f32 %v154, %v2028
    %v2034 = vmul.f32 %v159, %v2028
    %v2035 = vmul.f32 %v164, %v2028
    %v2036 = vmul.f32 %v169, %v2028
    %v2037 = vmul.f32 %v174, %v2028
    %v2038 = vmul.f32 %v179, %v2028
    %v2039 = vmul.f32 %v184, %v2028
    %v2040 = vmul.f32 %v189, %v2028
    %v2041 = vmul.f32 %v194, %v2028
    %v2042 = vmul.f32 %v199, %v2028
    %v2043 = vmul.f32 %v204, %v2028
    %v2044 = vmul.f32 %v209, %v2028
    %v2045 = vmul.f32 %v214, %v2028
    %v2046 = vmul.f32 %v219, %v2028
    %v2047 = vmul.f32 %v224, %v2028
    %v2048 = vmul.f32 %v229, %v2028
    %v2049 = vmul.f32 %v234, %v2028
    %v2050 = vmul.f32 %v239, %v2028
    %v2051 = vmul.f32 %v244, %v2028
    %v2052 = vmul.f32 %v249, %v2028
    %v2053 = vmul.f32 %v254, %v2028
    %v2054 = vmul.f32 %v1138, %v2028
    %v2055 = vmul.f32 %v1143, %v2028
    %v2056 = vmul.f32 %v1895, %v2028
    %v2057 = vmul.f32 %v1900, %v2028
    %v2058 = vmul.f32 %v279, %v2028
    %v2059 = vmul.f32 %v284, %v2028
    %v2060 = vmul.f32 %v289, %v2028
    %v2061 = vmul.f32 %v294, %v2028
    %v2062 = vmul.f32 %v299, %v2028
    %v2063 = vmul.f32 %v304, %v2028
    %v2064 = vmul.f32 %v309, %v2028
    %v2065 = vmul.f32 %v314, %v2028
    %v2066 = vmul.f32 %v319, %v2028
    %v2067 = vmul.f32 %v324, %v2028
    %v2068 = vmul.f32 %v329, %v2028
    %v2069 = vmul.f32 %v334, %v2028
    %v2070 = vmul.f32 %v339, %v2028
    %v2071 = vmul.f32 %v344, %v2028
    %v2072 = vmul.f32 %v349, %v2028
    %v2073 = vmul.f32 %v354, %v2028
    %v2074 = vmul.f32 %v359, %v2028
    %v2075 = vmul.f32 %v364, %v2028
    %v2076 = vmul.f32 %v369, %v2028
    %v2077 = vmul.f32 %v374, %v2028
    %v2078 = vmul.f32 %v379, %v2028
    %v2079 = vmul.f32 %v384, %v2028
    %v2080 = vmul.f32 %v389, %v2028
    %v2081 = vmul.f32 %v394, %v2028
    %v2082 = vmul.f32 %v1148, %v2028
    %v2083 = vmul.f32 %v1153, %v2028
    %v2084 = vmul.f32 %v1905, %v2028
    %v2085 = vmul.f32 %v1910, %v2028
    %v2142 = vrot.slane %v2030, 1
    %v2143 = vrot.slane %v2031, 1
    %v2144 = vsel %vm626, %v2142, %v2143
    %v2145 = vrot.slane %v2032, 1
    %v2146 = vrot.slane %v2033, 1
    %v2147 = vsel %vm626, %v2145, %v2146
    %v2148 = vrot.slane %v2034, 1
    %v2149 = vrot.slane %v2035, 1
    %v2150 = vsel %vm626, %v2148, %v2149
    %v2151 = vrot.slane %v2036, 1
    %v2152 = vrot.slane %v2037, 1
    %v2153 = vsel %vm626, %v2151, %v2152
    %v2154 = vrot.slane %v2038, 1
    %v2155 = vrot.slane %v2039, 1
    %v2156 = vsel %vm626, %v2154, %v2155
    %v2157 = vrot.slane %v2040, 1
    %v2158 = vrot.slane %v2041, 1
    %v2159 = vsel %vm626, %v2157, %v2158
    %v2160 = vrot.slane %v2042, 1
    %v2161 = vrot.slane %v2043, 1
    %v2162 = vsel %vm626, %v2160, %v2161
    %v2163 = vrot.slane %v2044, 1
    %v2164 = vrot.slane %v2045, 1
    %v2165 = vsel %vm626, %v2163, %v2164
    %v2166 = vrot.slane %v2046, 1
    %v2167 = vrot.slane %v2047, 1
    %v2168 = vsel %vm626, %v2166, %v2167
    %v2169 = vrot.slane %v2048, 1
    %v2170 = vrot.slane %v2049, 1
    %v2171 = vsel %vm626, %v2169, %v2170
    %v2172 = vrot.slane %v2050, 1
    %v2173 = vrot.slane %v2051, 1
    %v2174 = vsel %vm626, %v2172, %v2173
    %v2175 = vrot.slane %v2052, 1
    %v2176 = vrot.slane %v2053, 1
    %v2177 = vsel %vm626, %v2175, %v2176
    %v2178 = vrot.slane %v2054, 1
    %v2179 = vrot.slane %v2055, 1
    %v2180 = vsel %vm626, %v2178, %v2179
    %v2181 = vrot.slane %v2056, 1
    %v2182 = vrot.slane %v2057, 1
    %v2183 = vsel %vm626, %v2181, %v2182
    %v2184 = vrot.slane %v2058, 1
    %v2185 = vrot.slane %v2059, 1
    %v2186 = vsel %vm626, %v2184, %v2185
    %v2187 = vrot.slane %v2060, 1
    %v2188 = vrot.slane %v2061, 1
    %v2189 = vsel %vm626, %v2187, %v2188
    %v2190 = vrot.slane %v2062, 1
    %v2191 = vrot.slane %v2063, 1
    %v2192 = vsel %vm626, %v2190, %v2191
    %v2193 = vrot.slane %v2064, 1
    %v2194 = vrot.slane %v2065, 1
    %v2195 = vsel %vm626, %v2193, %v2194
    %v2196 = vrot.slane %v2066, 1
    %v2197 = vrot.slane %v2067, 1
    %v2198 = vsel %vm626, %v2196, %v2197
    %v2199 = vrot.slane %v2068, 1
    %v2200 = vrot.slane %v2069, 1
    %v2201 = vsel %vm626, %v2199, %v2200
    %v2202 = vrot.slane %v2070, 1
    %v2203 = vrot.slane %v2071, 1
    %v2204 = vsel %vm626, %v2202, %v2203
    %v2205 = vrot.slane %v2072, 1
    %v2206 = vrot.slane %v2073, 1
    %v2207 = vsel %vm626, %v2205, %v2206
    %v2208 = vrot.slane %v2074, 1
    %v2209 = vrot.slane %v2075, 1
    %v2210 = vsel %vm626, %v2208, %v2209
    %v2211 = vrot.slane %v2076, 1
    %v2212 = vrot.slane %v2077, 1
    %v2213 = vsel %vm626, %v2211, %v2212
    %v2214 = vrot.slane %v2078, 1
    %v2215 = vrot.slane %v2079, 1
    %v2216 = vsel %vm626, %v2214, %v2215
    %v2217 = vrot.slane %v2080, 1
    %v2218 = vrot.slane %v2081, 1
    %v2219 = vsel %vm626, %v2217, %v2218
    %v2220 = vrot.slane %v2082, 1
    %v2221 = vrot.slane %v2083, 1
    %v2222 = vsel %vm626, %v2220, %v2221
    %v2223 = vrot.slane %v2084, 1
    %v2224 = vrot.slane %v2085, 1
    %v2225 = vsel %vm626, %v2223, %v2224
    %v2282 = vadd.f32 %v1971, %v2144
    %v2283 = vadd.f32 %v1972, %v2143
    %v2284 = vadd.f32 %v1973, %v2147
    %v2285 = vadd.f32 %v1974, %v2146
    %v2286 = vadd.f32 %v1975, %v2150
    %v2287 = vadd.f32 %v1976, %v2149
    %v2288 = vadd.f32 %v1977, %v2153
    %v2289 = vadd.f32 %v1978, %v2152
    %v2290 = vadd.f32 %v1979, %v2156
    %v2291 = vadd.f32 %v1980, %v2155
    %v2292 = vadd.f32 %v1981, %v2159
    %v2293 = vadd.f32 %v1982, %v2158
    %v2294 = vadd.f32 %v1983, %v2162
    %v2295 = vadd.f32 %v1984, %v2161
    %v2296 = vadd.f32 %v1985, %v2165
    %v2297 = vadd.f32 %v1986, %v2164
    %v2298 = vadd.f32 %v1987, %v2168
    %v2299 = vadd.f32 %v1988, %v2167
    %v2300 = vadd.f32 %v1989, %v2171
    %v2301 = vadd.f32 %v1990, %v2170
    %v2302 = vadd.f32 %v1991, %v2174
    %v2303 = vadd.f32 %v1992, %v2173
    %v2304 = vadd.f32 %v1993, %v2177
    %v2305 = vadd.f32 %v1994, %v2176
    %v2306 = vadd.f32 %v1995, %v2180
    %v2307 = vadd.f32 %v1996, %v2179
    %v2308 = vadd.f32 %v1997, %v2183
    %v2309 = vadd.f32 %v1998, %v2182
    %v2310 = vadd.f32 %v1999, %v2186
    %v2311 = vadd.f32 %v2000, %v2185
    %v2312 = vadd.f32 %v2001, %v2189
    %v2313 = vadd.f32 %v2002, %v2188
    %v2314 = vadd.f32 %v2003, %v2192
    %v2315 = vadd.f32 %v2004, %v2191
    %v2316 = vadd.f32 %v2005, %v2195
    %v2317 = vadd.f32 %v2006, %v2194
    %v2318 = vadd.f32 %v2007, %v2198
    %v2319 = vadd.f32 %v2008, %v2197
    %v2320 = vadd.f32 %v2009, %v2201
    %v2321 = vadd.f32 %v2010, %v2200
    %v2322 = vadd.f32 %v2011, %v2204
    %v2323 = vadd.f32 %v2012, %v2203
    %v2324 = vadd.f32 %v2013, %v2207
    %v2325 = vadd.f32 %v2014, %v2206
    %v2326 = vadd.f32 %v2015, %v2210
    %v2327 = vadd.f32 %v2016, %v2209
    %v2328 = vadd.f32 %v2017, %v2213
    %v2329 = vadd.f32 %v2018, %v2212
    %v2330 = vadd.f32 %v2019, %v2216
    %v2331 = vadd.f32 %v2020, %v2215
    %v2332 = vadd.f32 %v2021, %v2219
    %v2333 = vadd.f32 %v2022, %v2218
    %v2334 = vadd.f32 %v2023, %v2222
    %v2335 = vadd.f32 %v2024, %v2221
    %v2336 = vadd.f32 %v2025, %v2225
    %v2337 = vadd.f32 %v2026, %v2224
    %v2339 = vperm.slane %v114, 0
    %v2341 = vmul.f32 %v139, %v2339
    %v2342 = vmul.f32 %v144, %v2339
    %v2343 = vmul.f32 %v149, %v2339
    %v2344 = vmul.f32 %v154, %v2339
    %v2345 = vmul.f32 %v159, %v2339
    %v2346 = vmul.f32 %v164, %v2339
    %v2347 = vmul.f32 %v169, %v2339
    %v2348 = vmul.f32 %v174, %v2339
    %v2349 = vmul.f32 %v179, %v2339
    %v2350 = vmul.f32 %v184, %v2339
    %v2351 = vmul.f32 %v189, %v2339
    %v2352 = vmul.f32 %v194, %v2339
    %v2353 = vmul.f32 %v199, %v2339
    %v2354 = vmul.f32 %v204, %v2339
    %v2355 = vmul.f32 %v209, %v2339
    %v2356 = vmul.f32 %v214, %v2339
    %v2357 = vmul.f32 %v219, %v2339
    %v2358 = vmul.f32 %v224, %v2339
    %v2359 = vmul.f32 %v229, %v2339
    %v2360 = vmul.f32 %v234, %v2339
    %v2361 = vmul.f32 %v239, %v2339
    %v2362 = vmul.f32 %v244, %v2339
    %v2363 = vmul.f32 %v249, %v2339
    %v2364 = vmul.f32 %v254, %v2339
    %v2365 = vmul.f32 %v1138, %v2339
    %v2366 = vmul.f32 %v1143, %v2339
    %v2367 = vmul.f32 %v1895, %v2339
    %v2368 = vmul.f32 %v1900, %v2339
    %v2369 = vmul.f32 %v279, %v2339
    %v2370 = vmul.f32 %v284, %v2339
    %v2371 = vmul.f32 %v289, %v2339
    %v2372 = vmul.f32 %v294, %v2339
    %v2373 = vmul.f32 %v299, %v2339
    %v2374 = vmul.f32 %v304, %v2339
    %v2375 = vmul.f32 %v309, %v2339
    %v2376 = vmul.f32 %v314, %v2339
    %v2377 = vmul.f32 %v319, %v2339
    %v2378 = vmul.f32 %v324, %v2339
    %v2379 = vmul.f32 %v329, %v2339
    %v2380 = vmul.f32 %v334, %v2339
    %v2381 = vmul.f32 %v339, %v2339
    %v2382 = vmul.f32 %v344, %v2339
    %v2383 = vmul.f32 %v349, %v2339
    %v2384 = vmul.f32 %v354, %v2339
    %v2385 = vmul.f32 %v359, %v2339
    %v2386 = vmul.f32 %v364, %v2339
    %v2387 = vmul.f32 %v369, %v2339
    %v2388 = vmul.f32 %v374, %v2339
    %v2389 = vmul.f32 %v379, %v2339
    %v2390 = vmul.f32 %v384, %v2339
    %v2391 = vmul.f32 %v389, %v2339
    %v2392 = vmul.f32 %v394, %v2339
    %v2393 = vmul.f32 %v1148, %v2339
    %v2394 = vmul.f32 %v1153, %v2339
    %v2395 = vmul.f32 %v1905, %v2339
    %v2396 = vmul.f32 %v1910, %v2339
    %v2453 = vrot.slane %v2341, 2
    %v2454 = vrot.slane %v2342, 2
    %v2455 = vsel %vm938, %v2453, %v2454
    %v2456 = vrot.slane %v2343, 2
    %v2457 = vrot.slane %v2344, 2
    %v2458 = vsel %vm938, %v2456, %v2457
    %v2459 = vrot.slane %v2345, 2
    %v2460 = vrot.slane %v2346, 2
    %v2461 = vsel %vm938, %v2459, %v2460
    %v2462 = vrot.slane %v2347, 2
    %v2463 = vrot.slane %v2348, 2
    %v2464 = vsel %vm938, %v2462, %v2463
    %v2465 = vrot.slane %v2349, 2
    %v2466 = vrot.slane %v2350, 2
    %v2467 = vsel %vm938, %v2465, %v2466
    %v2468 = vrot.slane %v2351, 2
    %v2469 = vrot.slane %v2352, 2
    %v2470 = vsel %vm938, %v2468, %v2469
    %v2471 = vrot.slane %v2353, 2
    %v2472 = vrot.slane %v2354, 2
    %v2473 = vsel %vm938, %v2471, %v2472
    %v2474 = vrot.slane %v2355, 2
    %v2475 = vrot.slane %v2356, 2
    %v2476 = vsel %vm938, %v2474, %v2475
    %v2477 = vrot.slane %v2357, 2
    %v2478 = vrot.slane %v2358, 2
    %v2479 = vsel %vm938, %v2477, %v2478
    %v2480 = vrot.slane %v2359, 2
    %v2481 = vrot.slane %v2360, 2
    %v2482 = vsel %vm938, %v2480, %v2481
    %v2483 = vrot.slane %v2361, 2
    %v2484 = vrot.slane %v2362, 2
    %v2485 = vsel %vm938, %v2483, %v2484
    %v2486 = vrot.slane %v2363, 2
    %v2487 = vrot.slane %v2364, 2
    %v2488 = vsel %vm938, %v2486, %v2487
    %v2489 = vrot.slane %v2365, 2
    %v2490 = vrot.slane %v2366, 2
    %v2491 = vsel %vm938, %v2489, %v2490
    %v2492 = vrot.slane %v2367, 2
    %v2493 = vrot.slane %v2368, 2
    %v2494 = vsel %vm938, %v2492, %v2493
    %v2495 = vrot.slane %v2369, 2
    %v2496 = vrot.slane %v2370, 2
    %v2497 = vsel %vm938, %v2495, %v2496
    %v2498 = vrot.slane %v2371, 2
    %v2499 = vrot.slane %v2372, 2
    %v2500 = vsel %vm938, %v2498, %v2499
    %v2501 = vrot.slane %v2373, 2
    %v2502 = vrot.slane %v2374, 2
    %v2503 = vsel %vm938, %v2501, %v2502
    %v2504 = vrot.slane %v2375, 2
    %v2505 = vrot.slane %v2376, 2
    %v2506 = vsel %vm938, %v2504, %v2505
    %v2507 = vrot.slane %v2377, 2
    %v2508 = vrot.slane %v2378, 2
    %v2509 = vsel %vm938, %v2507, %v2508
    %v2510 = vrot.slane %v2379, 2
    %v2511 = vrot.slane %v2380, 2
    %v2512 = vsel %vm938, %v2510, %v2511
    %v2513 = vrot.slane %v2381, 2
    %v2514 = vrot.slane %v2382, 2
    %v2515 = vsel %vm938, %v2513, %v2514
    %v2516 = vrot.slane %v2383, 2
    %v2517 = vrot.slane %v2384, 2
    %v2518 = vsel %vm938, %v2516, %v2517
    %v2519 = vrot.slane %v2385, 2
    %v2520 = vrot.slane %v2386, 2
    %v2521 = vsel %vm938, %v2519, %v2520
    %v2522 = vrot.slane %v2387, 2
    %v2523 = vrot.slane %v2388, 2
    %v2524 = vsel %vm938, %v2522, %v2523
    %v2525 = vrot.slane %v2389, 2
    %v2526 = vrot.slane %v2390, 2
    %v2527 = vsel %vm938, %v2525, %v2526
    %v2528 = vrot.slane %v2391, 2
    %v2529 = vrot.slane %v2392, 2
    %v2530 = vsel %vm938, %v2528, %v2529
    %v2531 = vrot.slane %v2393, 2
    %v2532 = vrot.slane %v2394, 2
    %v2533 = vsel %vm938, %v2531, %v2532
    %v2534 = vrot.slane %v2395, 2
    %v2535 = vrot.slane %v2396, 2
    %v2536 = vsel %vm938, %v2534, %v2535
    %v2593 = vadd.f32 %v2282, %v2455
    %v2594 = vadd.f32 %v2283, %v2454
    %v2595 = vadd.f32 %v2284, %v2458
    %v2596 = vadd.f32 %v2285, %v2457
    %v2597 = vadd.f32 %v2286, %v2461
    %v2598 = vadd.f32 %v2287, %v2460
    %v2599 = vadd.f32 %v2288, %v2464
    %v2600 = vadd.f32 %v2289, %v2463
    %v2601 = vadd.f32 %v2290, %v2467
    %v2602 = vadd.f32 %v2291, %v2466
    %v2603 = vadd.f32 %v2292, %v2470
    %v2604 = vadd.f32 %v2293, %v2469
    %v2605 = vadd.f32 %v2294, %v2473
    %v2606 = vadd.f32 %v2295, %v2472
    %v2607 = vadd.f32 %v2296, %v2476
    %v2608 = vadd.f32 %v2297, %v2475
    %v2609 = vadd.f32 %v2298, %v2479
    %v2610 = vadd.f32 %v2299, %v2478
    %v2611 = vadd.f32 %v2300, %v2482
    %v2612 = vadd.f32 %v2301, %v2481
    %v2613 = vadd.f32 %v2302, %v2485
    %v2614 = vadd.f32 %v2303, %v2484
    %v2615 = vadd.f32 %v2304, %v2488
    %v2616 = vadd.f32 %v2305, %v2487
    %v2617 = vadd.f32 %v2306, %v2491
    %v2618 = vadd.f32 %v2307, %v2490
    %v2619 = vadd.f32 %v2308, %v2494
    %v2620 = vadd.f32 %v2309, %v2493
    %v2621 = vadd.f32 %v2310, %v2497
    %v2622 = vadd.f32 %v2311, %v2496
    %v2623 = vadd.f32 %v2312, %v2500
    %v2624 = vadd.f32 %v2313, %v2499
    %v2625 = vadd.f32 %v2314, %v2503
    %v2626 = vadd.f32 %v2315, %v2502
    %v2627 = vadd.f32 %v2316, %v2506
    %v2628 = vadd.f32 %v2317, %v2505
    %v2629 = vadd.f32 %v2318, %v2509
    %v2630 = vadd.f32 %v2319, %v2508
    %v2631 = vadd.f32 %v2320, %v2512
    %v2632 = vadd.f32 %v2321, %v2511
    %v2633 = vadd.f32 %v2322, %v2515
    %v2634 = vadd.f32 %v2323, %v2514
    %v2635 = vadd.f32 %v2324, %v2518
    %v2636 = vadd.f32 %v2325, %v2517
    %v2637 = vadd.f32 %v2326, %v2521
    %v2638 = vadd.f32 %v2327, %v2520
    %v2639 = vadd.f32 %v2328, %v2524
    %v2640 = vadd.f32 %v2329, %v2523
    %v2641 = vadd.f32 %v2330, %v2527
    %v2642 = vadd.f32 %v2331, %v2526
    %v2643 = vadd.f32 %v2332, %v2530
    %v2644 = vadd.f32 %v2333, %v2529
    %v2645 = vadd.f32 %v2334, %v2533
    %v2646 = vadd.f32 %v2335, %v2532
    %v2647 = vadd.f32 %v2336, %v2536
    %v2648 = vadd.f32 %v2337, %v2535
    %v2650 = vperm.slane %v115, 0
    %v2652 = vadd.f32 %v2593, %v2650
    %v2653 = vadd.f32 %v2594, %v2650
    %v2654 = vadd.f32 %v2595, %v2650
    %v2655 = vadd.f32 %v2596, %v2650
    %v2656 = vadd.f32 %v2597, %v2650
    %v2657 = vadd.f32 %v2598, %v2650
    %v2658 = vadd.f32 %v2599, %v2650
    %v2659 = vadd.f32 %v2600, %v2650
    %v2660 = vadd.f32 %v2601, %v2650
    %v2661 = vadd.f32 %v2602, %v2650
    %v2662 = vadd.f32 %v2603, %v2650
    %v2663 = vadd.f32 %v2604, %v2650
    %v2664 = vadd.f32 %v2605, %v2650
    %v2665 = vadd.f32 %v2606, %v2650
    %v2666 = vadd.f32 %v2607, %v2650
    %v2667 = vadd.f32 %v2608, %v2650
    %v2668 = vadd.f32 %v2609, %v2650
    %v2669 = vadd.f32 %v2610, %v2650
    %v2670 = vadd.f32 %v2611, %v2650
    %v2671 = vadd.f32 %v2612, %v2650
    %v2672 = vadd.f32 %v2613, %v2650
    %v2673 = vadd.f32 %v2614, %v2650
    %v2674 = vadd.f32 %v2615, %v2650
    %v2675 = vadd.f32 %v2616, %v2650
    %v2676 = vadd.f32 %v2617, %v2650
    %v2677 = vadd.f32 %v2618, %v2650
    %v2678 = vadd.f32 %v2619, %v2650
    %v2679 = vadd.f32 %v2620, %v2650
    %v2680 = vadd.f32 %v2621, %v2650
    %v2681 = vadd.f32 %v2622, %v2650
    %v2682 = vadd.f32 %v2623, %v2650
    %v2683 = vadd.f32 %v2624, %v2650
    %v2684 = vadd.f32 %v2625, %v2650
    %v2685 = vadd.f32 %v2626, %v2650
    %v2686 = vadd.f32 %v2627, %v2650
    %v2687 = vadd.f32 %v2628, %v2650
    %v2688 = vadd.f32 %v2629, %v2650
    %v2689 = vadd.f32 %v2630, %v2650
    %v2690 = vadd.f32 %v2631, %v2650
    %v2691 = vadd.f32 %v2632, %v2650
    %v2692 = vadd.f32 %v2633, %v2650
    %v2693 = vadd.f32 %v2634, %v2650
    %v2694 = vadd.f32 %v2635, %v2650
    %v2695 = vadd.f32 %v2636, %v2650
    %v2696 = vadd.f32 %v2637, %v2650
    %v2697 = vadd.f32 %v2638, %v2650
    %v2698 = vadd.f32 %v2639, %v2650
    %v2699 = vadd.f32 %v2640, %v2650
    %v2700 = vadd.f32 %v2641, %v2650
    %v2701 = vadd.f32 %v2642, %v2650
    %v2702 = vadd.f32 %v2643, %v2650
    %v2703 = vadd.f32 %v2644, %v2650
    %v2704 = vadd.f32 %v2645, %v2650
    %v2705 = vadd.f32 %v2646, %v2650
    %v2706 = vadd.f32 %v2647, %v2650
    %v2707 = vadd.f32 %v2648, %v2650
    %v2708 = vmax.f32 %v2652, 0.0
    %v2709 = vmax.f32 %v2653, 0.0
    %v2710 = vmax.f32 %v2654, 0.0
    %v2711 = vmax.f32 %v2655, 0.0
    %v2712 = vmax.f32 %v2656, 0.0
    %v2713 = vmax.f32 %v2657, 0.0
    %v2714 = vmax.f32 %v2658, 0.0
    %v2715 = vmax.f32 %v2659, 0.0
    %v2716 = vmax.f32 %v2660, 0.0
    %v2717 = vmax.f32 %v2661, 0.0
    %v2718 = vmax.f32 %v2662, 0.0
    %v2719 = vmax.f32 %v2663, 0.0
    %v2720 = vmax.f32 %v2664, 0.0
    %v2721 = vmax.f32 %v2665, 0.0
    %v2722 = vmax.f32 %v2666, 0.0
    %v2723 = vmax.f32 %v2667, 0.0
    %v2724 = vmax.f32 %v2668, 0.0
    %v2725 = vmax.f32 %v2669, 0.0
    %v2726 = vmax.f32 %v2670, 0.0
    %v2727 = vmax.f32 %v2671, 0.0
    %v2728 = vmax.f32 %v2672, 0.0
    %v2729 = vmax.f32 %v2673, 0.0
    %v2730 = vmax.f32 %v2674, 0.0
    %v2731 = vmax.f32 %v2675, 0.0
    %v2732 = vmax.f32 %v2676, 0.0
    %v2733 = vmax.f32 %v2677, 0.0
    %v2734 = vmax.f32 %v2678, 0.0
    %v2735 = vmax.f32 %v2679, 0.0
    %v2736 = vmax.f32 %v2680, 0.0
    %v2737 = vmax.f32 %v2681, 0.0
    %v2738 = vmax.f32 %v2682, 0.0
    %v2739 = vmax.f32 %v2683, 0.0
    %v2740 = vmax.f32 %v2684, 0.0
    %v2741 = vmax.f32 %v2685, 0.0
    %v2742 = vmax.f32 %v2686, 0.0
    %v2743 = vmax.f32 %v2687, 0.0
    %v2744 = vmax.f32 %v2688, 0.0
    %v2745 = vmax.f32 %v2689, 0.0
    %v2746 = vmax.f32 %v2690, 0.0
    %v2747 = vmax.f32 %v2691, 0.0
    %v2748 = vmax.f32 %v2692, 0.0
    %v2749 = vmax.f32 %v2693, 0.0
    %v2750 = vmax.f32 %v2694, 0.0
    %v2751 = vmax.f32 %v2695, 0.0
    %v2752 = vmax.f32 %v2696, 0.0
    %v2753 = vmax.f32 %v2697, 0.0
    %v2754 = vmax.f32 %v2698, 0.0
    %v2755 = vmax.f32 %v2699, 0.0
    %v2756 = vmax.f32 %v2700, 0.0
    %v2757 = vmax.f32 %v2701, 0.0
    %v2758 = vmax.f32 %v2702, 0.0
    %v2759 = vmax.f32 %v2703, 0.0
    %v2760 = vmax.f32 %v2704, 0.0
    %v2761 = vmax.f32 %v2705, 0.0
    %v2762 = vmax.f32 %v2706, 0.0
    %v2763 = vmax.f32 %v2707, 0.0
    %v2812 = vrot.slane %v2708, 4
    %v2813 = vrot.slane %v2710, 4
    %v2814 = vrot.slane %v2712, 4
    %v2815 = vrot.slane %v2714, 4
    %v2816 = vrot.slane %v2716, 4
    %v2817 = vrot.slane %v2718, 4
    %v2818 = vrot.slane %v2720, 4
    %v2819 = vrot.slane %v2722, 4
    %v2820 = vrot.slane %v2724, 4
    %v2821 = vrot.slane %v2726, 4
    %v2822 = vrot.slane %v2728, 4
    %v2823 = vrot.slane %v2730, 4
    %v2824 = vrot.slane %v2736, 4
    %v2825 = vrot.slane %v2738, 4
    %v2826 = vrot.slane %v2740, 4
    %v2827 = vrot.slane %v2742, 4
    %v2828 = vrot.slane %v2744, 4
    %v2829 = vrot.slane %v2746, 4
    %v2830 = vrot.slane %v2748, 4
    %v2831 = vrot.slane %v2750, 4
    %v2832 = vrot.slane %v2752, 4
    %v2833 = vrot.slane %v2754, 4
    %v2834 = vrot.slane %v2756, 4
    %v2835 = vrot.slane %v2758, 4
    %v2836 = vrot.slane %v2709, 4
    %v2837 = vrot.slane %v2711, 4
    %v2838 = vrot.slane %v2713, 4
    %v2839 = vrot.slane %v2715, 4
    %v2840 = vrot.slane %v2717, 4
    %v2841 = vrot.slane %v2719, 4
    %v2842 = vrot.slane %v2721, 4
    %v2843 = vrot.slane %v2723, 4
    %v2844 = vrot.slane %v2725, 4
    %v2845 = vrot.slane %v2727, 4
    %v2846 = vrot.slane %v2729, 4
    %v2847 = vrot.slane %v2731, 4
    %v2848 = vrot.slane %v2737, 4
    %v2849 = vrot.slane %v2739, 4
    %v2850 = vrot.slane %v2741, 4
    %v2851 = vrot.slane %v2743, 4
    %v2852 = vrot.slane %v2745, 4
    %v2853 = vrot.slane %v2747, 4
    %v2854 = vrot.slane %v2749, 4
    %v2855 = vrot.slane %v2751, 4
    %v2856 = vrot.slane %v2753, 4
    %v2857 = vrot.slane %v2755, 4
    %v2858 = vrot.slane %v2757, 4
    %v2859 = vrot.slane %v2759, 4
    %vm2860 = vcmask 1042432
    %vm2861 = vcmask 1046532
    %vm2862 = vmor %vm2860, %vm2861
    %v2863 = vrot.slane %v2708, 5
    %v2864 = vrot.slane %v2863, 4
    %v2865 = vrot.slane %v2812, 5
    %v2866 = vsel %vm2862, %v2864, %v2865
    %v2867 = vrot.slane %v2865, 4
    %v2868 = vrot.slane %v2709, 5
    %v2869 = vsel %vm2862, %v2867, %v2868
    %v2870 = vrot.slane %v2868, 4
    %v2871 = vrot.slane %v2836, 5
    %v2872 = vsel %vm2862, %v2870, %v2871
    %v2873 = vrot.slane %v2710, 5
    %v2874 = vrot.slane %v2873, 4
    %v2875 = vrot.slane %v2813, 5
    %v2876 = vsel %vm2862, %v2874, %v2875
    %v2877 = vrot.slane %v2875, 4
    %v2878 = vrot.slane %v2711, 5
    %v2879 = vsel %vm2862, %v2877, %v2878
    %v2880 = vrot.slane %v2878, 4
    %v2881 = vrot.slane %v2837, 5
    %v2882 = vsel %vm2862, %v2880, %v2881
    %v2883 = vrot.slane %v2712, 5
    %v2884 = vrot.slane %v2883, 4
    %v2885 = vrot.slane %v2814, 5
    %v2886 = vsel %vm2862, %v2884, %v2885
    %v2887 = vrot.slane %v2885, 4
    %v2888 = vrot.slane %v2713, 5
    %v2889 = vsel %vm2862, %v2887, %v2888
    %v2890 = vrot.slane %v2888, 4
    %v2891 = vrot.slane %v2838, 5
    %v2892 = vsel %vm2862, %v2890, %v2891
    %v2893 = vrot.slane %v2714, 5
    %v2894 = vrot.slane %v2893, 4
    %v2895 = vrot.slane %v2815, 5
    %v2896 = vsel %vm2862, %v2894, %v2895
    %v2897 = vrot.slane %v2895, 4
    %v2898 = vrot.slane %v2715, 5
    %v2899 = vsel %vm2862, %v2897, %v2898
    %v2900 = vrot.slane %v2898, 4
    %v2901 = vrot.slane %v2839, 5
    %v2902 = vsel %vm2862, %v2900, %v2901
    %v2903 = vrot.slane %v2716, 5
    %v2904 = vrot.slane %v2903, 4
    %v2905 = vrot.slane %v2816, 5
    %v2906 = vsel %vm2862, %v2904, %v2905
    %v2907 = vrot.slane %v2905, 4
    %v2908 = vrot.slane %v2717, 5
    %v2909 = vsel %vm2862, %v2907, %v2908
    %v2910 = vrot.slane %v2908, 4
    %v2911 = vrot.slane %v2840, 5
    %v2912 = vsel %vm2862, %v2910, %v2911
    %v2913 = vrot.slane %v2718, 5
    %v2914 = vrot.slane %v2913, 4
    %v2915 = vrot.slane %v2817, 5
    %v2916 = vsel %vm2862, %v2914, %v2915
    %v2917 = vrot.slane %v2915, 4
    %v2918 = vrot.slane %v2719, 5
    %v2919 = vsel %vm2862, %v2917, %v2918
    %v2920 = vrot.slane %v2918, 4
    %v2921 = vrot.slane %v2841, 5
    %v2922 = vsel %vm2862, %v2920, %v2921
    %v2923 = vrot.slane %v2720, 5
    %v2924 = vrot.slane %v2923, 4
    %v2925 = vrot.slane %v2818, 5
    %v2926 = vsel %vm2862, %v2924, %v2925
    %v2927 = vrot.slane %v2925, 4
    %v2928 = vrot.slane %v2721, 5
    %v2929 = vsel %vm2862, %v2927, %v2928
    %v2930 = vrot.slane %v2928, 4
    %v2931 = vrot.slane %v2842, 5
    %v2932 = vsel %vm2862, %v2930, %v2931
    %v2933 = vrot.slane %v2722, 5
    %v2934 = vrot.slane %v2933, 4
    %v2935 = vrot.slane %v2819, 5
    %v2936 = vsel %vm2862, %v2934, %v2935
    %v2937 = vrot.slane %v2935, 4
    %v2938 = vrot.slane %v2723, 5
    %v2939 = vsel %vm2862, %v2937, %v2938
    %v2940 = vrot.slane %v2938, 4
    %v2941 = vrot.slane %v2843, 5
    %v2942 = vsel %vm2862, %v2940, %v2941
    %v2943 = vrot.slane %v2724, 5
    %v2944 = vrot.slane %v2943, 4
    %v2945 = vrot.slane %v2820, 5
    %v2946 = vsel %vm2862, %v2944, %v2945
    %v2947 = vrot.slane %v2945, 4
    %v2948 = vrot.slane %v2725, 5
    %v2949 = vsel %vm2862, %v2947, %v2948
    %v2950 = vrot.slane %v2948, 4
    %v2951 = vrot.slane %v2844, 5
    %v2952 = vsel %vm2862, %v2950, %v2951
    %v2953 = vrot.slane %v2726, 5
    %v2954 = vrot.slane %v2953, 4
    %v2955 = vrot.slane %v2821, 5
    %v2956 = vsel %vm2862, %v2954, %v2955
    %v2957 = vrot.slane %v2955, 4
    %v2958 = vrot.slane %v2727, 5
    %v2959 = vsel %vm2862, %v2957, %v2958
    %v2960 = vrot.slane %v2958, 4
    %v2961 = vrot.slane %v2845, 5
    %v2962 = vsel %vm2862, %v2960, %v2961
    %v2963 = vrot.slane %v2728, 5
    %v2964 = vrot.slane %v2963, 4
    %v2965 = vrot.slane %v2822, 5
    %v2966 = vsel %vm2862, %v2964, %v2965
    %v2967 = vrot.slane %v2965, 4
    %v2968 = vrot.slane %v2729, 5
    %v2969 = vsel %vm2862, %v2967, %v2968
    %v2970 = vrot.slane %v2968, 4
    %v2971 = vrot.slane %v2846, 5
    %v2972 = vsel %vm2862, %v2970, %v2971
    %v2973 = vrot.slane %v2730, 5
    %v2974 = vrot.slane %v2973, 4
    %v2975 = vrot.slane %v2823, 5
    %v2976 = vsel %vm2862, %v2974, %v2975
    %v2977 = vrot.slane %v2975, 4
    %v2978 = vrot.slane %v2731, 5
    %v2979 = vsel %vm2862, %v2977, %v2978
    %v2980 = vrot.slane %v2978, 4
    %v2981 = vrot.slane %v2847, 5
    %v2982 = vsel %vm2862, %v2980, %v2981
    %v2983 = vrot.slane %v2736, 5
    %v2984 = vrot.slane %v2983, 4
    %v2985 = vrot.slane %v2824, 5
    %v2986 = vsel %vm2862, %v2984, %v2985
    %v2987 = vrot.slane %v2985, 4
    %v2988 = vrot.slane %v2737, 5
    %v2989 = vsel %vm2862, %v2987, %v2988
    %v2990 = vrot.slane %v2988, 4
    %v2991 = vrot.slane %v2848, 5
    %v2992 = vsel %vm2862, %v2990, %v2991
    %v2993 = vrot.slane %v2738, 5
    %v2994 = vrot.slane %v2993, 4
    %v2995 = vrot.slane %v2825, 5
    %v2996 = vsel %vm2862, %v2994, %v2995
    %v2997 = vrot.slane %v2995, 4
    %v2998 = vrot.slane %v2739, 5
    %v2999 = vsel %vm2862, %v2997, %v2998
    %v3000 = vrot.slane %v2998, 4
    %v3001 = vrot.slane %v2849, 5
    %v3002 = vsel %vm2862, %v3000, %v3001
    %v3003 = vrot.slane %v2740, 5
    %v3004 = vrot.slane %v3003, 4
    %v3005 = vrot.slane %v2826, 5
    %v3006 = vsel %vm2862, %v3004, %v3005
    %v3007 = vrot.slane %v3005, 4
    %v3008 = vrot.slane %v2741, 5
    %v3009 = vsel %vm2862, %v3007, %v3008
    %v3010 = vrot.slane %v3008, 4
    %v3011 = vrot.slane %v2850, 5
    %v3012 = vsel %vm2862, %v3010, %v3011
    %v3013 = vrot.slane %v2742, 5
    %v3014 = vrot.slane %v3013, 4
    %v3015 = vrot.slane %v2827, 5
    %v3016 = vsel %vm2862, %v3014, %v3015
    %v3017 = vrot.slane %v3015, 4
    %v3018 = vrot.slane %v2743, 5
    %v3019 = vsel %vm2862, %v3017, %v3018
    %v3020 = vrot.slane %v3018, 4
    %v3021 = vrot.slane %v2851, 5
    %v3022 = vsel %vm2862, %v3020, %v3021
    %v3023 = vrot.slane %v2744, 5
    %v3024 = vrot.slane %v3023, 4
    %v3025 = vrot.slane %v2828, 5
    %v3026 = vsel %vm2862, %v3024, %v3025
    %v3027 = vrot.slane %v3025, 4
    %v3028 = vrot.slane %v2745, 5
    %v3029 = vsel %vm2862, %v3027, %v3028
    %v3030 = vrot.slane %v3028, 4
    %v3031 = vrot.slane %v2852, 5
    %v3032 = vsel %vm2862, %v3030, %v3031
    %v3033 = vrot.slane %v2746, 5
    %v3034 = vrot.slane %v3033, 4
    %v3035 = vrot.slane %v2829, 5
    %v3036 = vsel %vm2862, %v3034, %v3035
    %v3037 = vrot.slane %v3035, 4
    %v3038 = vrot.slane %v2747, 5
    %v3039 = vsel %vm2862, %v3037, %v3038
    %v3040 = vrot.slane %v3038, 4
    %v3041 = vrot.slane %v2853, 5
    %v3042 = vsel %vm2862, %v3040, %v3041
    %v3043 = vrot.slane %v2748, 5
    %v3044 = vrot.slane %v3043, 4
    %v3045 = vrot.slane %v2830, 5
    %v3046 = vsel %vm2862, %v3044, %v3045
    %v3047 = vrot.slane %v3045, 4
    %v3048 = vrot.slane %v2749, 5
    %v3049 = vsel %vm2862, %v3047, %v3048
    %v3050 = vrot.slane %v3048, 4
    %v3051 = vrot.slane %v2854, 5
    %v3052 = vsel %vm2862, %v3050, %v3051
    %v3053 = vrot.slane %v2750, 5
    %v3054 = vrot.slane %v3053, 4
    %v3055 = vrot.slane %v2831, 5
    %v3056 = vsel %vm2862, %v3054, %v3055
    %v3057 = vrot.slane %v3055, 4
    %v3058 = vrot.slane %v2751, 5
    %v3059 = vsel %vm2862, %v3057, %v3058
    %v3060 = vrot.slane %v3058, 4
    %v3061 = vrot.slane %v2855, 5
    %v3062 = vsel %vm2862, %v3060, %v3061
    %v3063 = vrot.slane %v2752, 5
    %v3064 = vrot.slane %v3063, 4
    %v3065 = vrot.slane %v2832, 5
    %v3066 = vsel %vm2862, %v3064, %v3065
    %v3067 = vrot.slane %v3065, 4
    %v3068 = vrot.slane %v2753, 5
    %v3069 = vsel %vm2862, %v3067, %v3068
    %v3070 = vrot.slane %v3068, 4
    %v3071 = vrot.slane %v2856, 5
    %v3072 = vsel %vm2862, %v3070, %v3071
    %v3073 = vrot.slane %v2754, 5
    %v3074 = vrot.slane %v3073, 4
    %v3075 = vrot.slane %v2833, 5
    %v3076 = vsel %vm2862, %v3074, %v3075
    %v3077 = vrot.slane %v3075, 4
    %v3078 = vrot.slane %v2755, 5
    %v3079 = vsel %vm2862, %v3077, %v3078
    %v3080 = vrot.slane %v3078, 4
    %v3081 = vrot.slane %v2857, 5
    %v3082 = vsel %vm2862, %v3080, %v3081
    %v3083 = vrot.slane %v2756, 5
    %v3084 = vrot.slane %v3083, 4
    %v3085 = vrot.slane %v2834, 5
    %v3086 = vsel %vm2862, %v3084, %v3085
    %v3087 = vrot.slane %v3085, 4
    %v3088 = vrot.slane %v2757, 5
    %v3089 = vsel %vm2862, %v3087, %v3088
    %v3090 = vrot.slane %v3088, 4
    %v3091 = vrot.slane %v2858, 5
    %v3092 = vsel %vm2862, %v3090, %v3091
    %v3093 = vrot.slane %v2758, 5
    %v3094 = vrot.slane %v3093, 4
    %v3095 = vrot.slane %v2835, 5
    %v3096 = vsel %vm2862, %v3094, %v3095
    %v3097 = vrot.slane %v3095, 4
    %v3098 = vrot.slane %v2759, 5
    %v3099 = vsel %vm2862, %v3097, %v3098
    %v3100 = vrot.slane %v3098, 4
    %v3101 = vrot.slane %v2859, 5
    %v3102 = vsel %vm2862, %v3100, %v3101
    %vm3103 = vcmask 1041408
    %vm3104 = vcmask 1045508
    %vm3105 = vmor %vm3103, %vm3104
    %v3106 = vrot.slane %v2708, 6
    %v3107 = vrot.slane %v3106, 4
    %v3108 = vrot.slane %v2812, 6
    %v3109 = vsel %vm3105, %v3107, %v3108
    %v3110 = vrot.slane %v3108, 4
    %v3111 = vrot.slane %v2709, 6
    %v3112 = vsel %vm3105, %v3110, %v3111
    %v3113 = vrot.slane %v3111, 4
    %v3114 = vrot.slane %v2836, 6
    %v3115 = vsel %vm3105, %v3113, %v3114
    %v3116 = vrot.slane %v2710, 6
    %v3117 = vrot.slane %v3116, 4
    %v3118 = vrot.slane %v2813, 6
    %v3119 = vsel %vm3105, %v3117, %v3118
    %v3120 = vrot.slane %v3118, 4
    %v3121 = vrot.slane %v2711, 6
    %v3122 = vsel %vm3105, %v3120, %v3121
    %v3123 = vrot.slane %v3121, 4
    %v3124 = vrot.slane %v2837, 6
    %v3125 = vsel %vm3105, %v3123, %v3124
    %v3126 = vrot.slane %v2712, 6
    %v3127 = vrot.slane %v3126, 4
    %v3128 = vrot.slane %v2814, 6
    %v3129 = vsel %vm3105, %v3127, %v3128
    %v3130 = vrot.slane %v3128, 4
    %v3131 = vrot.slane %v2713, 6
    %v3132 = vsel %vm3105, %v3130, %v3131
    %v3133 = vrot.slane %v3131, 4
    %v3134 = vrot.slane %v2838, 6
    %v3135 = vsel %vm3105, %v3133, %v3134
    %v3136 = vrot.slane %v2714, 6
    %v3137 = vrot.slane %v3136, 4
    %v3138 = vrot.slane %v2815, 6
    %v3139 = vsel %vm3105, %v3137, %v3138
    %v3140 = vrot.slane %v3138, 4
    %v3141 = vrot.slane %v2715, 6
    %v3142 = vsel %vm3105, %v3140, %v3141
    %v3143 = vrot.slane %v3141, 4
    %v3144 = vrot.slane %v2839, 6
    %v3145 = vsel %vm3105, %v3143, %v3144
    %v3146 = vrot.slane %v2716, 6
    %v3147 = vrot.slane %v3146, 4
    %v3148 = vrot.slane %v2816, 6
    %v3149 = vsel %vm3105, %v3147, %v3148
    %v3150 = vrot.slane %v3148, 4
    %v3151 = vrot.slane %v2717, 6
    %v3152 = vsel %vm3105, %v3150, %v3151
    %v3153 = vrot.slane %v3151, 4
    %v3154 = vrot.slane %v2840, 6
    %v3155 = vsel %vm3105, %v3153, %v3154
    %v3156 = vrot.slane %v2718, 6
    %v3157 = vrot.slane %v3156, 4
    %v3158 = vrot.slane %v2817, 6
    %v3159 = vsel %vm3105, %v3157, %v3158
    %v3160 = vrot.slane %v3158, 4
    %v3161 = vrot.slane %v2719, 6
    %v3162 = vsel %vm3105, %v3160, %v3161
    %v3163 = vrot.slane %v3161, 4
    %v3164 = vrot.slane %v2841, 6
    %v3165 = vsel %vm3105, %v3163, %v3164
    %v3166 = vrot.slane %v2720, 6
    %v3167 = vrot.slane %v3166, 4
    %v3168 = vrot.slane %v2818, 6
    %v3169 = vsel %vm3105, %v3167, %v3168
    %v3170 = vrot.slane %v3168, 4
    %v3171 = vrot.slane %v2721, 6
    %v3172 = vsel %vm3105, %v3170, %v3171
    %v3173 = vrot.slane %v3171, 4
    %v3174 = vrot.slane %v2842, 6
    %v3175 = vsel %vm3105, %v3173, %v3174
    %v3176 = vrot.slane %v2722, 6
    %v3177 = vrot.slane %v3176, 4
    %v3178 = vrot.slane %v2819, 6
    %v3179 = vsel %vm3105, %v3177, %v3178
    %v3180 = vrot.slane %v3178, 4
    %v3181 = vrot.slane %v2723, 6
    %v3182 = vsel %vm3105, %v3180, %v3181
    %v3183 = vrot.slane %v3181, 4
    %v3184 = vrot.slane %v2843, 6
    %v3185 = vsel %vm3105, %v3183, %v3184
    %v3186 = vrot.slane %v2724, 6
    %v3187 = vrot.slane %v3186, 4
    %v3188 = vrot.slane %v2820, 6
    %v3189 = vsel %vm3105, %v3187, %v3188
    %v3190 = vrot.slane %v3188, 4
    %v3191 = vrot.slane %v2725, 6
    %v3192 = vsel %vm3105, %v3190, %v3191
    %v3193 = vrot.slane %v3191, 4
    %v3194 = vrot.slane %v2844, 6
    %v3195 = vsel %vm3105, %v3193, %v3194
    %v3196 = vrot.slane %v2726, 6
    %v3197 = vrot.slane %v3196, 4
    %v3198 = vrot.slane %v2821, 6
    %v3199 = vsel %vm3105, %v3197, %v3198
    %v3200 = vrot.slane %v3198, 4
    %v3201 = vrot.slane %v2727, 6
    %v3202 = vsel %vm3105, %v3200, %v3201
    %v3203 = vrot.slane %v3201, 4
    %v3204 = vrot.slane %v2845, 6
    %v3205 = vsel %vm3105, %v3203, %v3204
    %v3206 = vrot.slane %v2728, 6
    %v3207 = vrot.slane %v3206, 4
    %v3208 = vrot.slane %v2822, 6
    %v3209 = vsel %vm3105, %v3207, %v3208
    %v3210 = vrot.slane %v3208, 4
    %v3211 = vrot.slane %v2729, 6
    %v3212 = vsel %vm3105, %v3210, %v3211
    %v3213 = vrot.slane %v3211, 4
    %v3214 = vrot.slane %v2846, 6
    %v3215 = vsel %vm3105, %v3213, %v3214
    %v3216 = vrot.slane %v2730, 6
    %v3217 = vrot.slane %v3216, 4
    %v3218 = vrot.slane %v2823, 6
    %v3219 = vsel %vm3105, %v3217, %v3218
    %v3220 = vrot.slane %v3218, 4
    %v3221 = vrot.slane %v2731, 6
    %v3222 = vsel %vm3105, %v3220, %v3221
    %v3223 = vrot.slane %v3221, 4
    %v3224 = vrot.slane %v2847, 6
    %v3225 = vsel %vm3105, %v3223, %v3224
    %v3226 = vrot.slane %v2736, 6
    %v3227 = vrot.slane %v3226, 4
    %v3228 = vrot.slane %v2824, 6
    %v3229 = vsel %vm3105, %v3227, %v3228
    %v3230 = vrot.slane %v3228, 4
    %v3231 = vrot.slane %v2737, 6
    %v3232 = vsel %vm3105, %v3230, %v3231
    %v3233 = vrot.slane %v3231, 4
    %v3234 = vrot.slane %v2848, 6
    %v3235 = vsel %vm3105, %v3233, %v3234
    %v3236 = vrot.slane %v2738, 6
    %v3237 = vrot.slane %v3236, 4
    %v3238 = vrot.slane %v2825, 6
    %v3239 = vsel %vm3105, %v3237, %v3238
    %v3240 = vrot.slane %v3238, 4
    %v3241 = vrot.slane %v2739, 6
    %v3242 = vsel %vm3105, %v3240, %v3241
    %v3243 = vrot.slane %v3241, 4
    %v3244 = vrot.slane %v2849, 6
    %v3245 = vsel %vm3105, %v3243, %v3244
    %v3246 = vrot.slane %v2740, 6
    %v3247 = vrot.slane %v3246, 4
    %v3248 = vrot.slane %v2826, 6
    %v3249 = vsel %vm3105, %v3247, %v3248
    %v3250 = vrot.slane %v3248, 4
    %v3251 = vrot.slane %v2741, 6
    %v3252 = vsel %vm3105, %v3250, %v3251
    %v3253 = vrot.slane %v3251, 4
    %v3254 = vrot.slane %v2850, 6
    %v3255 = vsel %vm3105, %v3253, %v3254
    %v3256 = vrot.slane %v2742, 6
    %v3257 = vrot.slane %v3256, 4
    %v3258 = vrot.slane %v2827, 6
    %v3259 = vsel %vm3105, %v3257, %v3258
    %v3260 = vrot.slane %v3258, 4
    %v3261 = vrot.slane %v2743, 6
    %v3262 = vsel %vm3105, %v3260, %v3261
    %v3263 = vrot.slane %v3261, 4
    %v3264 = vrot.slane %v2851, 6
    %v3265 = vsel %vm3105, %v3263, %v3264
    %v3266 = vrot.slane %v2744, 6
    %v3267 = vrot.slane %v3266, 4
    %v3268 = vrot.slane %v2828, 6
    %v3269 = vsel %vm3105, %v3267, %v3268
    %v3270 = vrot.slane %v3268, 4
    %v3271 = vrot.slane %v2745, 6
    %v3272 = vsel %vm3105, %v3270, %v3271
    %v3273 = vrot.slane %v3271, 4
    %v3274 = vrot.slane %v2852, 6
    %v3275 = vsel %vm3105, %v3273, %v3274
    %v3276 = vrot.slane %v2746, 6
    %v3277 = vrot.slane %v3276, 4
    %v3278 = vrot.slane %v2829, 6
    %v3279 = vsel %vm3105, %v3277, %v3278
    %v3280 = vrot.slane %v3278, 4
    %v3281 = vrot.slane %v2747, 6
    %v3282 = vsel %vm3105, %v3280, %v3281
    %v3283 = vrot.slane %v3281, 4
    %v3284 = vrot.slane %v2853, 6
    %v3285 = vsel %vm3105, %v3283, %v3284
    %v3286 = vrot.slane %v2748, 6
    %v3287 = vrot.slane %v3286, 4
    %v3288 = vrot.slane %v2830, 6
    %v3289 = vsel %vm3105, %v3287, %v3288
    %v3290 = vrot.slane %v3288, 4
    %v3291 = vrot.slane %v2749, 6
    %v3292 = vsel %vm3105, %v3290, %v3291
    %v3293 = vrot.slane %v3291, 4
    %v3294 = vrot.slane %v2854, 6
    %v3295 = vsel %vm3105, %v3293, %v3294
    %v3296 = vrot.slane %v2750, 6
    %v3297 = vrot.slane %v3296, 4
    %v3298 = vrot.slane %v2831, 6
    %v3299 = vsel %vm3105, %v3297, %v3298
    %v3300 = vrot.slane %v3298, 4
    %v3301 = vrot.slane %v2751, 6
    %v3302 = vsel %vm3105, %v3300, %v3301
    %v3303 = vrot.slane %v3301, 4
    %v3304 = vrot.slane %v2855, 6
    %v3305 = vsel %vm3105, %v3303, %v3304
    %v3306 = vrot.slane %v2752, 6
    %v3307 = vrot.slane %v3306, 4
    %v3308 = vrot.slane %v2832, 6
    %v3309 = vsel %vm3105, %v3307, %v3308
    %v3310 = vrot.slane %v3308, 4
    %v3311 = vrot.slane %v2753, 6
    %v3312 = vsel %vm3105, %v3310, %v3311
    %v3313 = vrot.slane %v3311, 4
    %v3314 = vrot.slane %v2856, 6
    %v3315 = vsel %vm3105, %v3313, %v3314
    %v3316 = vrot.slane %v2754, 6
    %v3317 = vrot.slane %v3316, 4
    %v3318 = vrot.slane %v2833, 6
    %v3319 = vsel %vm3105, %v3317, %v3318
    %v3320 = vrot.slane %v3318, 4
    %v3321 = vrot.slane %v2755, 6
    %v3322 = vsel %vm3105, %v3320, %v3321
    %v3323 = vrot.slane %v3321, 4
    %v3324 = vrot.slane %v2857, 6
    %v3325 = vsel %vm3105, %v3323, %v3324
    %v3326 = vrot.slane %v2756, 6
    %v3327 = vrot.slane %v3326, 4
    %v3328 = vrot.slane %v2834, 6
    %v3329 = vsel %vm3105, %v3327, %v3328
    %v3330 = vrot.slane %v3328, 4
    %v3331 = vrot.slane %v2757, 6
    %v3332 = vsel %vm3105, %v3330, %v3331
    %v3333 = vrot.slane %v3331, 4
    %v3334 = vrot.slane %v2858, 6
    %v3335 = vsel %vm3105, %v3333, %v3334
    %v3336 = vrot.slane %v2758, 6
    %v3337 = vrot.slane %v3336, 4
    %v3338 = vrot.slane %v2835, 6
    %v3339 = vsel %vm3105, %v3337, %v3338
    %v3340 = vrot.slane %v3338, 4
    %v3341 = vrot.slane %v2759, 6
    %v3342 = vsel %vm3105, %v3340, %v3341
    %v3343 = vrot.slane %v3341, 4
    %v3344 = vrot.slane %v2859, 6
    %v3345 = vsel %vm3105, %v3343, %v3344
    %v3350 = vrot.slane %v2732, 4
    %v3351 = vrot.slane %v2760, 4
    %v3352 = vrot.slane %v2733, 4
    %v3353 = vrot.slane %v2761, 4
    %v3354 = vrot.slane %v2732, 5
    %v3355 = vrot.slane %v3354, 4
    %v3356 = vrot.slane %v3350, 5
    %v3357 = vsel %vm2862, %v3355, %v3356
    %v3358 = vrot.slane %v3356, 4
    %v3359 = vrot.slane %v2733, 5
    %v3360 = vsel %vm2862, %v3358, %v3359
    %v3361 = vrot.slane %v3359, 4
    %v3362 = vrot.slane %v3352, 5
    %v3363 = vsel %vm2862, %v3361, %v3362
    %v3364 = vrot.slane %v2760, 5
    %v3365 = vrot.slane %v3364, 4
    %v3366 = vrot.slane %v3351, 5
    %v3367 = vsel %vm2862, %v3365, %v3366
    %v3368 = vrot.slane %v3366, 4
    %v3369 = vrot.slane %v2761, 5
    %v3370 = vsel %vm2862, %v3368, %v3369
    %v3371 = vrot.slane %v3369, 4
    %v3372 = vrot.slane %v3353, 5
    %v3373 = vsel %vm2862, %v3371, %v3372
    %v3374 = vrot.slane %v2732, 6
    %v3375 = vrot.slane %v3374, 4
    %v3376 = vrot.slane %v3350, 6
    %v3377 = vsel %vm3105, %v3375, %v3376
    %v3378 = vrot.slane %v3376, 4
    %v3379 = vrot.slane %v2733, 6
    %v3380 = vsel %vm3105, %v3378, %v3379
    %v3381 = vrot.slane %v3379, 4
    %v3382 = vrot.slane %v3352, 6
    %v3383 = vsel %vm3105, %v3381, %v3382
    %v3384 = vrot.slane %v2760, 6
    %v3385 = vrot.slane %v3384, 4
    %v3386 = vrot.slane %v3351, 6
    %v3387 = vsel %vm3105, %v3385, %v3386
    %v3388 = vrot.slane %v3386, 4
    %v3389 = vrot.slane %v2761, 6
    %v3390 = vsel %vm3105, %v3388, %v3389
    %v3391 = vrot.slane %v3389, 4
    %v3392 = vrot.slane %v3353, 6
    %v3393 = vsel %vm3105, %v3391, %v3392
    %v3398 = vrot.slane %v2734, 4
    %v3399 = vrot.slane %v2762, 4
    %v3400 = vrot.slane %v2735, 4
    %v3401 = vrot.slane %v2763, 4
    %v3402 = vrot.slane %v2734, 5
    %v3403 = vrot.slane %v3402, 4
    %v3404 = vrot.slane %v3398, 5
    %v3405 = vsel %vm2862, %v3403, %v3404
    %v3406 = vrot.slane %v3404, 4
    %v3407 = vrot.slane %v2735, 5
    %v3408 = vsel %vm2862, %v3406, %v3407
    %v3409 = vrot.slane %v3407, 4
    %v3410 = vrot.slane %v3400, 5
    %v3411 = vsel %vm2862, %v3409, %v3410
    %v3412 = vrot.slane %v2762, 5
    %v3413 = vrot.slane %v3412, 4
    %v3414 = vrot.slane %v3399, 5
    %v3415 = vsel %vm2862, %v3413, %v3414
    %v3416 = vrot.slane %v3414, 4
    %v3417 = vrot.slane %v2763, 5
    %v3418 = vsel %vm2862, %v3416, %v3417
    %v3419 = vrot.slane %v3417, 4
    %v3420 = vrot.slane %v3401, 5
    %v3421 = vsel %vm2862, %v3419, %v3420
    %v3422 = vrot.slane %v2734, 6
    %v3423 = vrot.slane %v3422, 4
    %v3424 = vrot.slane %v3398, 6
    %v3425 = vsel %vm3105, %v3423, %v3424
    %v3426 = vrot.slane %v3424, 4
    %v3427 = vrot.slane %v2735, 6
    %v3428 = vsel %vm3105, %v3426, %v3427
    %v3429 = vrot.slane %v3427, 4
    %v3430 = vrot.slane %v3400, 6
    %v3431 = vsel %vm3105, %v3429, %v3430
    %v3432 = vrot.slane %v2762, 6
    %v3433 = vrot.slane %v3432, 4
    %v3434 = vrot.slane %v3399, 6
    %v3435 = vsel %vm3105, %v3433, %v3434
    %v3436 = vrot.slane %v3434, 4
    %v3437 = vrot.slane %v2763, 6
    %v3438 = vsel %vm3105, %v3436, %v3437
    %v3439 = vrot.slane %v3437, 4
    %v3440 = vrot.slane %v3401, 6
    %v3441 = vsel %vm3105, %v3439, %v3440
    %3442 = vst [vmem:[#allocation1] ss:$2 sm:$0xff] %v2708
    %s3443 = scalar_lea.vmem [#allocation1], 1
    %3444 = vst [vmem:[%s3443] ss:$2 sm:$0xff] %v2812
    %s3445 = scalar_lea.vmem [#allocation1], 16
    %3446 = vst [vmem:[%s3445] ss:$2 sm:$0xff] %v2709
    %s3447 = scalar_lea.vmem [#allocation1], 17
    %3448 = vst [vmem:[%s3447] ss:$2 sm:$0xff] %v2710
    %s3449 = scalar_lea.vmem [#allocation1], 32
    %3450 = vst [vmem:[%s3449] ss:$2 sm:$0xff] %v2813
    %s3451 = scalar_lea.vmem [#allocation1], 33
    %3452 = vst [vmem:[%s3451] ss:$2 sm:$0xff] %v2711
    %s3453 = scalar_lea.vmem [#allocation1], 48
    %3454 = vst [vmem:[%s3453] ss:$2 sm:$0xff] %v2712
    %s3455 = scalar_lea.vmem [#allocation1], 49
    %3456 = vst [vmem:[%s3455] ss:$2 sm:$0xff] %v2814
    %v3457 = vld.sshfl [vmem:[#allocation1] sm:$0xff pattern:$0x75316420]
    %v3458 = vld.sshfl [vmem:[#allocation1 + $0x10] sm:$0xff pattern:$0x75316420]
    %v3459 = vld.sshfl [vmem:[#allocation1 + $0x20] sm:$0xff pattern:$0x75316420]
    %v3460 = vld.sshfl [vmem:[#allocation1 + $0x30] sm:$0xff pattern:$0x75316420]
    %3461 = vst [vmem:[#allocation1] ss:$2 sm:$0xff] %v2713
    %3462 = vst [vmem:[%s3443] ss:$2 sm:$0xff] %v2714
    %3463 = vst [vmem:[%s3445] ss:$2 sm:$0xff] %v2815
    %3464 = vst [vmem:[%s3447] ss:$2 sm:$0xff] %v2715
    %3465 = vst [vmem:[%s3449] ss:$2 sm:$0xff] %v2716
    %3466 = vst [vmem:[%s3451] ss:$2 sm:$0xff] %v2816
    %3467 = vst [vmem:[%s3453] ss:$2 sm:$0xff] %v2717
    %3468 = vst [vmem:[%s3455] ss:$2 sm:$0xff] %v2718
    %v3469 = vld.sshfl [vmem:[#allocation1] sm:$0xff pattern:$0x75316420]
    %v3470 = vld.sshfl [vmem:[#allocation1 + $0x10] sm:$0xff pattern:$0x75316420]
    %v3471 = vld.sshfl [vmem:[#allocation1 + $0x20] sm:$0xff pattern:$0x75316420]
    %v3472 = vld.sshfl [vmem:[#allocation1 + $0x30] sm:$0xff pattern:$0x75316420]
    %3473 = vst [vmem:[#allocation1] ss:$2 sm:$0xff] %v2817
    %3474 = vst [vmem:[%s3443] ss:$2 sm:$0xff] %v2719
    %3475 = vst [vmem:[%s3445] ss:$2 sm:$0xff] %v2720
    %3476 = vst [vmem:[%s3447] ss:$2 sm:$0xff] %v2818
    %3477 = vst [vmem:[%s3449] ss:$2 sm:$0xff] %v2721
    %3478 = vst [vmem:[%s3451] ss:$2 sm:$0xff] %v2722
    %3479 = vst [vmem:[%s3453] ss:$2 sm:$0xff] %v2819
    %3480 = vst [vmem:[%s3455] ss:$2 sm:$0xff] %v2723
    %v3481 = vld.sshfl [vmem:[#allocation1] sm:$0xff pattern:$0x75316420]
    %v3482 = vld.sshfl [vmem:[#allocation1 + $0x10] sm:$0xff pattern:$0x75316420]
    %v3483 = vld.sshfl [vmem:[#allocation1 + $0x20] sm:$0xff pattern:$0x75316420]
    %v3484 = vld.sshfl [vmem:[#allocation1 + $0x30] sm:$0xff pattern:$0x75316420]
    %3485 = vst [vmem:[#allocation1] ss:$2 sm:$0xff] %v2724
    %3486 = vst [vmem:[%s3443] ss:$2 sm:$0xff] %v2820
    %3487 = vst [vmem:[%s3445] ss:$2 sm:$0xff] %v2725
    %3488 = vst [vmem:[%s3447] ss:$2 sm:$0xff] %v2726
    %3489 = vst [vmem:[%s3449] ss:$2 sm:$0xff] %v2821
    %3490 = vst [vmem:[%s3451] ss:$2 sm:$0xff] %v2727
    %3491 = vst [vmem:[%s3453] ss:$2 sm:$0xff] %v2728
    %3492 = vst [vmem:[%s3455] ss:$2 sm:$0xff] %v2822
    %v3493 = vld.sshfl [vmem:[#allocation1] sm:$0xff pattern:$0x75316420]
    %v3494 = vld.sshfl [vmem:[#allocation1 + $0x10] sm:$0xff pattern:$0x75316420]
    %v3495 = vld.sshfl [vmem:[#allocation1 + $0x20] sm:$0xff pattern:$0x75316420]
    %v3496 = vld.sshfl [vmem:[#allocation1 + $0x30] sm:$0xff pattern:$0x75316420]
    %3497 = vst [vmem:[#allocation1] ss:$2 sm:$0xff] %v2729
    %3498 = vst [vmem:[%s3443] ss:$2 sm:$0xff] %v2730
    %3499 = vst [vmem:[%s3445] ss:$2 sm:$0xff] %v2823
    %3500 = vst [vmem:[%s3447] ss:$2 sm:$0xff] %v2731
    %3501 = vst [vmem:[%s3449] ss:$2 sm:$0xff] %v2736
    %3502 = vst [vmem:[%s3451] ss:$2 sm:$0xff] %v2824
    %3503 = vst [vmem:[%s3453] ss:$2 sm:$0xff] %v2737
    %3504 = vst [vmem:[%s3455] ss:$2 sm:$0xff] %v2738
    %v3505 = vld.sshfl [vmem:[#allocation1] sm:$0xff pattern:$0x75316420]
    %v3506 = vld.sshfl [vmem:[#allocation1 + $0x10] sm:$0xff pattern:$0x75316420]
    %v3507 = vld.sshfl [vmem:[#allocation1 + $0x20] sm:$0xff pattern:$0x75316420]
    %v3508 = vld.sshfl [vmem:[#allocation1 + $0x30] sm:$0xff pattern:$0x75316420]
    %3509 = vst [vmem:[#allocation1] ss:$2 sm:$0xff] %v2825
    %3510 = vst [vmem:[%s3443] ss:$2 sm:$0xff] %v2739
    %3511 = vst [vmem:[%s3445] ss:$2 sm:$0xff] %v2740
    %3512 = vst [vmem:[%s3447] ss:$2 sm:$0xff] %v2826
    %3513 = vst [vmem:[%s3449] ss:$2 sm:$0xff] %v2741
    %3514 = vst [vmem:[%s3451] ss:$2 sm:$0xff] %v2742
    %3515 = vst [vmem:[%s3453] ss:$2 sm:$0xff] %v2827
    %3516 = vst [vmem:[%s3455] ss:$2 sm:$0xff] %v2743
    %v3517 = vld.sshfl [vmem:[#allocation1] sm:$0xff pattern:$0x75316420]
    %v3518 = vld.sshfl [vmem:[#allocation1 + $0x10] sm:$0xff pattern:$0x75316420]
    %v3519 = vld.sshfl [vmem:[#allocation1 + $0x20] sm:$0xff pattern:$0x75316420]
    %v3520 = vld.sshfl [vmem:[#allocation1 + $0x30] sm:$0xff pattern:$0x75316420]
    %3521 = vst [vmem:[#allocation1] ss:$2 sm:$0xff] %v2744
    %3522 = vst [vmem:[%s3443] ss:$2 sm:$0xff] %v2828
    %3523 = vst [vmem:[%s3445] ss:$2 sm:$0xff] %v2745
    %3524 = vst [vmem:[%s3447] ss:$2 sm:$0xff] %v2746
    %3525 = vst [vmem:[%s3449] ss:$2 sm:$0xff] %v2829
    %3526 = vst [vmem:[%s3451] ss:$2 sm:$0xff] %v2747
    %3527 = vst [vmem:[%s3453] ss:$2 sm:$0xff] %v2748
    %3528 = vst [vmem:[%s3455] ss:$2 sm:$0xff] %v2830
    %v3529 = vld.sshfl [vmem:[#allocation1] sm:$0xff pattern:$0x75316420]
    %v3530 = vld.sshfl [vmem:[#allocation1 + $0x10] sm:$0xff pattern:$0x75316420]
    %v3531 = vld.sshfl [vmem:[#allocation1 + $0x20] sm:$0xff pattern:$0x75316420]
    %v3532 = vld.sshfl [vmem:[#allocation1 + $0x30] sm:$0xff pattern:$0x75316420]
    %3533 = vst [vmem:[#allocation1] ss:$2 sm:$0xff] %v2749
    %3534 = vst [vmem:[%s3443] ss:$2 sm:$0xff] %v2750
    %3535 = vst [vmem:[%s3445] ss:$2 sm:$0xff] %v2831
    %3536 = vst [vmem:[%s3447] ss:$2 sm:$0xff] %v2751
    %3537 = vst [vmem:[%s3449] ss:$2 sm:$0xff] %v2752
    %3538 = vst [vmem:[%s3451] ss:$2 sm:$0xff] %v2832
    %3539 = vst [vmem:[%s3453] ss:$2 sm:$0xff] %v2753
    %3540 = vst [vmem:[%s3455] ss:$2 sm:$0xff] %v2754
    %v3541 = vld.sshfl [vmem:[#allocation1] sm:$0xff pattern:$0x75316420]
    %v3542 = vld.sshfl [vmem:[#allocation1 + $0x10] sm:$0xff pattern:$0x75316420]
    %v3543 = vld.sshfl [vmem:[#allocation1 + $0x20] sm:$0xff pattern:$0x75316420]
    %v3544 = vld.sshfl [vmem:[#allocation1 + $0x30] sm:$0xff pattern:$0x75316420]
    %3545 = vst [vmem:[#allocation1] ss:$2 sm:$0xff] %v2833
    %3546 = vst [vmem:[%s3443] ss:$2 sm:$0xff] %v2755
    %3547 = vst [vmem:[%s3445] ss:$2 sm:$0xff] %v2756
    %3548 = vst [vmem:[%s3447] ss:$2 sm:$0xff] %v2834
    %3549 = vst [vmem:[%s3449] ss:$2 sm:$0xff] %v2757
    %3550 = vst [vmem:[%s3451] ss:$2 sm:$0xff] %v2758
    %3551 = vst [vmem:[%s3453] ss:$2 sm:$0xff] %v2835
    %3552 = vst [vmem:[%s3455] ss:$2 sm:$0xff] %v2759
    %v3553 = vld.sshfl [vmem:[#allocation1] sm:$0xff pattern:$0x75316420]
    %v3554 = vld.sshfl [vmem:[#allocation1 + $0x10] sm:$0xff pattern:$0x75316420]
    %v3555 = vld.sshfl [vmem:[#allocation1 + $0x20] sm:$0xff pattern:$0x75316420]
    %v3556 = vld.sshfl [vmem:[#allocation1 + $0x30] sm:$0xff pattern:$0x75316420]
    %3593 = vst [vmem:[#allocation1] ss:$2 sm:$0xff] %v2866
    %s3594 = scalar_lea.vmem [#allocation1], 1
    %3595 = vst [vmem:[%s3594] ss:$2 sm:$0xff] %v2869
    %s3596 = scalar_lea.vmem [#allocation1], 16
    %3597 = vst [vmem:[%s3596] ss:$2 sm:$0xff] %v2872
    %s3598 = scalar_lea.vmem [#allocation1], 17
    %3599 = vst [vmem:[%s3598] ss:$2 sm:$0xff] %v2876
    %s3600 = scalar_lea.vmem [#allocation1], 32
    %3601 = vst [vmem:[%s3600] ss:$2 sm:$0xff] %v2879
    %s3602 = scalar_lea.vmem [#allocation1], 33
    %3603 = vst [vmem:[%s3602] ss:$2 sm:$0xff] %v2882
    %s3604 = scalar_lea.vmem [#allocation1], 48
    %3605 = vst [vmem:[%s3604] ss:$2 sm:$0xff] %v2886
    %s3606 = scalar_lea.vmem [#allocation1], 49
    %3607 = vst [vmem:[%s3606] ss:$2 sm:$0xff] %v2889
    %v3608 = vld.sshfl [vmem:[#allocation1] sm:$0xff pattern:$0x75316420]
    %v3609 = vld.sshfl [vmem:[#allocation1 + $0x10] sm:$0xff pattern:$0x75316420]
    %v3610 = vld.sshfl [vmem:[#allocation1 + $0x20] sm:$0xff pattern:$0x75316420]
    %v3611 = vld.sshfl [vmem:[#allocation1 + $0x30] sm:$0xff pattern:$0x75316420]
    %3612 = vst [vmem:[#allocation1] ss:$2 sm:$0xff] %v2892
    %3613 = vst [vmem:[%s3594] ss:$2 sm:$0xff] %v2896
    %3614 = vst [vmem:[%s3596] ss:$2 sm:$0xff] %v2899
    %3615 = vst [vmem:[%s3598] ss:$2 sm:$0xff] %v2902
    %3616 = vst [vmem:[%s3600] ss:$2 sm:$0xff] %v2906
    %3617 = vst [vmem:[%s3602] ss:$2 sm:$0xff] %v2909
    %3618 = vst [vmem:[%s3604] ss:$2 sm:$0xff] %v2912
    %3619 = vst [vmem:[%s3606] ss:$2 sm:$0xff] %v2916
    %v3620 = vld.sshfl [vmem:[#allocation1] sm:$0xff pattern:$0x75316420]
    %v3621 = vld.sshfl [vmem:[#allocation1 + $0x10] sm:$0xff pattern:$0x75316420]
    %v3622 = vld.sshfl [vmem:[#allocation1 + $0x20] sm:$0xff pattern:$0x75316420]
    %v3623 = vld.sshfl [vmem:[#allocation1 + $0x30] sm:$0xff pattern:$0x75316420]
    %3624 = vst [vmem:[#allocation1] ss:$2 sm:$0xff] %v2919
    %3625 = vst [vmem:[%s3594] ss:$2 sm:$0xff] %v2922
    %3626 = vst [vmem:[%s3596] ss:$2 sm:$0xff] %v2926
    %3627 = vst [vmem:[%s3598] ss:$2 sm:$0xff] %v2929
    %3628 = vst [vmem:[%s3600] ss:$2 sm:$0xff] %v2932
    %3629 = vst [vmem:[%s3602] ss:$2 sm:$0xff] %v2936
    %3630 = vst [vmem:[%s3604] ss:$2 sm:$0xff] %v2939
    %3631 = vst [vmem:[%s3606] ss:$2 sm:$0xff] %v2942
    %v3632 = vld.sshfl [vmem:[#allocation1] sm:$0xff pattern:$0x75316420]
    %v3633 = vld.sshfl [vmem:[#allocation1 + $0x10] sm:$0xff pattern:$0x75316420]
    %v3634 = vld.sshfl [vmem:[#allocation1 + $0x20] sm:$0xff pattern:$0x75316420]
    %v3635 = vld.sshfl [vmem:[#allocation1 + $0x30] sm:$0xff pattern:$0x75316420]
    %3636 = vst [vmem:[#allocation1] ss:$2 sm:$0xff] %v2946
    %3637 = vst [vmem:[%s3594] ss:$2 sm:$0xff] %v2949
    %3638 = vst [vmem:[%s3596] ss:$2 sm:$0xff] %v2952
    %3639 = vst [vmem:[%s3598] ss:$2 sm:$0xff] %v2956
    %3640 = vst [vmem:[%s3600] ss:$2 sm:$0xff] %v2959
    %3641 = vst [vmem:[%s3602] ss:$2 sm:$0xff] %v2962
    %3642 = vst [vmem:[%s3604] ss:$2 sm:$0xff] %v2966
    %3643 = vst [vmem:[%s3606] ss:$2 sm:$0xff] %v2969
    %v3644 = vld.sshfl [vmem:[#allocation1] sm:$0xff pattern:$0x75316420]
    %v3645 = vld.sshfl [vmem:[#allocation1 + $0x10] sm:$0xff pattern:$0x75316420]
    %v3646 = vld.sshfl [vmem:[#allocation1 + $0x20] sm:$0xff pattern:$0x75316420]
    %v3647 = vld.sshfl [vmem:[#allocation1 + $0x30] sm:$0xff pattern:$0x75316420]
    %3648 = vst [vmem:[#allocation1] ss:$2 sm:$0xff] %v2972
    %3649 = vst [vmem:[%s3594] ss:$2 sm:$0xff] %v2976
    %3650 = vst [vmem:[%s3596] ss:$2 sm:$0xff] %v2979
    %3651 = vst [vmem:[%s3598] ss:$2 sm:$0xff] %v2982
    %3652 = vst [vmem:[%s3600] ss:$2 sm:$0xff] %v2986
    %3653 = vst [vmem:[%s3602] ss:$2 sm:$0xff] %v2989
    %3654 = vst [vmem:[%s3604] ss:$2 sm:$0xff] %v2992
    %3655 = vst [vmem:[%s3606] ss:$2 sm:$0xff] %v2996
    %v3656 = vld.sshfl [vmem:[#allocation1] sm:$0xff pattern:$0x75316420]
    %v3657 = vld.sshfl [vmem:[#allocation1 + $0x10] sm:$0xff pattern:$0x75316420]
    %v3658 = vld.sshfl [vmem:[#allocation1 + $0x20] sm:$0xff pattern:$0x75316420]
    %v3659 = vld.sshfl [vmem:[#allocation1 + $0x30] sm:$0xff pattern:$0x75316420]
    %3660 = vst [vmem:[#allocation1] ss:$2 sm:$0xff] %v2999
    %3661 = vst [vmem:[%s3594] ss:$2 sm:$0xff] %v3002
    %3662 = vst [vmem:[%s3596] ss:$2 sm:$0xff] %v3006
    %3663 = vst [vmem:[%s3598] ss:$2 sm:$0xff] %v3009
    %3664 = vst [vmem:[%s3600] ss:$2 sm:$0xff] %v3012
    %3665 = vst [vmem:[%s3602] ss:$2 sm:$0xff] %v3016
    %3666 = vst [vmem:[%s3604] ss:$2 sm:$0xff] %v3019
    %3667 = vst [vmem:[%s3606] ss:$2 sm:$0xff] %v3022
    %v3668 = vld.sshfl [vmem:[#allocation1] sm:$0xff pattern:$0x75316420]
    %v3669 = vld.sshfl [vmem:[#allocation1 + $0x10] sm:$0xff pattern:$0x75316420]
    %v3670 = vld.sshfl [vmem:[#allocation1 + $0x20] sm:$0xff pattern:$0x75316420]
    %v3671 = vld.sshfl [vmem:[#allocation1 + $0x30] sm:$0xff pattern:$0x75316420]
    %3672 = vst [vmem:[#allocation1] ss:$2 sm:$0xff] %v3026
    %3673 = vst [vmem:[%s3594] ss:$2 sm:$0xff] %v3029
    %3674 = vst [vmem:[%s3596] ss:$2 sm:$0xff] %v3032
    %3675 = vst [vmem:[%s3598] ss:$2 sm:$0xff] %v3036
    %3676 = vst [vmem:[%s3600] ss:$2 sm:$0xff] %v3039
    %3677 = vst [vmem:[%s3602] ss:$2 sm:$0xff] %v3042
    %3678 = vst [vmem:[%s3604] ss:$2 sm:$0xff] %v3046
    %3679 = vst [vmem:[%s3606] ss:$2 sm:$0xff] %v3049
    %v3680 = vld.sshfl [vmem:[#allocation1] sm:$0xff pattern:$0x75316420]
    %v3681 = vld.sshfl [vmem:[#allocation1 + $0x10] sm:$0xff pattern:$0x75316420]
    %v3682 = vld.sshfl [vmem:[#allocation1 + $0x20] sm:$0xff pattern:$0x75316420]
    %v3683 = vld.sshfl [vmem:[#allocation1 + $0x30] sm:$0xff pattern:$0x75316420]
    %3684 = vst [vmem:[#allocation1] ss:$2 sm:$0xff] %v3052
    %3685 = vst [vmem:[%s3594] ss:$2 sm:$0xff] %v3056
    %3686 = vst [vmem:[%s3596] ss:$2 sm:$0xff] %v3059
    %3687 = vst [vmem:[%s3598] ss:$2 sm:$0xff] %v3062
    %3688 = vst [vmem:[%s3600] ss:$2 sm:$0xff] %v3066
    %3689 = vst [vmem:[%s3602] ss:$2 sm:$0xff] %v3069
    %3690 = vst [vmem:[%s3604] ss:$2 sm:$0xff] %v3072
    %3691 = vst [vmem:[%s3606] ss:$2 sm:$0xff] %v3076
    %v3692 = vld.sshfl [vmem:[#allocation1] sm:$0xff pattern:$0x75316420]
    %v3693 = vld.sshfl [vmem:[#allocation1 + $0x10] sm:$0xff pattern:$0x75316420]
    %v3694 = vld.sshfl [vmem:[#allocation1 + $0x20] sm:$0xff pattern:$0x75316420]
    %v3695 = vld.sshfl [vmem:[#allocation1 + $0x30] sm:$0xff pattern:$0x75316420]
    %3696 = vst [vmem:[#allocation1] ss:$2 sm:$0xff] %v3079
    %3697 = vst [vmem:[%s3594] ss:$2 sm:$0xff] %v3082
    %3698 = vst [vmem:[%s3596] ss:$2 sm:$0xff] %v3086
    %3699 = vst [vmem:[%s3598] ss:$2 sm:$0xff] %v3089
    %3700 = vst [vmem:[%s3600] ss:$2 sm:$0xff] %v3092
    %3701 = vst [vmem:[%s3602] ss:$2 sm:$0xff] %v3096
    %3702 = vst [vmem:[%s3604] ss:$2 sm:$0xff] %v3099
    %3703 = vst [vmem:[%s3606] ss:$2 sm:$0xff] %v3102
    %v3704 = vld.sshfl [vmem:[#allocation1] sm:$0xff pattern:$0x75316420]
    %v3705 = vld.sshfl [vmem:[#allocation1 + $0x10] sm:$0xff pattern:$0x75316420]
    %v3706 = vld.sshfl [vmem:[#allocation1 + $0x20] sm:$0xff pattern:$0x75316420]
    %v3707 = vld.sshfl [vmem:[#allocation1 + $0x30] sm:$0xff pattern:$0x75316420]
    %3708 = vrot.lane.b32.xlu0 %v3608, 32
    %v3709 = vpop.permute.xlu0 %3708
    %3710 = vrot.lane.b32.xlu0 %v3609, 32
    %v3711 = vpop.permute.xlu0 %3710
    %3712 = vrot.lane.b32.xlu0 %v3610, 32
    %v3713 = vpop.permute.xlu0 %3712
    %3714 = vrot.lane.b32.xlu0 %v3611, 32
    %v3715 = vpop.permute.xlu0 %3714
    %3716 = vrot.lane.b32.xlu0 %v3620, 32
    %v3717 = vpop.permute.xlu0 %3716
    %3718 = vrot.lane.b32.xlu0 %v3621, 32
    %v3719 = vpop.permute.xlu0 %3718
    %3720 = vrot.lane.b32.xlu0 %v3622, 32
    %v3721 = vpop.permute.xlu0 %3720
    %3722 = vrot.lane.b32.xlu0 %v3623, 32
    %v3723 = vpop.permute.xlu0 %3722
    %3724 = vrot.lane.b32.xlu0 %v3632, 32
    %v3725 = vpop.permute.xlu0 %3724
    %3726 = vrot.lane.b32.xlu0 %v3633, 32
    %v3727 = vpop.permute.xlu0 %3726
    %3728 = vrot.lane.b32.xlu0 %v3634, 32
    %v3729 = vpop.permute.xlu0 %3728
    %3730 = vrot.lane.b32.xlu0 %v3635, 32
    %v3731 = vpop.permute.xlu0 %3730
    %3732 = vrot.lane.b32.xlu0 %v3644, 32
    %v3733 = vpop.permute.xlu0 %3732
    %3734 = vrot.lane.b32.xlu0 %v3645, 32
    %v3735 = vpop.permute.xlu0 %3734
    %3736 = vrot.lane.b32.xlu0 %v3646, 32
    %v3737 = vpop.permute.xlu0 %3736
    %3738 = vrot.lane.b32.xlu0 %v3647, 32
    %v3739 = vpop.permute.xlu0 %3738
    %3740 = vrot.lane.b32.xlu0 %v3656, 32
    %v3741 = vpop.permute.xlu0 %3740
    %3742 = vrot.lane.b32.xlu0 %v3657, 32
    %v3743 = vpop.permute.xlu0 %3742
    %3744 = vrot.lane.b32.xlu0 %v3658, 32
    %v3745 = vpop.permute.xlu0 %3744
    %3746 = vrot.lane.b32.xlu0 %v3659, 32
    %v3747 = vpop.permute.xlu0 %3746
    %3748 = vrot.lane.b32.xlu0 %v3668, 32
    %v3749 = vpop.permute.xlu0 %3748
    %3750 = vrot.lane.b32.xlu0 %v3669, 32
    %v3751 = vpop.permute.xlu0 %3750
    %3752 = vrot.lane.b32.xlu0 %v3670, 32
    %v3753 = vpop.permute.xlu0 %3752
    %3754 = vrot.lane.b32.xlu0 %v3671, 32
    %v3755 = vpop.permute.xlu0 %3754
    %3756 = vrot.lane.b32.xlu0 %v3680, 32
    %v3757 = vpop.permute.xlu0 %3756
    %3758 = vrot.lane.b32.xlu0 %v3681, 32
    %v3759 = vpop.permute.xlu0 %3758
    %3760 = vrot.lane.b32.xlu0 %v3682, 32
    %v3761 = vpop.permute.xlu0 %3760
    %3762 = vrot.lane.b32.xlu0 %v3683, 32
    %v3763 = vpop.permute.xlu0 %3762
    %3764 = vrot.lane.b32.xlu0 %v3692, 32
    %v3765 = vpop.permute.xlu0 %3764
    %3766 = vrot.lane.b32.xlu0 %v3693, 32
    %v3767 = vpop.permute.xlu0 %3766
    %3768 = vrot.lane.b32.xlu0 %v3694, 32
    %v3769 = vpop.permute.xlu0 %3768
    %3770 = vrot.lane.b32.xlu0 %v3695, 32
    %v3771 = vpop.permute.xlu0 %3770
    %3772 = vrot.lane.b32.xlu0 %v3704, 32
    %v3773 = vpop.permute.xlu0 %3772
    %3774 = vrot.lane.b32.xlu0 %v3705, 32
    %v3775 = vpop.permute.xlu0 %3774
    %3776 = vrot.lane.b32.xlu0 %v3706, 32
    %v3777 = vpop.permute.xlu0 %3776
    %3778 = vrot.lane.b32.xlu0 %v3707, 32
    %v3779 = vpop.permute.xlu0 %3778
    %3816 = vst [vmem:[#allocation1] ss:$2 sm:$0xff] %v3109
    %s3817 = scalar_lea.vmem [#allocation1], 1
    %3818 = vst [vmem:[%s3817] ss:$2 sm:$0xff] %v3112
    %s3819 = scalar_lea.vmem [#allocation1], 16
    %3820 = vst [vmem:[%s3819] ss:$2 sm:$0xff] %v3115
    %s3821 = scalar_lea.vmem [#allocation1], 17
    %3822 = vst [vmem:[%s3821] ss:$2 sm:$0xff] %v3119
    %s3823 = scalar_lea.vmem [#allocation1], 32
    %3824 = vst [vmem:[%s3823] ss:$2 sm:$0xff] %v3122
    %s3825 = scalar_lea.vmem [#allocation1], 33
    %3826 = vst [vmem:[%s3825] ss:$2 sm:$0xff] %v3125
    %s3827 = scalar_lea.vmem [#allocation1], 48
    %3828 = vst [vmem:[%s3827] ss:$2 sm:$0xff] %v3129
    %s3829 = scalar_lea.vmem [#allocation1], 49
    %3830 = vst [vmem:[%s3829] ss:$2 sm:$0xff] %v3132
    %v3831 = vld.sshfl [vmem:[#allocation1] sm:$0xff pattern:$0x75316420]
    %v3832 = vld.sshfl [vmem:[#allocation1 + $0x10] sm:$0xff pattern:$0x75316420]
    %v3833 = vld.sshfl [vmem:[#allocation1 + $0x20] sm:$0xff pattern:$0x75316420]
    %v3834 = vld.sshfl [vmem:[#allocation1 + $0x30] sm:$0xff pattern:$0x75316420]
    %3835 = vst [vmem:[#allocation1] ss:$2 sm:$0xff] %v3135
    %3836 = vst [vmem:[%s3817] ss:$2 sm:$0xff] %v3139
    %3837 = vst [vmem:[%s3819] ss:$2 sm:$0xff] %v3142
    %3838 = vst [vmem:[%s3821] ss:$2 sm:$0xff] %v3145
    %3839 = vst [vmem:[%s3823] ss:$2 sm:$0xff] %v3149
    %3840 = vst [vmem:[%s3825] ss:$2 sm:$0xff] %v3152
    %3841 = vst [vmem:[%s3827] ss:$2 sm:$0xff] %v3155
    %3842 = vst [vmem:[%s3829] ss:$2 sm:$0xff] %v3159
    %v3843 = vld.sshfl [vmem:[#allocation1] sm:$0xff pattern:$0x75316420]
    %v3844 = vld.sshfl [vmem:[#allocation1 + $0x10] sm:$0xff pattern:$0x75316420]
    %v3845 = vld.sshfl [vmem:[#allocation1 + $0x20] sm:$0xff pattern:$0x75316420]
    %v3846 = vld.sshfl [vmem:[#allocation1 + $0x30] sm:$0xff pattern:$0x75316420]
    %3847 = vst [vmem:[#allocation1] ss:$2 sm:$0xff] %v3162
    %3848 = vst [vmem:[%s3817] ss:$2 sm:$0xff] %v3165
    %3849 = vst [vmem:[%s3819] ss:$2 sm:$0xff] %v3169
    %3850 = vst [vmem:[%s3821] ss:$2 sm:$0xff] %v3172
    %3851 = vst [vmem:[%s3823] ss:$2 sm:$0xff] %v3175
    %3852 = vst [vmem:[%s3825] ss:$2 sm:$0xff] %v3179
    %3853 = vst [vmem:[%s3827] ss:$2 sm:$0xff] %v3182
    %3854 = vst [vmem:[%s3829] ss:$2 sm:$0xff] %v3185
    %v3855 = vld.sshfl [vmem:[#allocation1] sm:$0xff pattern:$0x75316420]
    %v3856 = vld.sshfl [vmem:[#allocation1 + $0x10] sm:$0xff pattern:$0x75316420]
    %v3857 = vld.sshfl [vmem:[#allocation1 + $0x20] sm:$0xff pattern:$0x75316420]
    %v3858 = vld.sshfl [vmem:[#allocation1 + $0x30] sm:$0xff pattern:$0x75316420]
    %3859 = vst [vmem:[#allocation1] ss:$2 sm:$0xff] %v3189
    %3860 = vst [vmem:[%s3817] ss:$2 sm:$0xff] %v3192
    %3861 = vst [vmem:[%s3819] ss:$2 sm:$0xff] %v3195
    %3862 = vst [vmem:[%s3821] ss:$2 sm:$0xff] %v3199
    %3863 = vst [vmem:[%s3823] ss:$2 sm:$0xff] %v3202
    %3864 = vst [vmem:[%s3825] ss:$2 sm:$0xff] %v3205
    %3865 = vst [vmem:[%s3827] ss:$2 sm:$0xff] %v3209
    %3866 = vst [vmem:[%s3829] ss:$2 sm:$0xff] %v3212
    %v3867 = vld.sshfl [vmem:[#allocation1] sm:$0xff pattern:$0x75316420]
    %v3868 = vld.sshfl [vmem:[#allocation1 + $0x10] sm:$0xff pattern:$0x75316420]
    %v3869 = vld.sshfl [vmem:[#allocation1 + $0x20] sm:$0xff pattern:$0x75316420]
    %v3870 = vld.sshfl [vmem:[#allocation1 + $0x30] sm:$0xff pattern:$0x75316420]
    %3871 = vst [vmem:[#allocation1] ss:$2 sm:$0xff] %v3215
    %3872 = vst [vmem:[%s3817] ss:$2 sm:$0xff] %v3219
    %3873 = vst [vmem:[%s3819] ss:$2 sm:$0xff] %v3222
    %3874 = vst [vmem:[%s3821] ss:$2 sm:$0xff] %v3225
    %3875 = vst [vmem:[%s3823] ss:$2 sm:$0xff] %v3229
    %3876 = vst [vmem:[%s3825] ss:$2 sm:$0xff] %v3232
    %3877 = vst [vmem:[%s3827] ss:$2 sm:$0xff] %v3235
    %3878 = vst [vmem:[%s3829] ss:$2 sm:$0xff] %v3239
    %v3879 = vld.sshfl [vmem:[#allocation1] sm:$0xff pattern:$0x75316420]
    %v3880 = vld.sshfl [vmem:[#allocation1 + $0x10] sm:$0xff pattern:$0x75316420]
    %v3881 = vld.sshfl [vmem:[#allocation1 + $0x20] sm:$0xff pattern:$0x75316420]
    %v3882 = vld.sshfl [vmem:[#allocation1 + $0x30] sm:$0xff pattern:$0x75316420]
    %3883 = vst [vmem:[#allocation1] ss:$2 sm:$0xff] %v3242
    %3884 = vst [vmem:[%s3817] ss:$2 sm:$0xff] %v3245
    %3885 = vst [vmem:[%s3819] ss:$2 sm:$0xff] %v3249
    %3886 = vst [vmem:[%s3821] ss:$2 sm:$0xff] %v3252
    %3887 = vst [vmem:[%s3823] ss:$2 sm:$0xff] %v3255
    %3888 = vst [vmem:[%s3825] ss:$2 sm:$0xff] %v3259
    %3889 = vst [vmem:[%s3827] ss:$2 sm:$0xff] %v3262
    %3890 = vst [vmem:[%s3829] ss:$2 sm:$0xff] %v3265
    %v3891 = vld.sshfl [vmem:[#allocation1] sm:$0xff pattern:$0x75316420]
    %v3892 = vld.sshfl [vmem:[#allocation1 + $0x10] sm:$0xff pattern:$0x75316420]
    %v3893 = vld.sshfl [vmem:[#allocation1 + $0x20] sm:$0xff pattern:$0x75316420]
    %v3894 = vld.sshfl [vmem:[#allocation1 + $0x30] sm:$0xff pattern:$0x75316420]
    %3895 = vst [vmem:[#allocation1] ss:$2 sm:$0xff] %v3269
    %3896 = vst [vmem:[%s3817] ss:$2 sm:$0xff] %v3272
    %3897 = vst [vmem:[%s3819] ss:$2 sm:$0xff] %v3275
    %3898 = vst [vmem:[%s3821] ss:$2 sm:$0xff] %v3279
    %3899 = vst [vmem:[%s3823] ss:$2 sm:$0xff] %v3282
    %3900 = vst [vmem:[%s3825] ss:$2 sm:$0xff] %v3285
    %3901 = vst [vmem:[%s3827] ss:$2 sm:$0xff] %v3289
    %3902 = vst [vmem:[%s3829] ss:$2 sm:$0xff] %v3292
    %v3903 = vld.sshfl [vmem:[#allocation1] sm:$0xff pattern:$0x75316420]
    %v3904 = vld.sshfl [vmem:[#allocation1 + $0x10] sm:$0xff pattern:$0x75316420]
    %v3905 = vld.sshfl [vmem:[#allocation1 + $0x20] sm:$0xff pattern:$0x75316420]
    %v3906 = vld.sshfl [vmem:[#allocation1 + $0x30] sm:$0xff pattern:$0x75316420]
    %3907 = vst [vmem:[#allocation1] ss:$2 sm:$0xff] %v3295
    %3908 = vst [vmem:[%s3817] ss:$2 sm:$0xff] %v3299
    %3909 = vst [vmem:[%s3819] ss:$2 sm:$0xff] %v3302
    %3910 = vst [vmem:[%s3821] ss:$2 sm:$0xff] %v3305
    %3911 = vst [vmem:[%s3823] ss:$2 sm:$0xff] %v3309
    %3912 = vst [vmem:[%s3825] ss:$2 sm:$0xff] %v3312
    %3913 = vst [vmem:[%s3827] ss:$2 sm:$0xff] %v3315
    %3914 = vst [vmem:[%s3829] ss:$2 sm:$0xff] %v3319
    %v3915 = vld.sshfl [vmem:[#allocation1] sm:$0xff pattern:$0x75316420]
    %v3916 = vld.sshfl [vmem:[#allocation1 + $0x10] sm:$0xff pattern:$0x75316420]
    %v3917 = vld.sshfl [vmem:[#allocation1 + $0x20] sm:$0xff pattern:$0x75316420]
    %v3918 = vld.sshfl [vmem:[#allocation1 + $0x30] sm:$0xff pattern:$0x75316420]
    %3919 = vst [vmem:[#allocation1] ss:$2 sm:$0xff] %v3322
    %3920 = vst [vmem:[%s3817] ss:$2 sm:$0xff] %v3325
    %3921 = vst [vmem:[%s3819] ss:$2 sm:$0xff] %v3329
    %3922 = vst [vmem:[%s3821] ss:$2 sm:$0xff] %v3332
    %3923 = vst [vmem:[%s3823] ss:$2 sm:$0xff] %v3335
    %3924 = vst [vmem:[%s3825] ss:$2 sm:$0xff] %v3339
    %3925 = vst [vmem:[%s3827] ss:$2 sm:$0xff] %v3342
    %3926 = vst [vmem:[%s3829] ss:$2 sm:$0xff] %v3345
    %v3927 = vld.sshfl [vmem:[#allocation1] sm:$0xff pattern:$0x75316420]
    %v3928 = vld.sshfl [vmem:[#allocation1 + $0x10] sm:$0xff pattern:$0x75316420]
    %v3929 = vld.sshfl [vmem:[#allocation1 + $0x20] sm:$0xff pattern:$0x75316420]
    %v3930 = vld.sshfl [vmem:[#allocation1 + $0x30] sm:$0xff pattern:$0x75316420]
    %3931 = vrot.lane.b32.xlu0 %v3831, 64
    %v3932 = vpop.permute.xlu0 %3931
    %3933 = vrot.lane.b32.xlu0 %v3832, 64
    %v3934 = vpop.permute.xlu0 %3933
    %3935 = vrot.lane.b32.xlu0 %v3833, 64
    %v3936 = vpop.permute.xlu0 %3935
    %3937 = vrot.lane.b32.xlu0 %v3834, 64
    %v3938 = vpop.permute.xlu0 %3937
    %3939 = vrot.lane.b32.xlu0 %v3843, 64
    %v3940 = vpop.permute.xlu0 %3939
    %3941 = vrot.lane.b32.xlu0 %v3844, 64
    %v3942 = vpop.permute.xlu0 %3941
    %3943 = vrot.lane.b32.xlu0 %v3845, 64
    %v3944 = vpop.permute.xlu0 %3943
    %3945 = vrot.lane.b32.xlu0 %v3846, 64
    %v3946 = vpop.permute.xlu0 %3945
    %3947 = vrot.lane.b32.xlu0 %v3855, 64
    %v3948 = vpop.permute.xlu0 %3947
    %3949 = vrot.lane.b32.xlu0 %v3856, 64
    %v3950 = vpop.permute.xlu0 %3949
    %3951 = vrot.lane.b32.xlu0 %v3857, 64
    %v3952 = vpop.permute.xlu0 %3951
    %3953 = vrot.lane.b32.xlu0 %v3858, 64
    %v3954 = vpop.permute.xlu0 %3953
    %3955 = vrot.lane.b32.xlu0 %v3867, 64
    %v3956 = vpop.permute.xlu0 %3955
    %3957 = vrot.lane.b32.xlu0 %v3868, 64
    %v3958 = vpop.permute.xlu0 %3957
    %3959 = vrot.lane.b32.xlu0 %v3869, 64
    %v3960 = vpop.permute.xlu0 %3959
    %3961 = vrot.lane.b32.xlu0 %v3870, 64
    %v3962 = vpop.permute.xlu0 %3961
    %3963 = vrot.lane.b32.xlu0 %v3879, 64
    %v3964 = vpop.permute.xlu0 %3963
    %3965 = vrot.lane.b32.xlu0 %v3880, 64
    %v3966 = vpop.permute.xlu0 %3965
    %3967 = vrot.lane.b32.xlu0 %v3881, 64
    %v3968 = vpop.permute.xlu0 %3967
    %3969 = vrot.lane.b32.xlu0 %v3882, 64
    %v3970 = vpop.permute.xlu0 %3969
    %3971 = vrot.lane.b32.xlu0 %v3891, 64
    %v3972 = vpop.permute.xlu0 %3971
    %3973 = vrot.lane.b32.xlu0 %v3892, 64
    %v3974 = vpop.permute.xlu0 %3973
    %3975 = vrot.lane.b32.xlu0 %v3893, 64
    %v3976 = vpop.permute.xlu0 %3975
    %3977 = vrot.lane.b32.xlu0 %v3894, 64
    %v3978 = vpop.permute.xlu0 %3977
    %3979 = vrot.lane.b32.xlu0 %v3903, 64
    %v3980 = vpop.permute.xlu0 %3979
    %3981 = vrot.lane.b32.xlu0 %v3904, 64
    %v3982 = vpop.permute.xlu0 %3981
    %3983 = vrot.lane.b32.xlu0 %v3905, 64
    %v3984 = vpop.permute.xlu0 %3983
    %3985 = vrot.lane.b32.xlu0 %v3906, 64
    %v3986 = vpop.permute.xlu0 %3985
    %3987 = vrot.lane.b32.xlu0 %v3915, 64
    %v3988 = vpop.permute.xlu0 %3987
    %3989 = vrot.lane.b32.xlu0 %v3916, 64
    %v3990 = vpop.permute.xlu0 %3989
    %3991 = vrot.lane.b32.xlu0 %v3917, 64
    %v3992 = vpop.permute.xlu0 %3991
    %3993 = vrot.lane.b32.xlu0 %v3918, 64
    %v3994 = vpop.permute.xlu0 %3993
    %3995 = vrot.lane.b32.xlu0 %v3927, 64
    %v3996 = vpop.permute.xlu0 %3995
    %3997 = vrot.lane.b32.xlu0 %v3928, 64
    %v3998 = vpop.permute.xlu0 %3997
    %3999 = vrot.lane.b32.xlu0 %v3929, 64
    %v4000 = vpop.permute.xlu0 %3999
    %4001 = vrot.lane.b32.xlu0 %v3930, 64
    %v4002 = vpop.permute.xlu0 %4001
    %4039 = vst [vmem:[#allocation1] ss:$2 sm:$0xff] %v2710
    %s4040 = scalar_lea.vmem [#allocation1], 1
    %4041 = vst [vmem:[%s4040] ss:$2 sm:$0xff] %v2813
    %s4042 = scalar_lea.vmem [#allocation1], 16
    %4043 = vst [vmem:[%s4042] ss:$2 sm:$0xff] %v2711
    %s4044 = scalar_lea.vmem [#allocation1], 17
    %4045 = vst [vmem:[%s4044] ss:$2 sm:$0xff] %v2712
    %s4046 = scalar_lea.vmem [#allocation1], 32
    %4047 = vst [vmem:[%s4046] ss:$2 sm:$0xff] %v2814
    %s4048 = scalar_lea.vmem [#allocation1], 33
    %4049 = vst [vmem:[%s4048] ss:$2 sm:$0xff] %v2713
    %s4050 = scalar_lea.vmem [#allocation1], 48
    %4051 = vst [vmem:[%s4050] ss:$2 sm:$0xff] %v2714
    %s4052 = scalar_lea.vmem [#allocation1], 49
    %4053 = vst [vmem:[%s4052] ss:$2 sm:$0xff] %v2815
    %v4054 = vld.sshfl [vmem:[#allocation1] sm:$0xff pattern:$0x75316420]
    %v4055 = vld.sshfl [vmem:[#allocation1 + $0x10] sm:$0xff pattern:$0x75316420]
    %v4056 = vld.sshfl [vmem:[#allocation1 + $0x20] sm:$0xff pattern:$0x75316420]
    %v4057 = vld.sshfl [vmem:[#allocation1 + $0x30] sm:$0xff pattern:$0x75316420]
    %4058 = vst [vmem:[#allocation1] ss:$2 sm:$0xff] %v2715
    %4059 = vst [vmem:[%s4040] ss:$2 sm:$0xff] %v2716
    %4060 = vst [vmem:[%s4042] ss:$2 sm:$0xff] %v2816
    %4061 = vst [vmem:[%s4044] ss:$2 sm:$0xff] %v2717
    %4062 = vst [vmem:[%s4046] ss:$2 sm:$0xff] %v2718
    %4063 = vst [vmem:[%s4048] ss:$2 sm:$0xff] %v2817
    %4064 = vst [vmem:[%s4050] ss:$2 sm:$0xff] %v2719
    %4065 = vst [vmem:[%s4052] ss:$2 sm:$0xff] %v2720
    %v4066 = vld.sshfl [vmem:[#allocation1] sm:$0xff pattern:$0x75316420]
    %v4067 = vld.sshfl [vmem:[#allocation1 + $0x10] sm:$0xff pattern:$0x75316420]
    %v4068 = vld.sshfl [vmem:[#allocation1 + $0x20] sm:$0xff pattern:$0x75316420]
    %v4069 = vld.sshfl [vmem:[#allocation1 + $0x30] sm:$0xff pattern:$0x75316420]
    %4070 = vst [vmem:[#allocation1] ss:$2 sm:$0xff] %v2818
    %4071 = vst [vmem:[%s4040] ss:$2 sm:$0xff] %v2721
    %4072 = vst [vmem:[%s4042] ss:$2 sm:$0xff] %v2722
    %4073 = vst [vmem:[%s4044] ss:$2 sm:$0xff] %v2819
    %4074 = vst [vmem:[%s4046] ss:$2 sm:$0xff] %v2723
    %4075 = vst [vmem:[%s4048] ss:$2 sm:$0xff] %v2724
    %4076 = vst [vmem:[%s4050] ss:$2 sm:$0xff] %v2820
    %4077 = vst [vmem:[%s4052] ss:$2 sm:$0xff] %v2725
    %v4078 = vld.sshfl [vmem:[#allocation1] sm:$0xff pattern:$0x75316420]
    %v4079 = vld.sshfl [vmem:[#allocation1 + $0x10] sm:$0xff pattern:$0x75316420]
    %v4080 = vld.sshfl [vmem:[#allocation1 + $0x20] sm:$0xff pattern:$0x75316420]
    %v4081 = vld.sshfl [vmem:[#allocation1 + $0x30] sm:$0xff pattern:$0x75316420]
    %4082 = vst [vmem:[#allocation1] ss:$2 sm:$0xff] %v2726
    %4083 = vst [vmem:[%s4040] ss:$2 sm:$0xff] %v2821
    %4084 = vst [vmem:[%s4042] ss:$2 sm:$0xff] %v2727
    %4085 = vst [vmem:[%s4044] ss:$2 sm:$0xff] %v2728
    %4086 = vst [vmem:[%s4046] ss:$2 sm:$0xff] %v2822
    %4087 = vst [vmem:[%s4048] ss:$2 sm:$0xff] %v2729
    %4088 = vst [vmem:[%s4050] ss:$2 sm:$0xff] %v2730
    %4089 = vst [vmem:[%s4052] ss:$2 sm:$0xff] %v2823
    %v4090 = vld.sshfl [vmem:[#allocation1] sm:$0xff pattern:$0x75316420]
    %v4091 = vld.sshfl [vmem:[#allocation1 + $0x10] sm:$0xff pattern:$0x75316420]
    %v4092 = vld.sshfl [vmem:[#allocation1 + $0x20] sm:$0xff pattern:$0x75316420]
    %v4093 = vld.sshfl [vmem:[#allocation1 + $0x30] sm:$0xff pattern:$0x75316420]
    %4094 = vst [vmem:[#allocation1] ss:$2 sm:$0xff] %v2731
    %4095 = vst [vmem:[%s4040] ss:$2 sm:$0xff] %v2732
    %4096 = vst [vmem:[%s4042] ss:$2 sm:$0xff] %v3350
    %4097 = vst [vmem:[%s4044] ss:$2 sm:$0xff] %v2733
    %4098 = vst [vmem:[%s4046] ss:$2 sm:$0xff] %v2738
    %4099 = vst [vmem:[%s4048] ss:$2 sm:$0xff] %v2825
    %4100 = vst [vmem:[%s4050] ss:$2 sm:$0xff] %v2739
    %4101 = vst [vmem:[%s4052] ss:$2 sm:$0xff] %v2740
    %v4102 = vld.sshfl [vmem:[#allocation1] sm:$0xff pattern:$0x75316420]
    %v4103 = vld.sshfl [vmem:[#allocation1 + $0x10] sm:$0xff pattern:$0x75316420]
    %v4104 = vld.sshfl [vmem:[#allocation1 + $0x20] sm:$0xff pattern:$0x75316420]
    %v4105 = vld.sshfl [vmem:[#allocation1 + $0x30] sm:$0xff pattern:$0x75316420]
    %4106 = vst [vmem:[#allocation1] ss:$2 sm:$0xff] %v2826
    %4107 = vst [vmem:[%s4040] ss:$2 sm:$0xff] %v2741
    %4108 = vst [vmem:[%s4042] ss:$2 sm:$0xff] %v2742
    %4109 = vst [vmem:[%s4044] ss:$2 sm:$0xff] %v2827
    %4110 = vst [vmem:[%s4046] ss:$2 sm:$0xff] %v2743
    %4111 = vst [vmem:[%s4048] ss:$2 sm:$0xff] %v2744
    %4112 = vst [vmem:[%s4050] ss:$2 sm:$0xff] %v2828
    %4113 = vst [vmem:[%s4052] ss:$2 sm:$0xff] %v2745
    %v4114 = vld.sshfl [vmem:[#allocation1] sm:$0xff pattern:$0x75316420]
    %v4115 = vld.sshfl [vmem:[#allocation1 + $0x10] sm:$0xff pattern:$0x75316420]
    %v4116 = vld.sshfl [vmem:[#allocation1 + $0x20] sm:$0xff pattern:$0x75316420]
    %v4117 = vld.sshfl [vmem:[#allocation1 + $0x30] sm:$0xff pattern:$0x75316420]
    %4118 = vst [vmem:[#allocation1] ss:$2 sm:$0xff] %v2746
    %4119 = vst [vmem:[%s4040] ss:$2 sm:$0xff] %v2829
    %4120 = vst [vmem:[%s4042] ss:$2 sm:$0xff] %v2747
    %4121 = vst [vmem:[%s4044] ss:$2 sm:$0xff] %v2748
    %4122 = vst [vmem:[%s4046] ss:$2 sm:$0xff] %v2830
    %4123 = vst [vmem:[%s4048] ss:$2 sm:$0xff] %v2749
    %4124 = vst [vmem:[%s4050] ss:$2 sm:$0xff] %v2750
    %4125 = vst [vmem:[%s4052] ss:$2 sm:$0xff] %v2831
    %v4126 = vld.sshfl [vmem:[#allocation1] sm:$0xff pattern:$0x75316420]
    %v4127 = vld.sshfl [vmem:[#allocation1 + $0x10] sm:$0xff pattern:$0x75316420]
    %v4128 = vld.sshfl [vmem:[#allocation1 + $0x20] sm:$0xff pattern:$0x75316420]
    %v4129 = vld.sshfl [vmem:[#allocation1 + $0x30] sm:$0xff pattern:$0x75316420]
    %4130 = vst [vmem:[#allocation1] ss:$2 sm:$0xff] %v2751
    %4131 = vst [vmem:[%s4040] ss:$2 sm:$0xff] %v2752
    %4132 = vst [vmem:[%s4042] ss:$2 sm:$0xff] %v2832
    %4133 = vst [vmem:[%s4044] ss:$2 sm:$0xff] %v2753
    %4134 = vst [vmem:[%s4046] ss:$2 sm:$0xff] %v2754
    %4135 = vst [vmem:[%s4048] ss:$2 sm:$0xff] %v2833
    %4136 = vst [vmem:[%s4050] ss:$2 sm:$0xff] %v2755
    %4137 = vst [vmem:[%s4052] ss:$2 sm:$0xff] %v2756
    %v4138 = vld.sshfl [vmem:[#allocation1] sm:$0xff pattern:$0x75316420]
    %v4139 = vld.sshfl [vmem:[#allocation1 + $0x10] sm:$0xff pattern:$0x75316420]
    %v4140 = vld.sshfl [vmem:[#allocation1 + $0x20] sm:$0xff pattern:$0x75316420]
    %v4141 = vld.sshfl [vmem:[#allocation1 + $0x30] sm:$0xff pattern:$0x75316420]
    %4142 = vst [vmem:[#allocation1] ss:$2 sm:$0xff] %v2834
    %4143 = vst [vmem:[%s4040] ss:$2 sm:$0xff] %v2757
    %4144 = vst [vmem:[%s4042] ss:$2 sm:$0xff] %v2758
    %4145 = vst [vmem:[%s4044] ss:$2 sm:$0xff] %v2835
    %4146 = vst [vmem:[%s4046] ss:$2 sm:$0xff] %v2759
    %4147 = vst [vmem:[%s4048] ss:$2 sm:$0xff] %v2760
    %4148 = vst [vmem:[%s4050] ss:$2 sm:$0xff] %v3351
    %4149 = vst [vmem:[%s4052] ss:$2 sm:$0xff] %v2761
    %v4150 = vld.sshfl [vmem:[#allocation1] sm:$0xff pattern:$0x75316420]
    %v4151 = vld.sshfl [vmem:[#allocation1 + $0x10] sm:$0xff pattern:$0x75316420]
    %v4152 = vld.sshfl [vmem:[#allocation1 + $0x20] sm:$0xff pattern:$0x75316420]
    %v4153 = vld.sshfl [vmem:[#allocation1 + $0x30] sm:$0xff pattern:$0x75316420]
    %4154 = vrot.lane.b32.xlu0 %v4054, 96
    %v4155 = vpop.permute.xlu0 %4154
    %4156 = vrot.lane.b32.xlu0 %v4055, 96
    %v4157 = vpop.permute.xlu0 %4156
    %4158 = vrot.lane.b32.xlu0 %v4056, 96
    %v4159 = vpop.permute.xlu0 %4158
    %4160 = vrot.lane.b32.xlu0 %v4057, 96
    %v4161 = vpop.permute.xlu0 %4160
    %4162 = vrot.lane.b32.xlu0 %v4066, 96
    %v4163 = vpop.permute.xlu0 %4162
    %4164 = vrot.lane.b32.xlu0 %v4067, 96
    %v4165 = vpop.permute.xlu0 %4164
    %4166 = vrot.lane.b32.xlu0 %v4068, 96
    %v4167 = vpop.permute.xlu0 %4166
    %4168 = vrot.lane.b32.xlu0 %v4069, 96
    %v4169 = vpop.permute.xlu0 %4168
    %4170 = vrot.lane.b32.xlu0 %v4078, 96
    %v4171 = vpop.permute.xlu0 %4170
    %4172 = vrot.lane.b32.xlu0 %v4079, 96
    %v4173 = vpop.permute.xlu0 %4172
    %4174 = vrot.lane.b32.xlu0 %v4080, 96
    %v4175 = vpop.permute.xlu0 %4174
    %4176 = vrot.lane.b32.xlu0 %v4081, 96
    %v4177 = vpop.permute.xlu0 %4176
    %4178 = vrot.lane.b32.xlu0 %v4090, 96
    %v4179 = vpop.permute.xlu0 %4178
    %4180 = vrot.lane.b32.xlu0 %v4091, 96
    %v4181 = vpop.permute.xlu0 %4180
    %4182 = vrot.lane.b32.xlu0 %v4092, 96
    %v4183 = vpop.permute.xlu0 %4182
    %4184 = vrot.lane.b32.xlu0 %v4093, 96
    %v4185 = vpop.permute.xlu0 %4184
    %4186 = vrot.lane.b32.xlu0 %v4102, 96
    %v4187 = vpop.permute.xlu0 %4186
    %4188 = vrot.lane.b32.xlu0 %v4103, 96
    %v4189 = vpop.permute.xlu0 %4188
    %4190 = vrot.lane.b32.xlu0 %v4104, 96
    %v4191 = vpop.permute.xlu0 %4190
    %4192 = vrot.lane.b32.xlu0 %v4105, 96
    %v4193 = vpop.permute.xlu0 %4192
    %4194 = vrot.lane.b32.xlu0 %v4114, 96
    %v4195 = vpop.permute.xlu0 %4194
    %4196 = vrot.lane.b32.xlu0 %v4115, 96
    %v4197 = vpop.permute.xlu0 %4196
    %4198 = vrot.lane.b32.xlu0 %v4116, 96
    %v4199 = vpop.permute.xlu0 %4198
    %4200 = vrot.lane.b32.xlu0 %v4117, 96
    %v4201 = vpop.permute.xlu0 %4200
    %4202 = vrot.lane.b32.xlu0 %v4126, 96
    %v4203 = vpop.permute.xlu0 %4202
    %4204 = vrot.lane.b32.xlu0 %v4127, 96
    %v4205 = vpop.permute.xlu0 %4204
    %4206 = vrot.lane.b32.xlu0 %v4128, 96
    %v4207 = vpop.permute.xlu0 %4206
    %4208 = vrot.lane.b32.xlu0 %v4129, 96
    %v4209 = vpop.permute.xlu0 %4208
    %4210 = vrot.lane.b32.xlu0 %v4138, 96
    %v4211 = vpop.permute.xlu0 %4210
    %4212 = vrot.lane.b32.xlu0 %v4139, 96
    %v4213 = vpop.permute.xlu0 %4212
    %4214 = vrot.lane.b32.xlu0 %v4140, 96
    %v4215 = vpop.permute.xlu0 %4214
    %4216 = vrot.lane.b32.xlu0 %v4141, 96
    %v4217 = vpop.permute.xlu0 %4216
    %4218 = vrot.lane.b32.xlu0 %v4150, 96
    %v4219 = vpop.permute.xlu0 %4218
    %4220 = vrot.lane.b32.xlu0 %v4151, 96
    %v4221 = vpop.permute.xlu0 %4220
    %4222 = vrot.lane.b32.xlu0 %v4152, 96
    %v4223 = vpop.permute.xlu0 %4222
    %4224 = vrot.lane.b32.xlu0 %v4153, 96
    %v4225 = vpop.permute.xlu0 %4224
    %4262 = vst [vmem:[#allocation1] ss:$2 sm:$0xff] %v2876
    %s4263 = scalar_lea.vmem [#allocation1], 1
    %4264 = vst [vmem:[%s4263] ss:$2 sm:$0xff] %v2879
    %s4265 = scalar_lea.vmem [#allocation1], 16
    %4266 = vst [vmem:[%s4265] ss:$2 sm:$0xff] %v2882
    %s4267 = scalar_lea.vmem [#allocation1], 17
    %4268 = vst [vmem:[%s4267] ss:$2 sm:$0xff] %v2886
    %s4269 = scalar_lea.vmem [#allocation1], 32
    %4270 = vst [vmem:[%s4269] ss:$2 sm:$0xff] %v2889
    %s4271 = scalar_lea.vmem [#allocation1], 33
    %4272 = vst [vmem:[%s4271] ss:$2 sm:$0xff] %v2892
    %s4273 = scalar_lea.vmem [#allocation1], 48
    %4274 = vst [vmem:[%s4273] ss:$2 sm:$0xff] %v2896
    %s4275 = scalar_lea.vmem [#allocation1], 49
    %4276 = vst [vmem:[%s4275] ss:$2 sm:$0xff] %v2899
    %v4277 = vld.sshfl [vmem:[#allocation1] sm:$0xff pattern:$0x75316420]
    %v4278 = vld.sshfl [vmem:[#allocation1 + $0x10] sm:$0xff pattern:$0x75316420]
    %v4279 = vld.sshfl [vmem:[#allocation1 + $0x20] sm:$0xff pattern:$0x75316420]
    %v4280 = vld.sshfl [vmem:[#allocation1 + $0x30] sm:$0xff pattern:$0x75316420]
    %4281 = vst [vmem:[#allocation1] ss:$2 sm:$0xff] %v2902
    %4282 = vst [vmem:[%s4263] ss:$2 sm:$0xff] %v2906
    %4283 = vst [vmem:[%s4265] ss:$2 sm:$0xff] %v2909
    %4284 = vst [vmem:[%s4267] ss:$2 sm:$0xff] %v2912
    %4285 = vst [vmem:[%s4269] ss:$2 sm:$0xff] %v2916
    %4286 = vst [vmem:[%s4271] ss:$2 sm:$0xff] %v2919
    %4287 = vst [vmem:[%s4273] ss:$2 sm:$0xff] %v2922
    %4288 = vst [vmem:[%s4275] ss:$2 sm:$0xff] %v2926
    %v4289 = vld.sshfl [vmem:[#allocation1] sm:$0xff pattern:$0x75316420]
    %v4290 = vld.sshfl [vmem:[#allocation1 + $0x10] sm:$0xff pattern:$0x75316420]
    %v4291 = vld.sshfl [vmem:[#allocation1 + $0x20] sm:$0xff pattern:$0x75316420]
    %v4292 = vld.sshfl [vmem:[#allocation1 + $0x30] sm:$0xff pattern:$0x75316420]
    %4293 = vst [vmem:[#allocation1] ss:$2 sm:$0xff] %v2929
    %4294 = vst [vmem:[%s4263] ss:$2 sm:$0xff] %v2932
    %4295 = vst [vmem:[%s4265] ss:$2 sm:$0xff] %v2936
    %4296 = vst [vmem:[%s4267] ss:$2 sm:$0xff] %v2939
    %4297 = vst [vmem:[%s4269] ss:$2 sm:$0xff] %v2942
    %4298 = vst [vmem:[%s4271] ss:$2 sm:$0xff] %v2946
    %4299 = vst [vmem:[%s4273] ss:$2 sm:$0xff] %v2949
    %4300 = vst [vmem:[%s4275] ss:$2 sm:$0xff] %v2952
    %v4301 = vld.sshfl [vmem:[#allocation1] sm:$0xff pattern:$0x75316420]
    %v4302 = vld.sshfl [vmem:[#allocation1 + $0x10] sm:$0xff pattern:$0x75316420]
    %v4303 = vld.sshfl [vmem:[#allocation1 + $0x20] sm:$0xff pattern:$0x75316420]
    %v4304 = vld.sshfl [vmem:[#allocation1 + $0x30] sm:$0xff pattern:$0x75316420]
    %4305 = vst [vmem:[#allocation1] ss:$2 sm:$0xff] %v2956
    %4306 = vst [vmem:[%s4263] ss:$2 sm:$0xff] %v2959
    %4307 = vst [vmem:[%s4265] ss:$2 sm:$0xff] %v2962
    %4308 = vst [vmem:[%s4267] ss:$2 sm:$0xff] %v2966
    %4309 = vst [vmem:[%s4269] ss:$2 sm:$0xff] %v2969
    %4310 = vst [vmem:[%s4271] ss:$2 sm:$0xff] %v2972
    %4311 = vst [vmem:[%s4273] ss:$2 sm:$0xff] %v2976
    %4312 = vst [vmem:[%s4275] ss:$2 sm:$0xff] %v2979
    %v4313 = vld.sshfl [vmem:[#allocation1] sm:$0xff pattern:$0x75316420]
    %v4314 = vld.sshfl [vmem:[#allocation1 + $0x10] sm:$0xff pattern:$0x75316420]
    %v4315 = vld.sshfl [vmem:[#allocation1 + $0x20] sm:$0xff pattern:$0x75316420]
    %v4316 = vld.sshfl [vmem:[#allocation1 + $0x30] sm:$0xff pattern:$0x75316420]
    %4317 = vst [vmem:[#allocation1] ss:$2 sm:$0xff] %v2982
    %4318 = vst [vmem:[%s4263] ss:$2 sm:$0xff] %v3357
    %4319 = vst [vmem:[%s4265] ss:$2 sm:$0xff] %v3360
    %4320 = vst [vmem:[%s4267] ss:$2 sm:$0xff] %v3363
    %4321 = vst [vmem:[%s4269] ss:$2 sm:$0xff] %v2996
    %4322 = vst [vmem:[%s4271] ss:$2 sm:$0xff] %v2999
    %4323 = vst [vmem:[%s4273] ss:$2 sm:$0xff] %v3002
    %4324 = vst [vmem:[%s4275] ss:$2 sm:$0xff] %v3006
    %v4325 = vld.sshfl [vmem:[#allocation1] sm:$0xff pattern:$0x75316420]
    %v4326 = vld.sshfl [vmem:[#allocation1 + $0x10] sm:$0xff pattern:$0x75316420]
    %v4327 = vld.sshfl [vmem:[#allocation1 + $0x20] sm:$0xff pattern:$0x75316420]
    %v4328 = vld.sshfl [vmem:[#allocation1 + $0x30] sm:$0xff pattern:$0x75316420]
    %4329 = vst [vmem:[#allocation1] ss:$2 sm:$0xff] %v3009
    %4330 = vst [vmem:[%s4263] ss:$2 sm:$0xff] %v3012
    %4331 = vst [vmem:[%s4265] ss:$2 sm:$0xff] %v3016
    %4332 = vst [vmem:[%s4267] ss:$2 sm:$0xff] %v3019
    %4333 = vst [vmem:[%s4269] ss:$2 sm:$0xff] %v3022
    %4334 = vst [vmem:[%s4271] ss:$2 sm:$0xff] %v3026
    %4335 = vst [vmem:[%s4273] ss:$2 sm:$0xff] %v3029
    %4336 = vst [vmem:[%s4275] ss:$2 sm:$0xff] %v3032
    %v4337 = vld.sshfl [vmem:[#allocation1] sm:$0xff pattern:$0x75316420]
    %v4338 = vld.sshfl [vmem:[#allocation1 + $0x10] sm:$0xff pattern:$0x75316420]
    %v4339 = vld.sshfl [vmem:[#allocation1 + $0x20] sm:$0xff pattern:$0x75316420]
    %v4340 = vld.sshfl [vmem:[#allocation1 + $0x30] sm:$0xff pattern:$0x75316420]
    %4341 = vst [vmem:[#allocation1] ss:$2 sm:$0xff] %v3036
    %4342 = vst [vmem:[%s4263] ss:$2 sm:$0xff] %v3039
    %4343 = vst [vmem:[%s4265] ss:$2 sm:$0xff] %v3042
    %4344 = vst [vmem:[%s4267] ss:$2 sm:$0xff] %v3046
    %4345 = vst [vmem:[%s4269] ss:$2 sm:$0xff] %v3049
    %4346 = vst [vmem:[%s4271] ss:$2 sm:$0xff] %v3052
    %4347 = vst [vmem:[%s4273] ss:$2 sm:$0xff] %v3056
    %4348 = vst [vmem:[%s4275] ss:$2 sm:$0xff] %v3059
    %v4349 = vld.sshfl [vmem:[#allocation1] sm:$0xff pattern:$0x75316420]
    %v4350 = vld.sshfl [vmem:[#allocation1 + $0x10] sm:$0xff pattern:$0x75316420]
    %v4351 = vld.sshfl [vmem:[#allocation1 + $0x20] sm:$0xff pattern:$0x75316420]
    %v4352 = vld.sshfl [vmem:[#allocation1 + $0x30] sm:$0xff pattern:$0x75316420]
    %4353 = vst [vmem:[#allocation1] ss:$2 sm:$0xff] %v3062
    %4354 = vst [vmem:[%s4263] ss:$2 sm:$0xff] %v3066
    %4355 = vst [vmem:[%s4265] ss:$2 sm:$0xff] %v3069
    %4356 = vst [vmem:[%s4267] ss:$2 sm:$0xff] %v3072
    %4357 = vst [vmem:[%s4269] ss:$2 sm:$0xff] %v3076
    %4358 = vst [vmem:[%s4271] ss:$2 sm:$0xff] %v3079
    %4359 = vst [vmem:[%s4273] ss:$2 sm:$0xff] %v3082
    %4360 = vst [vmem:[%s4275] ss:$2 sm:$0xff] %v3086
    %v4361 = vld.sshfl [vmem:[#allocation1] sm:$0xff pattern:$0x75316420]
    %v4362 = vld.sshfl [vmem:[#allocation1 + $0x10] sm:$0xff pattern:$0x75316420]
    %v4363 = vld.sshfl [vmem:[#allocation1 + $0x20] sm:$0xff pattern:$0x75316420]
    %v4364 = vld.sshfl [vmem:[#allocation1 + $0x30] sm:$0xff pattern:$0x75316420]
    %4365 = vst [vmem:[#allocation1] ss:$2 sm:$0xff] %v3089
    %4366 = vst [vmem:[%s4263] ss:$2 sm:$0xff] %v3092
    %4367 = vst [vmem:[%s4265] ss:$2 sm:$0xff] %v3096
    %4368 = vst [vmem:[%s4267] ss:$2 sm:$0xff] %v3099
    %4369 = vst [vmem:[%s4269] ss:$2 sm:$0xff] %v3102
    %4370 = vst [vmem:[%s4271] ss:$2 sm:$0xff] %v3367
    %4371 = vst [vmem:[%s4273] ss:$2 sm:$0xff] %v3370
    %4372 = vst [vmem:[%s4275] ss:$2 sm:$0xff] %v3373
    %v4373 = vld.sshfl [vmem:[#allocation1] sm:$0xff pattern:$0x75316420]
    %v4374 = vld.sshfl [vmem:[#allocation1 + $0x10] sm:$0xff pattern:$0x75316420]
    %v4375 = vld.sshfl [vmem:[#allocation1 + $0x20] sm:$0xff pattern:$0x75316420]
    %v4376 = vld.sshfl [vmem:[#allocation1 + $0x30] sm:$0xff pattern:$0x75316420]
    %4413 = vst [vmem:[#allocation1] ss:$2 sm:$0xff] %v3119
    %s4414 = scalar_lea.vmem [#allocation1], 1
    %4415 = vst [vmem:[%s4414] ss:$2 sm:$0xff] %v3122
    %s4416 = scalar_lea.vmem [#allocation1], 16
    %4417 = vst [vmem:[%s4416] ss:$2 sm:$0xff] %v3125
    %s4418 = scalar_lea.vmem [#allocation1], 17
    %4419 = vst [vmem:[%s4418] ss:$2 sm:$0xff] %v3129
    %s4420 = scalar_lea.vmem [#allocation1], 32
    %4421 = vst [vmem:[%s4420] ss:$2 sm:$0xff] %v3132
    %s4422 = scalar_lea.vmem [#allocation1], 33
    %4423 = vst [vmem:[%s4422] ss:$2 sm:$0xff] %v3135
    %s4424 = scalar_lea.vmem [#allocation1], 48
    %4425 = vst [vmem:[%s4424] ss:$2 sm:$0xff] %v3139
    %s4426 = scalar_lea.vmem [#allocation1], 49
    %4427 = vst [vmem:[%s4426] ss:$2 sm:$0xff] %v3142
    %v4428 = vld.sshfl [vmem:[#allocation1] sm:$0xff pattern:$0x75316420]
    %v4429 = vld.sshfl [vmem:[#allocation1 + $0x10] sm:$0xff pattern:$0x75316420]
    %v4430 = vld.sshfl [vmem:[#allocation1 + $0x20] sm:$0xff pattern:$0x75316420]
    %v4431 = vld.sshfl [vmem:[#allocation1 + $0x30] sm:$0xff pattern:$0x75316420]
    %4432 = vst [vmem:[#allocation1] ss:$2 sm:$0xff] %v3145
    %4433 = vst [vmem:[%s4414] ss:$2 sm:$0xff] %v3149
    %4434 = vst [vmem:[%s4416] ss:$2 sm:$0xff] %v3152
    %4435 = vst [vmem:[%s4418] ss:$2 sm:$0xff] %v3155
    %4436 = vst [vmem:[%s4420] ss:$2 sm:$0xff] %v3159
    %4437 = vst [vmem:[%s4422] ss:$2 sm:$0xff] %v3162
    %4438 = vst [vmem:[%s4424] ss:$2 sm:$0xff] %v3165
    %4439 = vst [vmem:[%s4426] ss:$2 sm:$0xff] %v3169
    %v4440 = vld.sshfl [vmem:[#allocation1] sm:$0xff pattern:$0x75316420]
    %v4441 = vld.sshfl [vmem:[#allocation1 + $0x10] sm:$0xff pattern:$0x75316420]
    %v4442 = vld.sshfl [vmem:[#allocation1 + $0x20] sm:$0xff pattern:$0x75316420]
    %v4443 = vld.sshfl [vmem:[#allocation1 + $0x30] sm:$0xff pattern:$0x75316420]
    %4444 = vst [vmem:[#allocation1] ss:$2 sm:$0xff] %v3172
    %4445 = vst [vmem:[%s4414] ss:$2 sm:$0xff] %v3175
    %4446 = vst [vmem:[%s4416] ss:$2 sm:$0xff] %v3179
    %4447 = vst [vmem:[%s4418] ss:$2 sm:$0xff] %v3182
    %4448 = vst [vmem:[%s4420] ss:$2 sm:$0xff] %v3185
    %4449 = vst [vmem:[%s4422] ss:$2 sm:$0xff] %v3189
    %4450 = vst [vmem:[%s4424] ss:$2 sm:$0xff] %v3192
    %4451 = vst [vmem:[%s4426] ss:$2 sm:$0xff] %v3195
    %v4452 = vld.sshfl [vmem:[#allocation1] sm:$0xff pattern:$0x75316420]
    %v4453 = vld.sshfl [vmem:[#allocation1 + $0x10] sm:$0xff pattern:$0x75316420]
    %v4454 = vld.sshfl [vmem:[#allocation1 + $0x20] sm:$0xff pattern:$0x75316420]
    %v4455 = vld.sshfl [vmem:[#allocation1 + $0x30] sm:$0xff pattern:$0x75316420]
    %4456 = vst [vmem:[#allocation1] ss:$2 sm:$0xff] %v3199
    %4457 = vst [vmem:[%s4414] ss:$2 sm:$0xff] %v3202
    %4458 = vst [vmem:[%s4416] ss:$2 sm:$0xff] %v3205
    %4459 = vst [vmem:[%s4418] ss:$2 sm:$0xff] %v3209
    %4460 = vst [vmem:[%s4420] ss:$2 sm:$0xff] %v3212
    %4461 = vst [vmem:[%s4422] ss:$2 sm:$0xff] %v3215
    %4462 = vst [vmem:[%s4424] ss:$2 sm:$0xff] %v3219
    %4463 = vst [vmem:[%s4426] ss:$2 sm:$0xff] %v3222
    %v4464 = vld.sshfl [vmem:[#allocation1] sm:$0xff pattern:$0x75316420]
    %v4465 = vld.sshfl [vmem:[#allocation1 + $0x10] sm:$0xff pattern:$0x75316420]
    %v4466 = vld.sshfl [vmem:[#allocation1 + $0x20] sm:$0xff pattern:$0x75316420]
    %v4467 = vld.sshfl [vmem:[#allocation1 + $0x30] sm:$0xff pattern:$0x75316420]
    %4468 = vst [vmem:[#allocation1] ss:$2 sm:$0xff] %v3225
    %4469 = vst [vmem:[%s4414] ss:$2 sm:$0xff] %v3377
    %4470 = vst [vmem:[%s4416] ss:$2 sm:$0xff] %v3380
    %4471 = vst [vmem:[%s4418] ss:$2 sm:$0xff] %v3383
    %4472 = vst [vmem:[%s4420] ss:$2 sm:$0xff] %v3239
    %4473 = vst [vmem:[%s4422] ss:$2 sm:$0xff] %v3242
    %4474 = vst [vmem:[%s4424] ss:$2 sm:$0xff] %v3245
    %4475 = vst [vmem:[%s4426] ss:$2 sm:$0xff] %v3249
    %v4476 = vld.sshfl [vmem:[#allocation1] sm:$0xff pattern:$0x75316420]
    %v4477 = vld.sshfl [vmem:[#allocation1 + $0x10] sm:$0xff pattern:$0x75316420]
    %v4478 = vld.sshfl [vmem:[#allocation1 + $0x20] sm:$0xff pattern:$0x75316420]
    %v4479 = vld.sshfl [vmem:[#allocation1 + $0x30] sm:$0xff pattern:$0x75316420]
    %4480 = vst [vmem:[#allocation1] ss:$2 sm:$0xff] %v3252
    %4481 = vst [vmem:[%s4414] ss:$2 sm:$0xff] %v3255
    %4482 = vst [vmem:[%s4416] ss:$2 sm:$0xff] %v3259
    %4483 = vst [vmem:[%s4418] ss:$2 sm:$0xff] %v3262
    %4484 = vst [vmem:[%s4420] ss:$2 sm:$0xff] %v3265
    %4485 = vst [vmem:[%s4422] ss:$2 sm:$0xff] %v3269
    %4486 = vst [vmem:[%s4424] ss:$2 sm:$0xff] %v3272
    %4487 = vst [vmem:[%s4426] ss:$2 sm:$0xff] %v3275
    %v4488 = vld.sshfl [vmem:[#allocation1] sm:$0xff pattern:$0x75316420]
    %v4489 = vld.sshfl [vmem:[#allocation1 + $0x10] sm:$0xff pattern:$0x75316420]
    %v4490 = vld.sshfl [vmem:[#allocation1 + $0x20] sm:$0xff pattern:$0x75316420]
    %v4491 = vld.sshfl [vmem:[#allocation1 + $0x30] sm:$0xff pattern:$0x75316420]
    %4492 = vst [vmem:[#allocation1] ss:$2 sm:$0xff] %v3279
    %4493 = vst [vmem:[%s4414] ss:$2 sm:$0xff] %v3282
    %4494 = vst [vmem:[%s4416] ss:$2 sm:$0xff] %v3285
    %4495 = vst [vmem:[%s4418] ss:$2 sm:$0xff] %v3289
    %4496 = vst [vmem:[%s4420] ss:$2 sm:$0xff] %v3292
    %4497 = vst [vmem:[%s4422] ss:$2 sm:$0xff] %v3295
    %4498 = vst [vmem:[%s4424] ss:$2 sm:$0xff] %v3299
    %4499 = vst [vmem:[%s4426] ss:$2 sm:$0xff] %v3302
    %v4500 = vld.sshfl [vmem:[#allocation1] sm:$0xff pattern:$0x75316420]
    %v4501 = vld.sshfl [vmem:[#allocation1 + $0x10] sm:$0xff pattern:$0x75316420]
    %v4502 = vld.sshfl [vmem:[#allocation1 + $0x20] sm:$0xff pattern:$0x75316420]
    %v4503 = vld.sshfl [vmem:[#allocation1 + $0x30] sm:$0xff pattern:$0x75316420]
    %4504 = vst [vmem:[#allocation1] ss:$2 sm:$0xff] %v3305
    %4505 = vst [vmem:[%s4414] ss:$2 sm:$0xff] %v3309
    %4506 = vst [vmem:[%s4416] ss:$2 sm:$0xff] %v3312
    %4507 = vst [vmem:[%s4418] ss:$2 sm:$0xff] %v3315
    %4508 = vst [vmem:[%s4420] ss:$2 sm:$0xff] %v3319
    %4509 = vst [vmem:[%s4422] ss:$2 sm:$0xff] %v3322
    %4510 = vst [vmem:[%s4424] ss:$2 sm:$0xff] %v3325
    %4511 = vst [vmem:[%s4426] ss:$2 sm:$0xff] %v3329
    %v4512 = vld.sshfl [vmem:[#allocation1] sm:$0xff pattern:$0x75316420]
    %v4513 = vld.sshfl [vmem:[#allocation1 + $0x10] sm:$0xff pattern:$0x75316420]
    %v4514 = vld.sshfl [vmem:[#allocation1 + $0x20] sm:$0xff pattern:$0x75316420]
    %v4515 = vld.sshfl [vmem:[#allocation1 + $0x30] sm:$0xff pattern:$0x75316420]
    %4516 = vst [vmem:[#allocation1] ss:$2 sm:$0xff] %v3332
    %4517 = vst [vmem:[%s4414] ss:$2 sm:$0xff] %v3335
    %4518 = vst [vmem:[%s4416] ss:$2 sm:$0xff] %v3339
    %4519 = vst [vmem:[%s4418] ss:$2 sm:$0xff] %v3342
    %4520 = vst [vmem:[%s4420] ss:$2 sm:$0xff] %v3345
    %4521 = vst [vmem:[%s4422] ss:$2 sm:$0xff] %v3387
    %4522 = vst [vmem:[%s4424] ss:$2 sm:$0xff] %v3390
    %4523 = vst [vmem:[%s4426] ss:$2 sm:$0xff] %v3393
    %v4524 = vld.sshfl [vmem:[#allocation1] sm:$0xff pattern:$0x75316420]
    %v4525 = vld.sshfl [vmem:[#allocation1 + $0x10] sm:$0xff pattern:$0x75316420]
    %v4526 = vld.sshfl [vmem:[#allocation1 + $0x20] sm:$0xff pattern:$0x75316420]
    %v4527 = vld.sshfl [vmem:[#allocation1 + $0x30] sm:$0xff pattern:$0x75316420]
    %4528 = vrot.lane.b32.xlu0 %v4428, 32
    %v4529 = vpop.permute.xlu0 %4528
    %4530 = vrot.lane.b32.xlu0 %v4429, 32
    %v4531 = vpop.permute.xlu0 %4530
    %4532 = vrot.lane.b32.xlu0 %v4430, 32
    %v4533 = vpop.permute.xlu0 %4532
    %4534 = vrot.lane.b32.xlu0 %v4431, 32
    %v4535 = vpop.permute.xlu0 %4534
    %4536 = vrot.lane.b32.xlu0 %v4440, 32
    %v4537 = vpop.permute.xlu0 %4536
    %4538 = vrot.lane.b32.xlu0 %v4441, 32
    %v4539 = vpop.permute.xlu0 %4538
    %4540 = vrot.lane.b32.xlu0 %v4442, 32
    %v4541 = vpop.permute.xlu0 %4540
    %4542 = vrot.lane.b32.xlu0 %v4443, 32
    %v4543 = vpop.permute.xlu0 %4542
    %4544 = vrot.lane.b32.xlu0 %v4452, 32
    %v4545 = vpop.permute.xlu0 %4544
    %4546 = vrot.lane.b32.xlu0 %v4453, 32
    %v4547 = vpop.permute.xlu0 %4546
    %4548 = vrot.lane.b32.xlu0 %v4454, 32
    %v4549 = vpop.permute.xlu0 %4548
    %4550 = vrot.lane.b32.xlu0 %v4455, 32
    %v4551 = vpop.permute.xlu0 %4550
    %4552 = vrot.lane.b32.xlu0 %v4464, 32
    %v4553 = vpop.permute.xlu0 %4552
    %4554 = vrot.lane.b32.xlu0 %v4465, 32
    %v4555 = vpop.permute.xlu0 %4554
    %4556 = vrot.lane.b32.xlu0 %v4466, 32
    %v4557 = vpop.permute.xlu0 %4556
    %4558 = vrot.lane.b32.xlu0 %v4467, 32
    %v4559 = vpop.permute.xlu0 %4558
    %4560 = vrot.lane.b32.xlu0 %v4476, 32
    %v4561 = vpop.permute.xlu0 %4560
    %4562 = vrot.lane.b32.xlu0 %v4477, 32
    %v4563 = vpop.permute.xlu0 %4562
    %4564 = vrot.lane.b32.xlu0 %v4478, 32
    %v4565 = vpop.permute.xlu0 %4564
    %4566 = vrot.lane.b32.xlu0 %v4479, 32
    %v4567 = vpop.permute.xlu0 %4566
    %4568 = vrot.lane.b32.xlu0 %v4488, 32
    %v4569 = vpop.permute.xlu0 %4568
    %4570 = vrot.lane.b32.xlu0 %v4489, 32
    %v4571 = vpop.permute.xlu0 %4570
    %4572 = vrot.lane.b32.xlu0 %v4490, 32
    %v4573 = vpop.permute.xlu0 %4572
    %4574 = vrot.lane.b32.xlu0 %v4491, 32
    %v4575 = vpop.permute.xlu0 %4574
    %4576 = vrot.lane.b32.xlu0 %v4500, 32
    %v4577 = vpop.permute.xlu0 %4576
    %4578 = vrot.lane.b32.xlu0 %v4501, 32
    %v4579 = vpop.permute.xlu0 %4578
    %4580 = vrot.lane.b32.xlu0 %v4502, 32
    %v4581 = vpop.permute.xlu0 %4580
    %4582 = vrot.lane.b32.xlu0 %v4503, 32
    %v4583 = vpop.permute.xlu0 %4582
    %4584 = vrot.lane.b32.xlu0 %v4512, 32
    %v4585 = vpop.permute.xlu0 %4584
    %4586 = vrot.lane.b32.xlu0 %v4513, 32
    %v4587 = vpop.permute.xlu0 %4586
    %4588 = vrot.lane.b32.xlu0 %v4514, 32
    %v4589 = vpop.permute.xlu0 %4588
    %4590 = vrot.lane.b32.xlu0 %v4515, 32
    %v4591 = vpop.permute.xlu0 %4590
    %4592 = vrot.lane.b32.xlu0 %v4524, 32
    %v4593 = vpop.permute.xlu0 %4592
    %4594 = vrot.lane.b32.xlu0 %v4525, 32
    %v4595 = vpop.permute.xlu0 %4594
    %4596 = vrot.lane.b32.xlu0 %v4526, 32
    %v4597 = vpop.permute.xlu0 %4596
    %4598 = vrot.lane.b32.xlu0 %v4527, 32
    %v4599 = vpop.permute.xlu0 %4598
    %4636 = vst [vmem:[#allocation1] ss:$2 sm:$0xff] %v2712
    %s4637 = scalar_lea.vmem [#allocation1], 1
    %4638 = vst [vmem:[%s4637] ss:$2 sm:$0xff] %v2814
    %s4639 = scalar_lea.vmem [#allocation1], 16
    %4640 = vst [vmem:[%s4639] ss:$2 sm:$0xff] %v2713
    %s4641 = scalar_lea.vmem [#allocation1], 17
    %4642 = vst [vmem:[%s4641] ss:$2 sm:$0xff] %v2714
    %s4643 = scalar_lea.vmem [#allocation1], 32
    %4644 = vst [vmem:[%s4643] ss:$2 sm:$0xff] %v2815
    %s4645 = scalar_lea.vmem [#allocation1], 33
    %4646 = vst [vmem:[%s4645] ss:$2 sm:$0xff] %v2715
    %s4647 = scalar_lea.vmem [#allocation1], 48
    %4648 = vst [vmem:[%s4647] ss:$2 sm:$0xff] %v2716
    %s4649 = scalar_lea.vmem [#allocation1], 49
    %4650 = vst [vmem:[%s4649] ss:$2 sm:$0xff] %v2816
    %v4651 = vld.sshfl [vmem:[#allocation1] sm:$0xff pattern:$0x75316420]
    %v4652 = vld.sshfl [vmem:[#allocation1 + $0x10] sm:$0xff pattern:$0x75316420]
    %v4653 = vld.sshfl [vmem:[#allocation1 + $0x20] sm:$0xff pattern:$0x75316420]
    %v4654 = vld.sshfl [vmem:[#allocation1 + $0x30] sm:$0xff pattern:$0x75316420]
    %4655 = vst [vmem:[#allocation1] ss:$2 sm:$0xff] %v2717
    %4656 = vst [vmem:[%s4637] ss:$2 sm:$0xff] %v2718
    %4657 = vst [vmem:[%s4639] ss:$2 sm:$0xff] %v2817
    %4658 = vst [vmem:[%s4641] ss:$2 sm:$0xff] %v2719
    %4659 = vst [vmem:[%s4643] ss:$2 sm:$0xff] %v2720
    %4660 = vst [vmem:[%s4645] ss:$2 sm:$0xff] %v2818
    %4661 = vst [vmem:[%s4647] ss:$2 sm:$0xff] %v2721
    %4662 = vst [vmem:[%s4649] ss:$2 sm:$0xff] %v2722
    %v4663 = vld.sshfl [vmem:[#allocation1] sm:$0xff pattern:$0x75316420]
    %v4664 = vld.sshfl [vmem:[#allocation1 + $0x10] sm:$0xff pattern:$0x75316420]
    %v4665 = vld.sshfl [vmem:[#allocation1 + $0x20] sm:$0xff pattern:$0x75316420]
    %v4666 = vld.sshfl [vmem:[#allocation1 + $0x30] sm:$0xff pattern:$0x75316420]
    %4667 = vst [vmem:[#allocation1] ss:$2 sm:$0xff] %v2819
    %4668 = vst [vmem:[%s4637] ss:$2 sm:$0xff] %v2723
    %4669 = vst [vmem:[%s4639] ss:$2 sm:$0xff] %v2724
    %4670 = vst [vmem:[%s4641] ss:$2 sm:$0xff] %v2820
    %4671 = vst [vmem:[%s4643] ss:$2 sm:$0xff] %v2725
    %4672 = vst [vmem:[%s4645] ss:$2 sm:$0xff] %v2726
    %4673 = vst [vmem:[%s4647] ss:$2 sm:$0xff] %v2821
    %4674 = vst [vmem:[%s4649] ss:$2 sm:$0xff] %v2727
    %v4675 = vld.sshfl [vmem:[#allocation1] sm:$0xff pattern:$0x75316420]
    %v4676 = vld.sshfl [vmem:[#allocation1 + $0x10] sm:$0xff pattern:$0x75316420]
    %v4677 = vld.sshfl [vmem:[#allocation1 + $0x20] sm:$0xff pattern:$0x75316420]
    %v4678 = vld.sshfl [vmem:[#allocation1 + $0x30] sm:$0xff pattern:$0x75316420]
    %4679 = vst [vmem:[#allocation1] ss:$2 sm:$0xff] %v2728
    %4680 = vst [vmem:[%s4637] ss:$2 sm:$0xff] %v2822
    %4681 = vst [vmem:[%s4639] ss:$2 sm:$0xff] %v2729
    %4682 = vst [vmem:[%s4641] ss:$2 sm:$0xff] %v2730
    %4683 = vst [vmem:[%s4643] ss:$2 sm:$0xff] %v2823
    %4684 = vst [vmem:[%s4645] ss:$2 sm:$0xff] %v2731
    %4685 = vst [vmem:[%s4647] ss:$2 sm:$0xff] %v2732
    %4686 = vst [vmem:[%s4649] ss:$2 sm:$0xff] %v3350
    %v4687 = vld.sshfl [vmem:[#allocation1] sm:$0xff pattern:$0x75316420]
    %v4688 = vld.sshfl [vmem:[#allocation1 + $0x10] sm:$0xff pattern:$0x75316420]
    %v4689 = vld.sshfl [vmem:[#allocation1 + $0x20] sm:$0xff pattern:$0x75316420]
    %v4690 = vld.sshfl [vmem:[#allocation1 + $0x30] sm:$0xff pattern:$0x75316420]
    %4691 = vst [vmem:[#allocation1] ss:$2 sm:$0xff] %v2733
    %4692 = vst [vmem:[%s4637] ss:$2 sm:$0xff] %v2734
    %4693 = vst [vmem:[%s4639] ss:$2 sm:$0xff] %v3398
    %4694 = vst [vmem:[%s4641] ss:$2 sm:$0xff] %v2735
    %4695 = vst [vmem:[%s4643] ss:$2 sm:$0xff] %v2740
    %4696 = vst [vmem:[%s4645] ss:$2 sm:$0xff] %v2826
    %4697 = vst [vmem:[%s4647] ss:$2 sm:$0xff] %v2741
    %4698 = vst [vmem:[%s4649] ss:$2 sm:$0xff] %v2742
    %v4699 = vld.sshfl [vmem:[#allocation1] sm:$0xff pattern:$0x75316420]
    %v4700 = vld.sshfl [vmem:[#allocation1 + $0x10] sm:$0xff pattern:$0x75316420]
    %v4701 = vld.sshfl [vmem:[#allocation1 + $0x20] sm:$0xff pattern:$0x75316420]
    %v4702 = vld.sshfl [vmem:[#allocation1 + $0x30] sm:$0xff pattern:$0x75316420]
    %4703 = vst [vmem:[#allocation1] ss:$2 sm:$0xff] %v2827
    %4704 = vst [vmem:[%s4637] ss:$2 sm:$0xff] %v2743
    %4705 = vst [vmem:[%s4639] ss:$2 sm:$0xff] %v2744
    %4706 = vst [vmem:[%s4641] ss:$2 sm:$0xff] %v2828
    %4707 = vst [vmem:[%s4643] ss:$2 sm:$0xff] %v2745
    %4708 = vst [vmem:[%s4645] ss:$2 sm:$0xff] %v2746
    %4709 = vst [vmem:[%s4647] ss:$2 sm:$0xff] %v2829
    %4710 = vst [vmem:[%s4649] ss:$2 sm:$0xff] %v2747
    %v4711 = vld.sshfl [vmem:[#allocation1] sm:$0xff pattern:$0x75316420]
    %v4712 = vld.sshfl [vmem:[#allocation1 + $0x10] sm:$0xff pattern:$0x75316420]
    %v4713 = vld.sshfl [vmem:[#allocation1 + $0x20] sm:$0xff pattern:$0x75316420]
    %v4714 = vld.sshfl [vmem:[#allocation1 + $0x30] sm:$0xff pattern:$0x75316420]
    %4715 = vst [vmem:[#allocation1] ss:$2 sm:$0xff] %v2748
    %4716 = vst [vmem:[%s4637] ss:$2 sm:$0xff] %v2830
    %4717 = vst [vmem:[%s4639] ss:$2 sm:$0xff] %v2749
    %4718 = vst [vmem:[%s4641] ss:$2 sm:$0xff] %v2750
    %4719 = vst [vmem:[%s4643] ss:$2 sm:$0xff] %v2831
    %4720 = vst [vmem:[%s4645] ss:$2 sm:$0xff] %v2751
    %4721 = vst [vmem:[%s4647] ss:$2 sm:$0xff] %v2752
    %4722 = vst [vmem:[%s4649] ss:$2 sm:$0xff] %v2832
    %v4723 = vld.sshfl [vmem:[#allocation1] sm:$0xff pattern:$0x75316420]
    %v4724 = vld.sshfl [vmem:[#allocation1 + $0x10] sm:$0xff pattern:$0x75316420]
    %v4725 = vld.sshfl [vmem:[#allocation1 + $0x20] sm:$0xff pattern:$0x75316420]
    %v4726 = vld.sshfl [vmem:[#allocation1 + $0x30] sm:$0xff pattern:$0x75316420]
    %4727 = vst [vmem:[#allocation1] ss:$2 sm:$0xff] %v2753
    %4728 = vst [vmem:[%s4637] ss:$2 sm:$0xff] %v2754
    %4729 = vst [vmem:[%s4639] ss:$2 sm:$0xff] %v2833
    %4730 = vst [vmem:[%s4641] ss:$2 sm:$0xff] %v2755
    %4731 = vst [vmem:[%s4643] ss:$2 sm:$0xff] %v2756
    %4732 = vst [vmem:[%s4645] ss:$2 sm:$0xff] %v2834
    %4733 = vst [vmem:[%s4647] ss:$2 sm:$0xff] %v2757
    %4734 = vst [vmem:[%s4649] ss:$2 sm:$0xff] %v2758
    %v4735 = vld.sshfl [vmem:[#allocation1] sm:$0xff pattern:$0x75316420]
    %v4736 = vld.sshfl [vmem:[#allocation1 + $0x10] sm:$0xff pattern:$0x75316420]
    %v4737 = vld.sshfl [vmem:[#allocation1 + $0x20] sm:$0xff pattern:$0x75316420]
    %v4738 = vld.sshfl [vmem:[#allocation1 + $0x30] sm:$0xff pattern:$0x75316420]
    %4739 = vst [vmem:[#allocation1] ss:$2 sm:$0xff] %v2835
    %4740 = vst [vmem:[%s4637] ss:$2 sm:$0xff] %v2759
    %4741 = vst [vmem:[%s4639] ss:$2 sm:$0xff] %v2760
    %4742 = vst [vmem:[%s4641] ss:$2 sm:$0xff] %v3351
    %4743 = vst [vmem:[%s4643] ss:$2 sm:$0xff] %v2761
    %4744 = vst [vmem:[%s4645] ss:$2 sm:$0xff] %v2762
    %4745 = vst [vmem:[%s4647] ss:$2 sm:$0xff] %v3399
    %4746 = vst [vmem:[%s4649] ss:$2 sm:$0xff] %v2763
    %v4747 = vld.sshfl [vmem:[#allocation1] sm:$0xff pattern:$0x75316420]
    %v4748 = vld.sshfl [vmem:[#allocation1 + $0x10] sm:$0xff pattern:$0x75316420]
    %v4749 = vld.sshfl [vmem:[#allocation1 + $0x20] sm:$0xff pattern:$0x75316420]
    %v4750 = vld.sshfl [vmem:[#allocation1 + $0x30] sm:$0xff pattern:$0x75316420]
    %4751 = vrot.lane.b32.xlu0 %v4651, 64
    %v4752 = vpop.permute.xlu0 %4751
    %4753 = vrot.lane.b32.xlu0 %v4652, 64
    %v4754 = vpop.permute.xlu0 %4753
    %4755 = vrot.lane.b32.xlu0 %v4653, 64
    %v4756 = vpop.permute.xlu0 %4755
    %4757 = vrot.lane.b32.xlu0 %v4654, 64
    %v4758 = vpop.permute.xlu0 %4757
    %4759 = vrot.lane.b32.xlu0 %v4663, 64
    %v4760 = vpop.permute.xlu0 %4759
    %4761 = vrot.lane.b32.xlu0 %v4664, 64
    %v4762 = vpop.permute.xlu0 %4761
    %4763 = vrot.lane.b32.xlu0 %v4665, 64
    %v4764 = vpop.permute.xlu0 %4763
    %4765 = vrot.lane.b32.xlu0 %v4666, 64
    %v4766 = vpop.permute.xlu0 %4765
    %4767 = vrot.lane.b32.xlu0 %v4675, 64
    %v4768 = vpop.permute.xlu0 %4767
    %4769 = vrot.lane.b32.xlu0 %v4676, 64
    %v4770 = vpop.permute.xlu0 %4769
    %4771 = vrot.lane.b32.xlu0 %v4677, 64
    %v4772 = vpop.permute.xlu0 %4771
    %4773 = vrot.lane.b32.xlu0 %v4678, 64
    %v4774 = vpop.permute.xlu0 %4773
    %4775 = vrot.lane.b32.xlu0 %v4687, 64
    %v4776 = vpop.permute.xlu0 %4775
    %4777 = vrot.lane.b32.xlu0 %v4688, 64
    %v4778 = vpop.permute.xlu0 %4777
    %4779 = vrot.lane.b32.xlu0 %v4689, 64
    %v4780 = vpop.permute.xlu0 %4779
    %4781 = vrot.lane.b32.xlu0 %v4690, 64
    %v4782 = vpop.permute.xlu0 %4781
    %4783 = vrot.lane.b32.xlu0 %v4699, 64
    %v4784 = vpop.permute.xlu0 %4783
    %4785 = vrot.lane.b32.xlu0 %v4700, 64
    %v4786 = vpop.permute.xlu0 %4785
    %4787 = vrot.lane.b32.xlu0 %v4701, 64
    %v4788 = vpop.permute.xlu0 %4787
    %4789 = vrot.lane.b32.xlu0 %v4702, 64
    %v4790 = vpop.permute.xlu0 %4789
    %4791 = vrot.lane.b32.xlu0 %v4711, 64
    %v4792 = vpop.permute.xlu0 %4791
    %4793 = vrot.lane.b32.xlu0 %v4712, 64
    %v4794 = vpop.permute.xlu0 %4793
    %4795 = vrot.lane.b32.xlu0 %v4713, 64
    %v4796 = vpop.permute.xlu0 %4795
    %4797 = vrot.lane.b32.xlu0 %v4714, 64
    %v4798 = vpop.permute.xlu0 %4797
    %4799 = vrot.lane.b32.xlu0 %v4723, 64
    %v4800 = vpop.permute.xlu0 %4799
    %4801 = vrot.lane.b32.xlu0 %v4724, 64
    %v4802 = vpop.permute.xlu0 %4801
    %4803 = vrot.lane.b32.xlu0 %v4725, 64
    %v4804 = vpop.permute.xlu0 %4803
    %4805 = vrot.lane.b32.xlu0 %v4726, 64
    %v4806 = vpop.permute.xlu0 %4805
    %4807 = vrot.lane.b32.xlu0 %v4735, 64
    %v4808 = vpop.permute.xlu0 %4807
    %4809 = vrot.lane.b32.xlu0 %v4736, 64
    %v4810 = vpop.permute.xlu0 %4809
    %4811 = vrot.lane.b32.xlu0 %v4737, 64
    %v4812 = vpop.permute.xlu0 %4811
    %4813 = vrot.lane.b32.xlu0 %v4738, 64
    %v4814 = vpop.permute.xlu0 %4813
    %4815 = vrot.lane.b32.xlu0 %v4747, 64
    %v4816 = vpop.permute.xlu0 %4815
    %4817 = vrot.lane.b32.xlu0 %v4748, 64
    %v4818 = vpop.permute.xlu0 %4817
    %4819 = vrot.lane.b32.xlu0 %v4749, 64
    %v4820 = vpop.permute.xlu0 %4819
    %4821 = vrot.lane.b32.xlu0 %v4750, 64
    %v4822 = vpop.permute.xlu0 %4821
    %4859 = vst [vmem:[#allocation1] ss:$2 sm:$0xff] %v2886
    %s4860 = scalar_lea.vmem [#allocation1], 1
    %4861 = vst [vmem:[%s4860] ss:$2 sm:$0xff] %v2889
    %s4862 = scalar_lea.vmem [#allocation1], 16
    %4863 = vst [vmem:[%s4862] ss:$2 sm:$0xff] %v2892
    %s4864 = scalar_lea.vmem [#allocation1], 17
    %4865 = vst [vmem:[%s4864] ss:$2 sm:$0xff] %v2896
    %s4866 = scalar_lea.vmem [#allocation1], 32
    %4867 = vst [vmem:[%s4866] ss:$2 sm:$0xff] %v2899
    %s4868 = scalar_lea.vmem [#allocation1], 33
    %4869 = vst [vmem:[%s4868] ss:$2 sm:$0xff] %v2902
    %s4870 = scalar_lea.vmem [#allocation1], 48
    %4871 = vst [vmem:[%s4870] ss:$2 sm:$0xff] %v2906
    %s4872 = scalar_lea.vmem [#allocation1], 49
    %4873 = vst [vmem:[%s4872] ss:$2 sm:$0xff] %v2909
    %v4874 = vld.sshfl [vmem:[#allocation1] sm:$0xff pattern:$0x75316420]
    %v4875 = vld.sshfl [vmem:[#allocation1 + $0x10] sm:$0xff pattern:$0x75316420]
    %v4876 = vld.sshfl [vmem:[#allocation1 + $0x20] sm:$0xff pattern:$0x75316420]
    %v4877 = vld.sshfl [vmem:[#allocation1 + $0x30] sm:$0xff pattern:$0x75316420]
    %4878 = vst [vmem:[#allocation1] ss:$2 sm:$0xff] %v2912
    %4879 = vst [vmem:[%s4860] ss:$2 sm:$0xff] %v2916
    %4880 = vst [vmem:[%s4862] ss:$2 sm:$0xff] %v2919
    %4881 = vst [vmem:[%s4864] ss:$2 sm:$0xff] %v2922
    %4882 = vst [vmem:[%s4866] ss:$2 sm:$0xff] %v2926
    %4883 = vst [vmem:[%s4868] ss:$2 sm:$0xff] %v2929
    %4884 = vst [vmem:[%s4870] ss:$2 sm:$0xff] %v2932
    %4885 = vst [vmem:[%s4872] ss:$2 sm:$0xff] %v2936
    %v4886 = vld.sshfl [vmem:[#allocation1] sm:$0xff pattern:$0x75316420]
    %v4887 = vld.sshfl [vmem:[#allocation1 + $0x10] sm:$0xff pattern:$0x75316420]
    %v4888 = vld.sshfl [vmem:[#allocation1 + $0x20] sm:$0xff pattern:$0x75316420]
    %v4889 = vld.sshfl [vmem:[#allocation1 + $0x30] sm:$0xff pattern:$0x75316420]
    %4890 = vst [vmem:[#allocation1] ss:$2 sm:$0xff] %v2939
    %4891 = vst [vmem:[%s4860] ss:$2 sm:$0xff] %v2942
    %4892 = vst [vmem:[%s4862] ss:$2 sm:$0xff] %v2946
    %4893 = vst [vmem:[%s4864] ss:$2 sm:$0xff] %v2949
    %4894 = vst [vmem:[%s4866] ss:$2 sm:$0xff] %v2952
    %4895 = vst [vmem:[%s4868] ss:$2 sm:$0xff] %v2956
    %4896 = vst [vmem:[%s4870] ss:$2 sm:$0xff] %v2959
    %4897 = vst [vmem:[%s4872] ss:$2 sm:$0xff] %v2962
    %v4898 = vld.sshfl [vmem:[#allocation1] sm:$0xff pattern:$0x75316420]
    %v4899 = vld.sshfl [vmem:[#allocation1 + $0x10] sm:$0xff pattern:$0x75316420]
    %v4900 = vld.sshfl [vmem:[#allocation1 + $0x20] sm:$0xff pattern:$0x75316420]
    %v4901 = vld.sshfl [vmem:[#allocation1 + $0x30] sm:$0xff pattern:$0x75316420]
    %4902 = vst [vmem:[#allocation1] ss:$2 sm:$0xff] %v2966
    %4903 = vst [vmem:[%s4860] ss:$2 sm:$0xff] %v2969
    %4904 = vst [vmem:[%s4862] ss:$2 sm:$0xff] %v2972
    %4905 = vst [vmem:[%s4864] ss:$2 sm:$0xff] %v2976
    %4906 = vst [vmem:[%s4866] ss:$2 sm:$0xff] %v2979
    %4907 = vst [vmem:[%s4868] ss:$2 sm:$0xff] %v2982
    %4908 = vst [vmem:[%s4870] ss:$2 sm:$0xff] %v3357
    %4909 = vst [vmem:[%s4872] ss:$2 sm:$0xff] %v3360
    %v4910 = vld.sshfl [vmem:[#allocation1] sm:$0xff pattern:$0x75316420]
    %v4911 = vld.sshfl [vmem:[#allocation1 + $0x10] sm:$0xff pattern:$0x75316420]
    %v4912 = vld.sshfl [vmem:[#allocation1 + $0x20] sm:$0xff pattern:$0x75316420]
    %v4913 = vld.sshfl [vmem:[#allocation1 + $0x30] sm:$0xff pattern:$0x75316420]
    %4914 = vst [vmem:[#allocation1] ss:$2 sm:$0xff] %v3363
    %4915 = vst [vmem:[%s4860] ss:$2 sm:$0xff] %v3405
    %4916 = vst [vmem:[%s4862] ss:$2 sm:$0xff] %v3408
    %4917 = vst [vmem:[%s4864] ss:$2 sm:$0xff] %v3411
    %4918 = vst [vmem:[%s4866] ss:$2 sm:$0xff] %v3006
    %4919 = vst [vmem:[%s4868] ss:$2 sm:$0xff] %v3009
    %4920 = vst [vmem:[%s4870] ss:$2 sm:$0xff] %v3012
    %4921 = vst [vmem:[%s4872] ss:$2 sm:$0xff] %v3016
    %v4922 = vld.sshfl [vmem:[#allocation1] sm:$0xff pattern:$0x75316420]
    %v4923 = vld.sshfl [vmem:[#allocation1 + $0x10] sm:$0xff pattern:$0x75316420]
    %v4924 = vld.sshfl [vmem:[#allocation1 + $0x20] sm:$0xff pattern:$0x75316420]
    %v4925 = vld.sshfl [vmem:[#allocation1 + $0x30] sm:$0xff pattern:$0x75316420]
    %4926 = vst [vmem:[#allocation1] ss:$2 sm:$0xff] %v3019
    %4927 = vst [vmem:[%s4860] ss:$2 sm:$0xff] %v3022
    %4928 = vst [vmem:[%s4862] ss:$2 sm:$0xff] %v3026
    %4929 = vst [vmem:[%s4864] ss:$2 sm:$0xff] %v3029
    %4930 = vst [vmem:[%s4866] ss:$2 sm:$0xff] %v3032
    %4931 = vst [vmem:[%s4868] ss:$2 sm:$0xff] %v3036
    %4932 = vst [vmem:[%s4870] ss:$2 sm:$0xff] %v3039
    %4933 = vst [vmem:[%s4872] ss:$2 sm:$0xff] %v3042
    %v4934 = vld.sshfl [vmem:[#allocation1] sm:$0xff pattern:$0x75316420]
    %v4935 = vld.sshfl [vmem:[#allocation1 + $0x10] sm:$0xff pattern:$0x75316420]
    %v4936 = vld.sshfl [vmem:[#allocation1 + $0x20] sm:$0xff pattern:$0x75316420]
    %v4937 = vld.sshfl [vmem:[#allocation1 + $0x30] sm:$0xff pattern:$0x75316420]
    %4938 = vst [vmem:[#allocation1] ss:$2 sm:$0xff] %v3046
    %4939 = vst [vmem:[%s4860] ss:$2 sm:$0xff] %v3049
    %4940 = vst [vmem:[%s4862] ss:$2 sm:$0xff] %v3052
    %4941 = vst [vmem:[%s4864] ss:$2 sm:$0xff] %v3056
    %4942 = vst [vmem:[%s4866] ss:$2 sm:$0xff] %v3059
    %4943 = vst [vmem:[%s4868] ss:$2 sm:$0xff] %v3062
    %4944 = vst [vmem:[%s4870] ss:$2 sm:$0xff] %v3066
    %4945 = vst [vmem:[%s4872] ss:$2 sm:$0xff] %v3069
    %v4946 = vld.sshfl [vmem:[#allocation1] sm:$0xff pattern:$0x75316420]
    %v4947 = vld.sshfl [vmem:[#allocation1 + $0x10] sm:$0xff pattern:$0x75316420]
    %v4948 = vld.sshfl [vmem:[#allocation1 + $0x20] sm:$0xff pattern:$0x75316420]
    %v4949 = vld.sshfl [vmem:[#allocation1 + $0x30] sm:$0xff pattern:$0x75316420]
    %4950 = vst [vmem:[#allocation1] ss:$2 sm:$0xff] %v3072
    %4951 = vst [vmem:[%s4860] ss:$2 sm:$0xff] %v3076
    %4952 = vst [vmem:[%s4862] ss:$2 sm:$0xff] %v3079
    %4953 = vst [vmem:[%s4864] ss:$2 sm:$0xff] %v3082
    %4954 = vst [vmem:[%s4866] ss:$2 sm:$0xff] %v3086
    %4955 = vst [vmem:[%s4868] ss:$2 sm:$0xff] %v3089
    %4956 = vst [vmem:[%s4870] ss:$2 sm:$0xff] %v3092
    %4957 = vst [vmem:[%s4872] ss:$2 sm:$0xff] %v3096
    %v4958 = vld.sshfl [vmem:[#allocation1] sm:$0xff pattern:$0x75316420]
    %v4959 = vld.sshfl [vmem:[#allocation1 + $0x10] sm:$0xff pattern:$0x75316420]
    %v4960 = vld.sshfl [vmem:[#allocation1 + $0x20] sm:$0xff pattern:$0x75316420]
    %v4961 = vld.sshfl [vmem:[#allocation1 + $0x30] sm:$0xff pattern:$0x75316420]
    %4962 = vst [vmem:[#allocation1] ss:$2 sm:$0xff] %v3099
    %4963 = vst [vmem:[%s4860] ss:$2 sm:$0xff] %v3102
    %4964 = vst [vmem:[%s4862] ss:$2 sm:$0xff] %v3367
    %4965 = vst [vmem:[%s4864] ss:$2 sm:$0xff] %v3370
    %4966 = vst [vmem:[%s4866] ss:$2 sm:$0xff] %v3373
    %4967 = vst [vmem:[%s4868] ss:$2 sm:$0xff] %v3415
    %4968 = vst [vmem:[%s4870] ss:$2 sm:$0xff] %v3418
    %4969 = vst [vmem:[%s4872] ss:$2 sm:$0xff] %v3421
    %v4970 = vld.sshfl [vmem:[#allocation1] sm:$0xff pattern:$0x75316420]
    %v4971 = vld.sshfl [vmem:[#allocation1 + $0x10] sm:$0xff pattern:$0x75316420]
    %v4972 = vld.sshfl [vmem:[#allocation1 + $0x20] sm:$0xff pattern:$0x75316420]
    %v4973 = vld.sshfl [vmem:[#allocation1 + $0x30] sm:$0xff pattern:$0x75316420]
    %4974 = vrot.lane.b32.xlu0 %v4874, 96
    %v4975 = vpop.permute.xlu0 %4974
    %4976 = vrot.lane.b32.xlu0 %v4875, 96
    %v4977 = vpop.permute.xlu0 %4976
    %4978 = vrot.lane.b32.xlu0 %v4876, 96
    %v4979 = vpop.permute.xlu0 %4978
    %4980 = vrot.lane.b32.xlu0 %v4877, 96
    %v4981 = vpop.permute.xlu0 %4980
    %4982 = vrot.lane.b32.xlu0 %v4886, 96
    %v4983 = vpop.permute.xlu0 %4982
    %4984 = vrot.lane.b32.xlu0 %v4887, 96
    %v4985 = vpop.permute.xlu0 %4984
    %4986 = vrot.lane.b32.xlu0 %v4888, 96
    %v4987 = vpop.permute.xlu0 %4986
    %4988 = vrot.lane.b32.xlu0 %v4889, 96
    %v4989 = vpop.permute.xlu0 %4988
    %4990 = vrot.lane.b32.xlu0 %v4898, 96
    %v4991 = vpop.permute.xlu0 %4990
    %4992 = vrot.lane.b32.xlu0 %v4899, 96
    %v4993 = vpop.permute.xlu0 %4992
    %4994 = vrot.lane.b32.xlu0 %v4900, 96
    %v4995 = vpop.permute.xlu0 %4994
    %4996 = vrot.lane.b32.xlu0 %v4901, 96
    %v4997 = vpop.permute.xlu0 %4996
    %4998 = vrot.lane.b32.xlu0 %v4910, 96
    %v4999 = vpop.permute.xlu0 %4998
    %5000 = vrot.lane.b32.xlu0 %v4911, 96
    %v5001 = vpop.permute.xlu0 %5000
    %5002 = vrot.lane.b32.xlu0 %v4912, 96
    %v5003 = vpop.permute.xlu0 %5002
    %5004 = vrot.lane.b32.xlu0 %v4913, 96
    %v5005 = vpop.permute.xlu0 %5004
    %5006 = vrot.lane.b32.xlu0 %v4922, 96
    %v5007 = vpop.permute.xlu0 %5006
    %5008 = vrot.lane.b32.xlu0 %v4923, 96
    %v5009 = vpop.permute.xlu0 %5008
    %5010 = vrot.lane.b32.xlu0 %v4924, 96
    %v5011 = vpop.permute.xlu0 %5010
    %5012 = vrot.lane.b32.xlu0 %v4925, 96
    %v5013 = vpop.permute.xlu0 %5012
    %5014 = vrot.lane.b32.xlu0 %v4934, 96
    %v5015 = vpop.permute.xlu0 %5014
    %5016 = vrot.lane.b32.xlu0 %v4935, 96
    %v5017 = vpop.permute.xlu0 %5016
    %5018 = vrot.lane.b32.xlu0 %v4936, 96
    %v5019 = vpop.permute.xlu0 %5018
    %5020 = vrot.lane.b32.xlu0 %v4937, 96
    %v5021 = vpop.permute.xlu0 %5020
    %5022 = vrot.lane.b32.xlu0 %v4946, 96
    %v5023 = vpop.permute.xlu0 %5022
    %5024 = vrot.lane.b32.xlu0 %v4947, 96
    %v5025 = vpop.permute.xlu0 %5024
    %5026 = vrot.lane.b32.xlu0 %v4948, 96
    %v5027 = vpop.permute.xlu0 %5026
    %5028 = vrot.lane.b32.xlu0 %v4949, 96
    %v5029 = vpop.permute.xlu0 %5028
    %5030 = vrot.lane.b32.xlu0 %v4958, 96
    %v5031 = vpop.permute.xlu0 %5030
    %5032 = vrot.lane.b32.xlu0 %v4959, 96
    %v5033 = vpop.permute.xlu0 %5032
    %5034 = vrot.lane.b32.xlu0 %v4960, 96
    %v5035 = vpop.permute.xlu0 %5034
    %5036 = vrot.lane.b32.xlu0 %v4961, 96
    %v5037 = vpop.permute.xlu0 %5036
    %5038 = vrot.lane.b32.xlu0 %v4970, 96
    %v5039 = vpop.permute.xlu0 %5038
    %5040 = vrot.lane.b32.xlu0 %v4971, 96
    %v5041 = vpop.permute.xlu0 %5040
    %5042 = vrot.lane.b32.xlu0 %v4972, 96
    %v5043 = vpop.permute.xlu0 %5042
    %5044 = vrot.lane.b32.xlu0 %v4973, 96
    %v5045 = vpop.permute.xlu0 %5044
    %5082 = vst [vmem:[#allocation1] ss:$2 sm:$0xff] %v3129
    %s5083 = scalar_lea.vmem [#allocation1], 1
    %5084 = vst [vmem:[%s5083] ss:$2 sm:$0xff] %v3132
    %s5085 = scalar_lea.vmem [#allocation1], 16
    %5086 = vst [vmem:[%s5085] ss:$2 sm:$0xff] %v3135
    %s5087 = scalar_lea.vmem [#allocation1], 17
    %5088 = vst [vmem:[%s5087] ss:$2 sm:$0xff] %v3139
    %s5089 = scalar_lea.vmem [#allocation1], 32
    %5090 = vst [vmem:[%s5089] ss:$2 sm:$0xff] %v3142
    %s5091 = scalar_lea.vmem [#allocation1], 33
    %5092 = vst [vmem:[%s5091] ss:$2 sm:$0xff] %v3145
    %s5093 = scalar_lea.vmem [#allocation1], 48
    %5094 = vst [vmem:[%s5093] ss:$2 sm:$0xff] %v3149
    %s5095 = scalar_lea.vmem [#allocation1], 49
    %5096 = vst [vmem:[%s5095] ss:$2 sm:$0xff] %v3152
    %v5097 = vld.sshfl [vmem:[#allocation1] sm:$0xff pattern:$0x75316420]
    %v5098 = vld.sshfl [vmem:[#allocation1 + $0x10] sm:$0xff pattern:$0x75316420]
    %v5099 = vld.sshfl [vmem:[#allocation1 + $0x20] sm:$0xff pattern:$0x75316420]
    %v5100 = vld.sshfl [vmem:[#allocation1 + $0x30] sm:$0xff pattern:$0x75316420]
    %5101 = vst [vmem:[#allocation1] ss:$2 sm:$0xff] %v3155
    %5102 = vst [vmem:[%s5083] ss:$2 sm:$0xff] %v3159
    %5103 = vst [vmem:[%s5085] ss:$2 sm:$0xff] %v3162
    %5104 = vst [vmem:[%s5087] ss:$2 sm:$0xff] %v3165
    %5105 = vst [vmem:[%s5089] ss:$2 sm:$0xff] %v3169
    %5106 = vst [vmem:[%s5091] ss:$2 sm:$0xff] %v3172
    %5107 = vst [vmem:[%s5093] ss:$2 sm:$0xff] %v3175
    %5108 = vst [vmem:[%s5095] ss:$2 sm:$0xff] %v3179
    %v5109 = vld.sshfl [vmem:[#allocation1] sm:$0xff pattern:$0x75316420]
    %v5110 = vld.sshfl [vmem:[#allocation1 + $0x10] sm:$0xff pattern:$0x75316420]
    %v5111 = vld.sshfl [vmem:[#allocation1 + $0x20] sm:$0xff pattern:$0x75316420]
    %v5112 = vld.sshfl [vmem:[#allocation1 + $0x30] sm:$0xff pattern:$0x75316420]
    %5113 = vst [vmem:[#allocation1] ss:$2 sm:$0xff] %v3182
    %5114 = vst [vmem:[%s5083] ss:$2 sm:$0xff] %v3185
    %5115 = vst [vmem:[%s5085] ss:$2 sm:$0xff] %v3189
    %5116 = vst [vmem:[%s5087] ss:$2 sm:$0xff] %v3192
    %5117 = vst [vmem:[%s5089] ss:$2 sm:$0xff] %v3195
    %5118 = vst [vmem:[%s5091] ss:$2 sm:$0xff] %v3199
    %5119 = vst [vmem:[%s5093] ss:$2 sm:$0xff] %v3202
    %5120 = vst [vmem:[%s5095] ss:$2 sm:$0xff] %v3205
    %v5121 = vld.sshfl [vmem:[#allocation1] sm:$0xff pattern:$0x75316420]
    %v5122 = vld.sshfl [vmem:[#allocation1 + $0x10] sm:$0xff pattern:$0x75316420]
    %v5123 = vld.sshfl [vmem:[#allocation1 + $0x20] sm:$0xff pattern:$0x75316420]
    %v5124 = vld.sshfl [vmem:[#allocation1 + $0x30] sm:$0xff pattern:$0x75316420]
    %5125 = vst [vmem:[#allocation1] ss:$2 sm:$0xff] %v3209
    %5126 = vst [vmem:[%s5083] ss:$2 sm:$0xff] %v3212
    %5127 = vst [vmem:[%s5085] ss:$2 sm:$0xff] %v3215
    %5128 = vst [vmem:[%s5087] ss:$2 sm:$0xff] %v3219
    %5129 = vst [vmem:[%s5089] ss:$2 sm:$0xff] %v3222
    %5130 = vst [vmem:[%s5091] ss:$2 sm:$0xff] %v3225
    %5131 = vst [vmem:[%s5093] ss:$2 sm:$0xff] %v3377
    %5132 = vst [vmem:[%s5095] ss:$2 sm:$0xff] %v3380
    %v5133 = vld.sshfl [vmem:[#allocation1] sm:$0xff pattern:$0x75316420]
    %v5134 = vld.sshfl [vmem:[#allocation1 + $0x10] sm:$0xff pattern:$0x75316420]
    %v5135 = vld.sshfl [vmem:[#allocation1 + $0x20] sm:$0xff pattern:$0x75316420]
    %v5136 = vld.sshfl [vmem:[#allocation1 + $0x30] sm:$0xff pattern:$0x75316420]
    %5137 = vst [vmem:[#allocation1] ss:$2 sm:$0xff] %v3383
    %5138 = vst [vmem:[%s5083] ss:$2 sm:$0xff] %v3425
    %5139 = vst [vmem:[%s5085] ss:$2 sm:$0xff] %v3428
    %5140 = vst [vmem:[%s5087] ss:$2 sm:$0xff] %v3431
    %5141 = vst [vmem:[%s5089] ss:$2 sm:$0xff] %v3249
    %5142 = vst [vmem:[%s5091] ss:$2 sm:$0xff] %v3252
    %5143 = vst [vmem:[%s5093] ss:$2 sm:$0xff] %v3255
    %5144 = vst [vmem:[%s5095] ss:$2 sm:$0xff] %v3259
    %v5145 = vld.sshfl [vmem:[#allocation1] sm:$0xff pattern:$0x75316420]
    %v5146 = vld.sshfl [vmem:[#allocation1 + $0x10] sm:$0xff pattern:$0x75316420]
    %v5147 = vld.sshfl [vmem:[#allocation1 + $0x20] sm:$0xff pattern:$0x75316420]
    %v5148 = vld.sshfl [vmem:[#allocation1 + $0x30] sm:$0xff pattern:$0x75316420]
    %5149 = vst [vmem:[#allocation1] ss:$2 sm:$0xff] %v3262
    %5150 = vst [vmem:[%s5083] ss:$2 sm:$0xff] %v3265
    %5151 = vst [vmem:[%s5085] ss:$2 sm:$0xff] %v3269
    %5152 = vst [vmem:[%s5087] ss:$2 sm:$0xff] %v3272
    %5153 = vst [vmem:[%s5089] ss:$2 sm:$0xff] %v3275
    %5154 = vst [vmem:[%s5091] ss:$2 sm:$0xff] %v3279
    %5155 = vst [vmem:[%s5093] ss:$2 sm:$0xff] %v3282
    %5156 = vst [vmem:[%s5095] ss:$2 sm:$0xff] %v3285
    %v5157 = vld.sshfl [vmem:[#allocation1] sm:$0xff pattern:$0x75316420]
    %v5158 = vld.sshfl [vmem:[#allocation1 + $0x10] sm:$0xff pattern:$0x75316420]
    %v5159 = vld.sshfl [vmem:[#allocation1 + $0x20] sm:$0xff pattern:$0x75316420]
    %v5160 = vld.sshfl [vmem:[#allocation1 + $0x30] sm:$0xff pattern:$0x75316420]
    %5161 = vst [vmem:[#allocation1] ss:$2 sm:$0xff] %v3289
    %5162 = vst [vmem:[%s5083] ss:$2 sm:$0xff] %v3292
    %5163 = vst [vmem:[%s5085] ss:$2 sm:$0xff] %v3295
    %5164 = vst [vmem:[%s5087] ss:$2 sm:$0xff] %v3299
    %5165 = vst [vmem:[%s5089] ss:$2 sm:$0xff] %v3302
    %5166 = vst [vmem:[%s5091] ss:$2 sm:$0xff] %v3305
    %5167 = vst [vmem:[%s5093] ss:$2 sm:$0xff] %v3309
    %5168 = vst [vmem:[%s5095] ss:$2 sm:$0xff] %v3312
    %v5169 = vld.sshfl [vmem:[#allocation1] sm:$0xff pattern:$0x75316420]
    %v5170 = vld.sshfl [vmem:[#allocation1 + $0x10] sm:$0xff pattern:$0x75316420]
    %v5171 = vld.sshfl [vmem:[#allocation1 + $0x20] sm:$0xff pattern:$0x75316420]
    %v5172 = vld.sshfl [vmem:[#allocation1 + $0x30] sm:$0xff pattern:$0x75316420]
    %5173 = vst [vmem:[#allocation1] ss:$2 sm:$0xff] %v3315
    %5174 = vst [vmem:[%s5083] ss:$2 sm:$0xff] %v3319
    %5175 = vst [vmem:[%s5085] ss:$2 sm:$0xff] %v3322
    %5176 = vst [vmem:[%s5087] ss:$2 sm:$0xff] %v3325
    %5177 = vst [vmem:[%s5089] ss:$2 sm:$0xff] %v3329
    %5178 = vst [vmem:[%s5091] ss:$2 sm:$0xff] %v3332
    %5179 = vst [vmem:[%s5093] ss:$2 sm:$0xff] %v3335
    %5180 = vst [vmem:[%s5095] ss:$2 sm:$0xff] %v3339
    %v5181 = vld.sshfl [vmem:[#allocation1] sm:$0xff pattern:$0x75316420]
    %v5182 = vld.sshfl [vmem:[#allocation1 + $0x10] sm:$0xff pattern:$0x75316420]
    %v5183 = vld.sshfl [vmem:[#allocation1 + $0x20] sm:$0xff pattern:$0x75316420]
    %v5184 = vld.sshfl [vmem:[#allocation1 + $0x30] sm:$0xff pattern:$0x75316420]
    %5185 = vst [vmem:[#allocation1] ss:$2 sm:$0xff] %v3342
    %5186 = vst [vmem:[%s5083] ss:$2 sm:$0xff] %v3345
    %5187 = vst [vmem:[%s5085] ss:$2 sm:$0xff] %v3387
    %5188 = vst [vmem:[%s5087] ss:$2 sm:$0xff] %v3390
    %5189 = vst [vmem:[%s5089] ss:$2 sm:$0xff] %v3393
    %5190 = vst [vmem:[%s5091] ss:$2 sm:$0xff] %v3435
    %5191 = vst [vmem:[%s5093] ss:$2 sm:$0xff] %v3438
    %5192 = vst [vmem:[%s5095] ss:$2 sm:$0xff] %v3441
    %v5193 = vld.sshfl [vmem:[#allocation1] sm:$0xff pattern:$0x75316420]
    %v5194 = vld.sshfl [vmem:[#allocation1 + $0x10] sm:$0xff pattern:$0x75316420]
    %v5195 = vld.sshfl [vmem:[#allocation1 + $0x20] sm:$0xff pattern:$0x75316420]
    %v5196 = vld.sshfl [vmem:[#allocation1 + $0x30] sm:$0xff pattern:$0x75316420]
    %vm5197 = vcmask 261120
    %v5198 = vsel %vm5197, %v3457, %v3709
    %v5199 = vsel %vm5197, %v3458, %v3711
    %v5200 = vsel %vm5197, %v3459, %v3713
    %v5201 = vsel %vm5197, %v3460, %v3715
    %v5202 = vsel %vm5197, %v3469, %v3717
    %v5203 = vsel %vm5197, %v3470, %v3719
    %v5204 = vsel %vm5197, %v3471, %v3721
    %v5205 = vsel %vm5197, %v3472, %v3723
    %v5206 = vsel %vm5197, %v3481, %v3725
    %v5207 = vsel %vm5197, %v3482, %v3727
    %v5208 = vsel %vm5197, %v3483, %v3729
    %v5209 = vsel %vm5197, %v3484, %v3731
    %v5210 = vsel %vm5197, %v3493, %v3733
    %v5211 = vsel %vm5197, %v3494, %v3735
    %v5212 = vsel %vm5197, %v3495, %v3737
    %v5213 = vsel %vm5197, %v3496, %v3739
    %v5214 = vsel %vm5197, %v3505, %v3741
    %v5215 = vsel %vm5197, %v3506, %v3743
    %v5216 = vsel %vm5197, %v3507, %v3745
    %v5217 = vsel %vm5197, %v3508, %v3747
    %v5218 = vsel %vm5197, %v3517, %v3749
    %v5219 = vsel %vm5197, %v3518, %v3751
    %v5220 = vsel %vm5197, %v3519, %v3753
    %v5221 = vsel %vm5197, %v3520, %v3755
    %v5222 = vsel %vm5197, %v3529, %v3757
    %v5223 = vsel %vm5197, %v3530, %v3759
    %v5224 = vsel %vm5197, %v3531, %v3761
    %v5225 = vsel %vm5197, %v3532, %v3763
    %v5226 = vsel %vm5197, %v3541, %v3765
    %v5227 = vsel %vm5197, %v3542, %v3767
    %v5228 = vsel %vm5197, %v3543, %v3769
    %v5229 = vsel %vm5197, %v3544, %v3771
    %v5230 = vsel %vm5197, %v3553, %v3773
    %v5231 = vsel %vm5197, %v3554, %v3775
    %v5232 = vsel %vm5197, %v3555, %v3777
    %v5233 = vsel %vm5197, %v3556, %v3779
    %vm5234 = vcmask 523264
    %v5235 = vsel %vm5234, %v5198, %v3932
    %v5236 = vsel %vm5234, %v5199, %v3934
    %v5237 = vsel %vm5234, %v5200, %v3936
    %v5238 = vsel %vm5234, %v5201, %v3938
    %v5239 = vsel %vm5234, %v5202, %v3940
    %v5240 = vsel %vm5234, %v5203, %v3942
    %v5241 = vsel %vm5234, %v5204, %v3944
    %v5242 = vsel %vm5234, %v5205, %v3946
    %v5243 = vsel %vm5234, %v5206, %v3948
    %v5244 = vsel %vm5234, %v5207, %v3950
    %v5245 = vsel %vm5234, %v5208, %v3952
    %v5246 = vsel %vm5234, %v5209, %v3954
    %v5247 = vsel %vm5234, %v5210, %v3956
    %v5248 = vsel %vm5234, %v5211, %v3958
    %v5249 = vsel %vm5234, %v5212, %v3960
    %v5250 = vsel %vm5234, %v5213, %v3962
    %v5251 = vsel %vm5234, %v5214, %v3964
    %v5252 = vsel %vm5234, %v5215, %v3966
    %v5253 = vsel %vm5234, %v5216, %v3968
    %v5254 = vsel %vm5234, %v5217, %v3970
    %v5255 = vsel %vm5234, %v5218, %v3972
    %v5256 = vsel %vm5234, %v5219, %v3974
    %v5257 = vsel %vm5234, %v5220, %v3976
    %v5258 = vsel %vm5234, %v5221, %v3978
    %v5259 = vsel %vm5234, %v5222, %v3980
    %v5260 = vsel %vm5234, %v5223, %v3982
    %v5261 = vsel %vm5234, %v5224, %v3984
    %v5262 = vsel %vm5234, %v5225, %v3986
    %v5263 = vsel %vm5234, %v5226, %v3988
    %v5264 = vsel %vm5234, %v5227, %v3990
    %v5265 = vsel %vm5234, %v5228, %v3992
    %v5266 = vsel %vm5234, %v5229, %v3994
    %v5267 = vsel %vm5234, %v5230, %v3996
    %v5268 = vsel %vm5234, %v5231, %v3998
    %v5269 = vsel %vm5234, %v5232, %v4000
    %v5270 = vsel %vm5234, %v5233, %v4002
    %vm5271 = vcmask 785408
    %v5272 = vsel %vm5271, %v5235, %v4155
    %v5273 = vsel %vm5271, %v5236, %v4157
    %v5274 = vsel %vm5271, %v5237, %v4159
    %v5275 = vsel %vm5271, %v5238, %v4161
    %v5276 = vsel %vm5271, %v5239, %v4163
    %v5277 = vsel %vm5271, %v5240, %v4165
    %v5278 = vsel %vm5271, %v5241, %v4167
    %v5279 = vsel %vm5271, %v5242, %v4169
    %v5280 = vsel %vm5271, %v5243, %v4171
    %v5281 = vsel %vm5271, %v5244, %v4173
    %v5282 = vsel %vm5271, %v5245, %v4175
    %v5283 = vsel %vm5271, %v5246, %v4177
    %v5284 = vsel %vm5271, %v5247, %v4179
    %v5285 = vsel %vm5271, %v5248, %v4181
    %v5286 = vsel %vm5271, %v5249, %v4183
    %v5287 = vsel %vm5271, %v5250, %v4185
    %v5288 = vsel %vm5271, %v5251, %v4187
    %v5289 = vsel %vm5271, %v5252, %v4189
    %v5290 = vsel %vm5271, %v5253, %v4191
    %v5291 = vsel %vm5271, %v5254, %v4193
    %v5292 = vsel %vm5271, %v5255, %v4195
    %v5293 = vsel %vm5271, %v5256, %v4197
    %v5294 = vsel %vm5271, %v5257, %v4199
    %v5295 = vsel %vm5271, %v5258, %v4201
    %v5296 = vsel %vm5271, %v5259, %v4203
    %v5297 = vsel %vm5271, %v5260, %v4205
    %v5298 = vsel %vm5271, %v5261, %v4207
    %v5299 = vsel %vm5271, %v5262, %v4209
    %v5300 = vsel %vm5271, %v5263, %v4211
    %v5301 = vsel %vm5271, %v5264, %v4213
    %v5302 = vsel %vm5271, %v5265, %v4215
    %v5303 = vsel %vm5271, %v5266, %v4217
    %v5304 = vsel %vm5271, %v5267, %v4219
    %v5305 = vsel %vm5271, %v5268, %v4221
    %v5306 = vsel %vm5271, %v5269, %v4223
    %v5307 = vsel %vm5271, %v5270, %v4225
    %v5308 = vsel %vm5197, %v4277, %v4529
    %v5309 = vsel %vm5197, %v4278, %v4531
    %v5310 = vsel %vm5197, %v4279, %v4533
    %v5311 = vsel %vm5197, %v4280, %v4535
    %v5312 = vsel %vm5197, %v4289, %v4537
    %v5313 = vsel %vm5197, %v4290, %v4539
    %v5314 = vsel %vm5197, %v4291, %v4541
    %v5315 = vsel %vm5197, %v4292, %v4543
    %v5316 = vsel %vm5197, %v4301, %v4545
    %v5317 = vsel %vm5197, %v4302, %v4547
    %v5318 = vsel %vm5197, %v4303, %v4549
    %v5319 = vsel %vm5197, %v4304, %v4551
    %v5320 = vsel %vm5197, %v4313, %v4553
    %v5321 = vsel %vm5197, %v4314, %v4555
    %v5322 = vsel %vm5197, %v4315, %v4557
    %v5323 = vsel %vm5197, %v4316, %v4559
    %v5324 = vsel %vm5197, %v4325, %v4561
    %v5325 = vsel %vm5197, %v4326, %v4563
    %v5326 = vsel %vm5197, %v4327, %v4565
    %v5327 = vsel %vm5197, %v4328, %v4567
    %v5328 = vsel %vm5197, %v4337, %v4569
    %v5329 = vsel %vm5197, %v4338, %v4571
    %v5330 = vsel %vm5197, %v4339, %v4573
    %v5331 = vsel %vm5197, %v4340, %v4575
    %v5332 = vsel %vm5197, %v4349, %v4577
    %v5333 = vsel %vm5197, %v4350, %v4579
    %v5334 = vsel %vm5197, %v4351, %v4581
    %v5335 = vsel %vm5197, %v4352, %v4583
    %v5336 = vsel %vm5197, %v4361, %v4585
    %v5337 = vsel %vm5197, %v4362, %v4587
    %v5338 = vsel %vm5197, %v4363, %v4589
    %v5339 = vsel %vm5197, %v4364, %v4591
    %v5340 = vsel %vm5197, %v4373, %v4593
    %v5341 = vsel %vm5197, %v4374, %v4595
    %v5342 = vsel %vm5197, %v4375, %v4597
    %v5343 = vsel %vm5197, %v4376, %v4599
    %v5344 = vsel %vm5234, %v5308, %v4752
    %v5345 = vsel %vm5234, %v5309, %v4754
    %v5346 = vsel %vm5234, %v5310, %v4756
    %v5347 = vsel %vm5234, %v5311, %v4758
    %v5348 = vsel %vm5234, %v5312, %v4760
    %v5349 = vsel %vm5234, %v5313, %v4762
    %v5350 = vsel %vm5234, %v5314, %v4764
    %v5351 = vsel %vm5234, %v5315, %v4766
    %v5352 = vsel %vm5234, %v5316, %v4768
    %v5353 = vsel %vm5234, %v5317, %v4770
    %v5354 = vsel %vm5234, %v5318, %v4772
    %v5355 = vsel %vm5234, %v5319, %v4774
    %v5356 = vsel %vm5234, %v5320, %v4776
    %v5357 = vsel %vm5234, %v5321, %v4778
    %v5358 = vsel %vm5234, %v5322, %v4780
    %v5359 = vsel %vm5234, %v5323, %v4782
    %v5360 = vsel %vm5234, %v5324, %v4784
    %v5361 = vsel %vm5234, %v5325, %v4786
    %v5362 = vsel %vm5234, %v5326, %v4788
    %v5363 = vsel %vm5234, %v5327, %v4790
    %v5364 = vsel %vm5234, %v5328, %v4792
    %v5365 = vsel %vm5234, %v5329, %v4794
    %v5366 = vsel %vm5234, %v5330, %v4796
    %v5367 = vsel %vm5234, %v5331, %v4798
    %v5368 = vsel %vm5234, %v5332, %v4800
    %v5369 = vsel %vm5234, %v5333, %v4802
    %v5370 = vsel %vm5234, %v5334, %v4804
    %v5371 = vsel %vm5234, %v5335, %v4806
    %v5372 = vsel %vm5234, %v5336, %v4808
    %v5373 = vsel %vm5234, %v5337, %v4810
    %v5374 = vsel %vm5234, %v5338, %v4812
    %v5375 = vsel %vm5234, %v5339, %v4814
    %v5376 = vsel %vm5234, %v5340, %v4816
    %v5377 = vsel %vm5234, %v5341, %v4818
    %v5378 = vsel %vm5234, %v5342, %v4820
    %v5379 = vsel %vm5234, %v5343, %v4822
    %v5380 = vsel %vm5271, %v5344, %v4975
    %v5381 = vsel %vm5271, %v5345, %v4977
    %v5382 = vsel %vm5271, %v5346, %v4979
    %v5383 = vsel %vm5271, %v5347, %v4981
    %v5384 = vsel %vm5271, %v5348, %v4983
    %v5385 = vsel %vm5271, %v5349, %v4985
    %v5386 = vsel %vm5271, %v5350, %v4987
    %v5387 = vsel %vm5271, %v5351, %v4989
    %v5388 = vsel %vm5271, %v5352, %v4991
    %v5389 = vsel %vm5271, %v5353, %v4993
    %v5390 = vsel %vm5271, %v5354, %v4995
    %v5391 = vsel %vm5271, %v5355, %v4997
    %v5392 = vsel %vm5271, %v5356, %v4999
    %v5393 = vsel %vm5271, %v5357, %v5001
    %v5394 = vsel %vm5271, %v5358, %v5003
    %v5395 = vsel %vm5271, %v5359, %v5005
    %v5396 = vsel %vm5271, %v5360, %v5007
    %v5397 = vsel %vm5271, %v5361, %v5009
    %v5398 = vsel %vm5271, %v5362, %v5011
    %v5399 = vsel %vm5271, %v5363, %v5013
    %v5400 = vsel %vm5271, %v5364, %v5015
    %v5401 = vsel %vm5271, %v5365, %v5017
    %v5402 = vsel %vm5271, %v5366, %v5019
    %v5403 = vsel %vm5271, %v5367, %v5021
    %v5404 = vsel %vm5271, %v5368, %v5023
    %v5405 = vsel %vm5271, %v5369, %v5025
    %v5406 = vsel %vm5271, %v5370, %v5027
    %v5407 = vsel %vm5271, %v5371, %v5029
    %v5408 = vsel %vm5271, %v5372, %v5031
    %v5409 = vsel %vm5271, %v5373, %v5033
    %v5410 = vsel %vm5271, %v5374, %v5035
    %v5411 = vsel %vm5271, %v5375, %v5037
    %v5412 = vsel %vm5271, %v5376, %v5039
    %v5413 = vsel %vm5271, %v5377, %v5041
    %v5414 = vsel %vm5271, %v5378, %v5043
    %v5415 = vsel %vm5271, %v5379, %v5045
    %v5416 = vld [vmem:[%s3] sm:$0xff]
    %v5417 = vld [vmem:[%s3 + $0x8] sm:$0xff]
    %v5418 = vld [vmem:[%s3 + $0x10] sm:$0xff]
    %v5419 = vld [vmem:[%s3 + $0x18] sm:$0xff]
    %v5420 = vld [vmem:[%s3 + $0x20] sm:$0xff]
    %v5421 = vld [vmem:[%s3 + $0x28] sm:$0xff]
    %v5422 = vld [vmem:[%s3 + $0x30] sm:$0xff]
    %v5423 = vld [vmem:[%s3 + $0x38] sm:$0xff]
    %v5424 = vld [vmem:[%s3 + $0x40] sm:$0xff]
    %v5425 = vld [vmem:[%s3 + $0x48] sm:$0xff]
    %v5426 = vld [vmem:[%s3 + $0x50] sm:$0xff]
    %v5427 = vld [vmem:[%s3 + $0x58] sm:$0xff]
    %v5428 = vld [vmem:[%s3 + $0x60] sm:$0xff]
    %v5429 = vld [vmem:[%s3 + $0x68] sm:$0xff]
    %v5430 = vld [vmem:[%s3 + $0x70] sm:$0xff]
    %v5431 = vld [vmem:[%s3 + $0x78] sm:$0xff]
    %v5432 = vld [vmem:[%s3 + $0x80] sm:$0xff]
    %v5433 = vld [vmem:[%s3 + $0x88] sm:$0xff]
    %v5434 = vld [vmem:[%s3 + $0x90] sm:$0xff]
    %v5435 = vld [vmem:[%s3 + $0x98] sm:$0xff]
    %v5436 = vld [vmem:[%s3 + $0xa0] sm:$0xff]
    %v5437 = vld [vmem:[%s3 + $0xa8] sm:$0xff]
    %v5438 = vld [vmem:[%s3 + $0xb0] sm:$0xff]
    %v5439 = vld [vmem:[%s3 + $0xb8] sm:$0xff]
    %v5440 = vld [vmem:[%s3 + $0xc0] sm:$0xff]
    %v5441 = vld [vmem:[%s3 + $0xc8] sm:$0xff]
    %v5442 = vld [vmem:[%s3 + $0xd0] sm:$0xff]
    %v5443 = vld [vmem:[%s3 + $0xd8] sm:$0xff]
    %v5444 = vld [vmem:[%s3 + $0xe0] sm:$0xff]
    %v5445 = vld [vmem:[%s3 + $0xe8] sm:$0xff]
    %v5446 = vld [vmem:[%s3 + $0xf0] sm:$0xff]
    %v5447 = vld [vmem:[%s3 + $0xf8] sm:$0xff]
    %v5448 = vld [vmem:[%s3 + $0x100] sm:$0xff]
    %v5449 = vld [vmem:[%s3 + $0x108] sm:$0xff]
    %v5450 = vld [vmem:[%s3 + $0x110] sm:$0xff]
    %v5451 = vld [vmem:[%s3 + $0x118] sm:$0xff]
    %v5452 = vld [vmem:[%s4] sm:$0x1]
    %v5454 = vperm.slane %v5452, 0
    %v5456 = vsel %vm5197, %v5097, 0
    %v5458 = vsel %vm5197, %v5098, 0
    %v5460 = vsel %vm5197, %v5099, 0
    %v5462 = vsel %vm5197, %v5100, 0
    %v5464 = vsel %vm5197, %v5109, 0
    %v5466 = vsel %vm5197, %v5110, 0
    %v5468 = vsel %vm5197, %v5111, 0
    %v5470 = vsel %vm5197, %v5112, 0
    %v5472 = vsel %vm5197, %v5121, 0
    %v5474 = vsel %vm5197, %v5122, 0
    %v5476 = vsel %vm5197, %v5123, 0
    %v5478 = vsel %vm5197, %v5124, 0
    %v5480 = vsel %vm5197, %v5133, 0
    %v5482 = vsel %vm5197, %v5134, 0
    %v5484 = vsel %vm5197, %v5135, 0
    %v5486 = vsel %vm5197, %v5136, 0
    %v5488 = vsel %vm5197, %v5145, 0
    %v5490 = vsel %vm5197, %v5146, 0
    %v5492 = vsel %vm5197, %v5147, 0
    %v5494 = vsel %vm5197, %v5148, 0
    %v5496 = vsel %vm5197, %v5157, 0
    %v5498 = vsel %vm5197, %v5158, 0
    %v5500 = vsel %vm5197, %v5159, 0
    %v5502 = vsel %vm5197, %v5160, 0
    %v5504 = vsel %vm5197, %v5169, 0
    %v5506 = vsel %vm5197, %v5170, 0
    %v5508 = vsel %vm5197, %v5171, 0
    %v5510 = vsel %vm5197, %v5172, 0
    %v5512 = vsel %vm5197, %v5181, 0
    %v5514 = vsel %vm5197, %v5182, 0
    %v5516 = vsel %vm5197, %v5183, 0
    %v5518 = vsel %vm5197, %v5184, 0
    %v5520 = vsel %vm5197, %v5193, 0
    %v5522 = vsel %vm5197, %v5194, 0
    %v5524 = vsel %vm5197, %v5195, 0
    %v5526 = vsel %vm5197, %v5196, 0
    %5528 = vmatpush.msra.mxu0 %v5431
    %5529 = vmatpush.msra.mxu0 %v5430
    %5530 = vmatpush.msra.mxu0 %v5429
    %5531 = vmatpush.msra.mxu0 %v5428
    %5532 = vmatpush.msra.mxu0 %v5427
    %5533 = vmatpush.msra.mxu0 %v5426
    %5534 = vmatpush.msra.mxu0 %v5425
    %5535 = vmatpush.msra.mxu0 %v5424
    %5536 = vmatpush.msra.mxu0 %v5423
    %5537 = vmatpush.msra.mxu0 %v5422
    %5538 = vmatpush.msra.mxu0 %v5421
    %5539 = vmatpush.msra.mxu0 %v5420
    %5540 = vmatpush.msra.mxu0 %v5419
    %5541 = vmatpush.msra.mxu0 %v5418
    %5542 = vmatpush.msra.mxu0 %v5417
    %5543 = vmatpush.msra.mxu0 %v5416
    %5544 = vmatmul.f32.gmra.mxu0 %v5272
    %v5545 = vpop.f32.mrf.mxu0
    %v5546 = vadd.f32 %v5454, %v5545
    %5547 = vmatmul.f32.gmra.mxu0 %v5273
    %v5548 = vpop.f32.mrf.mxu0
    %v5549 = vadd.f32 %v5454, %v5548
    %5550 = vmatmul.f32.gmra.mxu0 %v5274
    %v5551 = vpop.f32.mrf.mxu0
    %v5552 = vadd.f32 %v5454, %v5551
    %5553 = vmatmul.f32.gmra.mxu0 %v5275
    %v5554 = vpop.f32.mrf.mxu0
    %v5555 = vadd.f32 %v5454, %v5554
    %5556 = vmatmul.f32.gmra.mxu0 %v5276
    %v5557 = vpop.f32.mrf.mxu0
    %v5558 = vadd.f32 %v5454, %v5557
    %5559 = vmatmul.f32.gmra.mxu0 %v5277
    %v5560 = vpop.f32.mrf.mxu0
    %v5561 = vadd.f32 %v5454, %v5560
    %5562 = vmatmul.f32.gmra.mxu0 %v5278
    %v5563 = vpop.f32.mrf.mxu0
    %v5564 = vadd.f32 %v5454, %v5563
    %5565 = vmatmul.f32.gmra.mxu0 %v5279
    %v5566 = vpop.f32.mrf.mxu0
    %v5567 = vadd.f32 %v5454, %v5566
    %5568 = vmatmul.f32.gmra.mxu0 %v5280
    %v5569 = vpop.f32.mrf.mxu0
    %v5570 = vadd.f32 %v5454, %v5569
    %5571 = vmatmul.f32.gmra.mxu0 %v5281
    %v5572 = vpop.f32.mrf.mxu0
    %v5573 = vadd.f32 %v5454, %v5572
    %5574 = vmatmul.f32.gmra.mxu0 %v5282
    %v5575 = vpop.f32.mrf.mxu0
    %v5576 = vadd.f32 %v5454, %v5575
    %5577 = vmatmul.f32.gmra.mxu0 %v5283
    %v5578 = vpop.f32.mrf.mxu0
    %v5579 = vadd.f32 %v5454, %v5578
    %5580 = vmatmul.f32.gmra.mxu0 %v5284
    %v5581 = vpop.f32.mrf.mxu0
    %v5582 = vadd.f32 %v5454, %v5581
    %5583 = vmatmul.f32.gmra.mxu0 %v5285
    %v5584 = vpop.f32.mrf.mxu0
    %v5585 = vadd.f32 %v5454, %v5584
    %5586 = vmatmul.f32.gmra.mxu0 %v5286
    %v5587 = vpop.f32.mrf.mxu0
    %v5588 = vadd.f32 %v5454, %v5587
    %5589 = vmatmul.f32.gmra.mxu0 %v5287
    %v5590 = vpop.f32.mrf.mxu0
    %v5591 = vadd.f32 %v5454, %v5590
    %5592 = vmatmul.f32.gmra.mxu0 %v5288
    %v5593 = vpop.f32.mrf.mxu0
    %v5594 = vadd.f32 %v5454, %v5593
    %5595 = vmatmul.f32.gmra.mxu0 %v5289
    %v5596 = vpop.f32.mrf.mxu0
    %v5597 = vadd.f32 %v5454, %v5596
    %5598 = vmatmul.f32.gmra.mxu0 %v5290
    %v5599 = vpop.f32.mrf.mxu0
    %v5600 = vadd.f32 %v5454, %v5599
    %5601 = vmatmul.f32.gmra.mxu0 %v5291
    %v5602 = vpop.f32.mrf.mxu0
    %v5603 = vadd.f32 %v5454, %v5602
    %5604 = vmatmul.f32.gmra.mxu0 %v5292
    %v5605 = vpop.f32.mrf.mxu0
    %v5606 = vadd.f32 %v5454, %v5605
    %5607 = vmatmul.f32.gmra.mxu0 %v5293
    %v5608 = vpop.f32.mrf.mxu0
    %v5609 = vadd.f32 %v5454, %v5608
    %5610 = vmatmul.f32.gmra.mxu0 %v5294
    %v5611 = vpop.f32.mrf.mxu0
    %v5612 = vadd.f32 %v5454, %v5611
    %5613 = vmatmul.f32.gmra.mxu0 %v5295
    %v5614 = vpop.f32.mrf.mxu0
    %v5615 = vadd.f32 %v5454, %v5614
    %5616 = vmatmul.f32.gmra.mxu0 %v5296
    %v5617 = vpop.f32.mrf.mxu0
    %v5618 = vadd.f32 %v5454, %v5617
    %5619 = vmatmul.f32.gmra.mxu0 %v5297
    %v5620 = vpop.f32.mrf.mxu0
    %v5621 = vadd.f32 %v5454, %v5620
    %5622 = vmatmul.f32.gmra.mxu0 %v5298
    %v5623 = vpop.f32.mrf.mxu0
    %v5624 = vadd.f32 %v5454, %v5623
    %5625 = vmatmul.f32.gmra.mxu0 %v5299
    %v5626 = vpop.f32.mrf.mxu0
    %v5627 = vadd.f32 %v5454, %v5626
    %5628 = vmatmul.f32.gmra.mxu0 %v5300
    %v5629 = vpop.f32.mrf.mxu0
    %v5630 = vadd.f32 %v5454, %v5629
    %5631 = vmatmul.f32.gmra.mxu0 %v5301
    %v5632 = vpop.f32.mrf.mxu0
    %v5633 = vadd.f32 %v5454, %v5632
    %5634 = vmatmul.f32.gmra.mxu0 %v5302
    %v5635 = vpop.f32.mrf.mxu0
    %v5636 = vadd.f32 %v5454, %v5635
    %5637 = vmatmul.f32.gmra.mxu0 %v5303
    %v5638 = vpop.f32.mrf.mxu0
    %v5639 = vadd.f32 %v5454, %v5638
    %5640 = vmatmul.f32.gmra.mxu0 %v5304
    %v5641 = vpop.f32.mrf.mxu0
    %v5642 = vadd.f32 %v5454, %v5641
    %5643 = vmatmul.f32.gmra.mxu0 %v5305
    %v5644 = vpop.f32.mrf.mxu0
    %v5645 = vadd.f32 %v5454, %v5644
    %5646 = vmatmul.f32.gmra.mxu0 %v5306
    %v5647 = vpop.f32.mrf.mxu0
    %v5648 = vadd.f32 %v5454, %v5647
    %5649 = vmatmul.f32.gmra.mxu0 %v5307
    %v5650 = vpop.f32.mrf.mxu0
    %v5651 = vadd.f32 %v5454, %v5650
    %5652 = vdwg.mxu0
    %5653 = vmatpush.msra.mxu0 %v5447
    %5654 = vmatpush.msra.mxu0 %v5446
    %5655 = vmatpush.msra.mxu0 %v5445
    %5656 = vmatpush.msra.mxu0 %v5444
    %5657 = vmatpush.msra.mxu0 %v5443
    %5658 = vmatpush.msra.mxu0 %v5442
    %5659 = vmatpush.msra.mxu0 %v5441
    %5660 = vmatpush.msra.mxu0 %v5440
    %5661 = vmatpush.msra.mxu0 %v5439
    %5662 = vmatpush.msra.mxu0 %v5438
    %5663 = vmatpush.msra.mxu0 %v5437
    %5664 = vmatpush.msra.mxu0 %v5436
    %5665 = vmatpush.msra.mxu0 %v5435
    %5666 = vmatpush.msra.mxu0 %v5434
    %5667 = vmatpush.msra.mxu0 %v5433
    %5668 = vmatpush.msra.mxu0 %v5432
    %5669 = vmatmul.f32.gmra.mxu0 %v5380
    %v5670 = vpop.f32.mrf.mxu0
    %v5671 = vadd.f32 %v5546, %v5670
    %5672 = vmatmul.f32.gmra.mxu0 %v5381
    %v5673 = vpop.f32.mrf.mxu0
    %v5674 = vadd.f32 %v5549, %v5673
    %5675 = vmatmul.f32.gmra.mxu0 %v5382
    %v5676 = vpop.f32.mrf.mxu0
    %v5677 = vadd.f32 %v5552, %v5676
    %5678 = vmatmul.f32.gmra.mxu0 %v5383
    %v5679 = vpop.f32.mrf.mxu0
    %v5680 = vadd.f32 %v5555, %v5679
    %5681 = vmatmul.f32.gmra.mxu0 %v5384
    %v5682 = vpop.f32.mrf.mxu0
    %v5683 = vadd.f32 %v5558, %v5682
    %5684 = vmatmul.f32.gmra.mxu0 %v5385
    %v5685 = vpop.f32.mrf.mxu0
    %v5686 = vadd.f32 %v5561, %v5685
    %5687 = vmatmul.f32.gmra.mxu0 %v5386
    %v5688 = vpop.f32.mrf.mxu0
    %v5689 = vadd.f32 %v5564, %v5688
    %5690 = vmatmul.f32.gmra.mxu0 %v5387
    %v5691 = vpop.f32.mrf.mxu0
    %v5692 = vadd.f32 %v5567, %v5691
    %5693 = vmatmul.f32.gmra.mxu0 %v5388
    %v5694 = vpop.f32.mrf.mxu0
    %v5695 = vadd.f32 %v5570, %v5694
    %5696 = vmatmul.f32.gmra.mxu0 %v5389
    %v5697 = vpop.f32.mrf.mxu0
    %v5698 = vadd.f32 %v5573, %v5697
    %5699 = vmatmul.f32.gmra.mxu0 %v5390
    %v5700 = vpop.f32.mrf.mxu0
    %v5701 = vadd.f32 %v5576, %v5700
    %5702 = vmatmul.f32.gmra.mxu0 %v5391
    %v5703 = vpop.f32.mrf.mxu0
    %v5704 = vadd.f32 %v5579, %v5703
    %5705 = vmatmul.f32.gmra.mxu0 %v5392
    %v5706 = vpop.f32.mrf.mxu0
    %v5707 = vadd.f32 %v5582, %v5706
    %5708 = vmatmul.f32.gmra.mxu0 %v5393
    %v5709 = vpop.f32.mrf.mxu0
    %v5710 = vadd.f32 %v5585, %v5709
    %5711 = vmatmul.f32.gmra.mxu0 %v5394
    %v5712 = vpop.f32.mrf.mxu0
    %v5713 = vadd.f32 %v5588, %v5712
    %5714 = vmatmul.f32.gmra.mxu0 %v5395
    %v5715 = vpop.f32.mrf.mxu0
    %v5716 = vadd.f32 %v5591, %v5715
    %5717 = vmatmul.f32.gmra.mxu0 %v5396
    %v5718 = vpop.f32.mrf.mxu0
    %v5719 = vadd.f32 %v5594, %v5718
    %5720 = vmatmul.f32.gmra.mxu0 %v5397
    %v5721 = vpop.f32.mrf.mxu0
    %v5722 = vadd.f32 %v5597, %v5721
    %5723 = vmatmul.f32.gmra.mxu0 %v5398
    %v5724 = vpop.f32.mrf.mxu0
    %v5725 = vadd.f32 %v5600, %v5724
    %5726 = vmatmul.f32.gmra.mxu0 %v5399
    %v5727 = vpop.f32.mrf.mxu0
    %v5728 = vadd.f32 %v5603, %v5727
    %5729 = vmatmul.f32.gmra.mxu0 %v5400
    %v5730 = vpop.f32.mrf.mxu0
    %v5731 = vadd.f32 %v5606, %v5730
    %5732 = vmatmul.f32.gmra.mxu0 %v5401
    %v5733 = vpop.f32.mrf.mxu0
    %v5734 = vadd.f32 %v5609, %v5733
    %5735 = vmatmul.f32.gmra.mxu0 %v5402
    %v5736 = vpop.f32.mrf.mxu0
    %v5737 = vadd.f32 %v5612, %v5736
    %5738 = vmatmul.f32.gmra.mxu0 %v5403
    %v5739 = vpop.f32.mrf.mxu0
    %v5740 = vadd.f32 %v5615, %v5739
    %5741 = vmatmul.f32.gmra.mxu0 %v5404
    %v5742 = vpop.f32.mrf.mxu0
    %v5743 = vadd.f32 %v5618, %v5742
    %5744 = vmatmul.f32.gmra.mxu0 %v5405
    %v5745 = vpop.f32.mrf.mxu0
    %v5746 = vadd.f32 %v5621, %v5745
    %5747 = vmatmul.f32.gmra.mxu0 %v5406
    %v5748 = vpop.f32.mrf.mxu0
    %v5749 = vadd.f32 %v5624, %v5748
    %5750 = vmatmul.f32.gmra.mxu0 %v5407
    %v5751 = vpop.f32.mrf.mxu0
    %v5752 = vadd.f32 %v5627, %v5751
    %5753 = vmatmul.f32.gmra.mxu0 %v5408
    %v5754 = vpop.f32.mrf.mxu0
    %v5755 = vadd.f32 %v5630, %v5754
    %5756 = vmatmul.f32.gmra.mxu0 %v5409
    %v5757 = vpop.f32.mrf.mxu0
    %v5758 = vadd.f32 %v5633, %v5757
    %5759 = vmatmul.f32.gmra.mxu0 %v5410
    %v5760 = vpop.f32.mrf.mxu0
    %v5761 = vadd.f32 %v5636, %v5760
    %5762 = vmatmul.f32.gmra.mxu0 %v5411
    %v5763 = vpop.f32.mrf.mxu0
    %v5764 = vadd.f32 %v5639, %v5763
    %5765 = vmatmul.f32.gmra.mxu0 %v5412
    %v5766 = vpop.f32.mrf.mxu0
    %v5767 = vadd.f32 %v5642, %v5766
    %5768 = vmatmul.f32.gmra.mxu0 %v5413
    %v5769 = vpop.f32.mrf.mxu0
    %v5770 = vadd.f32 %v5645, %v5769
    %5771 = vmatmul.f32.gmra.mxu0 %v5414
    %v5772 = vpop.f32.mrf.mxu0
    %v5773 = vadd.f32 %v5648, %v5772
    %5774 = vmatmul.f32.gmra.mxu0 %v5415
    %v5775 = vpop.f32.mrf.mxu0
    %v5776 = vadd.f32 %v5651, %v5775
    %5777 = vdwg.mxu0
    %5778 = vmatpush.msra.mxu0 0.0
    %5779 = vmatpush.msra.mxu0 0.0
    %5780 = vmatpush.msra.mxu0 0.0
    %5781 = vmatpush.msra.mxu0 0.0
    %5782 = vmatpush.msra.mxu0 0.0
    %5783 = vmatpush.msra.mxu0 0.0
    %5784 = vmatpush.msra.mxu0 0.0
    %5785 = vmatpush.msra.mxu0 0.0
    %5786 = vmatpush.msra.mxu0 0.0
    %5787 = vmatpush.msra.mxu0 0.0
    %5788 = vmatpush.msra.mxu0 0.0
    %5789 = vmatpush.msra.mxu0 0.0
    %5790 = vmatpush.msra.mxu0 %v5451
    %5791 = vmatpush.msra.mxu0 %v5450
    %5792 = vmatpush.msra.mxu0 %v5449
    %5793 = vmatpush.msra.mxu0 %v5448
    %5794 = vmatmul.f32.gmra.mxu0 %v5456
    %v5795 = vpop.f32.mrf.mxu0
    %v5796 = vadd.f32 %v5671, %v5795
    %5797 = vmatmul.f32.gmra.mxu0 %v5458
    %v5798 = vpop.f32.mrf.mxu0
    %v5799 = vadd.f32 %v5674, %v5798
    %5800 = vmatmul.f32.gmra.mxu0 %v5460
    %v5801 = vpop.f32.mrf.mxu0
    %v5802 = vadd.f32 %v5677, %v5801
    %5803 = vmatmul.f32.gmra.mxu0 %v5462
    %v5804 = vpop.f32.mrf.mxu0
    %v5805 = vadd.f32 %v5680, %v5804
    %5806 = vmatmul.f32.gmra.mxu0 %v5464
    %v5807 = vpop.f32.mrf.mxu0
    %v5808 = vadd.f32 %v5683, %v5807
    %5809 = vmatmul.f32.gmra.mxu0 %v5466
    %v5810 = vpop.f32.mrf.mxu0
    %v5811 = vadd.f32 %v5686, %v5810
    %5812 = vmatmul.f32.gmra.mxu0 %v5468
    %v5813 = vpop.f32.mrf.mxu0
    %v5814 = vadd.f32 %v5689, %v5813
    %5815 = vmatmul.f32.gmra.mxu0 %v5470
    %v5816 = vpop.f32.mrf.mxu0
    %v5817 = vadd.f32 %v5692, %v5816
    %5818 = vmatmul.f32.gmra.mxu0 %v5472
    %v5819 = vpop.f32.mrf.mxu0
    %v5820 = vadd.f32 %v5695, %v5819
    %5821 = vmatmul.f32.gmra.mxu0 %v5474
    %v5822 = vpop.f32.mrf.mxu0
    %v5823 = vadd.f32 %v5698, %v5822
    %5824 = vmatmul.f32.gmra.mxu0 %v5476
    %v5825 = vpop.f32.mrf.mxu0
    %v5826 = vadd.f32 %v5701, %v5825
    %5827 = vmatmul.f32.gmra.mxu0 %v5478
    %v5828 = vpop.f32.mrf.mxu0
    %v5829 = vadd.f32 %v5704, %v5828
    %5830 = vmatmul.f32.gmra.mxu0 %v5480
    %v5831 = vpop.f32.mrf.mxu0
    %v5832 = vadd.f32 %v5707, %v5831
    %5833 = vmatmul.f32.gmra.mxu0 %v5482
    %v5834 = vpop.f32.mrf.mxu0
    %v5835 = vadd.f32 %v5710, %v5834
    %5836 = vmatmul.f32.gmra.mxu0 %v5484
    %v5837 = vpop.f32.mrf.mxu0
    %v5838 = vadd.f32 %v5713, %v5837
    %5839 = vmatmul.f32.gmra.mxu0 %v5486
    %v5840 = vpop.f32.mrf.mxu0
    %v5841 = vadd.f32 %v5716, %v5840
    %5842 = vmatmul.f32.gmra.mxu0 %v5488
    %v5843 = vpop.f32.mrf.mxu0
    %v5844 = vadd.f32 %v5719, %v5843
    %5845 = vmatmul.f32.gmra.mxu0 %v5490
    %v5846 = vpop.f32.mrf.mxu0
    %v5847 = vadd.f32 %v5722, %v5846
    %5848 = vmatmul.f32.gmra.mxu0 %v5492
    %v5849 = vpop.f32.mrf.mxu0
    %v5850 = vadd.f32 %v5725, %v5849
    %5851 = vmatmul.f32.gmra.mxu0 %v5494
    %v5852 = vpop.f32.mrf.mxu0
    %v5853 = vadd.f32 %v5728, %v5852
    %5854 = vmatmul.f32.gmra.mxu0 %v5496
    %v5855 = vpop.f32.mrf.mxu0
    %v5856 = vadd.f32 %v5731, %v5855
    %5857 = vmatmul.f32.gmra.mxu0 %v5498
    %v5858 = vpop.f32.mrf.mxu0
    %v5859 = vadd.f32 %v5734, %v5858
    %5860 = vmatmul.f32.gmra.mxu0 %v5500
    %v5861 = vpop.f32.mrf.mxu0
    %v5862 = vadd.f32 %v5737, %v5861
    %5863 = vmatmul.f32.gmra.mxu0 %v5502
    %v5864 = vpop.f32.mrf.mxu0
    %v5865 = vadd.f32 %v5740, %v5864
    %5866 = vmatmul.f32.gmra.mxu0 %v5504
    %v5867 = vpop.f32.mrf.mxu0
    %v5868 = vadd.f32 %v5743, %v5867
    %5869 = vmatmul.f32.gmra.mxu0 %v5506
    %v5870 = vpop.f32.mrf.mxu0
    %v5871 = vadd.f32 %v5746, %v5870
    %5872 = vmatmul.f32.gmra.mxu0 %v5508
    %v5873 = vpop.f32.mrf.mxu0
    %v5874 = vadd.f32 %v5749, %v5873
    %5875 = vmatmul.f32.gmra.mxu0 %v5510
    %v5876 = vpop.f32.mrf.mxu0
    %v5877 = vadd.f32 %v5752, %v5876
    %5878 = vmatmul.f32.gmra.mxu0 %v5512
    %v5879 = vpop.f32.mrf.mxu0
    %v5880 = vadd.f32 %v5755, %v5879
    %5881 = vmatmul.f32.gmra.mxu0 %v5514
    %v5882 = vpop.f32.mrf.mxu0
    %v5883 = vadd.f32 %v5758, %v5882
    %5884 = vmatmul.f32.gmra.mxu0 %v5516
    %v5885 = vpop.f32.mrf.mxu0
    %v5886 = vadd.f32 %v5761, %v5885
    %5887 = vmatmul.f32.gmra.mxu0 %v5518
    %v5888 = vpop.f32.mrf.mxu0
    %v5889 = vadd.f32 %v5764, %v5888
    %5890 = vmatmul.f32.gmra.mxu0 %v5520
    %v5891 = vpop.f32.mrf.mxu0
    %v5892 = vadd.f32 %v5767, %v5891
    %5893 = vmatmul.f32.gmra.mxu0 %v5522
    %v5894 = vpop.f32.mrf.mxu0
    %v5895 = vadd.f32 %v5770, %v5894
    %5896 = vmatmul.f32.gmra.mxu0 %v5524
    %v5897 = vpop.f32.mrf.mxu0
    %v5898 = vadd.f32 %v5773, %v5897
    %5899 = vmatmul.f32.gmra.mxu0 %v5526
    %v5900 = vpop.f32.mrf.mxu0
    %v5901 = vadd.f32 %v5776, %v5900
    %5902 = vdwg.mxu0
    %v5903 = vmax.f32 %v5796, 0.0
    %v5904 = vmax.f32 %v5799, 0.0
    %v5905 = vmax.f32 %v5802, 0.0
    %v5906 = vmax.f32 %v5805, 0.0
    %v5907 = vmax.f32 %v5808, 0.0
    %v5908 = vmax.f32 %v5811, 0.0
    %v5909 = vmax.f32 %v5814, 0.0
    %v5910 = vmax.f32 %v5817, 0.0
    %v5911 = vmax.f32 %v5820, 0.0
    %v5912 = vmax.f32 %v5823, 0.0
    %v5913 = vmax.f32 %v5826, 0.0
    %v5914 = vmax.f32 %v5829, 0.0
    %v5915 = vmax.f32 %v5832, 0.0
    %v5916 = vmax.f32 %v5835, 0.0
    %v5917 = vmax.f32 %v5838, 0.0
    %v5918 = vmax.f32 %v5841, 0.0
    %v5919 = vmax.f32 %v5844, 0.0
    %v5920 = vmax.f32 %v5847, 0.0
    %v5921 = vmax.f32 %v5850, 0.0
    %v5922 = vmax.f32 %v5853, 0.0
    %v5923 = vmax.f32 %v5856, 0.0
    %v5924 = vmax.f32 %v5859, 0.0
    %v5925 = vmax.f32 %v5862, 0.0
    %v5926 = vmax.f32 %v5865, 0.0
    %v5927 = vmax.f32 %v5868, 0.0
    %v5928 = vmax.f32 %v5871, 0.0
    %v5929 = vmax.f32 %v5874, 0.0
    %v5930 = vmax.f32 %v5877, 0.0
    %v5931 = vmax.f32 %v5880, 0.0
    %v5932 = vmax.f32 %v5883, 0.0
    %v5933 = vmax.f32 %v5886, 0.0
    %v5934 = vmax.f32 %v5889, 0.0
    %v5935 = vmax.f32 %v5892, 0.0
    %v5936 = vmax.f32 %v5895, 0.0
    %v5937 = vmax.f32 %v5898, 0.0
    %v5938 = vmax.f32 %v5901, 0.0
    %v5975 = vrot.slane %v5903, 4
    %v5976 = vrot.slane %v5904, 4
    %v5977 = vrot.slane %v5905, 4
    %v5978 = vrot.slane %v5906, 4
    %v5979 = vrot.slane %v5907, 4
    %v5980 = vrot.slane %v5908, 4
    %v5981 = vrot.slane %v5909, 4
    %v5982 = vrot.slane %v5910, 4
    %v5983 = vrot.slane %v5911, 4
    %v5984 = vrot.slane %v5912, 4
    %v5985 = vrot.slane %v5913, 4
    %v5986 = vrot.slane %v5914, 4
    %v5987 = vrot.slane %v5915, 4
    %v5988 = vrot.slane %v5916, 4
    %v5989 = vrot.slane %v5917, 4
    %v5990 = vrot.slane %v5918, 4
    %v5991 = vrot.slane %v5919, 4
    %v5992 = vrot.slane %v5920, 4
    %v5993 = vrot.slane %v5921, 4
    %v5994 = vrot.slane %v5922, 4
    %v5995 = vrot.slane %v5923, 4
    %v5996 = vrot.slane %v5924, 4
    %v5997 = vrot.slane %v5925, 4
    %v5998 = vrot.slane %v5926, 4
    %v5999 = vrot.slane %v5927, 4
    %v6000 = vrot.slane %v5928, 4
    %v6001 = vrot.slane %v5929, 4
    %v6002 = vrot.slane %v5930, 4
    %v6003 = vrot.slane %v5931, 4
    %v6004 = vrot.slane %v5932, 4
    %v6005 = vrot.slane %v5933, 4
    %v6006 = vrot.slane %v5934, 4
    %v6007 = vrot.slane %v5935, 4
    %v6008 = vrot.slane %v5936, 4
    %v6009 = vrot.slane %v5937, 4
    %v6010 = vrot.slane %v5938, 4
    %v6047 = vmax.f32 %v5903, %v5976
    %v6048 = vmax.f32 %v5975, %v5905
    %v6049 = vmax.f32 %v5904, %v5977
    %v6050 = vmax.f32 %v5906, %v5979
    %v6051 = vmax.f32 %v5978, %v5908
    %v6052 = vmax.f32 %v5907, %v5980
    %v6053 = vmax.f32 %v5909, %v5982
    %v6054 = vmax.f32 %v5981, %v5911
    %v6055 = vmax.f32 %v5910, %v5983
    %v6056 = vmax.f32 %v5912, %v5985
    %v6057 = vmax.f32 %v5984, %v5914
    %v6058 = vmax.f32 %v5913, %v5986
    %v6059 = vmax.f32 %v5915, %v5988
    %v6060 = vmax.f32 %v5987, %v5917
    %v6061 = vmax.f32 %v5916, %v5989
    %v6062 = vmax.f32 %v5918, %v5991
    %v6063 = vmax.f32 %v5990, %v5920
    %v6064 = vmax.f32 %v5919, %v5992
    %v6065 = vmax.f32 %v5921, %v5994
    %v6066 = vmax.f32 %v5993, %v5923
    %v6067 = vmax.f32 %v5922, %v5995
    %v6068 = vmax.f32 %v5924, %v5997
    %v6069 = vmax.f32 %v5996, %v5926
    %v6070 = vmax.f32 %v5925, %v5998
    %v6071 = vmax.f32 %v5927, %v6000
    %v6072 = vmax.f32 %v5999, %v5929
    %v6073 = vmax.f32 %v5928, %v6001
    %v6074 = vmax.f32 %v5930, %v6003
    %v6075 = vmax.f32 %v6002, %v5932
    %v6076 = vmax.f32 %v5931, %v6004
    %v6077 = vmax.f32 %v5933, %v6006
    %v6078 = vmax.f32 %v6005, %v5935
    %v6079 = vmax.f32 %v5934, %v6007
    %v6080 = vmax.f32 %v5936, %v6009
    %v6081 = vmax.f32 %v6008, %v5938
    %v6082 = vmax.f32 %v5937, %v6010
    %v6085 = vrot.slane %v6047, 5
    %v6086 = vrot.slane %v6085, 4
    %v6087 = vrot.slane %v6065, 5
    %v6088 = vrot.slane %v6087, 4
    %v6091 = vmax.f32 %v6047, %v6086
    %v6092 = vmax.f32 %v6065, %v6088
    %v6095 = vrot.slane %v6048, 5
    %v6096 = vrot.slane %v6095, 4
    %v6097 = vrot.slane %v6066, 5
    %v6098 = vrot.slane %v6097, 4
    %v6101 = vmax.f32 %v6048, %v6096
    %v6102 = vmax.f32 %v6066, %v6098
    %v6105 = vrot.slane %v6049, 5
    %v6106 = vrot.slane %v6105, 4
    %v6107 = vrot.slane %v6067, 5
    %v6108 = vrot.slane %v6107, 4
    %v6111 = vmax.f32 %v6049, %v6106
    %v6112 = vmax.f32 %v6067, %v6108
    %v6115 = vrot.slane %v6050, 5
    %v6116 = vrot.slane %v6115, 4
    %v6117 = vrot.slane %v6068, 5
    %v6118 = vrot.slane %v6117, 4
    %v6121 = vmax.f32 %v6050, %v6116
    %v6122 = vmax.f32 %v6068, %v6118
    %v6125 = vrot.slane %v6051, 5
    %v6126 = vrot.slane %v6125, 4
    %v6127 = vrot.slane %v6069, 5
    %v6128 = vrot.slane %v6127, 4
    %v6131 = vmax.f32 %v6051, %v6126
    %v6132 = vmax.f32 %v6069, %v6128
    %v6135 = vrot.slane %v6052, 5
    %v6136 = vrot.slane %v6135, 4
    %v6137 = vrot.slane %v6070, 5
    %v6138 = vrot.slane %v6137, 4
    %v6141 = vmax.f32 %v6052, %v6136
    %v6142 = vmax.f32 %v6070, %v6138
    %v6145 = vrot.slane %v6053, 5
    %v6146 = vrot.slane %v6145, 4
    %v6147 = vrot.slane %v6071, 5
    %v6148 = vrot.slane %v6147, 4
    %v6151 = vmax.f32 %v6053, %v6146
    %v6152 = vmax.f32 %v6071, %v6148
    %v6155 = vrot.slane %v6054, 5
    %v6156 = vrot.slane %v6155, 4
    %v6157 = vrot.slane %v6072, 5
    %v6158 = vrot.slane %v6157, 4
    %v6161 = vmax.f32 %v6054, %v6156
    %v6162 = vmax.f32 %v6072, %v6158
    %v6165 = vrot.slane %v6055, 5
    %v6166 = vrot.slane %v6165, 4
    %v6167 = vrot.slane %v6073, 5
    %v6168 = vrot.slane %v6167, 4
    %v6171 = vmax.f32 %v6055, %v6166
    %v6172 = vmax.f32 %v6073, %v6168
    %v6175 = vrot.slane %v6056, 5
    %v6176 = vrot.slane %v6175, 4
    %v6177 = vrot.slane %v6074, 5
    %v6178 = vrot.slane %v6177, 4
    %v6181 = vmax.f32 %v6056, %v6176
    %v6182 = vmax.f32 %v6074, %v6178
    %v6185 = vrot.slane %v6057, 5
    %v6186 = vrot.slane %v6185, 4
    %v6187 = vrot.slane %v6075, 5
    %v6188 = vrot.slane %v6187, 4
    %v6191 = vmax.f32 %v6057, %v6186
    %v6192 = vmax.f32 %v6075, %v6188
    %v6195 = vrot.slane %v6058, 5
    %v6196 = vrot.slane %v6195, 4
    %v6197 = vrot.slane %v6076, 5
    %v6198 = vrot.slane %v6197, 4
    %v6201 = vmax.f32 %v6058, %v6196
    %v6202 = vmax.f32 %v6076, %v6198
    %v6205 = vrot.slane %v6059, 5
    %v6206 = vrot.slane %v6205, 4
    %v6207 = vrot.slane %v6077, 5
    %v6208 = vrot.slane %v6207, 4
    %v6211 = vmax.f32 %v6059, %v6206
    %v6212 = vmax.f32 %v6077, %v6208
    %v6215 = vrot.slane %v6060, 5
    %v6216 = vrot.slane %v6215, 4
    %v6217 = vrot.slane %v6078, 5
    %v6218 = vrot.slane %v6217, 4
    %v6221 = vmax.f32 %v6060, %v6216
    %v6222 = vmax.f32 %v6078, %v6218
    %v6225 = vrot.slane %v6061, 5
    %v6226 = vrot.slane %v6225, 4
    %v6227 = vrot.slane %v6079, 5
    %v6228 = vrot.slane %v6227, 4
    %v6231 = vmax.f32 %v6061, %v6226
    %v6232 = vmax.f32 %v6079, %v6228
    %v6235 = vrot.slane %v6062, 5
    %v6236 = vrot.slane %v6235, 4
    %v6237 = vrot.slane %v6080, 5
    %v6238 = vrot.slane %v6237, 4
    %v6241 = vmax.f32 %v6062, %v6236
    %v6242 = vmax.f32 %v6080, %v6238
    %v6245 = vrot.slane %v6063, 5
    %v6246 = vrot.slane %v6245, 4
    %v6247 = vrot.slane %v6081, 5
    %v6248 = vrot.slane %v6247, 4
    %v6251 = vmax.f32 %v6063, %v6246
    %v6252 = vmax.f32 %v6081, %v6248
    %v6255 = vrot.slane %v6064, 5
    %v6256 = vrot.slane %v6255, 4
    %v6257 = vrot.slane %v6082, 5
    %v6258 = vrot.slane %v6257, 4
    %v6261 = vmax.f32 %v6064, %v6256
    %v6262 = vmax.f32 %v6082, %v6258
    %v6265 = vperm.slane %v6091, 0
    %v6266 = vperm.slane %v6092, 0
    %vm6267 = vcmask 1041409
    %v6268 = vsel %vm6267, %v6266, %v6265
    %v6270 = vperm.slane %v6091, 2
    %v6271 = vperm.slane %v6092, 2
    %v6272 = vsel %vm6267, %v6271, %v6270
    %6273 = vrot.lane.b32.xlu0 %v6272, 32
    %v6274 = vpop.permute.xlu0 %6273
    %v6278 = vperm.slane %v6101, 0
    %v6279 = vperm.slane %v6102, 0
    %v6280 = vsel %vm6267, %v6279, %v6278
    %6281 = vrot.lane.b32.xlu0 %v6280, 64
    %v6282 = vpop.permute.xlu0 %6281
    %v6284 = vperm.slane %v6101, 2
    %v6285 = vperm.slane %v6102, 2
    %v6286 = vsel %vm6267, %v6285, %v6284
    %6287 = vrot.lane.b32.xlu0 %v6286, 96
    %v6288 = vpop.permute.xlu0 %6287
    %v6292 = vperm.slane %v6111, 0
    %v6293 = vperm.slane %v6112, 0
    %v6294 = vsel %vm6267, %v6293, %v6292
    %v6296 = vperm.slane %v6111, 2
    %v6297 = vperm.slane %v6112, 2
    %v6298 = vsel %vm6267, %v6297, %v6296
    %6299 = vrot.lane.b32.xlu0 %v6298, 32
    %v6300 = vpop.permute.xlu0 %6299
    %v6304 = vperm.slane %v6121, 0
    %v6305 = vperm.slane %v6122, 0
    %v6306 = vsel %vm6267, %v6305, %v6304
    %6307 = vrot.lane.b32.xlu0 %v6306, 64
    %v6308 = vpop.permute.xlu0 %6307
    %v6310 = vperm.slane %v6121, 2
    %v6311 = vperm.slane %v6122, 2
    %v6312 = vsel %vm6267, %v6311, %v6310
    %6313 = vrot.lane.b32.xlu0 %v6312, 96
    %v6314 = vpop.permute.xlu0 %6313
    %v6318 = vperm.slane %v6131, 0
    %v6319 = vperm.slane %v6132, 0
    %v6320 = vsel %vm6267, %v6319, %v6318
    %v6322 = vperm.slane %v6131, 2
    %v6323 = vperm.slane %v6132, 2
    %v6324 = vsel %vm6267, %v6323, %v6322
    %6325 = vrot.lane.b32.xlu0 %v6324, 32
    %v6326 = vpop.permute.xlu0 %6325
    %v6330 = vperm.slane %v6141, 0
    %v6331 = vperm.slane %v6142, 0
    %v6332 = vsel %vm6267, %v6331, %v6330
    %6333 = vrot.lane.b32.xlu0 %v6332, 64
    %v6334 = vpop.permute.xlu0 %6333
    %v6336 = vperm.slane %v6141, 2
    %v6337 = vperm.slane %v6142, 2
    %v6338 = vsel %vm6267, %v6337, %v6336
    %6339 = vrot.lane.b32.xlu0 %v6338, 96
    %v6340 = vpop.permute.xlu0 %6339
    %v6344 = vperm.slane %v6151, 0
    %v6345 = vperm.slane %v6152, 0
    %v6346 = vsel %vm6267, %v6345, %v6344
    %v6348 = vperm.slane %v6151, 2
    %v6349 = vperm.slane %v6152, 2
    %v6350 = vsel %vm6267, %v6349, %v6348
    %6351 = vrot.lane.b32.xlu0 %v6350, 32
    %v6352 = vpop.permute.xlu0 %6351
    %v6356 = vperm.slane %v6161, 0
    %v6357 = vperm.slane %v6162, 0
    %v6358 = vsel %vm6267, %v6357, %v6356
    %6359 = vrot.lane.b32.xlu0 %v6358, 64
    %v6360 = vpop.permute.xlu0 %6359
    %v6362 = vperm.slane %v6161, 2
    %v6363 = vperm.slane %v6162, 2
    %v6364 = vsel %vm6267, %v6363, %v6362
    %6365 = vrot.lane.b32.xlu0 %v6364, 96
    %v6366 = vpop.permute.xlu0 %6365
    %v6368 = vsel %vm5197, %v6268, %v6274
    %v6369 = vsel %vm5234, %v6368, %v6282
    %v6370 = vsel %vm5271, %v6369, %v6288
    %v6371 = vsel %vm5197, %v6294, %v6300
    %v6372 = vsel %vm5234, %v6371, %v6308
    %v6373 = vsel %vm5271, %v6372, %v6314
    %v6374 = vsel %vm5197, %v6320, %v6326
    %v6375 = vsel %vm5234, %v6374, %v6334
    %v6376 = vsel %vm5271, %v6375, %v6340
    %v6377 = vsel %vm5197, %v6346, %v6352
    %v6378 = vsel %vm5234, %v6377, %v6360
    %v6379 = vsel %vm5271, %v6378, %v6366
    %v6382 = vperm.slane %v6171, 0
    %v6383 = vperm.slane %v6172, 0
    %v6384 = vsel %vm6267, %v6383, %v6382
    %v6386 = vperm.slane %v6171, 2
    %v6387 = vperm.slane %v6172, 2
    %v6388 = vsel %vm6267, %v6387, %v6386
    %6389 = vrot.lane.b32.xlu0 %v6388, 32
    %v6390 = vpop.permute.xlu0 %6389
    %v6394 = vperm.slane %v6181, 0
    %v6395 = vperm.slane %v6182, 0
    %v6396 = vsel %vm6267, %v6395, %v6394
    %6397 = vrot.lane.b32.xlu0 %v6396, 64
    %v6398 = vpop.permute.xlu0 %6397
    %v6400 = vperm.slane %v6181, 2
    %v6401 = vperm.slane %v6182, 2
    %v6402 = vsel %vm6267, %v6401, %v6400
    %6403 = vrot.lane.b32.xlu0 %v6402, 96
    %v6404 = vpop.permute.xlu0 %6403
    %v6408 = vperm.slane %v6191, 0
    %v6409 = vperm.slane %v6192, 0
    %v6410 = vsel %vm6267, %v6409, %v6408
    %v6412 = vperm.slane %v6191, 2
    %v6413 = vperm.slane %v6192, 2
    %v6414 = vsel %vm6267, %v6413, %v6412
    %6415 = vrot.lane.b32.xlu0 %v6414, 32
    %v6416 = vpop.permute.xlu0 %6415
    %v6420 = vperm.slane %v6201, 0
    %v6421 = vperm.slane %v6202, 0
    %v6422 = vsel %vm6267, %v6421, %v6420
    %6423 = vrot.lane.b32.xlu0 %v6422, 64
    %v6424 = vpop.permute.xlu0 %6423
    %v6426 = vperm.slane %v6201, 2
    %v6427 = vperm.slane %v6202, 2
    %v6428 = vsel %vm6267, %v6427, %v6426
    %6429 = vrot.lane.b32.xlu0 %v6428, 96
    %v6430 = vpop.permute.xlu0 %6429
    %v6434 = vperm.slane %v6211, 0
    %v6435 = vperm.slane %v6212, 0
    %v6436 = vsel %vm6267, %v6435, %v6434
    %v6438 = vperm.slane %v6211, 2
    %v6439 = vperm.slane %v6212, 2
    %v6440 = vsel %vm6267, %v6439, %v6438
    %6441 = vrot.lane.b32.xlu0 %v6440, 32
    %v6442 = vpop.permute.xlu0 %6441
    %v6446 = vperm.slane %v6221, 0
    %v6447 = vperm.slane %v6222, 0
    %v6448 = vsel %vm6267, %v6447, %v6446
    %6449 = vrot.lane.b32.xlu0 %v6448, 64
    %v6450 = vpop.permute.xlu0 %6449
    %v6452 = vperm.slane %v6221, 2
    %v6453 = vperm.slane %v6222, 2
    %v6454 = vsel %vm6267, %v6453, %v6452
    %6455 = vrot.lane.b32.xlu0 %v6454, 96
    %v6456 = vpop.permute.xlu0 %6455
    %v6460 = vperm.slane %v6231, 0
    %v6461 = vperm.slane %v6232, 0
    %v6462 = vsel %vm6267, %v6461, %v6460
    %v6464 = vperm.slane %v6231, 2
    %v6465 = vperm.slane %v6232, 2
    %v6466 = vsel %vm6267, %v6465, %v6464
    %6467 = vrot.lane.b32.xlu0 %v6466, 32
    %v6468 = vpop.permute.xlu0 %6467
    %v6472 = vperm.slane %v6241, 0
    %v6473 = vperm.slane %v6242, 0
    %v6474 = vsel %vm6267, %v6473, %v6472
    %6475 = vrot.lane.b32.xlu0 %v6474, 64
    %v6476 = vpop.permute.xlu0 %6475
    %v6478 = vperm.slane %v6241, 2
    %v6479 = vperm.slane %v6242, 2
    %v6480 = vsel %vm6267, %v6479, %v6478
    %6481 = vrot.lane.b32.xlu0 %v6480, 96
    %v6482 = vpop.permute.xlu0 %6481
    %v6484 = vsel %vm5197, %v6384, %v6390
    %v6485 = vsel %vm5234, %v6484, %v6398
    %v6486 = vsel %vm5271, %v6485, %v6404
    %v6487 = vsel %vm5197, %v6410, %v6416
    %v6488 = vsel %vm5234, %v6487, %v6424
    %v6489 = vsel %vm5271, %v6488, %v6430
    %v6490 = vsel %vm5197, %v6436, %v6442
    %v6491 = vsel %vm5234, %v6490, %v6450
    %v6492 = vsel %vm5271, %v6491, %v6456
    %v6493 = vsel %vm5197, %v6462, %v6468
    %v6494 = vsel %vm5234, %v6493, %v6476
    %v6495 = vsel %vm5271, %v6494, %v6482
    %v6498 = vperm.slane %v6251, 0
    %v6499 = vperm.slane %v6252, 0
    %v6500 = vsel %vm6267, %v6499, %v6498
    %v6502 = vperm.slane %v6251, 2
    %v6503 = vperm.slane %v6252, 2
    %v6504 = vsel %vm6267, %v6503, %v6502
    %6505 = vrot.lane.b32.xlu0 %v6504, 32
    %v6506 = vpop.permute.xlu0 %6505
    %v6510 = vperm.slane %v6261, 0
    %v6511 = vperm.slane %v6262, 0
    %v6512 = vsel %vm6267, %v6511, %v6510
    %6513 = vrot.lane.b32.xlu0 %v6512, 64
    %v6514 = vpop.permute.xlu0 %6513
    %v6516 = vperm.slane %v6261, 2
    %v6517 = vperm.slane %v6262, 2
    %v6518 = vsel %vm6267, %v6517, %v6516
    %6519 = vrot.lane.b32.xlu0 %v6518, 96
    %v6520 = vpop.permute.xlu0 %6519
    %v6522 = vsel %vm5197, %v6500, %v6506
    %v6523 = vsel %vm5234, %v6522, %v6514
    %v6524 = vsel %vm5271, %v6523, %v6520
    %v6525 = vld [vmem:[%s5] sm:$0xff]
    %v6526 = vld [vmem:[%s5 + $0x8] sm:$0xff]
    %v6527 = vld [vmem:[%s5 + $0x10] sm:$0xff]
    %v6528 = vld [vmem:[%s5 + $0x18] sm:$0xff]
    %v6529 = vld [vmem:[%s5 + $0x20] sm:$0xff]
    %v6530 = vld [vmem:[%s5 + $0x28] sm:$0xff]
    %v6531 = vld [vmem:[%s5 + $0x30] sm:$0xff]
    %v6532 = vld [vmem:[%s5 + $0x38] sm:$0xff]
    %v6533 = vld [vmem:[%s5 + $0x40] sm:$0xff]
    %v6534 = vld [vmem:[%s5 + $0x48] sm:$0xff]
    %v6535 = vld [vmem:[%s5 + $0x50] sm:$0xff]
    %v6536 = vld [vmem:[%s5 + $0x58] sm:$0xff]
    %v6537 = vld [vmem:[%s5 + $0x60] sm:$0xff]
    %v6538 = vld [vmem:[%s5 + $0x68] sm:$0xff]
    %v6539 = vld [vmem:[%s5 + $0x70] sm:$0xff]
    %v6540 = vld [vmem:[%s5 + $0x78] sm:$0xff]
    %v6541 = vld [vmem:[%s5 + $0x80] sm:$0xff]
    %v6542 = vld [vmem:[%s5 + $0x88] sm:$0xff]
    %v6543 = vld [vmem:[%s5 + $0x90] sm:$0xff]
    %v6544 = vld [vmem:[%s5 + $0x98] sm:$0xff]
    %v6545 = vld [vmem:[%s5 + $0xa0] sm:$0xff]
    %v6546 = vld [vmem:[%s5 + $0xa8] sm:$0xff]
    %v6547 = vld [vmem:[%s5 + $0xb0] sm:$0xff]
    %v6548 = vld [vmem:[%s5 + $0xb8] sm:$0xff]
    %v6549 = vld [vmem:[%s5 + $0xc0] sm:$0xff]
    %v6550 = vld [vmem:[%s5 + $0xc8] sm:$0xff]
    %v6551 = vld [vmem:[%s5 + $0xd0] sm:$0xff]
    %v6552 = vld [vmem:[%s5 + $0xd8] sm:$0xff]
    %v6553 = vld [vmem:[%s5 + $0xe0] sm:$0xff]
    %v6554 = vld [vmem:[%s5 + $0xe8] sm:$0xff]
    %v6555 = vld [vmem:[%s5 + $0xf0] sm:$0xff]
    %v6556 = vld [vmem:[%s5 + $0xf8] sm:$0xff]
    %v6557 = vld [vmem:[%s5 + $0x100] sm:$0xff]
    %v6558 = vld [vmem:[%s5 + $0x108] sm:$0xff]
    %v6559 = vld [vmem:[%s5 + $0x110] sm:$0xff]
    %v6560 = vld [vmem:[%s5 + $0x118] sm:$0xff]
    %v6561 = vld [vmem:[%s5 + $0x120] sm:$0xff]
    %v6562 = vld [vmem:[%s5 + $0x128] sm:$0xff]
    %v6563 = vld [vmem:[%s5 + $0x130] sm:$0xff]
    %v6564 = vld [vmem:[%s5 + $0x138] sm:$0xff]
    %v6565 = vld [vmem:[%s5 + $0x140] sm:$0xff]
    %v6566 = vld [vmem:[%s5 + $0x148] sm:$0xff]
    %v6567 = vld [vmem:[%s5 + $0x150] sm:$0xff]
    %v6568 = vld [vmem:[%s5 + $0x158] sm:$0xff]
    %v6569 = vld [vmem:[%s5 + $0x160] sm:$0xff]
    %v6570 = vld [vmem:[%s5 + $0x168] sm:$0xff]
    %v6571 = vld [vmem:[%s5 + $0x170] sm:$0xff]
    %v6572 = vld [vmem:[%s5 + $0x178] sm:$0xff]
    %v6573 = vld [vmem:[%s5 + $0x180] sm:$0xff]
    %v6574 = vld [vmem:[%s5 + $0x188] sm:$0xff]
    %v6575 = vld [vmem:[%s5 + $0x190] sm:$0xff]
    %v6576 = vld [vmem:[%s5 + $0x198] sm:$0xff]
    %v6577 = vld [vmem:[%s5 + $0x1a0] sm:$0xff]
    %v6578 = vld [vmem:[%s5 + $0x1a8] sm:$0xff]
    %v6579 = vld [vmem:[%s5 + $0x1b0] sm:$0xff]
    %v6580 = vld [vmem:[%s5 + $0x1b8] sm:$0xff]
    %v6581 = vld [vmem:[%s5 + $0x1c0] sm:$0xff]
    %v6582 = vld [vmem:[%s5 + $0x1c8] sm:$0xff]
    %v6583 = vld [vmem:[%s5 + $0x1d0] sm:$0xff]
    %v6584 = vld [vmem:[%s5 + $0x1d8] sm:$0xff]
    %v6585 = vld [vmem:[%s5 + $0x1e0] sm:$0xff]
    %v6586 = vld [vmem:[%s5 + $0x1e8] sm:$0xff]
    %v6587 = vld [vmem:[%s5 + $0x1f0] sm:$0xff]
    %v6588 = vld [vmem:[%s5 + $0x1f8] sm:$0xff]
    %v6589 = vld [vmem:[%s5 + $0x200] sm:$0xff]
    %v6590 = vld [vmem:[%s5 + $0x208] sm:$0xff]
    %v6591 = vld [vmem:[%s5 + $0x210] sm:$0xff]
    %v6592 = vld [vmem:[%s5 + $0x218] sm:$0xff]
    %v6593 = vld [vmem:[%s5 + $0x220] sm:$0xff]
    %v6594 = vld [vmem:[%s5 + $0x228] sm:$0xff]
    %v6595 = vld [vmem:[%s5 + $0x230] sm:$0xff]
    %v6596 = vld [vmem:[%s5 + $0x238] sm:$0xff]
    %v6597 = vld [vmem:[%s5 + $0x240] sm:$0xff]
    %v6598 = vld [vmem:[%s5 + $0x248] sm:$0xff]
    %v6599 = vld [vmem:[%s5 + $0x250] sm:$0xff]
    %v6600 = vld [vmem:[%s5 + $0x258] sm:$0xff]
    %v6601 = vld [vmem:[%s5 + $0x260] sm:$0xff]
    %v6602 = vld [vmem:[%s5 + $0x268] sm:$0xff]
    %v6603 = vld [vmem:[%s5 + $0x270] sm:$0xff]
    %v6604 = vld [vmem:[%s5 + $0x278] sm:$0xff]
    %v6605 = vld [vmem:[%s5 + $0x280] sm:$0xff]
    %v6606 = vld [vmem:[%s5 + $0x288] sm:$0xff]
    %v6607 = vld [vmem:[%s5 + $0x290] sm:$0xff]
    %v6608 = vld [vmem:[%s5 + $0x298] sm:$0xff]
    %v6609 = vld [vmem:[%s5 + $0x2a0] sm:$0xff]
    %v6610 = vld [vmem:[%s5 + $0x2a8] sm:$0xff]
    %v6611 = vld [vmem:[%s5 + $0x2b0] sm:$0xff]
    %v6612 = vld [vmem:[%s5 + $0x2b8] sm:$0xff]
    %v6613 = vld [vmem:[%s5 + $0x2c0] sm:$0xff]
    %v6614 = vld [vmem:[%s5 + $0x2c8] sm:$0xff]
    %v6615 = vld [vmem:[%s5 + $0x2d0] sm:$0xff]
    %v6616 = vld [vmem:[%s5 + $0x2d8] sm:$0xff]
    %v6617 = vld [vmem:[%s5 + $0x2e0] sm:$0xff]
    %v6618 = vld [vmem:[%s5 + $0x2e8] sm:$0xff]
    %v6619 = vld [vmem:[%s5 + $0x2f0] sm:$0xff]
    %v6620 = vld [vmem:[%s5 + $0x2f8] sm:$0xff]
    %v6621 = vld [vmem:[%s5 + $0x300] sm:$0xff]
    %v6622 = vld [vmem:[%s5 + $0x308] sm:$0xff]
    %v6623 = vld [vmem:[%s5 + $0x310] sm:$0xff]
    %v6624 = vld [vmem:[%s5 + $0x318] sm:$0xff]
    %v6625 = vld [vmem:[%s5 + $0x320] sm:$0xff]
    %v6626 = vld [vmem:[%s5 + $0x328] sm:$0xff]
    %v6627 = vld [vmem:[%s5 + $0x330] sm:$0xff]
    %v6628 = vld [vmem:[%s5 + $0x338] sm:$0xff]
    %v6629 = vld [vmem:[%s5 + $0x340] sm:$0xff]
    %v6630 = vld [vmem:[%s5 + $0x348] sm:$0xff]
    %v6631 = vld [vmem:[%s5 + $0x350] sm:$0xff]
    %v6632 = vld [vmem:[%s5 + $0x358] sm:$0xff]
    %v6633 = vld [vmem:[%s5 + $0x360] sm:$0xff]
    %v6634 = vld [vmem:[%s5 + $0x368] sm:$0xff]
    %v6635 = vld [vmem:[%s5 + $0x370] sm:$0xff]
    %v6636 = vld [vmem:[%s5 + $0x378] sm:$0xff]
    %v6637 = vld [vmem:[%s5 + $0x380] sm:$0xff]
    %v6638 = vld [vmem:[%s5 + $0x388] sm:$0xff]
    %v6639 = vld [vmem:[%s5 + $0x390] sm:$0xff]
    %v6640 = vld [vmem:[%s5 + $0x398] sm:$0xff]
    %v6641 = vld [vmem:[%s5 + $0x3a0] sm:$0xff]
    %v6642 = vld [vmem:[%s5 + $0x3a8] sm:$0xff]
    %v6643 = vld [vmem:[%s5 + $0x3b0] sm:$0xff]
    %v6644 = vld [vmem:[%s5 + $0x3b8] sm:$0xff]
    %v6645 = vld [vmem:[%s5 + $0x3c0] sm:$0xff]
    %v6646 = vld [vmem:[%s5 + $0x3c8] sm:$0xff]
    %v6647 = vld [vmem:[%s5 + $0x3d0] sm:$0xff]
    %v6648 = vld [vmem:[%s5 + $0x3d8] sm:$0xff]
    %v6649 = vld [vmem:[%s5 + $0x3e0] sm:$0xff]
    %v6650 = vld [vmem:[%s5 + $0x3e8] sm:$0xff]
    %v6651 = vld [vmem:[%s5 + $0x3f0] sm:$0xff]
    %v6652 = vld [vmem:[%s5 + $0x3f8] sm:$0xff]
    %v6653 = vld [vmem:[%s5 + $0x400] sm:$0xff]
    %v6654 = vld [vmem:[%s5 + $0x408] sm:$0xff]
    %v6655 = vld [vmem:[%s5 + $0x410] sm:$0xff]
    %v6656 = vld [vmem:[%s5 + $0x418] sm:$0xff]
    %v6657 = vld [vmem:[%s5 + $0x420] sm:$0xff]
    %v6658 = vld [vmem:[%s5 + $0x428] sm:$0xff]
    %v6659 = vld [vmem:[%s5 + $0x430] sm:$0xff]
    %v6660 = vld [vmem:[%s5 + $0x438] sm:$0xff]
    %v6661 = vld [vmem:[%s5 + $0x440] sm:$0xff]
    %v6662 = vld [vmem:[%s5 + $0x448] sm:$0xff]
    %v6663 = vld [vmem:[%s5 + $0x450] sm:$0xff]
    %v6664 = vld [vmem:[%s5 + $0x458] sm:$0xff]
    %v6665 = vld [vmem:[%s5 + $0x460] sm:$0xff]
    %v6666 = vld [vmem:[%s5 + $0x468] sm:$0xff]
    %v6667 = vld [vmem:[%s5 + $0x470] sm:$0xff]
    %v6668 = vld [vmem:[%s5 + $0x478] sm:$0xff]
    %v6669 = vld [vmem:[%s6] sm:$0x1]
    %v6671 = vperm.slane %v6669, 0
    %6673 = vmatpush.msra.mxu0 %v6540
    %6674 = vmatpush.msra.mxu0 %v6539
    %6675 = vmatpush.msra.mxu0 %v6538
    %6676 = vmatpush.msra.mxu0 %v6537
    %6677 = vmatpush.msra.mxu0 %v6536
    %6678 = vmatpush.msra.mxu0 %v6535
    %6679 = vmatpush.msra.mxu0 %v6534
    %6680 = vmatpush.msra.mxu0 %v6533
    %6681 = vmatpush.msra.mxu0 %v6532
    %6682 = vmatpush.msra.mxu0 %v6531
    %6683 = vmatpush.msra.mxu0 %v6530
    %6684 = vmatpush.msra.mxu0 %v6529
    %6685 = vmatpush.msra.mxu0 %v6528
    %6686 = vmatpush.msra.mxu0 %v6527
    %6687 = vmatpush.msra.mxu0 %v6526
    %6688 = vmatpush.msra.mxu0 %v6525
    %6689 = vmatmul.f32.gmra.mxu0 %v6370
    %v6690 = vpop.f32.mrf.mxu0
    %v6691 = vadd.f32 %v6671, %v6690
    %6692 = vdwg.mxu0
    %6693 = vmatpush.msra.mxu0 %v6556
    %6694 = vmatpush.msra.mxu0 %v6555
    %6695 = vmatpush.msra.mxu0 %v6554
    %6696 = vmatpush.msra.mxu0 %v6553
    %6697 = vmatpush.msra.mxu0 %v6552
    %6698 = vmatpush.msra.mxu0 %v6551
    %6699 = vmatpush.msra.mxu0 %v6550
    %6700 = vmatpush.msra.mxu0 %v6549
    %6701 = vmatpush.msra.mxu0 %v6548
    %6702 = vmatpush.msra.mxu0 %v6547
    %6703 = vmatpush.msra.mxu0 %v6546
    %6704 = vmatpush.msra.mxu0 %v6545
    %6705 = vmatpush.msra.mxu0 %v6544
    %6706 = vmatpush.msra.mxu0 %v6543
    %6707 = vmatpush.msra.mxu0 %v6542
    %6708 = vmatpush.msra.mxu0 %v6541
    %6709 = vmatmul.f32.gmra.mxu0 %v6373
    %v6710 = vpop.f32.mrf.mxu0
    %v6711 = vadd.f32 %v6691, %v6710
    %6712 = vdwg.mxu0
    %6713 = vmatpush.msra.mxu0 %v6572
    %6714 = vmatpush.msra.mxu0 %v6571
    %6715 = vmatpush.msra.mxu0 %v6570
    %6716 = vmatpush.msra.mxu0 %v6569
    %6717 = vmatpush.msra.mxu0 %v6568
    %6718 = vmatpush.msra.mxu0 %v6567
    %6719 = vmatpush.msra.mxu0 %v6566
    %6720 = vmatpush.msra.mxu0 %v6565
    %6721 = vmatpush.msra.mxu0 %v6564
    %6722 = vmatpush.msra.mxu0 %v6563
    %6723 = vmatpush.msra.mxu0 %v6562
    %6724 = vmatpush.msra.mxu0 %v6561
    %6725 = vmatpush.msra.mxu0 %v6560
    %6726 = vmatpush.msra.mxu0 %v6559
    %6727 = vmatpush.msra.mxu0 %v6558
    %6728 = vmatpush.msra.mxu0 %v6557
    %6729 = vmatmul.f32.gmra.mxu0 %v6376
    %v6730 = vpop.f32.mrf.mxu0
    %v6731 = vadd.f32 %v6711, %v6730
    %6732 = vdwg.mxu0
    %6733 = vmatpush.msra.mxu0 %v6588
    %6734 = vmatpush.msra.mxu0 %v6587
    %6735 = vmatpush.msra.mxu0 %v6586
    %6736 = vmatpush.msra.mxu0 %v6585
    %6737 = vmatpush.msra.mxu0 %v6584
    %6738 = vmatpush.msra.mxu0 %v6583
    %6739 = vmatpush.msra.mxu0 %v6582
    %6740 = vmatpush.msra.mxu0 %v6581
    %6741 = vmatpush.msra.mxu0 %v6580
    %6742 = vmatpush.msra.mxu0 %v6579
    %6743 = vmatpush.msra.mxu0 %v6578
    %6744 = vmatpush.msra.mxu0 %v6577
    %6745 = vmatpush.msra.mxu0 %v6576
    %6746 = vmatpush.msra.mxu0 %v6575
    %6747 = vmatpush.msra.mxu0 %v6574
    %6748 = vmatpush.msra.mxu0 %v6573
    %6749 = vmatmul.f32.gmra.mxu0 %v6379
    %v6750 = vpop.f32.mrf.mxu0
    %v6751 = vadd.f32 %v6731, %v6750
    %6752 = vdwg.mxu0
    %6753 = vmatpush.msra.mxu0 %v6604
    %6754 = vmatpush.msra.mxu0 %v6603
    %6755 = vmatpush.msra.mxu0 %v6602
    %6756 = vmatpush.msra.mxu0 %v6601
    %6757 = vmatpush.msra.mxu0 %v6600
    %6758 = vmatpush.msra.mxu0 %v6599
    %6759 = vmatpush.msra.mxu0 %v6598
    %6760 = vmatpush.msra.mxu0 %v6597
    %6761 = vmatpush.msra.mxu0 %v6596
    %6762 = vmatpush.msra.mxu0 %v6595
    %6763 = vmatpush.msra.mxu0 %v6594
    %6764 = vmatpush.msra.mxu0 %v6593
    %6765 = vmatpush.msra.mxu0 %v6592
    %6766 = vmatpush.msra.mxu0 %v6591
    %6767 = vmatpush.msra.mxu0 %v6590
    %6768 = vmatpush.msra.mxu0 %v6589
    %6769 = vmatmul.f32.gmra.mxu0 %v6486
    %v6770 = vpop.f32.mrf.mxu0
    %v6771 = vadd.f32 %v6751, %v6770
    %6772 = vdwg.mxu0
    %6773 = vmatpush.msra.mxu0 %v6620
    %6774 = vmatpush.msra.mxu0 %v6619
    %6775 = vmatpush.msra.mxu0 %v6618
    %6776 = vmatpush.msra.mxu0 %v6617
    %6777 = vmatpush.msra.mxu0 %v6616
    %6778 = vmatpush.msra.mxu0 %v6615
    %6779 = vmatpush.msra.mxu0 %v6614
    %6780 = vmatpush.msra.mxu0 %v6613
    %6781 = vmatpush.msra.mxu0 %v6612
    %6782 = vmatpush.msra.mxu0 %v6611
    %6783 = vmatpush.msra.mxu0 %v6610
    %6784 = vmatpush.msra.mxu0 %v6609
    %6785 = vmatpush.msra.mxu0 %v6608
    %6786 = vmatpush.msra.mxu0 %v6607
    %6787 = vmatpush.msra.mxu0 %v6606
    %6788 = vmatpush.msra.mxu0 %v6605
    %6789 = vmatmul.f32.gmra.mxu0 %v6489
    %v6790 = vpop.f32.mrf.mxu0
    %v6791 = vadd.f32 %v6771, %v6790
    %6792 = vdwg.mxu0
    %6793 = vmatpush.msra.mxu0 %v6636
    %6794 = vmatpush.msra.mxu0 %v6635
    %6795 = vmatpush.msra.mxu0 %v6634
    %6796 = vmatpush.msra.mxu0 %v6633
    %6797 = vmatpush.msra.mxu0 %v6632
    %6798 = vmatpush.msra.mxu0 %v6631
    %6799 = vmatpush.msra.mxu0 %v6630
    %6800 = vmatpush.msra.mxu0 %v6629
    %6801 = vmatpush.msra.mxu0 %v6628
    %6802 = vmatpush.msra.mxu0 %v6627
    %6803 = vmatpush.msra.mxu0 %v6626
    %6804 = vmatpush.msra.mxu0 %v6625
    %6805 = vmatpush.msra.mxu0 %v6624
    %6806 = vmatpush.msra.mxu0 %v6623
    %6807 = vmatpush.msra.mxu0 %v6622
    %6808 = vmatpush.msra.mxu0 %v6621
    %6809 = vmatmul.f32.gmra.mxu0 %v6492
    %v6810 = vpop.f32.mrf.mxu0
    %v6811 = vadd.f32 %v6791, %v6810
    %6812 = vdwg.mxu0
    %6813 = vmatpush.msra.mxu0 %v6652
    %6814 = vmatpush.msra.mxu0 %v6651
    %6815 = vmatpush.msra.mxu0 %v6650
    %6816 = vmatpush.msra.mxu0 %v6649
    %6817 = vmatpush.msra.mxu0 %v6648
    %6818 = vmatpush.msra.mxu0 %v6647
    %6819 = vmatpush.msra.mxu0 %v6646
    %6820 = vmatpush.msra.mxu0 %v6645
    %6821 = vmatpush.msra.mxu0 %v6644
    %6822 = vmatpush.msra.mxu0 %v6643
    %6823 = vmatpush.msra.mxu0 %v6642
    %6824 = vmatpush.msra.mxu0 %v6641
    %6825 = vmatpush.msra.mxu0 %v6640
    %6826 = vmatpush.msra.mxu0 %v6639
    %6827 = vmatpush.msra.mxu0 %v6638
    %6828 = vmatpush.msra.mxu0 %v6637
    %6829 = vmatmul.f32.gmra.mxu0 %v6495
    %v6830 = vpop.f32.mrf.mxu0
    %v6831 = vadd.f32 %v6811, %v6830
    %6832 = vdwg.mxu0
    %6833 = vmatpush.msra.mxu0 %v6668
    %6834 = vmatpush.msra.mxu0 %v6667
    %6835 = vmatpush.msra.mxu0 %v6666
    %6836 = vmatpush.msra.mxu0 %v6665
    %6837 = vmatpush.msra.mxu0 %v6664
    %6838 = vmatpush.msra.mxu0 %v6663
    %6839 = vmatpush.msra.mxu0 %v6662
    %6840 = vmatpush.msra.mxu0 %v6661
    %6841 = vmatpush.msra.mxu0 %v6660
    %6842 = vmatpush.msra.mxu0 %v6659
    %6843 = vmatpush.msra.mxu0 %v6658
    %6844 = vmatpush.msra.mxu0 %v6657
    %6845 = vmatpush.msra.mxu0 %v6656
    %6846 = vmatpush.msra.mxu0 %v6655
    %6847 = vmatpush.msra.mxu0 %v6654
    %6848 = vmatpush.msra.mxu0 %v6653
    %6849 = vmatmul.f32.gmra.mxu0 %v6524
    %v6850 = vpop.f32.mrf.mxu0
    %v6851 = vadd.f32 %v6831, %v6850
    %6852 = vdwg.mxu0
    %v6853 = vmax.f32 %v6851, 0.0
    %v6854 = vld [vmem:[%s7] sm:$0xff]
    %v6855 = vld [vmem:[%s7 + $0x8] sm:$0xff]
    %v6856 = vld [vmem:[%s7 + $0x10] sm:$0xff]
    %v6857 = vld [vmem:[%s7 + $0x18] sm:$0xff]
    %v6858 = vld [vmem:[%s7 + $0x20] sm:$0xff]
    %v6859 = vld [vmem:[%s7 + $0x28] sm:$0xff]
    %v6860 = vld [vmem:[%s7 + $0x30] sm:$0xff]
    %v6861 = vld [vmem:[%s7 + $0x38] sm:$0xff]
    %v6862 = vld [vmem:[%s7 + $0x40] sm:$0xff]
    %v6863 = vld [vmem:[%s7 + $0x48] sm:$0xff]
    %v6864 = vld [vmem:[%s7 + $0x50] sm:$0xff]
    %v6865 = vld [vmem:[%s7 + $0x58] sm:$0xff]
    %v6866 = vld [vmem:[%s7 + $0x60] sm:$0xff]
    %v6867 = vld [vmem:[%s7 + $0x68] sm:$0xff]
    %v6868 = vld [vmem:[%s7 + $0x70] sm:$0xff]
    %v6869 = vld [vmem:[%s8] sm:$0x1]
    %v6871 = vperm.slane %v6869, 0
    %vm6873 = vcmask 982016
    %v6875 = vsel %vm6873, %v6853, 0
    %6877 = vmatpush.msra.mxu0 0.0
    %6878 = vmatpush.msra.mxu0 %v6868
    %6879 = vmatpush.msra.mxu0 %v6867
    %6880 = vmatpush.msra.mxu0 %v6866
    %6881 = vmatpush.msra.mxu0 %v6865
    %6882 = vmatpush.msra.mxu0 %v6864
    %6883 = vmatpush.msra.mxu0 %v6863
    %6884 = vmatpush.msra.mxu0 %v6862
    %6885 = vmatpush.msra.mxu0 %v6861
    %6886 = vmatpush.msra.mxu0 %v6860
    %6887 = vmatpush.msra.mxu0 %v6859
    %6888 = vmatpush.msra.mxu0 %v6858
    %6889 = vmatpush.msra.mxu0 %v6857
    %6890 = vmatpush.msra.mxu0 %v6856
    %6891 = vmatpush.msra.mxu0 %v6855
    %6892 = vmatpush.msra.mxu0 %v6854
    %6893 = vmatmul.f32.gmra.mxu0 %v6875
    %v6894 = vpop.f32.mrf.mxu0
    %v6895 = vadd.f32 %v6871, %v6894
    %6896 = vdwg.mxu0
    %v6897 = vmax.f32 %v6895, 0.0
    %vm6898 = vcmask 680960
    %6899 = vst.msk [vmem:[#allocation4] sm:$0x3] %vm6898, %v6897
    %v6900 = vld [vmem:[%s9] sm:$0xff]
    %v6901 = vld [vmem:[%s9 + $0x8] sm:$0xff]
    %v6902 = vld [vmem:[%s9 + $0x10] sm:$0xff]
    %v6903 = vld [vmem:[%s9 + $0x18] sm:$0xff]
    %v6904 = vld [vmem:[%s9 + $0x20] sm:$0xff]
    %v6905 = vld [vmem:[%s9 + $0x28] sm:$0xff]
    %v6906 = vld [vmem:[%s9 + $0x30] sm:$0xff]
    %v6907 = vld [vmem:[%s9 + $0x38] sm:$0xff]
    %v6908 = vld [vmem:[%s9 + $0x40] sm:$0xff]
    %v6909 = vld [vmem:[%s9 + $0x48] sm:$0xff]
    %v6910 = vld [vmem:[%s9 + $0x50] sm:$0xf]
    %v6911 = vld [vmem:[%s10] sm:$0x1]
    %v6913 = vperm.slane %v6911, 0
    %vm6915 = vcmask 687104
    %v6917 = vsel %vm6915, %v6897, 0
    %vm6919 = vcmask 1043456
    %v6921 = vsel %vm6919, %v6910, 0
    %6923 = vmatpush.msra.mxu0 0.0
    %6924 = vmatpush.msra.mxu0 0.0
    %6925 = vmatpush.msra.mxu0 0.0
    %6926 = vmatpush.msra.mxu0 0.0
    %6927 = vmatpush.msra.mxu0 0.0
    %6928 = vmatpush.msra.mxu0 %v6921
    %6929 = vmatpush.msra.mxu0 %v6909
    %6930 = vmatpush.msra.mxu0 %v6908
    %6931 = vmatpush.msra.mxu0 %v6907
    %6932 = vmatpush.msra.mxu0 %v6906
    %6933 = vmatpush.msra.mxu0 %v6905
    %6934 = vmatpush.msra.mxu0 %v6904
    %6935 = vmatpush.msra.mxu0 %v6903
    %6936 = vmatpush.msra.mxu0 %v6902
    %6937 = vmatpush.msra.mxu0 %v6901
    %6938 = vmatpush.msra.mxu0 %v6900
    %6939 = vmatmul.f32.gmra.mxu0 %v6917
    %v6940 = vpop.f32.mrf.mxu0
    %v6941 = vadd.f32 %v6913, %v6940
    %6942 = vdwg.mxu0
    %vm6943 = vcmask 74752
    %6944 = vst.msk [vmem:[#allocation2] sm:$0x3] %vm6943, %v6941
    // Predicated region
    $region46: #{cnn_forward.1} parent=1 // pred_check
      _
    $region47: #{cnn_forward.1} parent=1 // pred_check_branch
      %6946 = sbr.rel (0) target = $region49
    $region48: #{cnn_forward.1} parent=1 // pred_region
      %6948 = vsyncadd [#allocation3], 0
      %s6950 = sshll.u32 [#allocation2], 4
      %s6951 = int_to_ptr.vmem [resolvable:$true] %s6950
      %s6952 = sshll.u32 %s11, 4
      %s6953 = int_to_ptr.hbm [resolvable:$true] %s6952
      %6955 = dma.vmem_to_hbm [thread:$0]  %s6951, 32, %s6953, [#allocation3]
    $region49: #{cnn_forward.1} parent=1 // pred_fallthru
      _
    // Predicated region
    $region50: #{cnn_forward.1} parent=1 // pred_check
      _
    $region51: #{cnn_forward.1} parent=1 // pred_check_branch
      %6957 = sbr.rel (0) target = $region53
    $region52: #{cnn_forward.1} parent=1 // pred_region
      %6959 = vsyncadd [#allocation5], 0
      %s6961 = sshll.u32 [#allocation4], 4
      %s6962 = int_to_ptr.vmem [resolvable:$true] %s6961
      %s6963 = sshll.u32 %s12, 4
      %s6964 = int_to_ptr.hbm [resolvable:$true] %s6963
      %6966 = dma.vmem_to_hbm [thread:$0]  %s6962, 32, %s6964, [#allocation5]
    $region53: #{cnn_forward.1} parent=1 // pred_fallthru
      _
    // Predicated region
    $region54: #{cnn_forward.1} parent=1 // pred_check
      _
    $region55: #{cnn_forward.1} parent=1 // pred_check_branch
      %6968 = sbr.rel (0) target = $region57
    $region56: #{cnn_forward.1} parent=1 // pred_region
      %6970 = dma.done [#allocation3], 32
    $region57: #{cnn_forward.1} parent=1 // pred_fallthru
      _
    // Predicated region
    $region58: #{cnn_forward.1} parent=1 // pred_check
      _
    $region59: #{cnn_forward.1} parent=1 // pred_check_branch
      %6972 = sbr.rel (0) target = $region61
    $region60: #{cnn_forward.1} parent=1 // pred_region
      %6974 = dma.done [#allocation5], 32
    $region61: #{cnn_forward.1} parent=1 // pred_fallthru
      _
    %6975 = vsyncpa [#allocation3], 1
    %6976 = vsyncpa [#allocation5], 1

</llo_original>
